<compile_context>
chip_gen: v7x
topology: tpu7x:2x2x1
jax: 0.10.0
libtpu: 0.0.40
codegen_flags: <defaults>
</compile_context>

<pallas_src>
import math

import jax
import jax.numpy as jnp
from jax import lax
from jax.experimental import pallas as pl
from jax.experimental.pallas import tpu as pltpu

# ----------------------------- configuration --------------------------------
LABEL_LIST = ["O", "B-PER", "I-PER", "B-LOC", "I-LOC", "B-ORG", "I-ORG", "B-MISC"]
NUM_LABELS = len(LABEL_LIST)           # T = 8
PAD_LABEL_ID = LABEL_LIST.index("O")   # 0
IGNORE_INDEX = -100                    # torch.nn.CrossEntropyLoss().ignore_index

B = 2        # batch
S = 8        # sequence length
BS = B * S   # folded batch*seq rows
H = 32       # hidden size
NH = 4       # attention heads
DH = H // NH # head dim
FF = 64      # FFN intermediate
VOCAB = 100
VOCAB_PAD = 128                        # padded word-table rows (aligned one-hot matmul)
NUM_LAYERS = 2
LN_EPS = 1e-12

OUT_ROWS = 8          # lane-dense output slab: [8, 128]
OUT_LANES = 128

# ---- embedding slab row offsets (width H) ----
E_WORD = 0
E_POS = VOCAB_PAD                      # 128  (positions pre-tiled for folded batch)
E_TYPE = E_POS + BS                    # 144
E_LNG = E_TYPE + 2                     # 146
E_LNB = E_LNG + 1                      # 147
EMB_ROWS = E_LNB + 1                   # 148

# ---- encoder slab row offsets (per layer, width ENC_W = 3H) ----
ENC_W = 3 * H                          # 96
R_WQKV = 0                             # [H, 3H]
R_WO = R_WQKV + H                      # 32   [H, H]
R_W1 = R_WO + H                        # 64   [H, FF]
R_W2 = R_W1 + H                        # 96   [FF, H]
R_BQKV = R_W2 + FF                     # 160
R_BO = R_BQKV + 1                      # 161
R_LN1G = R_BO + 1                      # 162
R_LN1B = R_LN1G + 1                    # 163
R_B1 = R_LN1B + 1                      # 164
R_B2 = R_B1 + 1                        # 165
R_LN2G = R_B2 + 1                      # 166
R_LN2B = R_LN2G + 1                    # 167
ENC_ROWS = R_LN2B + 1                  # 168

# ---- classifier + CRF slab row offsets (width NUM_LABELS) ----
HD_WC = 0                              # [H, T]
HD_TRANS = HD_WC + H                   # 32   [T, T]
HD_TRANST = HD_TRANS + NUM_LABELS      # 40   [T, T]
HD_BC = HD_TRANST + NUM_LABELS         # 48
HD_START = HD_BC + 1                   # 49
HD_END = HD_START + 1                  # 50
HEAD_ROWS = HD_END + 1                 # 51


# ----------------------------- small helpers --------------------------------
def _layernorm(x, g, b):
    mu = jnp.mean(x, axis=-1, keepdims=True)
    var = jnp.mean((x - mu) ** 2, axis=-1, keepdims=True)
    return (x - mu) * lax.rsqrt(var + LN_EPS) * g + b


def _sum_all(x):
    """Reduce a 2-D array to a [1, 1] value (lane reduce then sublane reduce)."""
    return jnp.sum(jnp.sum(x, axis=-1, keepdims=True), axis=0, keepdims=True)


# ======================= fused forward kernel ================================
def _fused_kernel(tok_ref, mask_ref, emb_ref, enc_ref, head_ref, out_ref):
    T = NUM_LABELS
    ids = tok_ref[:, 0:1]                 # [BS, 1] int32 token ids
    tti = tok_ref[:, 1:2]                 # [BS, 1] int32 token-type ids
    labels_col = tok_ref[:, 2:3]          # [BS, 1] int32 gold labels (pad-fixed)
    add_mask = mask_ref[...]              # [NH*BS, NH*BS] block-diag additive mask

    # ---------------- embeddings (one-hot gather on MXU) + LayerNorm --------
    word_emb = emb_ref[E_WORD:E_WORD + VOCAB_PAD, :]    # [128, H]
    pos_emb = emb_ref[E_POS:E_POS + BS, :]              # [BS, H] (pre-tiled)
    type0 = emb_ref[E_TYPE:E_TYPE + 1, :]
    type1 = emb_ref[E_TYPE + 1:E_TYPE + 2, :]
    emb_ln_g = emb_ref[E_LNG:E_LNG + 1, :]
    emb_ln_b = emb_ref[E_LNB:E_LNB + 1, :]

    oh_word = (lax.broadcasted_iota(jnp.int32, (BS, VOCAB_PAD), 1) == ids).astype(jnp.float32)
    x = jnp.dot(oh_word, word_emb, preferred_element_type=jnp.float32)
    x = x + pos_emb + jnp.where(tti == 0, type0, type1)
    x = _layernorm(x, emb_ln_g, emb_ln_b)                # [BS, H]

    inv_sqrt_dh = 1.0 / math.sqrt(DH)

    # ---------------- BERT encoder stack (static unroll over layers) --------
    for l in range(NUM_LAYERS):
        wqkv = enc_ref[l, R_WQKV:R_WQKV + H, :]          # [H, 3H]
        bqkv = enc_ref[l, R_BQKV:R_BQKV + 1, :]          # [1, 3H]
        wo = enc_ref[l, R_WO:R_WO + H, 0:H]              # [H, H]
        bo = enc_ref[l, R_BO:R_BO + 1, 0:H]
        ln1g = enc_ref[l, R_LN1G:R_LN1G + 1, 0:H]
        ln1b = enc_ref[l, R_LN1B:R_LN1B + 1, 0:H]
        w1 = enc_ref[l, R_W1:R_W1 + H, 0:FF]             # [H, FF]
        b1 = enc_ref[l, R_B1:R_B1 + 1, 0:FF]
        w2 = enc_ref[l, R_W2:R_W2 + FF, 0:H]             # [FF, H]
        b2 = enc_ref[l, R_B2:R_B2 + 1, 0:H]
        ln2g = enc_ref[l, R_LN2G:R_LN2G + 1, 0:H]
        ln2b = enc_ref[l, R_LN2B:R_LN2B + 1, 0:H]

        # fused QKV projection: one [BS,H] x [H,3H] MXU push
        qkv = jnp.dot(x, wqkv, preferred_element_type=jnp.float32) + bqkv   # [BS, 3H]

        # stack heads along ROWS -> 2 plain 2-D matmuls for all heads at once;
        # the block-diagonal additive mask kills cross-head / cross-batch terms.
        q_big = jnp.concatenate([qkv[:, h * DH:(h + 1) * DH] for h in range(NH)], axis=0)
        k_big = jnp.concatenate([qkv[:, H + h * DH:H + (h + 1) * DH] for h in range(NH)], axis=0)
        v_big = jnp.concatenate([qkv[:, 2 * H + h * DH:2 * H + (h + 1) * DH] for h in range(NH)], axis=0)

        scores = lax.dot_general(q_big, k_big, (((1,), (1,)), ((), ())),
                                 preferred_element_type=jnp.float32)        # [NH*BS, NH*BS]
        scores = scores * inv_sqrt_dh + add_mask
        mx = jnp.max(scores, axis=-1, keepdims=True)
        e = jnp.exp(scores - mx)
        p = e * pl.reciprocal(jnp.sum(e, axis=-1, keepdims=True), approx=True)
        ctx_big = jnp.dot(p, v_big, preferred_element_type=jnp.float32)     # [NH*BS, DH]
        ctx = jnp.concatenate([ctx_big[h * BS:(h + 1) * BS, :] for h in range(NH)], axis=-1)

        attn = jnp.dot(ctx, wo, preferred_element_type=jnp.float32) + bo
        h1 = _layernorm(x + attn, ln1g, ln1b)

        ffn = jnp.dot(h1, w1, preferred_element_type=jnp.float32) + b1
        # TODO(synk): torch/HF BERT uses exact erf-GELU; tanh approximation used here
        # (exact-erf not guaranteed to lower in Mosaic) -> tiny numeric drift.
        ffn = jax.nn.gelu(ffn)
        ffn = jnp.dot(ffn, w2, preferred_element_type=jnp.float32) + b2
        x = _layernorm(h1 + ffn, ln2g, ln2b)

    # ---------------- token classifier ---------------------------------------
    wc = head_ref[HD_WC:HD_WC + H, :]
    bc = head_ref[HD_BC:HD_BC + 1, :]
    start = head_ref[HD_START:HD_START + 1, :]           # [1, T]
    end = head_ref[HD_END:HD_END + 1, :]                 # [1, T]
    trans = head_ref[HD_TRANS:HD_TRANS + T, :]           # [T, T]
    transT = head_ref[HD_TRANST:HD_TRANST + T, :]        # [T, T] (precomputed transpose)

    logits = jnp.dot(x, wc, preferred_element_type=jnp.float32) + bc        # [BS, T]

    # per-timestep emissions for the folded batch: em[t] is [B, T]
    em = [jnp.concatenate([logits[b * S + t: b * S + t + 1, :] for b in range(B)], axis=0)
          for t in range(S)]

    # ---------------- CRF numerator (gold path score) — vectorized ----------
    oh_full = (lax.broadcasted_iota(jnp.int32, (BS, T), 1) == labels_col).astype(jnp.float32)
    em_rows = jnp.sum(oh_full * logits, axis=-1, keepdims=True)             # [BS, 1]
    row_trans = jnp.dot(oh_full[:BS - 1, :], trans, preferred_element_type=jnp.float32)
    pair = jnp.sum(row_trans * oh_full[1:BS, :], axis=-1, keepdims=True)    # [BS-1, 1]
    num_list = []
    for b in range(B):
        nb = jnp.sum(em_rows[b * S:(b + 1) * S], axis=0, keepdims=True)     # emissions
        nb = nb + jnp.sum(pair[b * S:b * S + S - 1], axis=0, keepdims=True)  # transitions (in-batch only)
        nb = nb + _sum_all(oh_full[b * S:b * S + 1, :] * start)             # start score
        nb = nb + _sum_all(oh_full[b * S + S - 1:b * S + S, :] * end)       # end score
        num_list.append(nb)
    nums = jnp.concatenate(num_list, axis=0)                                # [B, 1]

    # ---------------- CRF partition function (forward algo, folded batch) ---
    alpha = start + em[0]                                                   # [B, T]
    for t in range(1, S):
        arr = alpha[:, None, :] + transT[None, :, :]                        # [B, Tnext, Tprev]
        m = jnp.max(arr, axis=-1, keepdims=True)
        alpha = m[..., 0] + jnp.log(jnp.sum(jnp.exp(arr - m), axis=-1)) + em[t]
    alpha = alpha + end
    m = jnp.max(alpha, axis=-1, keepdims=True)
    denom = m + jnp.log(jnp.sum(jnp.exp(alpha - m), axis=-1, keepdims=True))  # [B, 1]

    loss_total = jnp.sum(denom - nums, axis=0, keepdims=True)               # [1, 1]

    # ---------------- Viterbi decode (folded batch, unrolled) ----------------
    score = start + em[0]                                                   # [B, T]
    iota3 = lax.broadcasted_iota(jnp.int32, (B, T, T), 2)                   # hoisted
    history = []                                                            # per-step [B, T] int32
    for t in range(1, S):
        arr = score[:, None, :] + transT[None, :, :]                        # [B, Tnext, Tprev]
        m = jnp.max(arr, axis=-1, keepdims=True)
        idx = jnp.min(jnp.where(arr == m, iota3, T), axis=-1)               # first argmax
        history.append(jnp.minimum(idx, T - 1))
        score = m[..., 0] + em[t]
    score = score + end

    m2 = jnp.max(score, axis=-1, keepdims=True)
    iota2 = lax.broadcasted_iota(jnp.int32, (B, T), 1)
    cur = jnp.min(jnp.where(score == m2, iota2, T), axis=-1, keepdims=True)
    cur = jnp.minimum(cur, T - 1)                                           # [B, 1]

    col128 = lax.broadcasted_iota(jnp.int32, (B, OUT_LANES), 1)
    tags_rows = jnp.where(col128 == (S - 1), cur.astype(jnp.float32), 0.0)  # [B, 128]
    iota_t = lax.broadcasted_iota(jnp.int32, (B, T), 1)
    for t in range(S - 1, 0, -1):
        hist_t = history[t - 1]                                             # [B, T]
        prev = jnp.sum(jnp.where(iota_t == cur, hist_t, 0), axis=-1, keepdims=True)
        tags_rows = jnp.where(col128 == (t - 1), prev.astype(jnp.float32), tags_rows)
        cur = prev

    # ---------------- pack loss + tags into one lane-dense slab -------------
    row_i = lax.broadcasted_iota(jnp.int32, (OUT_ROWS, OUT_LANES), 0)
    col_i = lax.broadcasted_iota(jnp.int32, (OUT_ROWS, OUT_LANES), 1)
    packed = jnp.where((row_i == 0) & (col_i == 0), loss_total, 0.0)
    for b in range(B):
        packed = jnp.where(row_i == 1 + b, tags_rows[b:b + 1, :], packed)
    out_ref[...] = packed


def fused_forward_pallas(tok, add_mask, emb_slab, enc_slab, head_slab):
    def full_spec(shape):
        nd = len(shape)
        return pl.BlockSpec(tuple(shape), lambda i, _nd=nd: (0,) * _nd)

    args = (tok, add_mask, emb_slab, enc_slab, head_slab)
    return pl.pallas_call(
        _fused_kernel,
        grid=(1,),
        in_specs=[full_spec(a.shape) for a in args],
        out_specs=full_spec((OUT_ROWS, OUT_LANES)),
        out_shape=jax.ShapeDtypeStruct((OUT_ROWS, OUT_LANES), jnp.float32),
        compiler_params=pltpu.CompilerParams(dimension_semantics=("arbitrary",)),
    )(*args)


# ======================= parameter construction ==============================
def init_params(key):
    # TODO(synk): pretrained KoBERT embedding/encoder weights are synthetic here.
    ks = iter(jax.random.split(key, 32))
    n = lambda shape, s=0.02: jax.random.normal(next(ks), shape, jnp.float32) * s
    u = lambda shape: jax.random.uniform(next(ks), shape, jnp.float32, -0.1, 0.1)

    # --- embedding slab (width H) ---
    word_emb = n((VOCAB, H))
    pos_emb = n((S, H))
    type_emb = n((2, H))
    emb_slab = jnp.concatenate([
        word_emb,
        jnp.zeros((VOCAB_PAD - VOCAB, H), jnp.float32),   # pad word table to 128 rows
        jnp.tile(pos_emb, (B, 1)),                        # positions pre-tiled for folded batch
        type_emb,
        jnp.ones((1, H), jnp.float32),                    # emb LN gamma
        jnp.zeros((1, H), jnp.float32),                   # emb LN beta
    ], axis=0)                                            # [EMB_ROWS, H]
    assert emb_slab.shape == (EMB_ROWS, H)

    # --- encoder slab (per layer, width 3H) ---
    def padw(a):
        return jnp.pad(a, ((0, 0), (0, ENC_W - a.shape[-1])))

    layer_slabs = []
    for _ in range(NUM_LAYERS):
        wq, wk, wv = n((H, H)), n((H, H)), n((H, H))
        wqkv = jnp.concatenate([wq, wk, wv], axis=1)      # [H, 3H]
        wo, w1, w2 = n((H, H)), n((H, FF)), n((FF, H))
        zeros_h = jnp.zeros((1, H), jnp.float32)
        ones_h = jnp.ones((1, H), jnp.float32)
        rows = [wqkv,                                     # R_WQKV
                padw(wo),                                 # R_WO
                padw(w1),                                 # R_W1
                padw(w2),                                 # R_W2
                jnp.zeros((1, ENC_W), jnp.float32),       # R_BQKV
                padw(zeros_h),                            # R_BO
                padw(ones_h),                             # R_LN1G
                padw(zeros_h),                            # R_LN1B
                padw(jnp.zeros((1, FF), jnp.float32)),    # R_B1
                padw(zeros_h),                            # R_B2
                padw(ones_h),                             # R_LN2G
                padw(zeros_h)]                            # R_LN2B
        layer_slabs.append(jnp.concatenate(rows, axis=0))
    enc_slab = jnp.stack(layer_slabs, axis=0)             # [L, ENC_ROWS, ENC_W]
    assert enc_slab.shape == (NUM_LAYERS, ENC_ROWS, ENC_W)

    # --- classifier + CRF slab (width NUM_LABELS); torchcrf init: U(-0.1, 0.1) ---
    wc = n((H, NUM_LABELS))
    bc = jnp.zeros((1, NUM_LABELS), jnp.float32)
    crf_start = u((1, NUM_LABELS))
    crf_end = u((1, NUM_LABELS))
    crf_trans = u((NUM_LABELS, NUM_LABELS))
    head_slab = jnp.concatenate([wc, crf_trans, crf_trans.T, bc, crf_start, crf_end], axis=0)
    assert head_slab.shape == (HEAD_ROWS, NUM_LABELS)

    return {"emb_slab": emb_slab, "enc_slab": enc_slab, "head_slab": head_slab}


# ======================= full forward pass ===================================
def kobert_crf_forward(params, input_ids, attention_mask, labels, token_type_ids):
    # labels[labels == ignore_index] = pad_token_id
    labels_fixed = jnp.where(labels == IGNORE_INDEX, PAD_LABEL_ID, labels).astype(jnp.int32)

    # token / type / label ids packed into one small int32 slab (folded batch rows)
    tok = jnp.stack([input_ids.reshape(-1).astype(jnp.int32),
                     token_type_ids.reshape(-1).astype(jnp.int32),
                     labels_fixed.reshape(-1)], axis=-1)                    # [BS, 3]

    # additive attention mask, block-diagonal over batch AND head for the
    # folded [NH*BS, NH*BS] score matrix (key padding from attention_mask).
    pos = jnp.arange(NH * BS, dtype=jnp.int32)
    head_id = pos // BS
    batch_id = (pos % BS) // S
    key_ok = jnp.tile(attention_mask.reshape(-1) > 0, (NH,))
    allowed = ((head_id[:, None] == head_id[None, :])
               & (batch_id[:, None] == batch_id[None, :])
               & key_ok[None, :])
    add_mask = jnp.where(allowed, 0.0, -1e9).astype(jnp.float32)            # [NH*BS, NH*BS]

    # --- ONE fused Pallas kernel: embeddings + encoder + classifier + CRF + Viterbi
    out = fused_forward_pallas(tok, add_mask,
                               params["emb_slab"], params["enc_slab"], params["head_slab"])

    loss = out[0, 0]                      # torchcrf reduction='sum'; loss = -llh
    tags = out[1:1 + B, :S]               # [B, S] float (torch.Tensor(tags))
    return loss, tags


# ======================= driver ==============================================
if __name__ == "__main__":
    key = jax.random.PRNGKey(0)
    kp, k1, k2 = jax.random.split(key, 3)

    params = init_params(kp)

    input_ids = jax.random.randint(k1, (B, S), 0, VOCAB, dtype=jnp.int32)
    attention_mask = jnp.array([[1] * S, [1] * (S - 2) + [0] * 2], dtype=jnp.int32)
    token_type_ids = jnp.zeros((B, S), jnp.int32)
    labels = jax.random.randint(k2, (B, S), 0, NUM_LABELS, dtype=jnp.int32)
    labels = jnp.where(attention_mask == 1, labels, IGNORE_INDEX)

    fwd = jax.jit(kobert_crf_forward)
    loss, tags = fwd(params, input_ids, attention_mask, labels, token_type_ids)
    loss = jax.block_until_ready(loss)
    tags = jax.block_until_ready(tags)

    assert loss.shape == () and loss.dtype == jnp.float32
    assert tags.shape == (B, S) and tags.dtype == jnp.float32
    assert bool(jnp.isfinite(loss))
    assert bool(jnp.all((tags >= 0) & (tags < NUM_LABELS)))
    print("KERNEL_OK")
</pallas_src>

<mosaic_0001>
module attributes {stable_mosaic.version = 11 : i64} {
  func.func @_fused_kernel(%arg0: i32, %arg1: memref<16x3xi32, #tpu.memory_space<vmem>>, %arg2: memref<64x64xf32, #tpu.memory_space<vmem>>, %arg3: memref<148x32xf32, #tpu.memory_space<vmem>>, %arg4: memref<2x168x96xf32, #tpu.memory_space<vmem>>, %arg5: memref<51x8xf32, #tpu.memory_space<vmem>>, %arg6: memref<8x128xf32, #tpu.memory_space<vmem>>) attributes {dimension_semantics = [#tpu.dimension_semantics<arbitrary>], iteration_bounds = array<i64: 1>, scalar_prefetch = 0 : i64, scratch_operands = 0 : i64, tpu.core_type = #tpu.core_type<tc>, window_params = [{pipeline_mode = #tpu.pipeline_mode<synchronous>, transform_indices = @transform_0, window_bounds = array<i64: 16, 3>}, {pipeline_mode = #tpu.pipeline_mode<synchronous>, transform_indices = @transform_1, window_bounds = array<i64: 64, 64>}, {pipeline_mode = #tpu.pipeline_mode<synchronous>, transform_indices = @transform_2, window_bounds = array<i64: 148, 32>}, {pipeline_mode = #tpu.pipeline_mode<synchronous>, transform_indices = @transform_3, window_bounds = array<i64: 2, 168, 96>}, {pipeline_mode = #tpu.pipeline_mode<synchronous>, transform_indices = @transform_4, window_bounds = array<i64: 51, 8>}, {pipeline_mode = #tpu.pipeline_mode<synchronous>, transform_indices = @transform_5, window_bounds = array<i64: 8, 128>}]} {
    %c0 = arith.constant 0 : index
    %c0_0 = arith.constant 0 : index
    %0 = vector.load %arg1[%c0, %c0_0] : memref<16x3xi32, #tpu.memory_space<vmem>>, vector<16x1xi32>
    %c0_1 = arith.constant 0 : index
    %c1 = arith.constant 1 : index
    %1 = vector.load %arg1[%c0_1, %c1] : memref<16x3xi32, #tpu.memory_space<vmem>>, vector<16x1xi32>
    %c0_2 = arith.constant 0 : index
    %c2 = arith.constant 2 : index
    %2 = vector.load %arg1[%c0_2, %c2] : memref<16x3xi32, #tpu.memory_space<vmem>>, vector<16x1xi32>
    %c0_3 = arith.constant 0 : index
    %c0_4 = arith.constant 0 : index
    %3 = vector.load %arg2[%c0_3, %c0_4] : memref<64x64xf32, #tpu.memory_space<vmem>>, vector<64x64xf32>
    %c0_5 = arith.constant 0 : index
    %c0_6 = arith.constant 0 : index
    %4 = vector.load %arg3[%c0_5, %c0_6] : memref<148x32xf32, #tpu.memory_space<vmem>>, vector<128x32xf32>
    %c128 = arith.constant 128 : index
    %c0_7 = arith.constant 0 : index
    %5 = vector.load %arg3[%c128, %c0_7] : memref<148x32xf32, #tpu.memory_space<vmem>>, vector<16x32xf32>
    %c144 = arith.constant 144 : index
    %c0_8 = arith.constant 0 : index
    %6 = vector.load %arg3[%c144, %c0_8] : memref<148x32xf32, #tpu.memory_space<vmem>>, vector<1x32xf32>
    %c145 = arith.constant 145 : index
    %c0_9 = arith.constant 0 : index
    %7 = vector.load %arg3[%c145, %c0_9] : memref<148x32xf32, #tpu.memory_space<vmem>>, vector<1x32xf32>
    %c146 = arith.constant 146 : index
    %c0_10 = arith.constant 0 : index
    %8 = vector.load %arg3[%c146, %c0_10] : memref<148x32xf32, #tpu.memory_space<vmem>>, vector<1x32xf32>
    %c147 = arith.constant 147 : index
    %c0_11 = arith.constant 0 : index
    %9 = vector.load %arg3[%c147, %c0_11] : memref<148x32xf32, #tpu.memory_space<vmem>>, vector<1x32xf32>
    %10 = tpu.iota {dimensions = array<i32: 1>} : vector<16x128xi32>
    %11 = vector.broadcast %0 : vector<16x1xi32> to vector<16x128xi32>
    %12 = arith.cmpi eq, %10, %11 : vector<16x128xi32>
    %13 = arith.extui %12 : vector<16x128xi1> to vector<16x128xi32>
    %14 = arith.sitofp %13 : vector<16x128xi32> to vector<16x128xf32>
    %cst = arith.constant dense<0.000000e+00> : vector<16x32xf32>
    %15 = tpu.matmul %14, %4, %cst {dimension_numbers = #tpu.dot_dimension_numbers<[1], [0], [0], [1], [0, 0, 1, 1], [], []>} : vector<16x128xf32>, vector<128x32xf32>, vector<16x32xf32> -> vector<16x32xf32>
    %16 = arith.addf %15, %5 : vector<16x32xf32>
    %c0_i32 = arith.constant 0 : i32
    %17 = vector.broadcast %c0_i32 : i32 to vector<16x1xi32>
    %18 = arith.cmpi eq, %1, %17 : vector<16x1xi32>
    %19 = vector.shape_cast %18 : vector<16x1xi1> to vector<16x1xi1>
    %20 = vector.broadcast %19 : vector<16x1xi1> to vector<16x32xi1>
    %21 = vector.shape_cast %6 : vector<1x32xf32> to vector<1x32xf32>
    %22 = vector.broadcast %21 : vector<1x32xf32> to vector<16x32xf32>
    %23 = vector.shape_cast %7 : vector<1x32xf32> to vector<1x32xf32>
    %24 = vector.broadcast %23 : vector<1x32xf32> to vector<16x32xf32>
    %25 = arith.select %20, %22, %24 : vector<16x32xi1>, vector<16x32xf32>
    %26 = arith.addf %16, %25 : vector<16x32xf32>
    %cst_12 = arith.constant dense<0.000000e+00> : vector<16xf32>
    %27 = vector.multi_reduction <add>, %26, %cst_12 [1] : vector<16x32xf32> to vector<16xf32>
    %28 = vector.shape_cast %27 : vector<16xf32> to vector<16x1xf32>
    %cst_13 = arith.constant 3.200000e+01 : f32
    %29 = vector.broadcast %cst_13 : f32 to vector<16x1xf32>
    %30 = arith.divf %28, %29 : vector<16x1xf32>
    %31 = vector.broadcast %30 : vector<16x1xf32> to vector<16x32xf32>
    %32 = arith.subf %26, %31 : vector<16x32xf32>
    %33 = arith.mulf %32, %32 : vector<16x32xf32>
    %cst_14 = arith.constant dense<0.000000e+00> : vector<16xf32>
    %34 = vector.multi_reduction <add>, %33, %cst_14 [1] : vector<16x32xf32> to vector<16xf32>
    %35 = vector.shape_cast %34 : vector<16xf32> to vector<16x1xf32>
    %cst_15 = arith.constant 3.200000e+01 : f32
    %36 = vector.broadcast %cst_15 : f32 to vector<16x1xf32>
    %37 = arith.divf %35, %36 : vector<16x1xf32>
    %38 = vector.broadcast %30 : vector<16x1xf32> to vector<16x32xf32>
    %39 = arith.subf %26, %38 : vector<16x32xf32>
    %cst_16 = arith.constant 9.99999996E-13 : f32
    %40 = vector.broadcast %cst_16 : f32 to vector<16x1xf32>
    %41 = arith.addf %37, %40 : vector<16x1xf32>
    %42 = math.rsqrt %41 : vector<16x1xf32>
    %43 = vector.broadcast %42 : vector<16x1xf32> to vector<16x32xf32>
    %44 = arith.mulf %39, %43 : vector<16x32xf32>
    %45 = vector.broadcast %8 : vector<1x32xf32> to vector<16x32xf32>
    %46 = arith.mulf %44, %45 : vector<16x32xf32>
    %47 = vector.broadcast %9 : vector<1x32xf32> to vector<16x32xf32>
    %48 = arith.addf %46, %47 : vector<16x32xf32>
    %c0_17 = arith.constant 0 : index
    %c0_18 = arith.constant 0 : index
    %c0_19 = arith.constant 0 : index
    %49 = vector.load %arg4[%c0_17, %c0_18, %c0_19] : memref<2x168x96xf32, #tpu.memory_space<vmem>>, vector<1x32x96xf32>
    %50 = vector.shape_cast %49 : vector<1x32x96xf32> to vector<32x96xf32>
    %c0_20 = arith.constant 0 : index
    %c160 = arith.constant 160 : index
    %c0_21 = arith.constant 0 : index
    %51 = vector.load %arg4[%c0_20, %c160, %c0_21] : memref<2x168x96xf32, #tpu.memory_space<vmem>>, vector<1x1x96xf32>
    %52 = vector.shape_cast %51 : vector<1x1x96xf32> to vector<1x96xf32>
    %c0_22 = arith.constant 0 : index
    %c32 = arith.constant 32 : index
    %c0_23 = arith.constant 0 : index
    %53 = vector.load %arg4[%c0_22, %c32, %c0_23] : memref<2x168x96xf32, #tpu.memory_space<vmem>>, vector<1x32x32xf32>
    %54 = vector.shape_cast %53 : vector<1x32x32xf32> to vector<32x32xf32>
    %c0_24 = arith.constant 0 : index
    %c161 = arith.constant 161 : index
    %c0_25 = arith.constant 0 : index
    %55 = vector.load %arg4[%c0_24, %c161, %c0_25] : memref<2x168x96xf32, #tpu.memory_space<vmem>>, vector<1x1x32xf32>
    %56 = vector.shape_cast %55 : vector<1x1x32xf32> to vector<1x32xf32>
    %c0_26 = arith.constant 0 : index
    %c162 = arith.constant 162 : index
    %c0_27 = arith.constant 0 : index
    %57 = vector.load %arg4[%c0_26, %c162, %c0_27] : memref<2x168x96xf32, #tpu.memory_space<vmem>>, vector<1x1x32xf32>
    %58 = vector.shape_cast %57 : vector<1x1x32xf32> to vector<1x32xf32>
    %c0_28 = arith.constant 0 : index
    %c163 = arith.constant 163 : index
    %c0_29 = arith.constant 0 : index
    %59 = vector.load %arg4[%c0_28, %c163, %c0_29] : memref<2x168x96xf32, #tpu.memory_space<vmem>>, vector<1x1x32xf32>
    %60 = vector.shape_cast %59 : vector<1x1x32xf32> to vector<1x32xf32>
    %c0_30 = arith.constant 0 : index
    %c64 = arith.constant 64 : index
    %c0_31 = arith.constant 0 : index
    %61 = vector.load %arg4[%c0_30, %c64, %c0_31] : memref<2x168x96xf32, #tpu.memory_space<vmem>>, vector<1x32x64xf32>
    %62 = vector.shape_cast %61 : vector<1x32x64xf32> to vector<32x64xf32>
    %c0_32 = arith.constant 0 : index
    %c164 = arith.constant 164 : index
    %c0_33 = arith.constant 0 : index
    %63 = vector.load %arg4[%c0_32, %c164, %c0_33] : memref<2x168x96xf32, #tpu.memory_space<vmem>>, vector<1x1x64xf32>
    %64 = vector.shape_cast %63 : vector<1x1x64xf32> to vector<1x64xf32>
    %c0_34 = arith.constant 0 : index
    %c96 = arith.constant 96 : index
    %c0_35 = arith.constant 0 : index
    %65 = vector.load %arg4[%c0_34, %c96, %c0_35] : memref<2x168x96xf32, #tpu.memory_space<vmem>>, vector<1x64x32xf32>
    %66 = vector.shape_cast %65 : vector<1x64x32xf32> to vector<64x32xf32>
    %c0_36 = arith.constant 0 : index
    %c165 = arith.constant 165 : index
    %c0_37 = arith.constant 0 : index
    %67 = vector.load %arg4[%c0_36, %c165, %c0_37] : memref<2x168x96xf32, #tpu.memory_space<vmem>>, vector<1x1x32xf32>
    %68 = vector.shape_cast %67 : vector<1x1x32xf32> to vector<1x32xf32>
    %c0_38 = arith.constant 0 : index
    %c166 = arith.constant 166 : index
    %c0_39 = arith.constant 0 : index
    %69 = vector.load %arg4[%c0_38, %c166, %c0_39] : memref<2x168x96xf32, #tpu.memory_space<vmem>>, vector<1x1x32xf32>
    %70 = vector.shape_cast %69 : vector<1x1x32xf32> to vector<1x32xf32>
    %c0_40 = arith.constant 0 : index
    %c167 = arith.constant 167 : index
    %c0_41 = arith.constant 0 : index
    %71 = vector.load %arg4[%c0_40, %c167, %c0_41] : memref<2x168x96xf32, #tpu.memory_space<vmem>>, vector<1x1x32xf32>
    %72 = vector.shape_cast %71 : vector<1x1x32xf32> to vector<1x32xf32>
    %cst_42 = arith.constant dense<0.000000e+00> : vector<16x96xf32>
    %73 = tpu.matmul %48, %50, %cst_42 {dimension_numbers = #tpu.dot_dimension_numbers<[1], [0], [0], [1], [0, 0, 1, 1], [], []>} : vector<16x32xf32>, vector<32x96xf32>, vector<16x96xf32> -> vector<16x96xf32>
    %74 = vector.broadcast %52 : vector<1x96xf32> to vector<16x96xf32>
    %75 = arith.addf %73, %74 : vector<16x96xf32>
    %76 = vector.extract_strided_slice %75 {offsets = [0, 0], sizes = [16, 8], strides = [1, 1]} : vector<16x96xf32> to vector<16x8xf32>
    %77 = vector.extract_strided_slice %75 {offsets = [0, 8], sizes = [16, 8], strides = [1, 1]} : vector<16x96xf32> to vector<16x8xf32>
    %78 = vector.extract_strided_slice %75 {offsets = [0, 16], sizes = [16, 8], strides = [1, 1]} : vector<16x96xf32> to vector<16x8xf32>
    %79 = vector.extract_strided_slice %75 {offsets = [0, 24], sizes = [16, 8], strides = [1, 1]} : vector<16x96xf32> to vector<16x8xf32>
    %80 = tpu.concatenate %76, %77, %78, %79 in 0 : vector<16x8xf32>, vector<16x8xf32>, vector<16x8xf32>, vector<16x8xf32> -> vector<64x8xf32>
    %81 = vector.extract_strided_slice %75 {offsets = [0, 32], sizes = [16, 8], strides = [1, 1]} : vector<16x96xf32> to vector<16x8xf32>
    %82 = vector.extract_strided_slice %75 {offsets = [0, 40], sizes = [16, 8], strides = [1, 1]} : vector<16x96xf32> to vector<16x8xf32>
    %83 = vector.extract_strided_slice %75 {offsets = [0, 48], sizes = [16, 8], strides = [1, 1]} : vector<16x96xf32> to vector<16x8xf32>
    %84 = vector.extract_strided_slice %75 {offsets = [0, 56], sizes = [16, 8], strides = [1, 1]} : vector<16x96xf32> to vector<16x8xf32>
    %85 = tpu.concatenate %81, %82, %83, %84 in 0 : vector<16x8xf32>, vector<16x8xf32>, vector<16x8xf32>, vector<16x8xf32> -> vector<64x8xf32>
    %86 = vector.extract_strided_slice %75 {offsets = [0, 64], sizes = [16, 8], strides = [1, 1]} : vector<16x96xf32> to vector<16x8xf32>
    %87 = vector.extract_strided_slice %75 {offsets = [0, 72], sizes = [16, 8], strides = [1, 1]} : vector<16x96xf32> to vector<16x8xf32>
    %88 = vector.extract_strided_slice %75 {offsets = [0, 80], sizes = [16, 8], strides = [1, 1]} : vector<16x96xf32> to vector<16x8xf32>
    %89 = vector.extract_strided_slice %75 {offsets = [0, 88], sizes = [16, 8], strides = [1, 1]} : vector<16x96xf32> to vector<16x8xf32>
    %90 = tpu.concatenate %86, %87, %88, %89 in 0 : vector<16x8xf32>, vector<16x8xf32>, vector<16x8xf32>, vector<16x8xf32> -> vector<64x8xf32>
    %cst_43 = arith.constant dense<0.000000e+00> : vector<64x64xf32>
    %91 = tpu.matmul %80, %85, %cst_43 {dimension_numbers = #tpu.dot_dimension_numbers<[1], [1], [0], [0], [0, 0, 1, 0], [], []>} : vector<64x8xf32>, vector<64x8xf32>, vector<64x64xf32> -> vector<64x64xf32>
    %cst_44 = arith.constant 0.353553385 : f32
    %92 = vector.broadcast %cst_44 : f32 to vector<64x64xf32>
    %93 = arith.mulf %91, %92 : vector<64x64xf32>
    %94 = arith.addf %93, %3 : vector<64x64xf32>
    %cst_45 = arith.constant dense<0xFF800000> : vector<64xf32>
    %95 = vector.multi_reduction <maximumf>, %94, %cst_45 [1] : vector<64x64xf32> to vector<64xf32>
    %96 = vector.shape_cast %95 : vector<64xf32> to vector<64x1xf32>
    %97 = vector.broadcast %96 : vector<64x1xf32> to vector<64x64xf32>
    %98 = arith.subf %94, %97 : vector<64x64xf32>
    %99 = math.exp %98 : vector<64x64xf32>
    %cst_46 = arith.constant dense<0.000000e+00> : vector<64xf32>
    %100 = vector.multi_reduction <add>, %99, %cst_46 [1] : vector<64x64xf32> to vector<64xf32>
    %101 = vector.shape_cast %100 : vector<64xf32> to vector<64x1xf32>
    %102 = tpu.reciprocal %101 {approx = true} : vector<64x1xf32> -> vector<64x1xf32>
    %103 = vector.broadcast %102 : vector<64x1xf32> to vector<64x64xf32>
    %104 = arith.mulf %99, %103 : vector<64x64xf32>
    %cst_47 = arith.constant dense<0.000000e+00> : vector<64x8xf32>
    %105 = tpu.matmul %104, %90, %cst_47 {dimension_numbers = #tpu.dot_dimension_numbers<[1], [0], [0], [1], [0, 0, 1, 1], [], []>} : vector<64x64xf32>, vector<64x8xf32>, vector<64x8xf32> -> vector<64x8xf32>
    %106 = vector.extract_strided_slice %105 {offsets = [0, 0], sizes = [16, 8], strides = [1, 1]} : vector<64x8xf32> to vector<16x8xf32>
    %107 = vector.extract_strided_slice %105 {offsets = [16, 0], sizes = [16, 8], strides = [1, 1]} : vector<64x8xf32> to vector<16x8xf32>
    %108 = vector.extract_strided_slice %105 {offsets = [32, 0], sizes = [16, 8], strides = [1, 1]} : vector<64x8xf32> to vector<16x8xf32>
    %109 = vector.extract_strided_slice %105 {offsets = [48, 0], sizes = [16, 8], strides = [1, 1]} : vector<64x8xf32> to vector<16x8xf32>
    %110 = tpu.concatenate %106, %107, %108, %109 in 1 : vector<16x8xf32>, vector<16x8xf32>, vector<16x8xf32>, vector<16x8xf32> -> vector<16x32xf32>
    %cst_48 = arith.constant dense<0.000000e+00> : vector<16x32xf32>
    %111 = tpu.matmul %110, %54, %cst_48 {dimension_numbers = #tpu.dot_dimension_numbers<[1], [0], [0], [1], [0, 0, 1, 1], [], []>} : vector<16x32xf32>, vector<32x32xf32>, vector<16x32xf32> -> vector<16x32xf32>
    %112 = vector.broadcast %56 : vector<1x32xf32> to vector<16x32xf32>
    %113 = arith.addf %111, %112 : vector<16x32xf32>
    %114 = arith.addf %48, %113 : vector<16x32xf32>
    %cst_49 = arith.constant dense<0.000000e+00> : vector<16xf32>
    %115 = vector.multi_reduction <add>, %114, %cst_49 [1] : vector<16x32xf32> to vector<16xf32>
    %116 = vector.shape_cast %115 : vector<16xf32> to vector<16x1xf32>
    %cst_50 = arith.constant 3.200000e+01 : f32
    %117 = vector.broadcast %cst_50 : f32 to vector<16x1xf32>
    %118 = arith.divf %116, %117 : vector<16x1xf32>
    %119 = vector.broadcast %118 : vector<16x1xf32> to vector<16x32xf32>
    %120 = arith.subf %114, %119 : vector<16x32xf32>
    %121 = arith.mulf %120, %120 : vector<16x32xf32>
    %cst_51 = arith.constant dense<0.000000e+00> : vector<16xf32>
    %122 = vector.multi_reduction <add>, %121, %cst_51 [1] : vector<16x32xf32> to vector<16xf32>
    %123 = vector.shape_cast %122 : vector<16xf32> to vector<16x1xf32>
    %cst_52 = arith.constant 3.200000e+01 : f32
    %124 = vector.broadcast %cst_52 : f32 to vector<16x1xf32>
    %125 = arith.divf %123, %124 : vector<16x1xf32>
    %126 = vector.broadcast %118 : vector<16x1xf32> to vector<16x32xf32>
    %127 = arith.subf %114, %126 : vector<16x32xf32>
    %cst_53 = arith.constant 9.99999996E-13 : f32
    %128 = vector.broadcast %cst_53 : f32 to vector<16x1xf32>
    %129 = arith.addf %125, %128 : vector<16x1xf32>
    %130 = math.rsqrt %129 : vector<16x1xf32>
    %131 = vector.broadcast %130 : vector<16x1xf32> to vector<16x32xf32>
    %132 = arith.mulf %127, %131 : vector<16x32xf32>
    %133 = vector.broadcast %58 : vector<1x32xf32> to vector<16x32xf32>
    %134 = arith.mulf %132, %133 : vector<16x32xf32>
    %135 = vector.broadcast %60 : vector<1x32xf32> to vector<16x32xf32>
    %136 = arith.addf %134, %135 : vector<16x32xf32>
    %cst_54 = arith.constant dense<0.000000e+00> : vector<16x64xf32>
    %137 = tpu.matmul %136, %62, %cst_54 {dimension_numbers = #tpu.dot_dimension_numbers<[1], [0], [0], [1], [0, 0, 1, 1], [], []>} : vector<16x32xf32>, vector<32x64xf32>, vector<16x64xf32> -> vector<16x64xf32>
    %138 = vector.broadcast %64 : vector<1x64xf32> to vector<16x64xf32>
    %139 = arith.addf %137, %138 : vector<16x64xf32>
    %140 = arith.mulf %139, %139 : vector<16x64xf32>
    %141 = arith.mulf %139, %140 : vector<16x64xf32>
    %cst_55 = arith.constant 4.471500e-02 : f32
    %142 = vector.broadcast %cst_55 : f32 to vector<16x64xf32>
    %143 = arith.mulf %142, %141 : vector<16x64xf32>
    %144 = arith.addf %139, %143 : vector<16x64xf32>
    %cst_56 = arith.constant 0.797884583 : f32
    %145 = vector.broadcast %cst_56 : f32 to vector<16x64xf32>
    %146 = arith.mulf %145, %144 : vector<16x64xf32>
    %147 = math.tanh %146 : vector<16x64xf32>
    %cst_57 = arith.constant 1.000000e+00 : f32
    %148 = vector.broadcast %cst_57 : f32 to vector<16x64xf32>
    %149 = arith.addf %148, %147 : vector<16x64xf32>
    %cst_58 = arith.constant 5.000000e-01 : f32
    %150 = vector.broadcast %cst_58 : f32 to vector<16x64xf32>
    %151 = arith.mulf %150, %149 : vector<16x64xf32>
    %152 = arith.mulf %139, %151 : vector<16x64xf32>
    %cst_59 = arith.constant dense<0.000000e+00> : vector<16x32xf32>
    %153 = tpu.matmul %152, %66, %cst_59 {dimension_numbers = #tpu.dot_dimension_numbers<[1], [0], [0], [1], [0, 0, 1, 1], [], []>} : vector<16x64xf32>, vector<64x32xf32>, vector<16x32xf32> -> vector<16x32xf32>
    %154 = vector.broadcast %68 : vector<1x32xf32> to vector<16x32xf32>
    %155 = arith.addf %153, %154 : vector<16x32xf32>
    %156 = arith.addf %136, %155 : vector<16x32xf32>
    %cst_60 = arith.constant dense<0.000000e+00> : vector<16xf32>
    %157 = vector.multi_reduction <add>, %156, %cst_60 [1] : vector<16x32xf32> to vector<16xf32>
    %158 = vector.shape_cast %157 : vector<16xf32> to vector<16x1xf32>
    %cst_61 = arith.constant 3.200000e+01 : f32
    %159 = vector.broadcast %cst_61 : f32 to vector<16x1xf32>
    %160 = arith.divf %158, %159 : vector<16x1xf32>
    %161 = vector.broadcast %160 : vector<16x1xf32> to vector<16x32xf32>
    %162 = arith.subf %156, %161 : vector<16x32xf32>
    %163 = arith.mulf %162, %162 : vector<16x32xf32>
    %cst_62 = arith.constant dense<0.000000e+00> : vector<16xf32>
    %164 = vector.multi_reduction <add>, %163, %cst_62 [1] : vector<16x32xf32> to vector<16xf32>
    %165 = vector.shape_cast %164 : vector<16xf32> to vector<16x1xf32>
    %cst_63 = arith.constant 3.200000e+01 : f32
    %166 = vector.broadcast %cst_63 : f32 to vector<16x1xf32>
    %167 = arith.divf %165, %166 : vector<16x1xf32>
    %168 = vector.broadcast %160 : vector<16x1xf32> to vector<16x32xf32>
    %169 = arith.subf %156, %168 : vector<16x32xf32>
    %cst_64 = arith.constant 9.99999996E-13 : f32
    %170 = vector.broadcast %cst_64 : f32 to vector<16x1xf32>
    %171 = arith.addf %167, %170 : vector<16x1xf32>
    %172 = math.rsqrt %171 : vector<16x1xf32>
    %173 = vector.broadcast %172 : vector<16x1xf32> to vector<16x32xf32>
    %174 = arith.mulf %169, %173 : vector<16x32xf32>
    %175 = vector.broadcast %70 : vector<1x32xf32> to vector<16x32xf32>
    %176 = arith.mulf %174, %175 : vector<16x32xf32>
    %177 = vector.broadcast %72 : vector<1x32xf32> to vector<16x32xf32>
    %178 = arith.addf %176, %177 : vector<16x32xf32>
    %c1_65 = arith.constant 1 : index
    %c0_66 = arith.constant 0 : index
    %c0_67 = arith.constant 0 : index
    %179 = vector.load %arg4[%c1_65, %c0_66, %c0_67] : memref<2x168x96xf32, #tpu.memory_space<vmem>>, vector<1x32x96xf32>
    %180 = vector.shape_cast %179 : vector<1x32x96xf32> to vector<32x96xf32>
    %c1_68 = arith.constant 1 : index
    %c160_69 = arith.constant 160 : index
    %c0_70 = arith.constant 0 : index
    %181 = vector.load %arg4[%c1_68, %c160_69, %c0_70] : memref<2x168x96xf32, #tpu.memory_space<vmem>>, vector<1x1x96xf32>
    %182 = vector.shape_cast %181 : vector<1x1x96xf32> to vector<1x96xf32>
    %c1_71 = arith.constant 1 : index
    %c32_72 = arith.constant 32 : index
    %c0_73 = arith.constant 0 : index
    %183 = vector.load %arg4[%c1_71, %c32_72, %c0_73] : memref<2x168x96xf32, #tpu.memory_space<vmem>>, vector<1x32x32xf32>
    %184 = vector.shape_cast %183 : vector<1x32x32xf32> to vector<32x32xf32>
    %c1_74 = arith.constant 1 : index
    %c161_75 = arith.constant 161 : index
    %c0_76 = arith.constant 0 : index
    %185 = vector.load %arg4[%c1_74, %c161_75, %c0_76] : memref<2x168x96xf32, #tpu.memory_space<vmem>>, vector<1x1x32xf32>
    %186 = vector.shape_cast %185 : vector<1x1x32xf32> to vector<1x32xf32>
    %c1_77 = arith.constant 1 : index
    %c162_78 = arith.constant 162 : index
    %c0_79 = arith.constant 0 : index
    %187 = vector.load %arg4[%c1_77, %c162_78, %c0_79] : memref<2x168x96xf32, #tpu.memory_space<vmem>>, vector<1x1x32xf32>
    %188 = vector.shape_cast %187 : vector<1x1x32xf32> to vector<1x32xf32>
    %c1_80 = arith.constant 1 : index
    %c163_81 = arith.constant 163 : index
    %c0_82 = arith.constant 0 : index
    %189 = vector.load %arg4[%c1_80, %c163_81, %c0_82] : memref<2x168x96xf32, #tpu.memory_space<vmem>>, vector<1x1x32xf32>
    %190 = vector.shape_cast %189 : vector<1x1x32xf32> to vector<1x32xf32>
    %c1_83 = arith.constant 1 : index
    %c64_84 = arith.constant 64 : index
    %c0_85 = arith.constant 0 : index
    %191 = vector.load %arg4[%c1_83, %c64_84, %c0_85] : memref<2x168x96xf32, #tpu.memory_space<vmem>>, vector<1x32x64xf32>
    %192 = vector.shape_cast %191 : vector<1x32x64xf32> to vector<32x64xf32>
    %c1_86 = arith.constant 1 : index
    %c164_87 = arith.constant 164 : index
    %c0_88 = arith.constant 0 : index
    %193 = vector.load %arg4[%c1_86, %c164_87, %c0_88] : memref<2x168x96xf32, #tpu.memory_space<vmem>>, vector<1x1x64xf32>
    %194 = vector.shape_cast %193 : vector<1x1x64xf32> to vector<1x64xf32>
    %c1_89 = arith.constant 1 : index
    %c96_90 = arith.constant 96 : index
    %c0_91 = arith.constant 0 : index
    %195 = vector.load %arg4[%c1_89, %c96_90, %c0_91] : memref<2x168x96xf32, #tpu.memory_space<vmem>>, vector<1x64x32xf32>
    %196 = vector.shape_cast %195 : vector<1x64x32xf32> to vector<64x32xf32>
    %c1_92 = arith.constant 1 : index
    %c165_93 = arith.constant 165 : index
    %c0_94 = arith.constant 0 : index
    %197 = vector.load %arg4[%c1_92, %c165_93, %c0_94] : memref<2x168x96xf32, #tpu.memory_space<vmem>>, vector<1x1x32xf32>
    %198 = vector.shape_cast %197 : vector<1x1x32xf32> to vector<1x32xf32>
    %c1_95 = arith.constant 1 : index
    %c166_96 = arith.constant 166 : index
    %c0_97 = arith.constant 0 : index
    %199 = vector.load %arg4[%c1_95, %c166_96, %c0_97] : memref<2x168x96xf32, #tpu.memory_space<vmem>>, vector<1x1x32xf32>
    %200 = vector.shape_cast %199 : vector<1x1x32xf32> to vector<1x32xf32>
    %c1_98 = arith.constant 1 : index
    %c167_99 = arith.constant 167 : index
    %c0_100 = arith.constant 0 : index
    %201 = vector.load %arg4[%c1_98, %c167_99, %c0_100] : memref<2x168x96xf32, #tpu.memory_space<vmem>>, vector<1x1x32xf32>
    %202 = vector.shape_cast %201 : vector<1x1x32xf32> to vector<1x32xf32>
    %cst_101 = arith.constant dense<0.000000e+00> : vector<16x96xf32>
    %203 = tpu.matmul %178, %180, %cst_101 {dimension_numbers = #tpu.dot_dimension_numbers<[1], [0], [0], [1], [0, 0, 1, 1], [], []>} : vector<16x32xf32>, vector<32x96xf32>, vector<16x96xf32> -> vector<16x96xf32>
    %204 = vector.broadcast %182 : vector<1x96xf32> to vector<16x96xf32>
    %205 = arith.addf %203, %204 : vector<16x96xf32>
    %206 = vector.extract_strided_slice %205 {offsets = [0, 0], sizes = [16, 8], strides = [1, 1]} : vector<16x96xf32> to vector<16x8xf32>
    %207 = vector.extract_strided_slice %205 {offsets = [0, 8], sizes = [16, 8], strides = [1, 1]} : vector<16x96xf32> to vector<16x8xf32>
    %208 = vector.extract_strided_slice %205 {offsets = [0, 16], sizes = [16, 8], strides = [1, 1]} : vector<16x96xf32> to vector<16x8xf32>
    %209 = vector.extract_strided_slice %205 {offsets = [0, 24], sizes = [16, 8], strides = [1, 1]} : vector<16x96xf32> to vector<16x8xf32>
    %210 = tpu.concatenate %206, %207, %208, %209 in 0 : vector<16x8xf32>, vector<16x8xf32>, vector<16x8xf32>, vector<16x8xf32> -> vector<64x8xf32>
    %211 = vector.extract_strided_slice %205 {offsets = [0, 32], sizes = [16, 8], strides = [1, 1]} : vector<16x96xf32> to vector<16x8xf32>
    %212 = vector.extract_strided_slice %205 {offsets = [0, 40], sizes = [16, 8], strides = [1, 1]} : vector<16x96xf32> to vector<16x8xf32>
    %213 = vector.extract_strided_slice %205 {offsets = [0, 48], sizes = [16, 8], strides = [1, 1]} : vector<16x96xf32> to vector<16x8xf32>
    %214 = vector.extract_strided_slice %205 {offsets = [0, 56], sizes = [16, 8], strides = [1, 1]} : vector<16x96xf32> to vector<16x8xf32>
    %215 = tpu.concatenate %211, %212, %213, %214 in 0 : vector<16x8xf32>, vector<16x8xf32>, vector<16x8xf32>, vector<16x8xf32> -> vector<64x8xf32>
    %216 = vector.extract_strided_slice %205 {offsets = [0, 64], sizes = [16, 8], strides = [1, 1]} : vector<16x96xf32> to vector<16x8xf32>
    %217 = vector.extract_strided_slice %205 {offsets = [0, 72], sizes = [16, 8], strides = [1, 1]} : vector<16x96xf32> to vector<16x8xf32>
    %218 = vector.extract_strided_slice %205 {offsets = [0, 80], sizes = [16, 8], strides = [1, 1]} : vector<16x96xf32> to vector<16x8xf32>
    %219 = vector.extract_strided_slice %205 {offsets = [0, 88], sizes = [16, 8], strides = [1, 1]} : vector<16x96xf32> to vector<16x8xf32>
    %220 = tpu.concatenate %216, %217, %218, %219 in 0 : vector<16x8xf32>, vector<16x8xf32>, vector<16x8xf32>, vector<16x8xf32> -> vector<64x8xf32>
    %cst_102 = arith.constant dense<0.000000e+00> : vector<64x64xf32>
    %221 = tpu.matmul %210, %215, %cst_102 {dimension_numbers = #tpu.dot_dimension_numbers<[1], [1], [0], [0], [0, 0, 1, 0], [], []>} : vector<64x8xf32>, vector<64x8xf32>, vector<64x64xf32> -> vector<64x64xf32>
    %cst_103 = arith.constant 0.353553385 : f32
    %222 = vector.broadcast %cst_103 : f32 to vector<64x64xf32>
    %223 = arith.mulf %221, %222 : vector<64x64xf32>
    %224 = arith.addf %223, %3 : vector<64x64xf32>
    %cst_104 = arith.constant dense<0xFF800000> : vector<64xf32>
    %225 = vector.multi_reduction <maximumf>, %224, %cst_104 [1] : vector<64x64xf32> to vector<64xf32>
    %226 = vector.shape_cast %225 : vector<64xf32> to vector<64x1xf32>
    %227 = vector.broadcast %226 : vector<64x1xf32> to vector<64x64xf32>
    %228 = arith.subf %224, %227 : vector<64x64xf32>
    %229 = math.exp %228 : vector<64x64xf32>
    %cst_105 = arith.constant dense<0.000000e+00> : vector<64xf32>
    %230 = vector.multi_reduction <add>, %229, %cst_105 [1] : vector<64x64xf32> to vector<64xf32>
    %231 = vector.shape_cast %230 : vector<64xf32> to vector<64x1xf32>
    %232 = tpu.reciprocal %231 {approx = true} : vector<64x1xf32> -> vector<64x1xf32>
    %233 = vector.broadcast %232 : vector<64x1xf32> to vector<64x64xf32>
    %234 = arith.mulf %229, %233 : vector<64x64xf32>
    %cst_106 = arith.constant dense<0.000000e+00> : vector<64x8xf32>
    %235 = tpu.matmul %234, %220, %cst_106 {dimension_numbers = #tpu.dot_dimension_numbers<[1], [0], [0], [1], [0, 0, 1, 1], [], []>} : vector<64x64xf32>, vector<64x8xf32>, vector<64x8xf32> -> vector<64x8xf32>
    %236 = vector.extract_strided_slice %235 {offsets = [0, 0], sizes = [16, 8], strides = [1, 1]} : vector<64x8xf32> to vector<16x8xf32>
    %237 = vector.extract_strided_slice %235 {offsets = [16, 0], sizes = [16, 8], strides = [1, 1]} : vector<64x8xf32> to vector<16x8xf32>
    %238 = vector.extract_strided_slice %235 {offsets = [32, 0], sizes = [16, 8], strides = [1, 1]} : vector<64x8xf32> to vector<16x8xf32>
    %239 = vector.extract_strided_slice %235 {offsets = [48, 0], sizes = [16, 8], strides = [1, 1]} : vector<64x8xf32> to vector<16x8xf32>
    %240 = tpu.concatenate %236, %237, %238, %239 in 1 : vector<16x8xf32>, vector<16x8xf32>, vector<16x8xf32>, vector<16x8xf32> -> vector<16x32xf32>
    %cst_107 = arith.constant dense<0.000000e+00> : vector<16x32xf32>
    %241 = tpu.matmul %240, %184, %cst_107 {dimension_numbers = #tpu.dot_dimension_numbers<[1], [0], [0], [1], [0, 0, 1, 1], [], []>} : vector<16x32xf32>, vector<32x32xf32>, vector<16x32xf32> -> vector<16x32xf32>
    %242 = vector.broadcast %186 : vector<1x32xf32> to vector<16x32xf32>
    %243 = arith.addf %241, %242 : vector<16x32xf32>
    %244 = arith.addf %178, %243 : vector<16x32xf32>
    %cst_108 = arith.constant dense<0.000000e+00> : vector<16xf32>
    %245 = vector.multi_reduction <add>, %244, %cst_108 [1] : vector<16x32xf32> to vector<16xf32>
    %246 = vector.shape_cast %245 : vector<16xf32> to vector<16x1xf32>
    %cst_109 = arith.constant 3.200000e+01 : f32
    %247 = vector.broadcast %cst_109 : f32 to vector<16x1xf32>
    %248 = arith.divf %246, %247 : vector<16x1xf32>
    %249 = vector.broadcast %248 : vector<16x1xf32> to vector<16x32xf32>
    %250 = arith.subf %244, %249 : vector<16x32xf32>
    %251 = arith.mulf %250, %250 : vector<16x32xf32>
    %cst_110 = arith.constant dense<0.000000e+00> : vector<16xf32>
    %252 = vector.multi_reduction <add>, %251, %cst_110 [1] : vector<16x32xf32> to vector<16xf32>
    %253 = vector.shape_cast %252 : vector<16xf32> to vector<16x1xf32>
    %cst_111 = arith.constant 3.200000e+01 : f32
    %254 = vector.broadcast %cst_111 : f32 to vector<16x1xf32>
    %255 = arith.divf %253, %254 : vector<16x1xf32>
    %256 = vector.broadcast %248 : vector<16x1xf32> to vector<16x32xf32>
    %257 = arith.subf %244, %256 : vector<16x32xf32>
    %cst_112 = arith.constant 9.99999996E-13 : f32
    %258 = vector.broadcast %cst_112 : f32 to vector<16x1xf32>
    %259 = arith.addf %255, %258 : vector<16x1xf32>
    %260 = math.rsqrt %259 : vector<16x1xf32>
    %261 = vector.broadcast %260 : vector<16x1xf32> to vector<16x32xf32>
    %262 = arith.mulf %257, %261 : vector<16x32xf32>
    %263 = vector.broadcast %188 : vector<1x32xf32> to vector<16x32xf32>
    %264 = arith.mulf %262, %263 : vector<16x32xf32>
    %265 = vector.broadcast %190 : vector<1x32xf32> to vector<16x32xf32>
    %266 = arith.addf %264, %265 : vector<16x32xf32>
    %cst_113 = arith.constant dense<0.000000e+00> : vector<16x64xf32>
    %267 = tpu.matmul %266, %192, %cst_113 {dimension_numbers = #tpu.dot_dimension_numbers<[1], [0], [0], [1], [0, 0, 1, 1], [], []>} : vector<16x32xf32>, vector<32x64xf32>, vector<16x64xf32> -> vector<16x64xf32>
    %268 = vector.broadcast %194 : vector<1x64xf32> to vector<16x64xf32>
    %269 = arith.addf %267, %268 : vector<16x64xf32>
    %270 = arith.mulf %269, %269 : vector<16x64xf32>
    %271 = arith.mulf %269, %270 : vector<16x64xf32>
    %cst_114 = arith.constant 4.471500e-02 : f32
    %272 = vector.broadcast %cst_114 : f32 to vector<16x64xf32>
    %273 = arith.mulf %272, %271 : vector<16x64xf32>
    %274 = arith.addf %269, %273 : vector<16x64xf32>
    %cst_115 = arith.constant 0.797884583 : f32
    %275 = vector.broadcast %cst_115 : f32 to vector<16x64xf32>
    %276 = arith.mulf %275, %274 : vector<16x64xf32>
    %277 = math.tanh %276 : vector<16x64xf32>
    %cst_116 = arith.constant 1.000000e+00 : f32
    %278 = vector.broadcast %cst_116 : f32 to vector<16x64xf32>
    %279 = arith.addf %278, %277 : vector<16x64xf32>
    %cst_117 = arith.constant 5.000000e-01 : f32
    %280 = vector.broadcast %cst_117 : f32 to vector<16x64xf32>
    %281 = arith.mulf %280, %279 : vector<16x64xf32>
    %282 = arith.mulf %269, %281 : vector<16x64xf32>
    %cst_118 = arith.constant dense<0.000000e+00> : vector<16x32xf32>
    %283 = tpu.matmul %282, %196, %cst_118 {dimension_numbers = #tpu.dot_dimension_numbers<[1], [0], [0], [1], [0, 0, 1, 1], [], []>} : vector<16x64xf32>, vector<64x32xf32>, vector<16x32xf32> -> vector<16x32xf32>
    %284 = vector.broadcast %198 : vector<1x32xf32> to vector<16x32xf32>
    %285 = arith.addf %283, %284 : vector<16x32xf32>
    %286 = arith.addf %266, %285 : vector<16x32xf32>
    %cst_119 = arith.constant dense<0.000000e+00> : vector<16xf32>
    %287 = vector.multi_reduction <add>, %286, %cst_119 [1] : vector<16x32xf32> to vector<16xf32>
    %288 = vector.shape_cast %287 : vector<16xf32> to vector<16x1xf32>
    %cst_120 = arith.constant 3.200000e+01 : f32
    %289 = vector.broadcast %cst_120 : f32 to vector<16x1xf32>
    %290 = arith.divf %288, %289 : vector<16x1xf32>
    %291 = vector.broadcast %290 : vector<16x1xf32> to vector<16x32xf32>
    %292 = arith.subf %286, %291 : vector<16x32xf32>
    %293 = arith.mulf %292, %292 : vector<16x32xf32>
    %cst_121 = arith.constant dense<0.000000e+00> : vector<16xf32>
    %294 = vector.multi_reduction <add>, %293, %cst_121 [1] : vector<16x32xf32> to vector<16xf32>
    %295 = vector.shape_cast %294 : vector<16xf32> to vector<16x1xf32>
    %cst_122 = arith.constant 3.200000e+01 : f32
    %296 = vector.broadcast %cst_122 : f32 to vector<16x1xf32>
    %297 = arith.divf %295, %296 : vector<16x1xf32>
    %298 = vector.broadcast %290 : vector<16x1xf32> to vector<16x32xf32>
    %299 = arith.subf %286, %298 : vector<16x32xf32>
    %cst_123 = arith.constant 9.99999996E-13 : f32
    %300 = vector.broadcast %cst_123 : f32 to vector<16x1xf32>
    %301 = arith.addf %297, %300 : vector<16x1xf32>
    %302 = math.rsqrt %301 : vector<16x1xf32>
    %303 = vector.broadcast %302 : vector<16x1xf32> to vector<16x32xf32>
    %304 = arith.mulf %299, %303 : vector<16x32xf32>
    %305 = vector.broadcast %200 : vector<1x32xf32> to vector<16x32xf32>
    %306 = arith.mulf %304, %305 : vector<16x32xf32>
    %307 = vector.broadcast %202 : vector<1x32xf32> to vector<16x32xf32>
    %308 = arith.addf %306, %307 : vector<16x32xf32>
    %c0_124 = arith.constant 0 : index
    %c0_125 = arith.constant 0 : index
    %309 = vector.load %arg5[%c0_124, %c0_125] : memref<51x8xf32, #tpu.memory_space<vmem>>, vector<32x8xf32>
    %c48 = arith.constant 48 : index
    %c0_126 = arith.constant 0 : index
    %310 = vector.load %arg5[%c48, %c0_126] : memref<51x8xf32, #tpu.memory_space<vmem>>, vector<1x8xf32>
    %c49 = arith.constant 49 : index
    %c0_127 = arith.constant 0 : index
    %311 = vector.load %arg5[%c49, %c0_127] : memref<51x8xf32, #tpu.memory_space<vmem>>, vector<1x8xf32>
    %c50 = arith.constant 50 : index
    %c0_128 = arith.constant 0 : index
    %312 = vector.load %arg5[%c50, %c0_128] : memref<51x8xf32, #tpu.memory_space<vmem>>, vector<1x8xf32>
    %c32_129 = arith.constant 32 : index
    %c0_130 = arith.constant 0 : index
    %313 = vector.load %arg5[%c32_129, %c0_130] : memref<51x8xf32, #tpu.memory_space<vmem>>, vector<8x8xf32>
    %c40 = arith.constant 40 : index
    %c0_131 = arith.constant 0 : index
    %314 = vector.load %arg5[%c40, %c0_131] : memref<51x8xf32, #tpu.memory_space<vmem>>, vector<8x8xf32>
    %cst_132 = arith.constant dense<0.000000e+00> : vector<16x8xf32>
    %315 = tpu.matmul %308, %309, %cst_132 {dimension_numbers = #tpu.dot_dimension_numbers<[1], [0], [0], [1], [0, 0, 1, 1], [], []>} : vector<16x32xf32>, vector<32x8xf32>, vector<16x8xf32> -> vector<16x8xf32>
    %316 = vector.broadcast %310 : vector<1x8xf32> to vector<16x8xf32>
    %317 = arith.addf %315, %316 : vector<16x8xf32>
    %318 = vector.extract_strided_slice %317 {offsets = [0, 0], sizes = [1, 8], strides = [1, 1]} : vector<16x8xf32> to vector<1x8xf32>
    %319 = vector.extract_strided_slice %317 {offsets = [8, 0], sizes = [1, 8], strides = [1, 1]} : vector<16x8xf32> to vector<1x8xf32>
    %320 = tpu.concatenate %318, %319 in 0 : vector<1x8xf32>, vector<1x8xf32> -> vector<2x8xf32>
    %321 = vector.extract_strided_slice %317 {offsets = [1, 0], sizes = [1, 8], strides = [1, 1]} : vector<16x8xf32> to vector<1x8xf32>
    %322 = vector.extract_strided_slice %317 {offsets = [9, 0], sizes = [1, 8], strides = [1, 1]} : vector<16x8xf32> to vector<1x8xf32>
    %323 = tpu.concatenate %321, %322 in 0 : vector<1x8xf32>, vector<1x8xf32> -> vector<2x8xf32>
    %324 = vector.extract_strided_slice %317 {offsets = [2, 0], sizes = [1, 8], strides = [1, 1]} : vector<16x8xf32> to vector<1x8xf32>
    %325 = vector.extract_strided_slice %317 {offsets = [10, 0], sizes = [1, 8], strides = [1, 1]} : vector<16x8xf32> to vector<1x8xf32>
    %326 = tpu.concatenate %324, %325 in 0 : vector<1x8xf32>, vector<1x8xf32> -> vector<2x8xf32>
    %327 = vector.extract_strided_slice %317 {offsets = [3, 0], sizes = [1, 8], strides = [1, 1]} : vector<16x8xf32> to vector<1x8xf32>
    %328 = vector.extract_strided_slice %317 {offsets = [11, 0], sizes = [1, 8], strides = [1, 1]} : vector<16x8xf32> to vector<1x8xf32>
    %329 = tpu.concatenate %327, %328 in 0 : vector<1x8xf32>, vector<1x8xf32> -> vector<2x8xf32>
    %330 = vector.extract_strided_slice %317 {offsets = [4, 0], sizes = [1, 8], strides = [1, 1]} : vector<16x8xf32> to vector<1x8xf32>
    %331 = vector.extract_strided_slice %317 {offsets = [12, 0], sizes = [1, 8], strides = [1, 1]} : vector<16x8xf32> to vector<1x8xf32>
    %332 = tpu.concatenate %330, %331 in 0 : vector<1x8xf32>, vector<1x8xf32> -> vector<2x8xf32>
    %333 = vector.extract_strided_slice %317 {offsets = [5, 0], sizes = [1, 8], strides = [1, 1]} : vector<16x8xf32> to vector<1x8xf32>
    %334 = vector.extract_strided_slice %317 {offsets = [13, 0], sizes = [1, 8], strides = [1, 1]} : vector<16x8xf32> to vector<1x8xf32>
    %335 = tpu.concatenate %333, %334 in 0 : vector<1x8xf32>, vector<1x8xf32> -> vector<2x8xf32>
    %336 = vector.extract_strided_slice %317 {offsets = [6, 0], sizes = [1, 8], strides = [1, 1]} : vector<16x8xf32> to vector<1x8xf32>
    %337 = vector.extract_strided_slice %317 {offsets = [14, 0], sizes = [1, 8], strides = [1, 1]} : vector<16x8xf32> to vector<1x8xf32>
    %338 = tpu.concatenate %336, %337 in 0 : vector<1x8xf32>, vector<1x8xf32> -> vector<2x8xf32>
    %339 = vector.extract_strided_slice %317 {offsets = [7, 0], sizes = [1, 8], strides = [1, 1]} : vector<16x8xf32> to vector<1x8xf32>
    %340 = vector.extract_strided_slice %317 {offsets = [15, 0], sizes = [1, 8], strides = [1, 1]} : vector<16x8xf32> to vector<1x8xf32>
    %341 = tpu.concatenate %339, %340 in 0 : vector<1x8xf32>, vector<1x8xf32> -> vector<2x8xf32>
    %342 = tpu.iota {dimensions = array<i32: 1>} : vector<16x8xi32>
    %343 = vector.broadcast %2 : vector<16x1xi32> to vector<16x8xi32>
    %344 = arith.cmpi eq, %342, %343 : vector<16x8xi32>
    %345 = arith.extui %344 : vector<16x8xi1> to vector<16x8xi32>
    %346 = arith.sitofp %345 : vector<16x8xi32> to vector<16x8xf32>
    %347 = arith.mulf %346, %317 : vector<16x8xf32>
    %cst_133 = arith.constant dense<0.000000e+00> : vector<16xf32>
    %348 = vector.multi_reduction <add>, %347, %cst_133 [1] : vector<16x8xf32> to vector<16xf32>
    %349 = vector.shape_cast %348 : vector<16xf32> to vector<16x1xf32>
    %350 = vector.extract_strided_slice %346 {offsets = [0, 0], sizes = [15, 8], strides = [1, 1]} : vector<16x8xf32> to vector<15x8xf32>
    %cst_134 = arith.constant dense<0.000000e+00> : vector<15x8xf32>
    %351 = tpu.matmul %350, %313, %cst_134 {dimension_numbers = #tpu.dot_dimension_numbers<[1], [0], [0], [1], [0, 0, 1, 1], [], []>} : vector<15x8xf32>, vector<8x8xf32>, vector<15x8xf32> -> vector<15x8xf32>
    %352 = vector.extract_strided_slice %346 {offsets = [1, 0], sizes = [15, 8], strides = [1, 1]} : vector<16x8xf32> to vector<15x8xf32>
    %353 = arith.mulf %351, %352 : vector<15x8xf32>
    %cst_135 = arith.constant dense<0.000000e+00> : vector<15xf32>
    %354 = vector.multi_reduction <add>, %353, %cst_135 [1] : vector<15x8xf32> to vector<15xf32>
    %355 = vector.shape_cast %354 : vector<15xf32> to vector<15x1xf32>
    %356 = vector.extract_strided_slice %349 {offsets = [0, 0], sizes = [8, 1], strides = [1, 1]} : vector<16x1xf32> to vector<8x1xf32>
    %cst_136 = arith.constant dense<0.000000e+00> : vector<1xf32>
    %357 = vector.multi_reduction <add>, %356, %cst_136 [0] : vector<8x1xf32> to vector<1xf32>
    %358 = vector.shape_cast %357 : vector<1xf32> to vector<1x1xf32>
    %359 = vector.extract_strided_slice %355 {offsets = [0, 0], sizes = [7, 1], strides = [1, 1]} : vector<15x1xf32> to vector<7x1xf32>
    %cst_137 = arith.constant dense<0.000000e+00> : vector<1xf32>
    %360 = vector.multi_reduction <add>, %359, %cst_137 [0] : vector<7x1xf32> to vector<1xf32>
    %361 = vector.shape_cast %360 : vector<1xf32> to vector<1x1xf32>
    %362 = arith.addf %358, %361 : vector<1x1xf32>
    %363 = vector.extract_strided_slice %346 {offsets = [0, 0], sizes = [1, 8], strides = [1, 1]} : vector<16x8xf32> to vector<1x8xf32>
    %364 = arith.mulf %363, %311 : vector<1x8xf32>
    %cst_138 = arith.constant dense<0.000000e+00> : vector<1xf32>
    %365 = vector.multi_reduction <add>, %364, %cst_138 [1] : vector<1x8xf32> to vector<1xf32>
    %366 = vector.shape_cast %365 : vector<1xf32> to vector<1x1xf32>
    %cst_139 = arith.constant dense<0.000000e+00> : vector<1xf32>
    %367 = vector.multi_reduction <add>, %366, %cst_139 [0] : vector<1x1xf32> to vector<1xf32>
    %368 = vector.shape_cast %367 : vector<1xf32> to vector<1x1xf32>
    %369 = arith.addf %362, %368 : vector<1x1xf32>
    %370 = vector.extract_strided_slice %346 {offsets = [7, 0], sizes = [1, 8], strides = [1, 1]} : vector<16x8xf32> to vector<1x8xf32>
    %371 = arith.mulf %370, %312 : vector<1x8xf32>
    %cst_140 = arith.constant dense<0.000000e+00> : vector<1xf32>
    %372 = vector.multi_reduction <add>, %371, %cst_140 [1] : vector<1x8xf32> to vector<1xf32>
    %373 = vector.shape_cast %372 : vector<1xf32> to vector<1x1xf32>
    %cst_141 = arith.constant dense<0.000000e+00> : vector<1xf32>
    %374 = vector.multi_reduction <add>, %373, %cst_141 [0] : vector<1x1xf32> to vector<1xf32>
    %375 = vector.shape_cast %374 : vector<1xf32> to vector<1x1xf32>
    %376 = arith.addf %369, %375 : vector<1x1xf32>
    %377 = vector.extract_strided_slice %349 {offsets = [8, 0], sizes = [8, 1], strides = [1, 1]} : vector<16x1xf32> to vector<8x1xf32>
    %cst_142 = arith.constant dense<0.000000e+00> : vector<1xf32>
    %378 = vector.multi_reduction <add>, %377, %cst_142 [0] : vector<8x1xf32> to vector<1xf32>
    %379 = vector.shape_cast %378 : vector<1xf32> to vector<1x1xf32>
    %380 = vector.extract_strided_slice %355 {offsets = [8, 0], sizes = [7, 1], strides = [1, 1]} : vector<15x1xf32> to vector<7x1xf32>
    %cst_143 = arith.constant dense<0.000000e+00> : vector<1xf32>
    %381 = vector.multi_reduction <add>, %380, %cst_143 [0] : vector<7x1xf32> to vector<1xf32>
    %382 = vector.shape_cast %381 : vector<1xf32> to vector<1x1xf32>
    %383 = arith.addf %379, %382 : vector<1x1xf32>
    %384 = vector.extract_strided_slice %346 {offsets = [8, 0], sizes = [1, 8], strides = [1, 1]} : vector<16x8xf32> to vector<1x8xf32>
    %385 = arith.mulf %384, %311 : vector<1x8xf32>
    %cst_144 = arith.constant dense<0.000000e+00> : vector<1xf32>
    %386 = vector.multi_reduction <add>, %385, %cst_144 [1] : vector<1x8xf32> to vector<1xf32>
    %387 = vector.shape_cast %386 : vector<1xf32> to vector<1x1xf32>
    %cst_145 = arith.constant dense<0.000000e+00> : vector<1xf32>
    %388 = vector.multi_reduction <add>, %387, %cst_145 [0] : vector<1x1xf32> to vector<1xf32>
    %389 = vector.shape_cast %388 : vector<1xf32> to vector<1x1xf32>
    %390 = arith.addf %383, %389 : vector<1x1xf32>
    %391 = vector.extract_strided_slice %346 {offsets = [15, 0], sizes = [1, 8], strides = [1, 1]} : vector<16x8xf32> to vector<1x8xf32>
    %392 = arith.mulf %391, %312 : vector<1x8xf32>
    %cst_146 = arith.constant dense<0.000000e+00> : vector<1xf32>
    %393 = vector.multi_reduction <add>, %392, %cst_146 [1] : vector<1x8xf32> to vector<1xf32>
    %394 = vector.shape_cast %393 : vector<1xf32> to vector<1x1xf32>
    %cst_147 = arith.constant dense<0.000000e+00> : vector<1xf32>
    %395 = vector.multi_reduction <add>, %394, %cst_147 [0] : vector<1x1xf32> to vector<1xf32>
    %396 = vector.shape_cast %395 : vector<1xf32> to vector<1x1xf32>
    %397 = arith.addf %390, %396 : vector<1x1xf32>
    %398 = tpu.concatenate %376, %397 in 0 : vector<1x1xf32>, vector<1x1xf32> -> vector<2x1xf32>
    %399 = vector.broadcast %311 : vector<1x8xf32> to vector<2x8xf32>
    %400 = arith.addf %399, %320 : vector<2x8xf32>
    %401 = vector.shape_cast %400 : vector<2x8xf32> to vector<2x1x8xf32>
    %402 = vector.shape_cast %314 : vector<8x8xf32> to vector<1x8x8xf32>
    %403 = vector.broadcast %401 : vector<2x1x8xf32> to vector<2x8x8xf32>
    %404 = vector.broadcast %402 : vector<1x8x8xf32> to vector<2x8x8xf32>
    %405 = arith.addf %403, %404 : vector<2x8x8xf32>
    %cst_148 = arith.constant dense<0xFF800000> : vector<2x8xf32>
    %406 = vector.multi_reduction <maximumf>, %405, %cst_148 [2] : vector<2x8x8xf32> to vector<2x8xf32>
    %407 = vector.shape_cast %406 : vector<2x8xf32> to vector<2x8x1xf32>
    %408 = vector.shape_cast %407 : vector<2x8x1xf32> to vector<2x8xf32>
    %409 = vector.broadcast %407 : vector<2x8x1xf32> to vector<2x8x8xf32>
    %410 = arith.subf %405, %409 : vector<2x8x8xf32>
    %411 = math.exp %410 : vector<2x8x8xf32>
    %cst_149 = arith.constant dense<0.000000e+00> : vector<2x8xf32>
    %412 = vector.multi_reduction <add>, %411, %cst_149 [2] : vector<2x8x8xf32> to vector<2x8xf32>
    %413 = math.log %412 : vector<2x8xf32>
    %414 = arith.addf %408, %413 : vector<2x8xf32>
    %415 = arith.addf %414, %323 : vector<2x8xf32>
    %416 = vector.shape_cast %415 : vector<2x8xf32> to vector<2x1x8xf32>
    %417 = vector.shape_cast %314 : vector<8x8xf32> to vector<1x8x8xf32>
    %418 = vector.broadcast %416 : vector<2x1x8xf32> to vector<2x8x8xf32>
    %419 = vector.broadcast %417 : vector<1x8x8xf32> to vector<2x8x8xf32>
    %420 = arith.addf %418, %419 : vector<2x8x8xf32>
    %cst_150 = arith.constant dense<0xFF800000> : vector<2x8xf32>
    %421 = vector.multi_reduction <maximumf>, %420, %cst_150 [2] : vector<2x8x8xf32> to vector<2x8xf32>
    %422 = vector.shape_cast %421 : vector<2x8xf32> to vector<2x8x1xf32>
    %423 = vector.shape_cast %422 : vector<2x8x1xf32> to vector<2x8xf32>
    %424 = vector.broadcast %422 : vector<2x8x1xf32> to vector<2x8x8xf32>
    %425 = arith.subf %420, %424 : vector<2x8x8xf32>
    %426 = math.exp %425 : vector<2x8x8xf32>
    %cst_151 = arith.constant dense<0.000000e+00> : vector<2x8xf32>
    %427 = vector.multi_reduction <add>, %426, %cst_151 [2] : vector<2x8x8xf32> to vector<2x8xf32>
    %428 = math.log %427 : vector<2x8xf32>
    %429 = arith.addf %423, %428 : vector<2x8xf32>
    %430 = arith.addf %429, %326 : vector<2x8xf32>
    %431 = vector.shape_cast %430 : vector<2x8xf32> to vector<2x1x8xf32>
    %432 = vector.shape_cast %314 : vector<8x8xf32> to vector<1x8x8xf32>
    %433 = vector.broadcast %431 : vector<2x1x8xf32> to vector<2x8x8xf32>
    %434 = vector.broadcast %432 : vector<1x8x8xf32> to vector<2x8x8xf32>
    %435 = arith.addf %433, %434 : vector<2x8x8xf32>
    %cst_152 = arith.constant dense<0xFF800000> : vector<2x8xf32>
    %436 = vector.multi_reduction <maximumf>, %435, %cst_152 [2] : vector<2x8x8xf32> to vector<2x8xf32>
    %437 = vector.shape_cast %436 : vector<2x8xf32> to vector<2x8x1xf32>
    %438 = vector.shape_cast %437 : vector<2x8x1xf32> to vector<2x8xf32>
    %439 = vector.broadcast %437 : vector<2x8x1xf32> to vector<2x8x8xf32>
    %440 = arith.subf %435, %439 : vector<2x8x8xf32>
    %441 = math.exp %440 : vector<2x8x8xf32>
    %cst_153 = arith.constant dense<0.000000e+00> : vector<2x8xf32>
    %442 = vector.multi_reduction <add>, %441, %cst_153 [2] : vector<2x8x8xf32> to vector<2x8xf32>
    %443 = math.log %442 : vector<2x8xf32>
    %444 = arith.addf %438, %443 : vector<2x8xf32>
    %445 = arith.addf %444, %329 : vector<2x8xf32>
    %446 = vector.shape_cast %445 : vector<2x8xf32> to vector<2x1x8xf32>
    %447 = vector.shape_cast %314 : vector<8x8xf32> to vector<1x8x8xf32>
    %448 = vector.broadcast %446 : vector<2x1x8xf32> to vector<2x8x8xf32>
    %449 = vector.broadcast %447 : vector<1x8x8xf32> to vector<2x8x8xf32>
    %450 = arith.addf %448, %449 : vector<2x8x8xf32>
    %cst_154 = arith.constant dense<0xFF800000> : vector<2x8xf32>
    %451 = vector.multi_reduction <maximumf>, %450, %cst_154 [2] : vector<2x8x8xf32> to vector<2x8xf32>
    %452 = vector.shape_cast %451 : vector<2x8xf32> to vector<2x8x1xf32>
    %453 = vector.shape_cast %452 : vector<2x8x1xf32> to vector<2x8xf32>
    %454 = vector.broadcast %452 : vector<2x8x1xf32> to vector<2x8x8xf32>
    %455 = arith.subf %450, %454 : vector<2x8x8xf32>
    %456 = math.exp %455 : vector<2x8x8xf32>
    %cst_155 = arith.constant dense<0.000000e+00> : vector<2x8xf32>
    %457 = vector.multi_reduction <add>, %456, %cst_155 [2] : vector<2x8x8xf32> to vector<2x8xf32>
    %458 = math.log %457 : vector<2x8xf32>
    %459 = arith.addf %453, %458 : vector<2x8xf32>
    %460 = arith.addf %459, %332 : vector<2x8xf32>
    %461 = vector.shape_cast %460 : vector<2x8xf32> to vector<2x1x8xf32>
    %462 = vector.shape_cast %314 : vector<8x8xf32> to vector<1x8x8xf32>
    %463 = vector.broadcast %461 : vector<2x1x8xf32> to vector<2x8x8xf32>
    %464 = vector.broadcast %462 : vector<1x8x8xf32> to vector<2x8x8xf32>
    %465 = arith.addf %463, %464 : vector<2x8x8xf32>
    %cst_156 = arith.constant dense<0xFF800000> : vector<2x8xf32>
    %466 = vector.multi_reduction <maximumf>, %465, %cst_156 [2] : vector<2x8x8xf32> to vector<2x8xf32>
    %467 = vector.shape_cast %466 : vector<2x8xf32> to vector<2x8x1xf32>
    %468 = vector.shape_cast %467 : vector<2x8x1xf32> to vector<2x8xf32>
    %469 = vector.broadcast %467 : vector<2x8x1xf32> to vector<2x8x8xf32>
    %470 = arith.subf %465, %469 : vector<2x8x8xf32>
    %471 = math.exp %470 : vector<2x8x8xf32>
    %cst_157 = arith.constant dense<0.000000e+00> : vector<2x8xf32>
    %472 = vector.multi_reduction <add>, %471, %cst_157 [2] : vector<2x8x8xf32> to vector<2x8xf32>
    %473 = math.log %472 : vector<2x8xf32>
    %474 = arith.addf %468, %473 : vector<2x8xf32>
    %475 = arith.addf %474, %335 : vector<2x8xf32>
    %476 = vector.shape_cast %475 : vector<2x8xf32> to vector<2x1x8xf32>
    %477 = vector.shape_cast %314 : vector<8x8xf32> to vector<1x8x8xf32>
    %478 = vector.broadcast %476 : vector<2x1x8xf32> to vector<2x8x8xf32>
    %479 = vector.broadcast %477 : vector<1x8x8xf32> to vector<2x8x8xf32>
    %480 = arith.addf %478, %479 : vector<2x8x8xf32>
    %cst_158 = arith.constant dense<0xFF800000> : vector<2x8xf32>
    %481 = vector.multi_reduction <maximumf>, %480, %cst_158 [2] : vector<2x8x8xf32> to vector<2x8xf32>
    %482 = vector.shape_cast %481 : vector<2x8xf32> to vector<2x8x1xf32>
    %483 = vector.shape_cast %482 : vector<2x8x1xf32> to vector<2x8xf32>
    %484 = vector.broadcast %482 : vector<2x8x1xf32> to vector<2x8x8xf32>
    %485 = arith.subf %480, %484 : vector<2x8x8xf32>
    %486 = math.exp %485 : vector<2x8x8xf32>
    %cst_159 = arith.constant dense<0.000000e+00> : vector<2x8xf32>
    %487 = vector.multi_reduction <add>, %486, %cst_159 [2] : vector<2x8x8xf32> to vector<2x8xf32>
    %488 = math.log %487 : vector<2x8xf32>
    %489 = arith.addf %483, %488 : vector<2x8xf32>
    %490 = arith.addf %489, %338 : vector<2x8xf32>
    %491 = vector.shape_cast %490 : vector<2x8xf32> to vector<2x1x8xf32>
    %492 = vector.shape_cast %314 : vector<8x8xf32> to vector<1x8x8xf32>
    %493 = vector.broadcast %491 : vector<2x1x8xf32> to vector<2x8x8xf32>
    %494 = vector.broadcast %492 : vector<1x8x8xf32> to vector<2x8x8xf32>
    %495 = arith.addf %493, %494 : vector<2x8x8xf32>
    %cst_160 = arith.constant dense<0xFF800000> : vector<2x8xf32>
    %496 = vector.multi_reduction <maximumf>, %495, %cst_160 [2] : vector<2x8x8xf32> to vector<2x8xf32>
    %497 = vector.shape_cast %496 : vector<2x8xf32> to vector<2x8x1xf32>
    %498 = vector.shape_cast %497 : vector<2x8x1xf32> to vector<2x8xf32>
    %499 = vector.broadcast %497 : vector<2x8x1xf32> to vector<2x8x8xf32>
    %500 = arith.subf %495, %499 : vector<2x8x8xf32>
    %501 = math.exp %500 : vector<2x8x8xf32>
    %cst_161 = arith.constant dense<0.000000e+00> : vector<2x8xf32>
    %502 = vector.multi_reduction <add>, %501, %cst_161 [2] : vector<2x8x8xf32> to vector<2x8xf32>
    %503 = math.log %502 : vector<2x8xf32>
    %504 = arith.addf %498, %503 : vector<2x8xf32>
    %505 = arith.addf %504, %341 : vector<2x8xf32>
    %506 = vector.broadcast %312 : vector<1x8xf32> to vector<2x8xf32>
    %507 = arith.addf %505, %506 : vector<2x8xf32>
    %cst_162 = arith.constant dense<0xFF800000> : vector<2xf32>
    %508 = vector.multi_reduction <maximumf>, %507, %cst_162 [1] : vector<2x8xf32> to vector<2xf32>
    %509 = vector.shape_cast %508 : vector<2xf32> to vector<2x1xf32>
    %510 = vector.broadcast %509 : vector<2x1xf32> to vector<2x8xf32>
    %511 = arith.subf %507, %510 : vector<2x8xf32>
    %512 = math.exp %511 : vector<2x8xf32>
    %cst_163 = arith.constant dense<0.000000e+00> : vector<2xf32>
    %513 = vector.multi_reduction <add>, %512, %cst_163 [1] : vector<2x8xf32> to vector<2xf32>
    %514 = vector.shape_cast %513 : vector<2xf32> to vector<2x1xf32>
    %515 = math.log %514 : vector<2x1xf32>
    %516 = arith.addf %509, %515 : vector<2x1xf32>
    %517 = arith.subf %516, %398 : vector<2x1xf32>
    %cst_164 = arith.constant dense<0.000000e+00> : vector<1xf32>
    %518 = vector.multi_reduction <add>, %517, %cst_164 [0] : vector<2x1xf32> to vector<1xf32>
    %519 = vector.shape_cast %518 : vector<1xf32> to vector<1x1xf32>
    %520 = vector.broadcast %311 : vector<1x8xf32> to vector<2x8xf32>
    %521 = arith.addf %520, %320 : vector<2x8xf32>
    %522 = tpu.iota {dimensions = array<i32: 2>} : vector<2x8x8xi32>
    %523 = vector.shape_cast %521 : vector<2x8xf32> to vector<2x1x8xf32>
    %524 = vector.shape_cast %314 : vector<8x8xf32> to vector<1x8x8xf32>
    %525 = vector.broadcast %523 : vector<2x1x8xf32> to vector<2x8x8xf32>
    %526 = vector.broadcast %524 : vector<1x8x8xf32> to vector<2x8x8xf32>
    %527 = arith.addf %525, %526 : vector<2x8x8xf32>
    %cst_165 = arith.constant dense<0xFF800000> : vector<2x8xf32>
    %528 = vector.multi_reduction <maximumf>, %527, %cst_165 [2] : vector<2x8x8xf32> to vector<2x8xf32>
    %529 = vector.shape_cast %528 : vector<2x8xf32> to vector<2x8x1xf32>
    %530 = vector.broadcast %529 : vector<2x8x1xf32> to vector<2x8x8xf32>
    %531 = arith.cmpf oeq, %527, %530 : vector<2x8x8xf32>
    %c8_i32 = arith.constant 8 : i32
    %532 = vector.broadcast %c8_i32 : i32 to vector<2x8x8xi32>
    %533 = arith.select %531, %522, %532 : vector<2x8x8xi1>, vector<2x8x8xi32>
    %cst_166 = arith.constant dense<2147483647> : vector<2x8xi32>
    %534 = vector.multi_reduction <minsi>, %533, %cst_166 [2] : vector<2x8x8xi32> to vector<2x8xi32>
    %c7_i32 = arith.constant 7 : i32
    %535 = vector.broadcast %c7_i32 : i32 to vector<2x8xi32>
    %536 = arith.minsi %534, %535 : vector<2x8xi32>
    %537 = vector.shape_cast %529 : vector<2x8x1xf32> to vector<2x8xf32>
    %538 = arith.addf %537, %323 : vector<2x8xf32>
    %539 = vector.shape_cast %538 : vector<2x8xf32> to vector<2x1x8xf32>
    %540 = vector.shape_cast %314 : vector<8x8xf32> to vector<1x8x8xf32>
    %541 = vector.broadcast %539 : vector<2x1x8xf32> to vector<2x8x8xf32>
    %542 = vector.broadcast %540 : vector<1x8x8xf32> to vector<2x8x8xf32>
    %543 = arith.addf %541, %542 : vector<2x8x8xf32>
    %cst_167 = arith.constant dense<0xFF800000> : vector<2x8xf32>
    %544 = vector.multi_reduction <maximumf>, %543, %cst_167 [2] : vector<2x8x8xf32> to vector<2x8xf32>
    %545 = vector.shape_cast %544 : vector<2x8xf32> to vector<2x8x1xf32>
    %546 = vector.broadcast %545 : vector<2x8x1xf32> to vector<2x8x8xf32>
    %547 = arith.cmpf oeq, %543, %546 : vector<2x8x8xf32>
    %c8_i32_168 = arith.constant 8 : i32
    %548 = vector.broadcast %c8_i32_168 : i32 to vector<2x8x8xi32>
    %549 = arith.select %547, %522, %548 : vector<2x8x8xi1>, vector<2x8x8xi32>
    %cst_169 = arith.constant dense<2147483647> : vector<2x8xi32>
    %550 = vector.multi_reduction <minsi>, %549, %cst_169 [2] : vector<2x8x8xi32> to vector<2x8xi32>
    %c7_i32_170 = arith.constant 7 : i32
    %551 = vector.broadcast %c7_i32_170 : i32 to vector<2x8xi32>
    %552 = arith.minsi %550, %551 : vector<2x8xi32>
    %553 = vector.shape_cast %545 : vector<2x8x1xf32> to vector<2x8xf32>
    %554 = arith.addf %553, %326 : vector<2x8xf32>
    %555 = vector.shape_cast %554 : vector<2x8xf32> to vector<2x1x8xf32>
    %556 = vector.shape_cast %314 : vector<8x8xf32> to vector<1x8x8xf32>
    %557 = vector.broadcast %555 : vector<2x1x8xf32> to vector<2x8x8xf32>
    %558 = vector.broadcast %556 : vector<1x8x8xf32> to vector<2x8x8xf32>
    %559 = arith.addf %557, %558 : vector<2x8x8xf32>
    %cst_171 = arith.constant dense<0xFF800000> : vector<2x8xf32>
    %560 = vector.multi_reduction <maximumf>, %559, %cst_171 [2] : vector<2x8x8xf32> to vector<2x8xf32>
    %561 = vector.shape_cast %560 : vector<2x8xf32> to vector<2x8x1xf32>
    %562 = vector.broadcast %561 : vector<2x8x1xf32> to vector<2x8x8xf32>
    %563 = arith.cmpf oeq, %559, %562 : vector<2x8x8xf32>
    %c8_i32_172 = arith.constant 8 : i32
    %564 = vector.broadcast %c8_i32_172 : i32 to vector<2x8x8xi32>
    %565 = arith.select %563, %522, %564 : vector<2x8x8xi1>, vector<2x8x8xi32>
    %cst_173 = arith.constant dense<2147483647> : vector<2x8xi32>
    %566 = vector.multi_reduction <minsi>, %565, %cst_173 [2] : vector<2x8x8xi32> to vector<2x8xi32>
    %c7_i32_174 = arith.constant 7 : i32
    %567 = vector.broadcast %c7_i32_174 : i32 to vector<2x8xi32>
    %568 = arith.minsi %566, %567 : vector<2x8xi32>
    %569 = vector.shape_cast %561 : vector<2x8x1xf32> to vector<2x8xf32>
    %570 = arith.addf %569, %329 : vector<2x8xf32>
    %571 = vector.shape_cast %570 : vector<2x8xf32> to vector<2x1x8xf32>
    %572 = vector.shape_cast %314 : vector<8x8xf32> to vector<1x8x8xf32>
    %573 = vector.broadcast %571 : vector<2x1x8xf32> to vector<2x8x8xf32>
    %574 = vector.broadcast %572 : vector<1x8x8xf32> to vector<2x8x8xf32>
    %575 = arith.addf %573, %574 : vector<2x8x8xf32>
    %cst_175 = arith.constant dense<0xFF800000> : vector<2x8xf32>
    %576 = vector.multi_reduction <maximumf>, %575, %cst_175 [2] : vector<2x8x8xf32> to vector<2x8xf32>
    %577 = vector.shape_cast %576 : vector<2x8xf32> to vector<2x8x1xf32>
    %578 = vector.broadcast %577 : vector<2x8x1xf32> to vector<2x8x8xf32>
    %579 = arith.cmpf oeq, %575, %578 : vector<2x8x8xf32>
    %c8_i32_176 = arith.constant 8 : i32
    %580 = vector.broadcast %c8_i32_176 : i32 to vector<2x8x8xi32>
    %581 = arith.select %579, %522, %580 : vector<2x8x8xi1>, vector<2x8x8xi32>
    %cst_177 = arith.constant dense<2147483647> : vector<2x8xi32>
    %582 = vector.multi_reduction <minsi>, %581, %cst_177 [2] : vector<2x8x8xi32> to vector<2x8xi32>
    %c7_i32_178 = arith.constant 7 : i32
    %583 = vector.broadcast %c7_i32_178 : i32 to vector<2x8xi32>
    %584 = arith.minsi %582, %583 : vector<2x8xi32>
    %585 = vector.shape_cast %577 : vector<2x8x1xf32> to vector<2x8xf32>
    %586 = arith.addf %585, %332 : vector<2x8xf32>
    %587 = vector.shape_cast %586 : vector<2x8xf32> to vector<2x1x8xf32>
    %588 = vector.shape_cast %314 : vector<8x8xf32> to vector<1x8x8xf32>
    %589 = vector.broadcast %587 : vector<2x1x8xf32> to vector<2x8x8xf32>
    %590 = vector.broadcast %588 : vector<1x8x8xf32> to vector<2x8x8xf32>
    %591 = arith.addf %589, %590 : vector<2x8x8xf32>
    %cst_179 = arith.constant dense<0xFF800000> : vector<2x8xf32>
    %592 = vector.multi_reduction <maximumf>, %591, %cst_179 [2] : vector<2x8x8xf32> to vector<2x8xf32>
    %593 = vector.shape_cast %592 : vector<2x8xf32> to vector<2x8x1xf32>
    %594 = vector.broadcast %593 : vector<2x8x1xf32> to vector<2x8x8xf32>
    %595 = arith.cmpf oeq, %591, %594 : vector<2x8x8xf32>
    %c8_i32_180 = arith.constant 8 : i32
    %596 = vector.broadcast %c8_i32_180 : i32 to vector<2x8x8xi32>
    %597 = arith.select %595, %522, %596 : vector<2x8x8xi1>, vector<2x8x8xi32>
    %cst_181 = arith.constant dense<2147483647> : vector<2x8xi32>
    %598 = vector.multi_reduction <minsi>, %597, %cst_181 [2] : vector<2x8x8xi32> to vector<2x8xi32>
    %c7_i32_182 = arith.constant 7 : i32
    %599 = vector.broadcast %c7_i32_182 : i32 to vector<2x8xi32>
    %600 = arith.minsi %598, %599 : vector<2x8xi32>
    %601 = vector.shape_cast %593 : vector<2x8x1xf32> to vector<2x8xf32>
    %602 = arith.addf %601, %335 : vector<2x8xf32>
    %603 = vector.shape_cast %602 : vector<2x8xf32> to vector<2x1x8xf32>
    %604 = vector.shape_cast %314 : vector<8x8xf32> to vector<1x8x8xf32>
    %605 = vector.broadcast %603 : vector<2x1x8xf32> to vector<2x8x8xf32>
    %606 = vector.broadcast %604 : vector<1x8x8xf32> to vector<2x8x8xf32>
    %607 = arith.addf %605, %606 : vector<2x8x8xf32>
    %cst_183 = arith.constant dense<0xFF800000> : vector<2x8xf32>
    %608 = vector.multi_reduction <maximumf>, %607, %cst_183 [2] : vector<2x8x8xf32> to vector<2x8xf32>
    %609 = vector.shape_cast %608 : vector<2x8xf32> to vector<2x8x1xf32>
    %610 = vector.broadcast %609 : vector<2x8x1xf32> to vector<2x8x8xf32>
    %611 = arith.cmpf oeq, %607, %610 : vector<2x8x8xf32>
    %c8_i32_184 = arith.constant 8 : i32
    %612 = vector.broadcast %c8_i32_184 : i32 to vector<2x8x8xi32>
    %613 = arith.select %611, %522, %612 : vector<2x8x8xi1>, vector<2x8x8xi32>
    %cst_185 = arith.constant dense<2147483647> : vector<2x8xi32>
    %614 = vector.multi_reduction <minsi>, %613, %cst_185 [2] : vector<2x8x8xi32> to vector<2x8xi32>
    %c7_i32_186 = arith.constant 7 : i32
    %615 = vector.broadcast %c7_i32_186 : i32 to vector<2x8xi32>
    %616 = arith.minsi %614, %615 : vector<2x8xi32>
    %617 = vector.shape_cast %609 : vector<2x8x1xf32> to vector<2x8xf32>
    %618 = arith.addf %617, %338 : vector<2x8xf32>
    %619 = vector.shape_cast %618 : vector<2x8xf32> to vector<2x1x8xf32>
    %620 = vector.shape_cast %314 : vector<8x8xf32> to vector<1x8x8xf32>
    %621 = vector.broadcast %619 : vector<2x1x8xf32> to vector<2x8x8xf32>
    %622 = vector.broadcast %620 : vector<1x8x8xf32> to vector<2x8x8xf32>
    %623 = arith.addf %621, %622 : vector<2x8x8xf32>
    %cst_187 = arith.constant dense<0xFF800000> : vector<2x8xf32>
    %624 = vector.multi_reduction <maximumf>, %623, %cst_187 [2] : vector<2x8x8xf32> to vector<2x8xf32>
    %625 = vector.shape_cast %624 : vector<2x8xf32> to vector<2x8x1xf32>
    %626 = vector.broadcast %625 : vector<2x8x1xf32> to vector<2x8x8xf32>
    %627 = arith.cmpf oeq, %623, %626 : vector<2x8x8xf32>
    %c8_i32_188 = arith.constant 8 : i32
    %628 = vector.broadcast %c8_i32_188 : i32 to vector<2x8x8xi32>
    %629 = arith.select %627, %522, %628 : vector<2x8x8xi1>, vector<2x8x8xi32>
    %cst_189 = arith.constant dense<2147483647> : vector<2x8xi32>
    %630 = vector.multi_reduction <minsi>, %629, %cst_189 [2] : vector<2x8x8xi32> to vector<2x8xi32>
    %c7_i32_190 = arith.constant 7 : i32
    %631 = vector.broadcast %c7_i32_190 : i32 to vector<2x8xi32>
    %632 = arith.minsi %630, %631 : vector<2x8xi32>
    %633 = vector.shape_cast %625 : vector<2x8x1xf32> to vector<2x8xf32>
    %634 = arith.addf %633, %341 : vector<2x8xf32>
    %635 = vector.broadcast %312 : vector<1x8xf32> to vector<2x8xf32>
    %636 = arith.addf %634, %635 : vector<2x8xf32>
    %cst_191 = arith.constant dense<0xFF800000> : vector<2xf32>
    %637 = vector.multi_reduction <maximumf>, %636, %cst_191 [1] : vector<2x8xf32> to vector<2xf32>
    %638 = vector.shape_cast %637 : vector<2xf32> to vector<2x1xf32>
    %639 = tpu.iota {dimensions = array<i32: 1>} : vector<2x8xi32>
    %640 = vector.broadcast %638 : vector<2x1xf32> to vector<2x8xf32>
    %641 = arith.cmpf oeq, %636, %640 : vector<2x8xf32>
    %c8_i32_192 = arith.constant 8 : i32
    %642 = vector.broadcast %c8_i32_192 : i32 to vector<2x8xi32>
    %643 = arith.select %641, %639, %642 : vector<2x8xi1>, vector<2x8xi32>
    %cst_193 = arith.constant dense<2147483647> : vector<2xi32>
    %644 = vector.multi_reduction <minsi>, %643, %cst_193 [1] : vector<2x8xi32> to vector<2xi32>
    %645 = vector.shape_cast %644 : vector<2xi32> to vector<2x1xi32>
    %c7_i32_194 = arith.constant 7 : i32
    %646 = vector.broadcast %c7_i32_194 : i32 to vector<2x1xi32>
    %647 = arith.minsi %645, %646 : vector<2x1xi32>
    %648 = tpu.iota {dimensions = array<i32: 1>} : vector<2x128xi32>
    %c7_i32_195 = arith.constant 7 : i32
    %649 = vector.broadcast %c7_i32_195 : i32 to vector<2x128xi32>
    %650 = arith.cmpi eq, %648, %649 : vector<2x128xi32>
    %651 = arith.sitofp %647 : vector<2x1xi32> to vector<2x1xf32>
    %cst_196 = arith.constant 0.000000e+00 : f32
    %652 = vector.shape_cast %651 : vector<2x1xf32> to vector<2x1xf32>
    %653 = vector.broadcast %652 : vector<2x1xf32> to vector<2x128xf32>
    %654 = vector.broadcast %cst_196 : f32 to vector<2x128xf32>
    %655 = arith.select %650, %653, %654 : vector<2x128xi1>, vector<2x128xf32>
    %656 = tpu.iota {dimensions = array<i32: 1>} : vector<2x8xi32>
    %657 = vector.broadcast %647 : vector<2x1xi32> to vector<2x8xi32>
    %658 = arith.cmpi eq, %656, %657 : vector<2x8xi32>
    %c0_i32_197 = arith.constant 0 : i32
    %659 = vector.broadcast %c0_i32_197 : i32 to vector<2x8xi32>
    %660 = arith.select %658, %632, %659 : vector<2x8xi1>, vector<2x8xi32>
    %cst_198 = arith.constant dense<0> : vector<2xi32>
    %661 = vector.multi_reduction <add>, %660, %cst_198 [1] : vector<2x8xi32> to vector<2xi32>
    %662 = vector.shape_cast %661 : vector<2xi32> to vector<2x1xi32>
    %c6_i32 = arith.constant 6 : i32
    %663 = vector.broadcast %c6_i32 : i32 to vector<2x128xi32>
    %664 = arith.cmpi eq, %648, %663 : vector<2x128xi32>
    %665 = arith.sitofp %662 : vector<2x1xi32> to vector<2x1xf32>
    %666 = vector.shape_cast %665 : vector<2x1xf32> to vector<2x1xf32>
    %667 = vector.broadcast %666 : vector<2x1xf32> to vector<2x128xf32>
    %668 = arith.select %664, %667, %655 : vector<2x128xi1>, vector<2x128xf32>
    %669 = vector.broadcast %662 : vector<2x1xi32> to vector<2x8xi32>
    %670 = arith.cmpi eq, %656, %669 : vector<2x8xi32>
    %c0_i32_199 = arith.constant 0 : i32
    %671 = vector.broadcast %c0_i32_199 : i32 to vector<2x8xi32>
    %672 = arith.select %670, %616, %671 : vector<2x8xi1>, vector<2x8xi32>
    %cst_200 = arith.constant dense<0> : vector<2xi32>
    %673 = vector.multi_reduction <add>, %672, %cst_200 [1] : vector<2x8xi32> to vector<2xi32>
    %674 = vector.shape_cast %673 : vector<2xi32> to vector<2x1xi32>
    %c5_i32 = arith.constant 5 : i32
    %675 = vector.broadcast %c5_i32 : i32 to vector<2x128xi32>
    %676 = arith.cmpi eq, %648, %675 : vector<2x128xi32>
    %677 = arith.sitofp %674 : vector<2x1xi32> to vector<2x1xf32>
    %678 = vector.shape_cast %677 : vector<2x1xf32> to vector<2x1xf32>
    %679 = vector.broadcast %678 : vector<2x1xf32> to vector<2x128xf32>
    %680 = arith.select %676, %679, %668 : vector<2x128xi1>, vector<2x128xf32>
    %681 = vector.broadcast %674 : vector<2x1xi32> to vector<2x8xi32>
    %682 = arith.cmpi eq, %656, %681 : vector<2x8xi32>
    %c0_i32_201 = arith.constant 0 : i32
    %683 = vector.broadcast %c0_i32_201 : i32 to vector<2x8xi32>
    %684 = arith.select %682, %600, %683 : vector<2x8xi1>, vector<2x8xi32>
    %cst_202 = arith.constant dense<0> : vector<2xi32>
    %685 = vector.multi_reduction <add>, %684, %cst_202 [1] : vector<2x8xi32> to vector<2xi32>
    %686 = vector.shape_cast %685 : vector<2xi32> to vector<2x1xi32>
    %c4_i32 = arith.constant 4 : i32
    %687 = vector.broadcast %c4_i32 : i32 to vector<2x128xi32>
    %688 = arith.cmpi eq, %648, %687 : vector<2x128xi32>
    %689 = arith.sitofp %686 : vector<2x1xi32> to vector<2x1xf32>
    %690 = vector.shape_cast %689 : vector<2x1xf32> to vector<2x1xf32>
    %691 = vector.broadcast %690 : vector<2x1xf32> to vector<2x128xf32>
    %692 = arith.select %688, %691, %680 : vector<2x128xi1>, vector<2x128xf32>
    %693 = vector.broadcast %686 : vector<2x1xi32> to vector<2x8xi32>
    %694 = arith.cmpi eq, %656, %693 : vector<2x8xi32>
    %c0_i32_203 = arith.constant 0 : i32
    %695 = vector.broadcast %c0_i32_203 : i32 to vector<2x8xi32>
    %696 = arith.select %694, %584, %695 : vector<2x8xi1>, vector<2x8xi32>
    %cst_204 = arith.constant dense<0> : vector<2xi32>
    %697 = vector.multi_reduction <add>, %696, %cst_204 [1] : vector<2x8xi32> to vector<2xi32>
    %698 = vector.shape_cast %697 : vector<2xi32> to vector<2x1xi32>
    %c3_i32 = arith.constant 3 : i32
    %699 = vector.broadcast %c3_i32 : i32 to vector<2x128xi32>
    %700 = arith.cmpi eq, %648, %699 : vector<2x128xi32>
    %701 = arith.sitofp %698 : vector<2x1xi32> to vector<2x1xf32>
    %702 = vector.shape_cast %701 : vector<2x1xf32> to vector<2x1xf32>
    %703 = vector.broadcast %702 : vector<2x1xf32> to vector<2x128xf32>
    %704 = arith.select %700, %703, %692 : vector<2x128xi1>, vector<2x128xf32>
    %705 = vector.broadcast %698 : vector<2x1xi32> to vector<2x8xi32>
    %706 = arith.cmpi eq, %656, %705 : vector<2x8xi32>
    %c0_i32_205 = arith.constant 0 : i32
    %707 = vector.broadcast %c0_i32_205 : i32 to vector<2x8xi32>
    %708 = arith.select %706, %568, %707 : vector<2x8xi1>, vector<2x8xi32>
    %cst_206 = arith.constant dense<0> : vector<2xi32>
    %709 = vector.multi_reduction <add>, %708, %cst_206 [1] : vector<2x8xi32> to vector<2xi32>
    %710 = vector.shape_cast %709 : vector<2xi32> to vector<2x1xi32>
    %c2_i32 = arith.constant 2 : i32
    %711 = vector.broadcast %c2_i32 : i32 to vector<2x128xi32>
    %712 = arith.cmpi eq, %648, %711 : vector<2x128xi32>
    %713 = arith.sitofp %710 : vector<2x1xi32> to vector<2x1xf32>
    %714 = vector.shape_cast %713 : vector<2x1xf32> to vector<2x1xf32>
    %715 = vector.broadcast %714 : vector<2x1xf32> to vector<2x128xf32>
    %716 = arith.select %712, %715, %704 : vector<2x128xi1>, vector<2x128xf32>
    %717 = vector.broadcast %710 : vector<2x1xi32> to vector<2x8xi32>
    %718 = arith.cmpi eq, %656, %717 : vector<2x8xi32>
    %c0_i32_207 = arith.constant 0 : i32
    %719 = vector.broadcast %c0_i32_207 : i32 to vector<2x8xi32>
    %720 = arith.select %718, %552, %719 : vector<2x8xi1>, vector<2x8xi32>
    %cst_208 = arith.constant dense<0> : vector<2xi32>
    %721 = vector.multi_reduction <add>, %720, %cst_208 [1] : vector<2x8xi32> to vector<2xi32>
    %722 = vector.shape_cast %721 : vector<2xi32> to vector<2x1xi32>
    %c1_i32 = arith.constant 1 : i32
    %723 = vector.broadcast %c1_i32 : i32 to vector<2x128xi32>
    %724 = arith.cmpi eq, %648, %723 : vector<2x128xi32>
    %725 = arith.sitofp %722 : vector<2x1xi32> to vector<2x1xf32>
    %726 = vector.shape_cast %725 : vector<2x1xf32> to vector<2x1xf32>
    %727 = vector.broadcast %726 : vector<2x1xf32> to vector<2x128xf32>
    %728 = arith.select %724, %727, %716 : vector<2x128xi1>, vector<2x128xf32>
    %729 = vector.broadcast %722 : vector<2x1xi32> to vector<2x8xi32>
    %730 = arith.cmpi eq, %656, %729 : vector<2x8xi32>
    %c0_i32_209 = arith.constant 0 : i32
    %731 = vector.broadcast %c0_i32_209 : i32 to vector<2x8xi32>
    %732 = arith.select %730, %536, %731 : vector<2x8xi1>, vector<2x8xi32>
    %cst_210 = arith.constant dense<0> : vector<2xi32>
    %733 = vector.multi_reduction <add>, %732, %cst_210 [1] : vector<2x8xi32> to vector<2xi32>
    %734 = vector.shape_cast %733 : vector<2xi32> to vector<2x1xi32>
    %c0_i32_211 = arith.constant 0 : i32
    %735 = vector.broadcast %c0_i32_211 : i32 to vector<2x128xi32>
    %736 = arith.cmpi eq, %648, %735 : vector<2x128xi32>
    %737 = arith.sitofp %734 : vector<2x1xi32> to vector<2x1xf32>
    %738 = vector.shape_cast %737 : vector<2x1xf32> to vector<2x1xf32>
    %739 = vector.broadcast %738 : vector<2x1xf32> to vector<2x128xf32>
    %740 = arith.select %736, %739, %728 : vector<2x128xi1>, vector<2x128xf32>
    %741 = tpu.iota {dimensions = array<i32: 0>} : vector<8x128xi32>
    %742 = tpu.iota {dimensions = array<i32: 1>} : vector<8x128xi32>
    %c0_i32_212 = arith.constant 0 : i32
    %743 = vector.broadcast %c0_i32_212 : i32 to vector<8x128xi32>
    %744 = arith.cmpi eq, %741, %743 : vector<8x128xi32>
    %c0_i32_213 = arith.constant 0 : i32
    %745 = vector.broadcast %c0_i32_213 : i32 to vector<8x128xi32>
    %746 = arith.cmpi eq, %742, %745 : vector<8x128xi32>
    %747 = arith.andi %744, %746 : vector<8x128xi1>
    %cst_214 = arith.constant 0.000000e+00 : f32
    %748 = vector.shape_cast %519 : vector<1x1xf32> to vector<1x1xf32>
    %749 = vector.broadcast %748 : vector<1x1xf32> to vector<8x128xf32>
    %750 = vector.broadcast %cst_214 : f32 to vector<8x128xf32>
    %751 = arith.select %747, %749, %750 : vector<8x128xi1>, vector<8x128xf32>
    %c1_i32_215 = arith.constant 1 : i32
    %752 = vector.broadcast %c1_i32_215 : i32 to vector<8x128xi32>
    %753 = arith.cmpi eq, %741, %752 : vector<8x128xi32>
    %754 = vector.extract_strided_slice %740 {offsets = [0, 0], sizes = [1, 128], strides = [1, 1]} : vector<2x128xf32> to vector<1x128xf32>
    %755 = vector.shape_cast %754 : vector<1x128xf32> to vector<1x128xf32>
    %756 = vector.broadcast %755 : vector<1x128xf32> to vector<8x128xf32>
    %757 = arith.select %753, %756, %751 : vector<8x128xi1>, vector<8x128xf32>
    %c2_i32_216 = arith.constant 2 : i32
    %758 = vector.broadcast %c2_i32_216 : i32 to vector<8x128xi32>
    %759 = arith.cmpi eq, %741, %758 : vector<8x128xi32>
    %760 = vector.extract_strided_slice %740 {offsets = [1, 0], sizes = [1, 128], strides = [1, 1]} : vector<2x128xf32> to vector<1x128xf32>
    %761 = vector.shape_cast %760 : vector<1x128xf32> to vector<1x128xf32>
    %762 = vector.broadcast %761 : vector<1x128xf32> to vector<8x128xf32>
    %763 = arith.select %759, %762, %757 : vector<8x128xi1>, vector<8x128xf32>
    %c0_217 = arith.constant 0 : index
    %c0_218 = arith.constant 0 : index
    %764 = vector.load %arg6[%c0_217, %c0_218] : memref<8x128xf32, #tpu.memory_space<vmem>>, vector<8x128xf32>
    tpu.vector_store %arg6[%c0_217, %c0_218], %763 {strides = array<i32>} : memref<8x128xf32, #tpu.memory_space<vmem>>, vector<8x128xf32>,
    return
  }
  func.func @transform_0(%arg0: i32) -> (i32, i32) {
    %c0_i32 = arith.constant 0 : i32
    %c0_i32_0 = arith.constant 0 : i32
    %c0_i32_1 = arith.constant 0 : i32
    return %c0_i32, %c0_i32_0 : i32, i32
  }
  func.func @transform_1(%arg0: i32) -> (i32, i32) {
    %c0_i32 = arith.constant 0 : i32
    %c0_i32_0 = arith.constant 0 : i32
    %c0_i32_1 = arith.constant 0 : i32
    return %c0_i32, %c0_i32_0 : i32, i32
  }
  func.func @transform_2(%arg0: i32) -> (i32, i32) {
    %c0_i32 = arith.constant 0 : i32
    %c0_i32_0 = arith.constant 0 : i32
    %c0_i32_1 = arith.constant 0 : i32
    return %c0_i32, %c0_i32_0 : i32, i32
  }
  func.func @transform_3(%arg0: i32) -> (i32, i32, i32) {
    %c0_i32 = arith.constant 0 : i32
    %c0_i32_0 = arith.constant 0 : i32
    %c0_i32_1 = arith.constant 0 : i32
    %c0_i32_2 = arith.constant 0 : i32
    return %c0_i32, %c0_i32_0, %c0_i32_1 : i32, i32, i32
  }
  func.func @transform_4(%arg0: i32) -> (i32, i32) {
    %c0_i32 = arith.constant 0 : i32
    %c0_i32_0 = arith.constant 0 : i32
    %c0_i32_1 = arith.constant 0 : i32
    return %c0_i32, %c0_i32_0 : i32, i32
  }
  func.func @transform_5(%arg0: i32) -> (i32, i32) {
    %c0_i32 = arith.constant 0 : i32
    %c0_i32_0 = arith.constant 0 : i32
    %c0_i32_1 = arith.constant 0 : i32
    return %c0_i32, %c0_i32_0 : i32, i32
  }
}

</mosaic_0001>

<llo_original>
// kernel: tile.8
$region0: #{tile.8}
  #allocation0 [shape = 's32[1]{0}', space=sflag, size = 0x4, scoped, tag = 'scoped memory for tile.8']
  %s0 = inlined_call_operand.vmem [shape: pred[16], index: 0, kind: input, shape index: {}]
  %s1 = inlined_call_operand.vmem [shape: pred[4,16], index: 1, kind: output, shape index: {}]
  // Predicated region
  $region2: #{tile.8} parent=0 // pred_check
    _
  $region3: #{tile.8} parent=0 // pred_check_branch
    %3 = sbr.rel (0) target = $region5
  $region4: #{tile.8} parent=0 // pred_region
    _
  $region5: #{tile.8} parent=0 // pred_fallthru
    _
  %v4 = vld [vmem:[%s0] ss:$0 sm:$0xff]
  %v6 = vshra.s32 %v4, 0
  %v7 = vand.u32 %v6, 255
  %v8 = vpack.c.b16 0, %v7
  %v9 = vpack.c.b8 0, %v8
  %11 = vst [vmem:[%s1] sm:$0x1] %v9

// kernel: kobert_crf_forward.1
$region0: #{kobert_crf_forward.1}
  #allocation0 [shape = 'u32[]', space=smem, size = 0x4, offset = 0x4, fixed_abs, tag = 'smem constant byte address 0x4 - core index']
  #allocation1 [shape = 'u32[144,128]{1,0:T(1,128)}', space=vmem, size = 0x12000, scoped, tag = 'internal scratch']
  %s0 = inlined_call_operand.vmem [shape: s32[16,3], index: 0, kind: input, shape index: {}]
  %s1 = inlined_call_operand.vmem [shape: f32[64,64], index: 1, kind: input, shape index: {}]
  %s2 = inlined_call_operand.vmem [shape: f32[148,32], index: 2, kind: input, shape index: {}]
  %s3 = inlined_call_operand.vmem [shape: f32[2,168,96], index: 3, kind: input, shape index: {}]
  %s4 = inlined_call_operand.vmem [shape: f32[51,8], index: 4, kind: input, shape index: {}]
  %s5 = inlined_call_operand.vmem [shape: f32[8,128], index: 5, kind: output, shape index: {}]
  %s6 = sld [smem:[#allocation0]]
  $region30: #{kobert_crf_forward.1} parent=0
    _
  %s8 = ssub.s32 1, %s6
  %s9 = scalar_select 0, %s8, %s6
  // Predicated region
  $region2: #{kobert_crf_forward.1} parent=0 // pred_check
    _
  $region3: #{kobert_crf_forward.1} parent=0 // pred_check_branch
    %11 = sbr.rel (0) target = $region5
  $region4: #{kobert_crf_forward.1} parent=0 // pred_region
    _
  $region5: #{kobert_crf_forward.1} parent=0 // pred_fallthru
    _
  // Predicated region
  $region6: #{kobert_crf_forward.1} parent=0 // pred_check
    _
  $region7: #{kobert_crf_forward.1} parent=0 // pred_check_branch
    %13 = sbr.rel (0) target = $region9
  $region8: #{kobert_crf_forward.1} parent=0 // pred_region
    _
  $region9: #{kobert_crf_forward.1} parent=0 // pred_fallthru
    _
  // Predicated region
  $region10: #{kobert_crf_forward.1} parent=0 // pred_check
    _
  $region11: #{kobert_crf_forward.1} parent=0 // pred_check_branch
    %15 = sbr.rel (0) target = $region13
  $region12: #{kobert_crf_forward.1} parent=0 // pred_region
    _
  $region13: #{kobert_crf_forward.1} parent=0 // pred_fallthru
    _
  // Predicated region
  $region14: #{kobert_crf_forward.1} parent=0 // pred_check
    _
  $region15: #{kobert_crf_forward.1} parent=0 // pred_check_branch
    %17 = sbr.rel (0) target = $region17
  $region16: #{kobert_crf_forward.1} parent=0 // pred_region
    _
  $region17: #{kobert_crf_forward.1} parent=0 // pred_fallthru
    _
  // Predicated region
  $region18: #{kobert_crf_forward.1} parent=0 // pred_check
    _
  $region19: #{kobert_crf_forward.1} parent=0 // pred_check_branch
    %19 = sbr.rel (0) target = $region21
  $region20: #{kobert_crf_forward.1} parent=0 // pred_region
    _
  $region21: #{kobert_crf_forward.1} parent=0 // pred_fallthru
    _
  %v20 = vld [vmem:[%s0] sm:$0xff]
  %v21 = vld [vmem:[%s0 + $0x8] sm:$0xff]
  %v22 = vld [vmem:[%s1] sm:$0xff]
  %v23 = vld [vmem:[%s1 + $0x8] sm:$0xff]
  %v24 = vld [vmem:[%s1 + $0x10] sm:$0xff]
  %v25 = vld [vmem:[%s1 + $0x18] sm:$0xff]
  %v26 = vld [vmem:[%s1 + $0x20] sm:$0xff]
  %v27 = vld [vmem:[%s1 + $0x28] sm:$0xff]
  %v28 = vld [vmem:[%s1 + $0x30] sm:$0xff]
  %v29 = vld [vmem:[%s1 + $0x38] sm:$0xff]
  %v30 = vld [vmem:[%s2] sm:$0xff]
  %v31 = vld [vmem:[%s2 + $0x8] sm:$0xff]
  %v32 = vld [vmem:[%s2 + $0x10] sm:$0xff]
  %v33 = vld [vmem:[%s2 + $0x18] sm:$0xff]
  %v34 = vld [vmem:[%s2 + $0x20] sm:$0xff]
  %v35 = vld [vmem:[%s2 + $0x28] sm:$0xff]
  %v36 = vld [vmem:[%s2 + $0x30] sm:$0xff]
  %v37 = vld [vmem:[%s2 + $0x38] sm:$0xff]
  %v38 = vld [vmem:[%s2 + $0x40] sm:$0xff]
  %v39 = vld [vmem:[%s2 + $0x48] sm:$0xff]
  %v40 = vld [vmem:[%s2 + $0x50] sm:$0xff]
  %v41 = vld [vmem:[%s2 + $0x58] sm:$0xff]
  %v42 = vld [vmem:[%s2 + $0x60] sm:$0xff]
  %v43 = vld [vmem:[%s2 + $0x68] sm:$0xff]
  %v44 = vld [vmem:[%s2 + $0x70] sm:$0xff]
  %v45 = vld [vmem:[%s2 + $0x78] sm:$0xff]
  %v46 = vld [vmem:[%s2 + $0x80] sm:$0xff]
  %v47 = vld [vmem:[%s2 + $0x88] sm:$0xff]
  %v48 = vld [vmem:[%s2 + $0x90] sm:$0x1]
  %v49 = vld [vmem:[%s2 + $0x91] sm:$0x1]
  %v50 = vld [vmem:[%s2 + $0x92] sm:$0x1]
  %v51 = vld [vmem:[%s2 + $0x93] sm:$0x1]
  %v52 = vlaneseq
  %v53 = vand.u32 %v52, 127
  %54 = vset.pattern.permute.xlu0 0
  %55 = vperm.xlu0 %54, %v20
  %v56 = vpop.permute.xlu0 %55
  %57 = vset.pattern.permute.xlu0 0
  %58 = vperm.xlu0 %57, %v21
  %v59 = vpop.permute.xlu0 %58
  %vm60 = vcmp.eq.s32.totalorder %v53, %v56
  %vm61 = vcmp.eq.s32.totalorder %v53, %v59
  %v62 = vsel %vm60, 1, 0
  %v63 = vsel %vm61, 1, 0
  %v64 = vcvt.s32.f32 %v62
  %v65 = vcvt.s32.f32 %v63
  %66 = vmatprep.subr.mxu0 0.0
  %67 = vmatpush1.msra.mxu0 %v30
  %68 = vmatprep.subr.mxu0 0.0
  %69 = vmatpush1.msra.mxu0 %v31
  %70 = vmatprep.subr.mxu0 0.0
  %71 = vmatpush1.msra.mxu0 %v32
  %72 = vmatprep.subr.mxu0 0.0
  %73 = vmatpush1.msra.mxu0 %v33
  %74 = vmatprep.subr.mxu0 0.0
  %75 = vmatpush1.msra.mxu0 %v34
  %76 = vmatprep.subr.mxu0 0.0
  %77 = vmatpush1.msra.mxu0 %v35
  %78 = vmatprep.subr.mxu0 0.0
  %79 = vmatpush1.msra.mxu0 %v36
  %80 = vmatprep.subr.mxu0 0.0
  %81 = vmatpush1.msra.mxu0 %v37
  %82 = vmatprep.subr.mxu0 0.0
  %83 = vmatpush1.msra.mxu0 %v38
  %84 = vmatprep.subr.mxu0 0.0
  %85 = vmatpush1.msra.mxu0 %v39
  %86 = vmatprep.subr.mxu0 0.0
  %87 = vmatpush1.msra.mxu0 %v40
  %88 = vmatprep.subr.mxu0 0.0
  %89 = vmatpush1.msra.mxu0 %v41
  %90 = vmatprep.subr.mxu0 0.0
  %91 = vmatpush1.msra.mxu0 %v42
  %92 = vmatprep.subr.mxu0 0.0
  %93 = vmatpush1.msra.mxu0 %v43
  %94 = vmatprep.subr.mxu0 0.0
  %95 = vmatpush1.msra.mxu0 %v44
  %96 = vmatprep.subr.mxu0 0.0
  %97 = vmatpush1.msra.mxu0 %v45
  %98 = vmatprep.subr.mxu0 0.0
  %99 = vmatpush1.msra.mxu0 0.0
  %100 = vmatprep.subr.mxu0 0.0
  %101 = vmatpush1.msra.mxu0 0.0
  %102 = vmatprep.subr.mxu0 0.0
  %103 = vmatpush1.msra.mxu0 0.0
  %104 = vmatprep.subr.mxu0 0.0
  %105 = vmatpush1.msra.mxu0 0.0
  %106 = vmatprep.subr.mxu0 0.0
  %107 = vmatpush1.msra.mxu0 0.0
  %108 = vmatprep.subr.mxu0 0.0
  %109 = vmatpush1.msra.mxu0 0.0
  %110 = vmatprep.subr.mxu0 0.0
  %111 = vmatpush1.msra.mxu0 0.0
  %112 = vmatprep.subr.mxu0 0.0
  %113 = vmatpush1.msra.mxu0 0.0
  %114 = vmatprep.subr.mxu0 0.0
  %115 = vmatpush1.msra.mxu0 0.0
  %116 = vmatprep.subr.mxu0 0.0
  %117 = vmatpush1.msra.mxu0 0.0
  %118 = vmatprep.subr.mxu0 0.0
  %119 = vmatpush1.msra.mxu0 0.0
  %120 = vmatprep.subr.mxu0 0.0
  %121 = vmatpush1.msra.mxu0 0.0
  %122 = vmatprep.subr.mxu0 0.0
  %123 = vmatpush1.msra.mxu0 0.0
  %124 = vmatprep.subr.mxu0 0.0
  %125 = vmatpush1.msra.mxu0 0.0
  %126 = vmatprep.subr.mxu0 0.0
  %127 = vmatpush1.msra.mxu0 0.0
  %128 = vmatprep.subr.mxu0 0.0
  %129 = vmatpush1.msra.mxu0 0.0
  %130 = vmatprep.mubr.f32.mxu0 0.0
  %131 = vmatmul.mubr.f32.gmra.mrb[0].mxu0 %v64
  %v132 = vpop.f32.mrb[0].mxu0
  %v133 = vadd.f32 %v46, %v132
  %v134 = vpop.f32.mrb[0].mxu0
  %135 = vmatprep.mubr.f32.mxu0 0.0
  %136 = vmatmul.mubr.f32.gmra.mrb[0].mxu0 %v65
  %v137 = vpop.f32.mrb[0].mxu0
  %v138 = vadd.f32 %v47, %v137
  %v139 = vpop.f32.mrb[0].mxu0
  %140 = vdwg.mxu0
  %vm141 = vcmp.eq.s32.totalorder %v20, 0
  %vm142 = vcmp.eq.s32.totalorder %v21, 0
  %v143 = vsel %vm141, 1, 0
  %v144 = vsel %vm142, 1, 0
  %145 = vset.pattern.permute.xlu0 1
  %146 = vperm.xlu0 %145, %v143
  %v147 = vpop.permute.xlu0 %146
  %148 = vset.pattern.permute.xlu0 1
  %149 = vperm.xlu0 %148, %v144
  %v150 = vpop.permute.xlu0 %149
  %vm151 = vcmp.eq.s32.totalorder %v147, 1
  %vm152 = vcmp.eq.s32.totalorder %v150, 1
  %v153 = vlaneseq
  %v154 = vshrl.u32 %v153, 7
  %v155 = vsub.s32 0, %v154
  %v156 = vrot.slane %v48, %v155
  %v157 = vlaneseq
  %v158 = vshrl.u32 %v157, 7
  %v159 = vsub.s32 0, %v158
  %v160 = vrot.slane %v49, %v159
  %v161 = vsel %vm151, %v156, %v160
  %v162 = vsel %vm152, %v156, %v160
  %v163 = vadd.f32 %v133, %v161
  %v164 = vadd.f32 %v138, %v162
  %vm165 = vcmask 261120
  %v166 = vsel %vm165, %v163, 0.0
  %167 = vadd.xlane.f32.xlu0 %v166
  %v168 = vpop.xlane.xlu0 %167
  %v169 = vsel %vm165, %v164, 0.0
  %170 = vadd.xlane.f32.xlu0 %v169
  %v171 = vpop.xlane.xlu0 %170
  %v172 = vrcp.pop 32.0
  %v173 = vmul.f32 %v168, %v172
  %v174 = vmul.f32 %v171, %v172
  %v175 = vsub.f32 %v163, %v173
  %v176 = vsub.f32 %v164, %v174
  %v177 = vmul.f32 %v175, %v175
  %v178 = vmul.f32 %v176, %v176
  %v179 = vsel %vm165, %v177, 0.0
  %180 = vadd.xlane.f32.xlu0 %v179
  %v181 = vpop.xlane.xlu0 %180
  %v182 = vsel %vm165, %v178, 0.0
  %183 = vadd.xlane.f32.xlu0 %v182
  %v184 = vpop.xlane.xlu0 %183
  %v185 = vmul.f32 %v181, %v172
  %v186 = vmul.f32 %v184, %v172
  %v187 = vadd.f32 %v185, 1e-12
  %v188 = vadd.f32 %v186, 1e-12
  %v189 = vrsqrt.pop %v187
  %v190 = vrsqrt.pop %v188
  %v191 = vmul.f32 %v175, %v189
  %v192 = vmul.f32 %v176, %v190
  %v193 = vlaneseq
  %v194 = vshrl.u32 %v193, 7
  %v195 = vsub.s32 0, %v194
  %v196 = vrot.slane %v50, %v195
  %v197 = vmul.f32 %v191, %v196
  %v198 = vmul.f32 %v192, %v196
  %v199 = vlaneseq
  %v200 = vshrl.u32 %v199, 7
  %v201 = vsub.s32 0, %v200
  %v202 = vrot.slane %v51, %v201
  %v203 = vadd.f32 %v197, %v202
  %v204 = vadd.f32 %v198, %v202
  %v205 = vld [vmem:[%s3] sm:$0xff]
  %v206 = vld [vmem:[%s3 + $0x8] sm:$0xff]
  %v207 = vld [vmem:[%s3 + $0x10] sm:$0xff]
  %v208 = vld [vmem:[%s3 + $0x18] sm:$0xff]
  %v209 = vld [vmem:[%s3 + $0xa0] sm:$0x1]
  %v210 = vld [vmem:[%s3 + $0x20] sm:$0xff]
  %v211 = vld [vmem:[%s3 + $0x28] sm:$0xff]
  %v212 = vld [vmem:[%s3 + $0x30] sm:$0xff]
  %v213 = vld [vmem:[%s3 + $0x38] sm:$0xff]
  %v214 = vld [vmem:[%s3 + $0xa1] sm:$0x1]
  %v215 = vld [vmem:[%s3 + $0xa2] sm:$0x1]
  %v216 = vld [vmem:[%s3 + $0xa3] sm:$0x1]
  %v217 = vld [vmem:[%s3 + $0x40] sm:$0xff]
  %v218 = vld [vmem:[%s3 + $0x48] sm:$0xff]
  %v219 = vld [vmem:[%s3 + $0x50] sm:$0xff]
  %v220 = vld [vmem:[%s3 + $0x58] sm:$0xff]
  %v221 = vld [vmem:[%s3 + $0xa4] sm:$0x1]
  %v222 = vld [vmem:[%s3 + $0x60] sm:$0xff]
  %v223 = vld [vmem:[%s3 + $0x68] sm:$0xff]
  %v224 = vld [vmem:[%s3 + $0x70] sm:$0xff]
  %v225 = vld [vmem:[%s3 + $0x78] sm:$0xff]
  %v226 = vld [vmem:[%s3 + $0x80] sm:$0xff]
  %v227 = vld [vmem:[%s3 + $0x88] sm:$0xff]
  %v228 = vld [vmem:[%s3 + $0x90] sm:$0xff]
  %v229 = vld [vmem:[%s3 + $0x98] sm:$0xff]
  %v230 = vld [vmem:[%s3 + $0xa5] sm:$0x1]
  %v231 = vld [vmem:[%s3 + $0xa6] sm:$0x1]
  %v232 = vld [vmem:[%s3 + $0xa7] sm:$0x1]
  %v233 = vlaneseq
  %v234 = vshrl.u32 %v233, 7
  %v235 = vsub.s32 0, %v234
  %v236 = vrot.slane %v209, %v235
  %v238 = vsel %vm165, %v203, 0
  %v241 = vsel %vm165, %v204, 0
  %243 = vmatprep.subr.mxu0 0.0
  %244 = vmatpush1.msra.mxu0 %v205
  %245 = vmatprep.subr.mxu0 0.0
  %246 = vmatpush1.msra.mxu0 %v206
  %247 = vmatprep.subr.mxu0 0.0
  %248 = vmatpush1.msra.mxu0 %v207
  %249 = vmatprep.subr.mxu0 0.0
  %250 = vmatpush1.msra.mxu0 %v208
  %251 = vmatprep.subr.mxu0 0.0
  %252 = vmatpush1.msra.mxu0 0.0
  %253 = vmatprep.subr.mxu0 0.0
  %254 = vmatpush1.msra.mxu0 0.0
  %255 = vmatprep.subr.mxu0 0.0
  %256 = vmatpush1.msra.mxu0 0.0
  %257 = vmatprep.subr.mxu0 0.0
  %258 = vmatpush1.msra.mxu0 0.0
  %259 = vmatprep.subr.mxu0 0.0
  %260 = vmatpush1.msra.mxu0 0.0
  %261 = vmatprep.subr.mxu0 0.0
  %262 = vmatpush1.msra.mxu0 0.0
  %263 = vmatprep.subr.mxu0 0.0
  %264 = vmatpush1.msra.mxu0 0.0
  %265 = vmatprep.subr.mxu0 0.0
  %266 = vmatpush1.msra.mxu0 0.0
  %267 = vmatprep.subr.mxu0 0.0
  %268 = vmatpush1.msra.mxu0 0.0
  %269 = vmatprep.subr.mxu0 0.0
  %270 = vmatpush1.msra.mxu0 0.0
  %271 = vmatprep.subr.mxu0 0.0
  %272 = vmatpush1.msra.mxu0 0.0
  %273 = vmatprep.subr.mxu0 0.0
  %274 = vmatpush1.msra.mxu0 0.0
  %275 = vmatprep.subr.mxu0 0.0
  %276 = vmatpush1.msra.mxu0 0.0
  %277 = vmatprep.subr.mxu0 0.0
  %278 = vmatpush1.msra.mxu0 0.0
  %279 = vmatprep.subr.mxu0 0.0
  %280 = vmatpush1.msra.mxu0 0.0
  %281 = vmatprep.subr.mxu0 0.0
  %282 = vmatpush1.msra.mxu0 0.0
  %283 = vmatprep.subr.mxu0 0.0
  %284 = vmatpush1.msra.mxu0 0.0
  %285 = vmatprep.subr.mxu0 0.0
  %286 = vmatpush1.msra.mxu0 0.0
  %287 = vmatprep.subr.mxu0 0.0
  %288 = vmatpush1.msra.mxu0 0.0
  %289 = vmatprep.subr.mxu0 0.0
  %290 = vmatpush1.msra.mxu0 0.0
  %291 = vmatprep.subr.mxu0 0.0
  %292 = vmatpush1.msra.mxu0 0.0
  %293 = vmatprep.subr.mxu0 0.0
  %294 = vmatpush1.msra.mxu0 0.0
  %295 = vmatprep.subr.mxu0 0.0
  %296 = vmatpush1.msra.mxu0 0.0
  %297 = vmatprep.subr.mxu0 0.0
  %298 = vmatpush1.msra.mxu0 0.0
  %299 = vmatprep.subr.mxu0 0.0
  %300 = vmatpush1.msra.mxu0 0.0
  %301 = vmatprep.subr.mxu0 0.0
  %302 = vmatpush1.msra.mxu0 0.0
  %303 = vmatprep.subr.mxu0 0.0
  %304 = vmatpush1.msra.mxu0 0.0
  %305 = vmatprep.subr.mxu0 0.0
  %306 = vmatpush1.msra.mxu0 0.0
  %307 = vmatprep.mubr.f32.mxu0 0.0
  %308 = vmatmul.mubr.f32.gmra.mrb[0].mxu0 %v238
  %v309 = vpop.f32.mrb[0].mxu0
  %v310 = vadd.f32 %v236, %v309
  %v311 = vpop.f32.mrb[0].mxu0
  %312 = vmatprep.mubr.f32.mxu0 0.0
  %313 = vmatmul.mubr.f32.gmra.mrb[0].mxu0 %v241
  %v314 = vpop.f32.mrb[0].mxu0
  %v315 = vadd.f32 %v236, %v314
  %v316 = vpop.f32.mrb[0].mxu0
  %317 = vdwg.mxu0
  %320 = vrot.lane.b32.xlu0 %v310, 120
  %v321 = vpop.permute.xlu0 %320
  %322 = vrot.lane.b32.xlu0 %v315, 120
  %v323 = vpop.permute.xlu0 %322
  %324 = vrot.lane.b32.xlu0 %v310, 112
  %v325 = vpop.permute.xlu0 %324
  %326 = vrot.lane.b32.xlu0 %v315, 112
  %v327 = vpop.permute.xlu0 %326
  %328 = vrot.lane.b32.xlu0 %v310, 104
  %v329 = vpop.permute.xlu0 %328
  %330 = vrot.lane.b32.xlu0 %v315, 104
  %v331 = vpop.permute.xlu0 %330
  %332 = vrot.lane.b32.xlu0 %v310, 96
  %v333 = vpop.permute.xlu0 %332
  %334 = vrot.lane.b32.xlu0 %v315, 96
  %v335 = vpop.permute.xlu0 %334
  %336 = vrot.lane.b32.xlu0 %v321, 96
  %v337 = vpop.permute.xlu0 %336
  %338 = vrot.lane.b32.xlu0 %v323, 96
  %v339 = vpop.permute.xlu0 %338
  %340 = vrot.lane.b32.xlu0 %v325, 96
  %v341 = vpop.permute.xlu0 %340
  %342 = vrot.lane.b32.xlu0 %v327, 96
  %v343 = vpop.permute.xlu0 %342
  %344 = vrot.lane.b32.xlu0 %v329, 96
  %v345 = vpop.permute.xlu0 %344
  %346 = vrot.lane.b32.xlu0 %v331, 96
  %v347 = vpop.permute.xlu0 %346
  %vm348 = vcmask 64512
  %v349 = vsel %vm348, %v310, 0
  %v351 = vsel %vm348, %v315, 0
  %v353 = vsel %vm348, %v321, 0
  %v355 = vsel %vm348, %v323, 0
  %v357 = vsel %vm348, %v325, 0
  %v359 = vsel %vm348, %v327, 0
  %v361 = vsel %vm348, %v329, 0
  %v363 = vsel %vm348, %v331, 0
  %v365 = vsel %vm348, %v333, 0
  %v367 = vsel %vm348, %v335, 0
  %v369 = vsel %vm348, %v337, 0
  %v371 = vsel %vm348, %v339, 0
  %v373 = vsel %vm348, %v341, 0
  %v375 = vsel %vm348, %v343, 0
  %v377 = vsel %vm348, %v345, 0
  %v379 = vsel %vm348, %v347, 0
  %381 = vmatprep.subr.mxu0 0.0
  %382 = vmatpush1.xpose.msra.mxu0 %v365
  %383 = vmatprep.subr.mxu0 0.0
  %384 = vmatpush1.xpose.msra.mxu0 %v367
  %385 = vmatprep.subr.mxu0 0.0
  %386 = vmatpush1.xpose.msra.mxu0 %v369
  %387 = vmatprep.subr.mxu0 0.0
  %388 = vmatpush1.xpose.msra.mxu0 %v371
  %389 = vmatprep.subr.mxu0 0.0
  %390 = vmatpush1.xpose.msra.mxu0 %v373
  %391 = vmatprep.subr.mxu0 0.0
  %392 = vmatpush1.xpose.msra.mxu0 %v375
  %393 = vmatprep.subr.mxu0 0.0
  %394 = vmatpush1.xpose.msra.mxu0 %v377
  %395 = vmatprep.subr.mxu0 0.0
  %396 = vmatpush1.xpose.msra.mxu0 %v379
  %397 = vmatprep.subr.mxu0 0.0
  %398 = vmatpush1.xpose.msra.mxu0 0.0
  %399 = vmatprep.subr.mxu0 0.0
  %400 = vmatpush1.xpose.msra.mxu0 0.0
  %401 = vmatprep.subr.mxu0 0.0
  %402 = vmatpush1.xpose.msra.mxu0 0.0
  %403 = vmatprep.subr.mxu0 0.0
  %404 = vmatpush1.xpose.msra.mxu0 0.0
  %405 = vmatprep.subr.mxu0 0.0
  %406 = vmatpush1.xpose.msra.mxu0 0.0
  %407 = vmatprep.subr.mxu0 0.0
  %408 = vmatpush1.xpose.msra.mxu0 0.0
  %409 = vmatprep.subr.mxu0 0.0
  %410 = vmatpush1.xpose.msra.mxu0 0.0
  %411 = vmatprep.subr.mxu0 0.0
  %412 = vmatpush1.xpose.msra.mxu0 0.0
  %413 = vmatprep.subr.mxu0 0.0
  %414 = vmatpush1.xpose.msra.mxu0 0.0
  %415 = vmatprep.subr.mxu0 0.0
  %416 = vmatpush1.xpose.msra.mxu0 0.0
  %417 = vmatprep.subr.mxu0 0.0
  %418 = vmatpush1.xpose.msra.mxu0 0.0
  %419 = vmatprep.subr.mxu0 0.0
  %420 = vmatpush1.xpose.msra.mxu0 0.0
  %421 = vmatprep.subr.mxu0 0.0
  %422 = vmatpush1.xpose.msra.mxu0 0.0
  %423 = vmatprep.subr.mxu0 0.0
  %424 = vmatpush1.xpose.msra.mxu0 0.0
  %425 = vmatprep.subr.mxu0 0.0
  %426 = vmatpush1.xpose.msra.mxu0 0.0
  %427 = vmatprep.subr.mxu0 0.0
  %428 = vmatpush1.xpose.msra.mxu0 0.0
  %429 = vmatprep.subr.mxu0 0.0
  %430 = vmatpush1.xpose.msra.mxu0 0.0
  %431 = vmatprep.subr.mxu0 0.0
  %432 = vmatpush1.xpose.msra.mxu0 0.0
  %433 = vmatprep.subr.mxu0 0.0
  %434 = vmatpush1.xpose.msra.mxu0 0.0
  %435 = vmatprep.subr.mxu0 0.0
  %436 = vmatpush1.xpose.msra.mxu0 0.0
  %437 = vmatprep.subr.mxu0 0.0
  %438 = vmatpush1.xpose.msra.mxu0 0.0
  %439 = vmatprep.subr.mxu0 0.0
  %440 = vmatpush1.xpose.msra.mxu0 0.0
  %441 = vmatprep.subr.mxu0 0.0
  %442 = vmatpush1.xpose.msra.mxu0 0.0
  %443 = vmatprep.subr.mxu0 0.0
  %444 = vmatpush1.xpose.msra.mxu0 0.0
  %445 = vmatprep.mubr.f32.mxu0 0.0
  %446 = vmatmul.mubr.f32.gmra.mrb[0].mxu0 %v349
  %v447 = vpop.f32.mrb[0].mxu0
  %v448 = vadd.f32 0.0, %v447
  %v449 = vpop.f32.mrb[0].mxu0
  %450 = vmatprep.mubr.f32.mxu0 0.0
  %451 = vmatmul.mubr.f32.gmra.mrb[0].mxu0 %v351
  %v452 = vpop.f32.mrb[0].mxu0
  %v453 = vadd.f32 0.0, %v452
  %v454 = vpop.f32.mrb[0].mxu0
  %455 = vmatprep.mubr.f32.mxu0 0.0
  %456 = vmatmul.mubr.f32.gmra.mrb[0].mxu0 %v353
  %v457 = vpop.f32.mrb[0].mxu0
  %v458 = vadd.f32 0.0, %v457
  %v459 = vpop.f32.mrb[0].mxu0
  %460 = vmatprep.mubr.f32.mxu0 0.0
  %461 = vmatmul.mubr.f32.gmra.mrb[0].mxu0 %v355
  %v462 = vpop.f32.mrb[0].mxu0
  %v463 = vadd.f32 0.0, %v462
  %v464 = vpop.f32.mrb[0].mxu0
  %465 = vmatprep.mubr.f32.mxu0 0.0
  %466 = vmatmul.mubr.f32.gmra.mrb[0].mxu0 %v357
  %v467 = vpop.f32.mrb[0].mxu0
  %v468 = vadd.f32 0.0, %v467
  %v469 = vpop.f32.mrb[0].mxu0
  %470 = vmatprep.mubr.f32.mxu0 0.0
  %471 = vmatmul.mubr.f32.gmra.mrb[0].mxu0 %v359
  %v472 = vpop.f32.mrb[0].mxu0
  %v473 = vadd.f32 0.0, %v472
  %v474 = vpop.f32.mrb[0].mxu0
  %475 = vmatprep.mubr.f32.mxu0 0.0
  %476 = vmatmul.mubr.f32.gmra.mrb[0].mxu0 %v361
  %v477 = vpop.f32.mrb[0].mxu0
  %v478 = vadd.f32 0.0, %v477
  %v479 = vpop.f32.mrb[0].mxu0
  %480 = vmatprep.mubr.f32.mxu0 0.0
  %481 = vmatmul.mubr.f32.gmra.mrb[0].mxu0 %v363
  %v482 = vpop.f32.mrb[0].mxu0
  %v483 = vadd.f32 0.0, %v482
  %v484 = vpop.f32.mrb[0].mxu0
  %485 = vdwg.mxu0
  %v486 = vmul.f32 %v448, 0.35355338
  %v487 = vmul.f32 %v453, 0.35355338
  %v488 = vmul.f32 %v458, 0.35355338
  %v489 = vmul.f32 %v463, 0.35355338
  %v490 = vmul.f32 %v468, 0.35355338
  %v491 = vmul.f32 %v473, 0.35355338
  %v492 = vmul.f32 %v478, 0.35355338
  %v493 = vmul.f32 %v483, 0.35355338
  %v494 = vadd.f32 %v486, %v22
  %v495 = vadd.f32 %v487, %v23
  %v496 = vadd.f32 %v488, %v24
  %v497 = vadd.f32 %v489, %v25
  %v498 = vadd.f32 %v490, %v26
  %v499 = vadd.f32 %v491, %v27
  %v500 = vadd.f32 %v492, %v28
  %v501 = vadd.f32 %v493, %v29
  %vm502 = vcmask 523264
  %v503 = vsel %vm502, %v494, -inf
  %504 = vmax.xlane.f32.xlu0 %v503
  %v505 = vpop.xlane.xlu0 %504
  %v506 = vsel %vm502, %v495, -inf
  %507 = vmax.xlane.f32.xlu0 %v506
  %v508 = vpop.xlane.xlu0 %507
  %v509 = vsel %vm502, %v496, -inf
  %510 = vmax.xlane.f32.xlu0 %v509
  %v511 = vpop.xlane.xlu0 %510
  %v512 = vsel %vm502, %v497, -inf
  %513 = vmax.xlane.f32.xlu0 %v512
  %v514 = vpop.xlane.xlu0 %513
  %v515 = vsel %vm502, %v498, -inf
  %516 = vmax.xlane.f32.xlu0 %v515
  %v517 = vpop.xlane.xlu0 %516
  %v518 = vsel %vm502, %v499, -inf
  %519 = vmax.xlane.f32.xlu0 %v518
  %v520 = vpop.xlane.xlu0 %519
  %v521 = vsel %vm502, %v500, -inf
  %522 = vmax.xlane.f32.xlu0 %v521
  %v523 = vpop.xlane.xlu0 %522
  %v524 = vsel %vm502, %v501, -inf
  %525 = vmax.xlane.f32.xlu0 %v524
  %v526 = vpop.xlane.xlu0 %525
  %v527 = vsub.f32 %v494, %v505
  %v528 = vsub.f32 %v495, %v508
  %v529 = vsub.f32 %v496, %v511
  %v530 = vsub.f32 %v497, %v514
  %v531 = vsub.f32 %v498, %v517
  %v532 = vsub.f32 %v499, %v520
  %v533 = vsub.f32 %v500, %v523
  %v534 = vsub.f32 %v501, %v526
  %v535 = vmul.f32 %v527, 1.442695
  %v536 = vpow.pop %v535
  %v537 = vmul.f32 %v528, 1.442695
  %v538 = vpow.pop %v537
  %v539 = vmul.f32 %v529, 1.442695
  %v540 = vpow.pop %v539
  %v541 = vmul.f32 %v530, 1.442695
  %v542 = vpow.pop %v541
  %v543 = vmul.f32 %v531, 1.442695
  %v544 = vpow.pop %v543
  %v545 = vmul.f32 %v532, 1.442695
  %v546 = vpow.pop %v545
  %v547 = vmul.f32 %v533, 1.442695
  %v548 = vpow.pop %v547
  %v549 = vmul.f32 %v534, 1.442695
  %v550 = vpow.pop %v549
  %v551 = vsel %vm502, %v536, 0.0
  %552 = vadd.xlane.f32.xlu0 %v551
  %v553 = vpop.xlane.xlu0 %552
  %v554 = vsel %vm502, %v538, 0.0
  %555 = vadd.xlane.f32.xlu0 %v554
  %v556 = vpop.xlane.xlu0 %555
  %v557 = vsel %vm502, %v540, 0.0
  %558 = vadd.xlane.f32.xlu0 %v557
  %v559 = vpop.xlane.xlu0 %558
  %v560 = vsel %vm502, %v542, 0.0
  %561 = vadd.xlane.f32.xlu0 %v560
  %v562 = vpop.xlane.xlu0 %561
  %v563 = vsel %vm502, %v544, 0.0
  %564 = vadd.xlane.f32.xlu0 %v563
  %v565 = vpop.xlane.xlu0 %564
  %v566 = vsel %vm502, %v546, 0.0
  %567 = vadd.xlane.f32.xlu0 %v566
  %v568 = vpop.xlane.xlu0 %567
  %v569 = vsel %vm502, %v548, 0.0
  %570 = vadd.xlane.f32.xlu0 %v569
  %v571 = vpop.xlane.xlu0 %570
  %v572 = vsel %vm502, %v550, 0.0
  %573 = vadd.xlane.f32.xlu0 %v572
  %v574 = vpop.xlane.xlu0 %573
  %v575 = vrcp.pop %v553
  %v576 = vrcp.pop %v556
  %v577 = vrcp.pop %v559
  %v578 = vrcp.pop %v562
  %v579 = vrcp.pop %v565
  %v580 = vrcp.pop %v568
  %v581 = vrcp.pop %v571
  %v582 = vrcp.pop %v574
  %v583 = vmul.f32 %v536, %v575
  %v584 = vmul.f32 %v538, %v576
  %v585 = vmul.f32 %v540, %v577
  %v586 = vmul.f32 %v542, %v578
  %v587 = vmul.f32 %v544, %v579
  %v588 = vmul.f32 %v546, %v580
  %v589 = vmul.f32 %v548, %v581
  %v590 = vmul.f32 %v550, %v582
  %591 = vrot.lane.b32.xlu0 %v310, 64
  %v592 = vpop.permute.xlu0 %591
  %593 = vrot.lane.b32.xlu0 %v315, 64
  %v594 = vpop.permute.xlu0 %593
  %595 = vrot.lane.b32.xlu0 %v321, 64
  %v596 = vpop.permute.xlu0 %595
  %597 = vrot.lane.b32.xlu0 %v323, 64
  %v598 = vpop.permute.xlu0 %597
  %599 = vrot.lane.b32.xlu0 %v325, 64
  %v600 = vpop.permute.xlu0 %599
  %601 = vrot.lane.b32.xlu0 %v327, 64
  %v602 = vpop.permute.xlu0 %601
  %603 = vrot.lane.b32.xlu0 %v329, 64
  %v604 = vpop.permute.xlu0 %603
  %605 = vrot.lane.b32.xlu0 %v331, 64
  %v606 = vpop.permute.xlu0 %605
  %v616 = vsel %vm502, %v583, 0
  %v619 = vsel %vm502, %v584, 0
  %v622 = vsel %vm502, %v585, 0
  %v625 = vsel %vm502, %v586, 0
  %v628 = vsel %vm502, %v587, 0
  %v631 = vsel %vm502, %v588, 0
  %v634 = vsel %vm502, %v589, 0
  %v637 = vsel %vm502, %v590, 0
  %639 = vmatprep.subr.mxu0 0.0
  %640 = vmatpush1.msra.mxu0 %v592
  %641 = vmatprep.subr.mxu0 0.0
  %642 = vmatpush1.msra.mxu0 %v594
  %643 = vmatprep.subr.mxu0 0.0
  %644 = vmatpush1.msra.mxu0 %v596
  %645 = vmatprep.subr.mxu0 0.0
  %646 = vmatpush1.msra.mxu0 %v598
  %647 = vmatprep.subr.mxu0 0.0
  %648 = vmatpush1.msra.mxu0 %v600
  %649 = vmatprep.subr.mxu0 0.0
  %650 = vmatpush1.msra.mxu0 %v602
  %651 = vmatprep.subr.mxu0 0.0
  %652 = vmatpush1.msra.mxu0 %v604
  %653 = vmatprep.subr.mxu0 0.0
  %654 = vmatpush1.msra.mxu0 %v606
  %655 = vmatprep.subr.mxu0 0.0
  %656 = vmatpush1.msra.mxu0 0.0
  %657 = vmatprep.subr.mxu0 0.0
  %658 = vmatpush1.msra.mxu0 0.0
  %659 = vmatprep.subr.mxu0 0.0
  %660 = vmatpush1.msra.mxu0 0.0
  %661 = vmatprep.subr.mxu0 0.0
  %662 = vmatpush1.msra.mxu0 0.0
  %663 = vmatprep.subr.mxu0 0.0
  %664 = vmatpush1.msra.mxu0 0.0
  %665 = vmatprep.subr.mxu0 0.0
  %666 = vmatpush1.msra.mxu0 0.0
  %667 = vmatprep.subr.mxu0 0.0
  %668 = vmatpush1.msra.mxu0 0.0
  %669 = vmatprep.subr.mxu0 0.0
  %670 = vmatpush1.msra.mxu0 0.0
  %671 = vmatprep.subr.mxu0 0.0
  %672 = vmatpush1.msra.mxu0 0.0
  %673 = vmatprep.subr.mxu0 0.0
  %674 = vmatpush1.msra.mxu0 0.0
  %675 = vmatprep.subr.mxu0 0.0
  %676 = vmatpush1.msra.mxu0 0.0
  %677 = vmatprep.subr.mxu0 0.0
  %678 = vmatpush1.msra.mxu0 0.0
  %679 = vmatprep.subr.mxu0 0.0
  %680 = vmatpush1.msra.mxu0 0.0
  %681 = vmatprep.subr.mxu0 0.0
  %682 = vmatpush1.msra.mxu0 0.0
  %683 = vmatprep.subr.mxu0 0.0
  %684 = vmatpush1.msra.mxu0 0.0
  %685 = vmatprep.subr.mxu0 0.0
  %686 = vmatpush1.msra.mxu0 0.0
  %687 = vmatprep.subr.mxu0 0.0
  %688 = vmatpush1.msra.mxu0 0.0
  %689 = vmatprep.subr.mxu0 0.0
  %690 = vmatpush1.msra.mxu0 0.0
  %691 = vmatprep.subr.mxu0 0.0
  %692 = vmatpush1.msra.mxu0 0.0
  %693 = vmatprep.subr.mxu0 0.0
  %694 = vmatpush1.msra.mxu0 0.0
  %695 = vmatprep.subr.mxu0 0.0
  %696 = vmatpush1.msra.mxu0 0.0
  %697 = vmatprep.subr.mxu0 0.0
  %698 = vmatpush1.msra.mxu0 0.0
  %699 = vmatprep.subr.mxu0 0.0
  %700 = vmatpush1.msra.mxu0 0.0
  %701 = vmatprep.subr.mxu0 0.0
  %702 = vmatpush1.msra.mxu0 0.0
  %703 = vmatprep.mubr.f32.mxu0 0.0
  %704 = vmatmul.mubr.f32.gmra.mrb[0].mxu0 %v616
  %v705 = vpop.f32.mrb[0].mxu0
  %v706 = vadd.f32 0.0, %v705
  %v707 = vpop.f32.mrb[0].mxu0
  %708 = vmatprep.mubr.f32.mxu0 0.0
  %709 = vmatmul.mubr.f32.gmra.mrb[0].mxu0 %v619
  %v710 = vpop.f32.mrb[0].mxu0
  %v711 = vadd.f32 0.0, %v710
  %v712 = vpop.f32.mrb[0].mxu0
  %713 = vmatprep.mubr.f32.mxu0 0.0
  %714 = vmatmul.mubr.f32.gmra.mrb[0].mxu0 %v622
  %v715 = vpop.f32.mrb[0].mxu0
  %v716 = vadd.f32 0.0, %v715
  %v717 = vpop.f32.mrb[0].mxu0
  %718 = vmatprep.mubr.f32.mxu0 0.0
  %719 = vmatmul.mubr.f32.gmra.mrb[0].mxu0 %v625
  %v720 = vpop.f32.mrb[0].mxu0
  %v721 = vadd.f32 0.0, %v720
  %v722 = vpop.f32.mrb[0].mxu0
  %723 = vmatprep.mubr.f32.mxu0 0.0
  %724 = vmatmul.mubr.f32.gmra.mrb[0].mxu0 %v628
  %v725 = vpop.f32.mrb[0].mxu0
  %v726 = vadd.f32 0.0, %v725
  %v727 = vpop.f32.mrb[0].mxu0
  %728 = vmatprep.mubr.f32.mxu0 0.0
  %729 = vmatmul.mubr.f32.gmra.mrb[0].mxu0 %v631
  %v730 = vpop.f32.mrb[0].mxu0
  %v731 = vadd.f32 0.0, %v730
  %v732 = vpop.f32.mrb[0].mxu0
  %733 = vmatprep.mubr.f32.mxu0 0.0
  %734 = vmatmul.mubr.f32.gmra.mrb[0].mxu0 %v634
  %v735 = vpop.f32.mrb[0].mxu0
  %v736 = vadd.f32 0.0, %v735
  %v737 = vpop.f32.mrb[0].mxu0
  %738 = vmatprep.mubr.f32.mxu0 0.0
  %739 = vmatmul.mubr.f32.gmra.mrb[0].mxu0 %v637
  %v740 = vpop.f32.mrb[0].mxu0
  %v741 = vadd.f32 0.0, %v740
  %v742 = vpop.f32.mrb[0].mxu0
  %743 = vdwg.mxu0
  %746 = vrot.lane.b32.xlu0 %v716, 8
  %v747 = vpop.permute.xlu0 %746
  %748 = vrot.lane.b32.xlu0 %v721, 8
  %v749 = vpop.permute.xlu0 %748
  %754 = vrot.lane.b32.xlu0 %v726, 16
  %v755 = vpop.permute.xlu0 %754
  %756 = vrot.lane.b32.xlu0 %v731, 16
  %v757 = vpop.permute.xlu0 %756
  %762 = vrot.lane.b32.xlu0 %v736, 24
  %v763 = vpop.permute.xlu0 %762
  %764 = vrot.lane.b32.xlu0 %v741, 24
  %v765 = vpop.permute.xlu0 %764
  %v768 = vsel %vm348, %v706, %v747
  %v769 = vsel %vm348, %v711, %v749
  %vm770 = vcmask 130048
  %v771 = vsel %vm770, %v768, %v755
  %v772 = vsel %vm770, %v769, %v757
  %vm773 = vcmask 195584
  %v774 = vsel %vm773, %v771, %v763
  %v775 = vsel %vm773, %v772, %v765
  %v776 = vlaneseq
  %v777 = vshrl.u32 %v776, 7
  %v778 = vsub.s32 0, %v777
  %v779 = vrot.slane %v214, %v778
  %v781 = vsel %vm165, %v774, 0
  %v784 = vsel %vm165, %v775, 0
  %786 = vmatprep.subr.mxu0 0.0
  %787 = vmatpush1.msra.mxu0 %v210
  %788 = vmatprep.subr.mxu0 0.0
  %789 = vmatpush1.msra.mxu0 %v211
  %790 = vmatprep.subr.mxu0 0.0
  %791 = vmatpush1.msra.mxu0 %v212
  %792 = vmatprep.subr.mxu0 0.0
  %793 = vmatpush1.msra.mxu0 %v213
  %794 = vmatprep.subr.mxu0 0.0
  %795 = vmatpush1.msra.mxu0 0.0
  %796 = vmatprep.subr.mxu0 0.0
  %797 = vmatpush1.msra.mxu0 0.0
  %798 = vmatprep.subr.mxu0 0.0
  %799 = vmatpush1.msra.mxu0 0.0
  %800 = vmatprep.subr.mxu0 0.0
  %801 = vmatpush1.msra.mxu0 0.0
  %802 = vmatprep.subr.mxu0 0.0
  %803 = vmatpush1.msra.mxu0 0.0
  %804 = vmatprep.subr.mxu0 0.0
  %805 = vmatpush1.msra.mxu0 0.0
  %806 = vmatprep.subr.mxu0 0.0
  %807 = vmatpush1.msra.mxu0 0.0
  %808 = vmatprep.subr.mxu0 0.0
  %809 = vmatpush1.msra.mxu0 0.0
  %810 = vmatprep.subr.mxu0 0.0
  %811 = vmatpush1.msra.mxu0 0.0
  %812 = vmatprep.subr.mxu0 0.0
  %813 = vmatpush1.msra.mxu0 0.0
  %814 = vmatprep.subr.mxu0 0.0
  %815 = vmatpush1.msra.mxu0 0.0
  %816 = vmatprep.subr.mxu0 0.0
  %817 = vmatpush1.msra.mxu0 0.0
  %818 = vmatprep.subr.mxu0 0.0
  %819 = vmatpush1.msra.mxu0 0.0
  %820 = vmatprep.subr.mxu0 0.0
  %821 = vmatpush1.msra.mxu0 0.0
  %822 = vmatprep.subr.mxu0 0.0
  %823 = vmatpush1.msra.mxu0 0.0
  %824 = vmatprep.subr.mxu0 0.0
  %825 = vmatpush1.msra.mxu0 0.0
  %826 = vmatprep.subr.mxu0 0.0
  %827 = vmatpush1.msra.mxu0 0.0
  %828 = vmatprep.subr.mxu0 0.0
  %829 = vmatpush1.msra.mxu0 0.0
  %830 = vmatprep.subr.mxu0 0.0
  %831 = vmatpush1.msra.mxu0 0.0
  %832 = vmatprep.subr.mxu0 0.0
  %833 = vmatpush1.msra.mxu0 0.0
  %834 = vmatprep.subr.mxu0 0.0
  %835 = vmatpush1.msra.mxu0 0.0
  %836 = vmatprep.subr.mxu0 0.0
  %837 = vmatpush1.msra.mxu0 0.0
  %838 = vmatprep.subr.mxu0 0.0
  %839 = vmatpush1.msra.mxu0 0.0
  %840 = vmatprep.subr.mxu0 0.0
  %841 = vmatpush1.msra.mxu0 0.0
  %842 = vmatprep.subr.mxu0 0.0
  %843 = vmatpush1.msra.mxu0 0.0
  %844 = vmatprep.subr.mxu0 0.0
  %845 = vmatpush1.msra.mxu0 0.0
  %846 = vmatprep.subr.mxu0 0.0
  %847 = vmatpush1.msra.mxu0 0.0
  %848 = vmatprep.subr.mxu0 0.0
  %849 = vmatpush1.msra.mxu0 0.0
  %850 = vmatprep.mubr.f32.mxu0 0.0
  %851 = vmatmul.mubr.f32.gmra.mrb[0].mxu0 %v781
  %v852 = vpop.f32.mrb[0].mxu0
  %v853 = vadd.f32 %v779, %v852
  %v854 = vpop.f32.mrb[0].mxu0
  %855 = vmatprep.mubr.f32.mxu0 0.0
  %856 = vmatmul.mubr.f32.gmra.mrb[0].mxu0 %v784
  %v857 = vpop.f32.mrb[0].mxu0
  %v858 = vadd.f32 %v779, %v857
  %v859 = vpop.f32.mrb[0].mxu0
  %860 = vdwg.mxu0
  %v861 = vadd.f32 %v203, %v853
  %v862 = vadd.f32 %v204, %v858
  %v863 = vsel %vm165, %v861, 0.0
  %864 = vadd.xlane.f32.xlu0 %v863
  %v865 = vpop.xlane.xlu0 %864
  %v866 = vsel %vm165, %v862, 0.0
  %867 = vadd.xlane.f32.xlu0 %v866
  %v868 = vpop.xlane.xlu0 %867
  %v869 = vmul.f32 %v865, %v172
  %v870 = vmul.f32 %v868, %v172
  %v871 = vsub.f32 %v861, %v869
  %v872 = vsub.f32 %v862, %v870
  %v873 = vmul.f32 %v871, %v871
  %v874 = vmul.f32 %v872, %v872
  %v875 = vsel %vm165, %v873, 0.0
  %876 = vadd.xlane.f32.xlu0 %v875
  %v877 = vpop.xlane.xlu0 %876
  %v878 = vsel %vm165, %v874, 0.0
  %879 = vadd.xlane.f32.xlu0 %v878
  %v880 = vpop.xlane.xlu0 %879
  %v881 = vmul.f32 %v877, %v172
  %v882 = vmul.f32 %v880, %v172
  %v883 = vadd.f32 %v881, 1e-12
  %v884 = vadd.f32 %v882, 1e-12
  %v885 = vrsqrt.pop %v883
  %v886 = vrsqrt.pop %v884
  %v887 = vmul.f32 %v871, %v885
  %v888 = vmul.f32 %v872, %v886
  %v889 = vlaneseq
  %v890 = vshrl.u32 %v889, 7
  %v891 = vsub.s32 0, %v890
  %v892 = vrot.slane %v215, %v891
  %v893 = vmul.f32 %v887, %v892
  %v894 = vmul.f32 %v888, %v892
  %v895 = vlaneseq
  %v896 = vshrl.u32 %v895, 7
  %v897 = vsub.s32 0, %v896
  %v898 = vrot.slane %v216, %v897
  %v899 = vadd.f32 %v893, %v898
  %v900 = vadd.f32 %v894, %v898
  %v901 = vlaneseq
  %v902 = vshrl.u32 %v901, 7
  %v903 = vsub.s32 0, %v902
  %v904 = vrot.slane %v221, %v903
  %v906 = vsel %vm165, %v899, 0
  %v909 = vsel %vm165, %v900, 0
  %911 = vmatprep.subr.mxu0 0.0
  %912 = vmatpush1.msra.mxu0 %v217
  %913 = vmatprep.subr.mxu0 0.0
  %914 = vmatpush1.msra.mxu0 %v218
  %915 = vmatprep.subr.mxu0 0.0
  %916 = vmatpush1.msra.mxu0 %v219
  %917 = vmatprep.subr.mxu0 0.0
  %918 = vmatpush1.msra.mxu0 %v220
  %919 = vmatprep.subr.mxu0 0.0
  %920 = vmatpush1.msra.mxu0 0.0
  %921 = vmatprep.subr.mxu0 0.0
  %922 = vmatpush1.msra.mxu0 0.0
  %923 = vmatprep.subr.mxu0 0.0
  %924 = vmatpush1.msra.mxu0 0.0
  %925 = vmatprep.subr.mxu0 0.0
  %926 = vmatpush1.msra.mxu0 0.0
  %927 = vmatprep.subr.mxu0 0.0
  %928 = vmatpush1.msra.mxu0 0.0
  %929 = vmatprep.subr.mxu0 0.0
  %930 = vmatpush1.msra.mxu0 0.0
  %931 = vmatprep.subr.mxu0 0.0
  %932 = vmatpush1.msra.mxu0 0.0
  %933 = vmatprep.subr.mxu0 0.0
  %934 = vmatpush1.msra.mxu0 0.0
  %935 = vmatprep.subr.mxu0 0.0
  %936 = vmatpush1.msra.mxu0 0.0
  %937 = vmatprep.subr.mxu0 0.0
  %938 = vmatpush1.msra.mxu0 0.0
  %939 = vmatprep.subr.mxu0 0.0
  %940 = vmatpush1.msra.mxu0 0.0
  %941 = vmatprep.subr.mxu0 0.0
  %942 = vmatpush1.msra.mxu0 0.0
  %943 = vmatprep.subr.mxu0 0.0
  %944 = vmatpush1.msra.mxu0 0.0
  %945 = vmatprep.subr.mxu0 0.0
  %946 = vmatpush1.msra.mxu0 0.0
  %947 = vmatprep.subr.mxu0 0.0
  %948 = vmatpush1.msra.mxu0 0.0
  %949 = vmatprep.subr.mxu0 0.0
  %950 = vmatpush1.msra.mxu0 0.0
  %951 = vmatprep.subr.mxu0 0.0
  %952 = vmatpush1.msra.mxu0 0.0
  %953 = vmatprep.subr.mxu0 0.0
  %954 = vmatpush1.msra.mxu0 0.0
  %955 = vmatprep.subr.mxu0 0.0
  %956 = vmatpush1.msra.mxu0 0.0
  %957 = vmatprep.subr.mxu0 0.0
  %958 = vmatpush1.msra.mxu0 0.0
  %959 = vmatprep.subr.mxu0 0.0
  %960 = vmatpush1.msra.mxu0 0.0
  %961 = vmatprep.subr.mxu0 0.0
  %962 = vmatpush1.msra.mxu0 0.0
  %963 = vmatprep.subr.mxu0 0.0
  %964 = vmatpush1.msra.mxu0 0.0
  %965 = vmatprep.subr.mxu0 0.0
  %966 = vmatpush1.msra.mxu0 0.0
  %967 = vmatprep.subr.mxu0 0.0
  %968 = vmatpush1.msra.mxu0 0.0
  %969 = vmatprep.subr.mxu0 0.0
  %970 = vmatpush1.msra.mxu0 0.0
  %971 = vmatprep.subr.mxu0 0.0
  %972 = vmatpush1.msra.mxu0 0.0
  %973 = vmatprep.subr.mxu0 0.0
  %974 = vmatpush1.msra.mxu0 0.0
  %975 = vmatprep.mubr.f32.mxu0 0.0
  %976 = vmatmul.mubr.f32.gmra.mrb[0].mxu0 %v906
  %v977 = vpop.f32.mrb[0].mxu0
  %v978 = vadd.f32 %v904, %v977
  %v979 = vpop.f32.mrb[0].mxu0
  %980 = vmatprep.mubr.f32.mxu0 0.0
  %981 = vmatmul.mubr.f32.gmra.mrb[0].mxu0 %v909
  %v982 = vpop.f32.mrb[0].mxu0
  %v983 = vadd.f32 %v904, %v982
  %v984 = vpop.f32.mrb[0].mxu0
  %985 = vdwg.mxu0
  %v986 = vmul.f32 %v978, %v978
  %v987 = vmul.f32 %v983, %v983
  %v988 = vmul.f32 %v978, %v986
  %v989 = vmul.f32 %v983, %v987
  %v990 = vmul.f32 %v988, 0.044715
  %v991 = vmul.f32 %v989, 0.044715
  %v992 = vadd.f32 %v978, %v990
  %v993 = vadd.f32 %v983, %v991
  %v994 = vmul.f32 %v992, 0.7978846
  %v995 = vmul.f32 %v993, 0.7978846
  %v996 = vtanh.pop %v994
  %v997 = vtanh.pop %v995
  %v998 = vadd.f32 %v996, 1.0
  %v999 = vadd.f32 %v997, 1.0
  %v1000 = vmul.f32 %v998, 0.5
  %v1001 = vmul.f32 %v999, 0.5
  %v1002 = vmul.f32 %v978, %v1000
  %v1003 = vmul.f32 %v983, %v1001
  %v1004 = vlaneseq
  %v1005 = vshrl.u32 %v1004, 7
  %v1006 = vsub.s32 0, %v1005
  %v1007 = vrot.slane %v230, %v1006
  %v1009 = vsel %vm502, %v1002, 0
  %v1012 = vsel %vm502, %v1003, 0
  %1014 = vmatprep.subr.mxu0 0.0
  %1015 = vmatpush1.msra.mxu0 %v222
  %1016 = vmatprep.subr.mxu0 0.0
  %1017 = vmatpush1.msra.mxu0 %v223
  %1018 = vmatprep.subr.mxu0 0.0
  %1019 = vmatpush1.msra.mxu0 %v224
  %1020 = vmatprep.subr.mxu0 0.0
  %1021 = vmatpush1.msra.mxu0 %v225
  %1022 = vmatprep.subr.mxu0 0.0
  %1023 = vmatpush1.msra.mxu0 %v226
  %1024 = vmatprep.subr.mxu0 0.0
  %1025 = vmatpush1.msra.mxu0 %v227
  %1026 = vmatprep.subr.mxu0 0.0
  %1027 = vmatpush1.msra.mxu0 %v228
  %1028 = vmatprep.subr.mxu0 0.0
  %1029 = vmatpush1.msra.mxu0 %v229
  %1030 = vmatprep.subr.mxu0 0.0
  %1031 = vmatpush1.msra.mxu0 0.0
  %1032 = vmatprep.subr.mxu0 0.0
  %1033 = vmatpush1.msra.mxu0 0.0
  %1034 = vmatprep.subr.mxu0 0.0
  %1035 = vmatpush1.msra.mxu0 0.0
  %1036 = vmatprep.subr.mxu0 0.0
  %1037 = vmatpush1.msra.mxu0 0.0
  %1038 = vmatprep.subr.mxu0 0.0
  %1039 = vmatpush1.msra.mxu0 0.0
  %1040 = vmatprep.subr.mxu0 0.0
  %1041 = vmatpush1.msra.mxu0 0.0
  %1042 = vmatprep.subr.mxu0 0.0
  %1043 = vmatpush1.msra.mxu0 0.0
  %1044 = vmatprep.subr.mxu0 0.0
  %1045 = vmatpush1.msra.mxu0 0.0
  %1046 = vmatprep.subr.mxu0 0.0
  %1047 = vmatpush1.msra.mxu0 0.0
  %1048 = vmatprep.subr.mxu0 0.0
  %1049 = vmatpush1.msra.mxu0 0.0
  %1050 = vmatprep.subr.mxu0 0.0
  %1051 = vmatpush1.msra.mxu0 0.0
  %1052 = vmatprep.subr.mxu0 0.0
  %1053 = vmatpush1.msra.mxu0 0.0
  %1054 = vmatprep.subr.mxu0 0.0
  %1055 = vmatpush1.msra.mxu0 0.0
  %1056 = vmatprep.subr.mxu0 0.0
  %1057 = vmatpush1.msra.mxu0 0.0
  %1058 = vmatprep.subr.mxu0 0.0
  %1059 = vmatpush1.msra.mxu0 0.0
  %1060 = vmatprep.subr.mxu0 0.0
  %1061 = vmatpush1.msra.mxu0 0.0
  %1062 = vmatprep.subr.mxu0 0.0
  %1063 = vmatpush1.msra.mxu0 0.0
  %1064 = vmatprep.subr.mxu0 0.0
  %1065 = vmatpush1.msra.mxu0 0.0
  %1066 = vmatprep.subr.mxu0 0.0
  %1067 = vmatpush1.msra.mxu0 0.0
  %1068 = vmatprep.subr.mxu0 0.0
  %1069 = vmatpush1.msra.mxu0 0.0
  %1070 = vmatprep.subr.mxu0 0.0
  %1071 = vmatpush1.msra.mxu0 0.0
  %1072 = vmatprep.subr.mxu0 0.0
  %1073 = vmatpush1.msra.mxu0 0.0
  %1074 = vmatprep.subr.mxu0 0.0
  %1075 = vmatpush1.msra.mxu0 0.0
  %1076 = vmatprep.subr.mxu0 0.0
  %1077 = vmatpush1.msra.mxu0 0.0
  %1078 = vmatprep.mubr.f32.mxu0 0.0
  %1079 = vmatmul.mubr.f32.gmra.mrb[0].mxu0 %v1009
  %v1080 = vpop.f32.mrb[0].mxu0
  %v1081 = vadd.f32 %v1007, %v1080
  %v1082 = vpop.f32.mrb[0].mxu0
  %1083 = vmatprep.mubr.f32.mxu0 0.0
  %1084 = vmatmul.mubr.f32.gmra.mrb[0].mxu0 %v1012
  %v1085 = vpop.f32.mrb[0].mxu0
  %v1086 = vadd.f32 %v1007, %v1085
  %v1087 = vpop.f32.mrb[0].mxu0
  %1088 = vdwg.mxu0
  %v1089 = vadd.f32 %v899, %v1081
  %v1090 = vadd.f32 %v900, %v1086
  %v1091 = vsel %vm165, %v1089, 0.0
  %1092 = vadd.xlane.f32.xlu0 %v1091
  %v1093 = vpop.xlane.xlu0 %1092
  %v1094 = vsel %vm165, %v1090, 0.0
  %1095 = vadd.xlane.f32.xlu0 %v1094
  %v1096 = vpop.xlane.xlu0 %1095
  %v1097 = vmul.f32 %v1093, %v172
  %v1098 = vmul.f32 %v1096, %v172
  %v1099 = vsub.f32 %v1089, %v1097
  %v1100 = vsub.f32 %v1090, %v1098
  %v1101 = vmul.f32 %v1099, %v1099
  %v1102 = vmul.f32 %v1100, %v1100
  %v1103 = vsel %vm165, %v1101, 0.0
  %1104 = vadd.xlane.f32.xlu0 %v1103
  %v1105 = vpop.xlane.xlu0 %1104
  %v1106 = vsel %vm165, %v1102, 0.0
  %1107 = vadd.xlane.f32.xlu0 %v1106
  %v1108 = vpop.xlane.xlu0 %1107
  %v1109 = vmul.f32 %v1105, %v172
  %v1110 = vmul.f32 %v1108, %v172
  %v1111 = vadd.f32 %v1109, 1e-12
  %v1112 = vadd.f32 %v1110, 1e-12
  %v1113 = vrsqrt.pop %v1111
  %v1114 = vrsqrt.pop %v1112
  %v1115 = vmul.f32 %v1099, %v1113
  %v1116 = vmul.f32 %v1100, %v1114
  %v1117 = vlaneseq
  %v1118 = vshrl.u32 %v1117, 7
  %v1119 = vsub.s32 0, %v1118
  %v1120 = vrot.slane %v231, %v1119
  %v1121 = vmul.f32 %v1115, %v1120
  %v1122 = vmul.f32 %v1116, %v1120
  %v1123 = vlaneseq
  %v1124 = vshrl.u32 %v1123, 7
  %v1125 = vsub.s32 0, %v1124
  %v1126 = vrot.slane %v232, %v1125
  %v1127 = vadd.f32 %v1121, %v1126
  %v1128 = vadd.f32 %v1122, %v1126
  %s1129 = scalar_lea.vmem %s3, 168
  %v1130 = vld [vmem:[%s1129] sm:$0xff]
  %v1131 = vld [vmem:[%s1129 + $0x8] sm:$0xff]
  %v1132 = vld [vmem:[%s1129 + $0x10] sm:$0xff]
  %v1133 = vld [vmem:[%s1129 + $0x18] sm:$0xff]
  %v1134 = vld [vmem:[%s1129 + $0xa0] sm:$0x1]
  %v1135 = vld [vmem:[%s1129 + $0x20] sm:$0xff]
  %v1136 = vld [vmem:[%s1129 + $0x28] sm:$0xff]
  %v1137 = vld [vmem:[%s1129 + $0x30] sm:$0xff]
  %v1138 = vld [vmem:[%s1129 + $0x38] sm:$0xff]
  %v1139 = vld [vmem:[%s1129 + $0xa1] sm:$0x1]
  %v1140 = vld [vmem:[%s1129 + $0xa2] sm:$0x1]
  %v1141 = vld [vmem:[%s1129 + $0xa3] sm:$0x1]
  %v1142 = vld [vmem:[%s1129 + $0x40] sm:$0xff]
  %v1143 = vld [vmem:[%s1129 + $0x48] sm:$0xff]
  %v1144 = vld [vmem:[%s1129 + $0x50] sm:$0xff]
  %v1145 = vld [vmem:[%s1129 + $0x58] sm:$0xff]
  %v1146 = vld [vmem:[%s1129 + $0xa4] sm:$0x1]
  %v1147 = vld [vmem:[%s1129 + $0x60] sm:$0xff]
  %v1148 = vld [vmem:[%s1129 + $0x68] sm:$0xff]
  %v1149 = vld [vmem:[%s1129 + $0x70] sm:$0xff]
  %v1150 = vld [vmem:[%s1129 + $0x78] sm:$0xff]
  %v1151 = vld [vmem:[%s1129 + $0x80] sm:$0xff]
  %v1152 = vld [vmem:[%s1129 + $0x88] sm:$0xff]
  %v1153 = vld [vmem:[%s1129 + $0x90] sm:$0xff]
  %v1154 = vld [vmem:[%s1129 + $0x98] sm:$0xff]
  %v1155 = vld [vmem:[%s1129 + $0xa5] sm:$0x1]
  %v1156 = vld [vmem:[%s1129 + $0xa6] sm:$0x1]
  %v1157 = vld [vmem:[%s1129 + $0xa7] sm:$0x1]
  %v1158 = vlaneseq
  %v1159 = vshrl.u32 %v1158, 7
  %v1160 = vsub.s32 0, %v1159
  %v1161 = vrot.slane %v1134, %v1160
  %v1163 = vsel %vm165, %v1127, 0
  %v1166 = vsel %vm165, %v1128, 0
  %1168 = vmatprep.subr.mxu0 0.0
  %1169 = vmatpush1.msra.mxu0 %v1130
  %1170 = vmatprep.subr.mxu0 0.0
  %1171 = vmatpush1.msra.mxu0 %v1131
  %1172 = vmatprep.subr.mxu0 0.0
  %1173 = vmatpush1.msra.mxu0 %v1132
  %1174 = vmatprep.subr.mxu0 0.0
  %1175 = vmatpush1.msra.mxu0 %v1133
  %1176 = vmatprep.subr.mxu0 0.0
  %1177 = vmatpush1.msra.mxu0 0.0
  %1178 = vmatprep.subr.mxu0 0.0
  %1179 = vmatpush1.msra.mxu0 0.0
  %1180 = vmatprep.subr.mxu0 0.0
  %1181 = vmatpush1.msra.mxu0 0.0
  %1182 = vmatprep.subr.mxu0 0.0
  %1183 = vmatpush1.msra.mxu0 0.0
  %1184 = vmatprep.subr.mxu0 0.0
  %1185 = vmatpush1.msra.mxu0 0.0
  %1186 = vmatprep.subr.mxu0 0.0
  %1187 = vmatpush1.msra.mxu0 0.0
  %1188 = vmatprep.subr.mxu0 0.0
  %1189 = vmatpush1.msra.mxu0 0.0
  %1190 = vmatprep.subr.mxu0 0.0
  %1191 = vmatpush1.msra.mxu0 0.0
  %1192 = vmatprep.subr.mxu0 0.0
  %1193 = vmatpush1.msra.mxu0 0.0
  %1194 = vmatprep.subr.mxu0 0.0
  %1195 = vmatpush1.msra.mxu0 0.0
  %1196 = vmatprep.subr.mxu0 0.0
  %1197 = vmatpush1.msra.mxu0 0.0
  %1198 = vmatprep.subr.mxu0 0.0
  %1199 = vmatpush1.msra.mxu0 0.0
  %1200 = vmatprep.subr.mxu0 0.0
  %1201 = vmatpush1.msra.mxu0 0.0
  %1202 = vmatprep.subr.mxu0 0.0
  %1203 = vmatpush1.msra.mxu0 0.0
  %1204 = vmatprep.subr.mxu0 0.0
  %1205 = vmatpush1.msra.mxu0 0.0
  %1206 = vmatprep.subr.mxu0 0.0
  %1207 = vmatpush1.msra.mxu0 0.0
  %1208 = vmatprep.subr.mxu0 0.0
  %1209 = vmatpush1.msra.mxu0 0.0
  %1210 = vmatprep.subr.mxu0 0.0
  %1211 = vmatpush1.msra.mxu0 0.0
  %1212 = vmatprep.subr.mxu0 0.0
  %1213 = vmatpush1.msra.mxu0 0.0
  %1214 = vmatprep.subr.mxu0 0.0
  %1215 = vmatpush1.msra.mxu0 0.0
  %1216 = vmatprep.subr.mxu0 0.0
  %1217 = vmatpush1.msra.mxu0 0.0
  %1218 = vmatprep.subr.mxu0 0.0
  %1219 = vmatpush1.msra.mxu0 0.0
  %1220 = vmatprep.subr.mxu0 0.0
  %1221 = vmatpush1.msra.mxu0 0.0
  %1222 = vmatprep.subr.mxu0 0.0
  %1223 = vmatpush1.msra.mxu0 0.0
  %1224 = vmatprep.subr.mxu0 0.0
  %1225 = vmatpush1.msra.mxu0 0.0
  %1226 = vmatprep.subr.mxu0 0.0
  %1227 = vmatpush1.msra.mxu0 0.0
  %1228 = vmatprep.subr.mxu0 0.0
  %1229 = vmatpush1.msra.mxu0 0.0
  %1230 = vmatprep.subr.mxu0 0.0
  %1231 = vmatpush1.msra.mxu0 0.0
  %1232 = vmatprep.mubr.f32.mxu0 0.0
  %1233 = vmatmul.mubr.f32.gmra.mrb[0].mxu0 %v1163
  %v1234 = vpop.f32.mrb[0].mxu0
  %v1235 = vadd.f32 %v1161, %v1234
  %v1236 = vpop.f32.mrb[0].mxu0
  %1237 = vmatprep.mubr.f32.mxu0 0.0
  %1238 = vmatmul.mubr.f32.gmra.mrb[0].mxu0 %v1166
  %v1239 = vpop.f32.mrb[0].mxu0
  %v1240 = vadd.f32 %v1161, %v1239
  %v1241 = vpop.f32.mrb[0].mxu0
  %1242 = vdwg.mxu0
  %1245 = vrot.lane.b32.xlu0 %v1235, 120
  %v1246 = vpop.permute.xlu0 %1245
  %1247 = vrot.lane.b32.xlu0 %v1240, 120
  %v1248 = vpop.permute.xlu0 %1247
  %1249 = vrot.lane.b32.xlu0 %v1235, 112
  %v1250 = vpop.permute.xlu0 %1249
  %1251 = vrot.lane.b32.xlu0 %v1240, 112
  %v1252 = vpop.permute.xlu0 %1251
  %1253 = vrot.lane.b32.xlu0 %v1235, 104
  %v1254 = vpop.permute.xlu0 %1253
  %1255 = vrot.lane.b32.xlu0 %v1240, 104
  %v1256 = vpop.permute.xlu0 %1255
  %1257 = vrot.lane.b32.xlu0 %v1235, 96
  %v1258 = vpop.permute.xlu0 %1257
  %1259 = vrot.lane.b32.xlu0 %v1240, 96
  %v1260 = vpop.permute.xlu0 %1259
  %1261 = vrot.lane.b32.xlu0 %v1246, 96
  %v1262 = vpop.permute.xlu0 %1261
  %1263 = vrot.lane.b32.xlu0 %v1248, 96
  %v1264 = vpop.permute.xlu0 %1263
  %1265 = vrot.lane.b32.xlu0 %v1250, 96
  %v1266 = vpop.permute.xlu0 %1265
  %1267 = vrot.lane.b32.xlu0 %v1252, 96
  %v1268 = vpop.permute.xlu0 %1267
  %1269 = vrot.lane.b32.xlu0 %v1254, 96
  %v1270 = vpop.permute.xlu0 %1269
  %1271 = vrot.lane.b32.xlu0 %v1256, 96
  %v1272 = vpop.permute.xlu0 %1271
  %v1273 = vsel %vm348, %v1235, 0
  %v1275 = vsel %vm348, %v1240, 0
  %v1277 = vsel %vm348, %v1246, 0
  %v1279 = vsel %vm348, %v1248, 0
  %v1281 = vsel %vm348, %v1250, 0
  %v1283 = vsel %vm348, %v1252, 0
  %v1285 = vsel %vm348, %v1254, 0
  %v1287 = vsel %vm348, %v1256, 0
  %v1289 = vsel %vm348, %v1258, 0
  %v1291 = vsel %vm348, %v1260, 0
  %v1293 = vsel %vm348, %v1262, 0
  %v1295 = vsel %vm348, %v1264, 0
  %v1297 = vsel %vm348, %v1266, 0
  %v1299 = vsel %vm348, %v1268, 0
  %v1301 = vsel %vm348, %v1270, 0
  %v1303 = vsel %vm348, %v1272, 0
  %1305 = vmatprep.subr.mxu0 0.0
  %1306 = vmatpush1.xpose.msra.mxu0 %v1289
  %1307 = vmatprep.subr.mxu0 0.0
  %1308 = vmatpush1.xpose.msra.mxu0 %v1291
  %1309 = vmatprep.subr.mxu0 0.0
  %1310 = vmatpush1.xpose.msra.mxu0 %v1293
  %1311 = vmatprep.subr.mxu0 0.0
  %1312 = vmatpush1.xpose.msra.mxu0 %v1295
  %1313 = vmatprep.subr.mxu0 0.0
  %1314 = vmatpush1.xpose.msra.mxu0 %v1297
  %1315 = vmatprep.subr.mxu0 0.0
  %1316 = vmatpush1.xpose.msra.mxu0 %v1299
  %1317 = vmatprep.subr.mxu0 0.0
  %1318 = vmatpush1.xpose.msra.mxu0 %v1301
  %1319 = vmatprep.subr.mxu0 0.0
  %1320 = vmatpush1.xpose.msra.mxu0 %v1303
  %1321 = vmatprep.subr.mxu0 0.0
  %1322 = vmatpush1.xpose.msra.mxu0 0.0
  %1323 = vmatprep.subr.mxu0 0.0
  %1324 = vmatpush1.xpose.msra.mxu0 0.0
  %1325 = vmatprep.subr.mxu0 0.0
  %1326 = vmatpush1.xpose.msra.mxu0 0.0
  %1327 = vmatprep.subr.mxu0 0.0
  %1328 = vmatpush1.xpose.msra.mxu0 0.0
  %1329 = vmatprep.subr.mxu0 0.0
  %1330 = vmatpush1.xpose.msra.mxu0 0.0
  %1331 = vmatprep.subr.mxu0 0.0
  %1332 = vmatpush1.xpose.msra.mxu0 0.0
  %1333 = vmatprep.subr.mxu0 0.0
  %1334 = vmatpush1.xpose.msra.mxu0 0.0
  %1335 = vmatprep.subr.mxu0 0.0
  %1336 = vmatpush1.xpose.msra.mxu0 0.0
  %1337 = vmatprep.subr.mxu0 0.0
  %1338 = vmatpush1.xpose.msra.mxu0 0.0
  %1339 = vmatprep.subr.mxu0 0.0
  %1340 = vmatpush1.xpose.msra.mxu0 0.0
  %1341 = vmatprep.subr.mxu0 0.0
  %1342 = vmatpush1.xpose.msra.mxu0 0.0
  %1343 = vmatprep.subr.mxu0 0.0
  %1344 = vmatpush1.xpose.msra.mxu0 0.0
  %1345 = vmatprep.subr.mxu0 0.0
  %1346 = vmatpush1.xpose.msra.mxu0 0.0
  %1347 = vmatprep.subr.mxu0 0.0
  %1348 = vmatpush1.xpose.msra.mxu0 0.0
  %1349 = vmatprep.subr.mxu0 0.0
  %1350 = vmatpush1.xpose.msra.mxu0 0.0
  %1351 = vmatprep.subr.mxu0 0.0
  %1352 = vmatpush1.xpose.msra.mxu0 0.0
  %1353 = vmatprep.subr.mxu0 0.0
  %1354 = vmatpush1.xpose.msra.mxu0 0.0
  %1355 = vmatprep.subr.mxu0 0.0
  %1356 = vmatpush1.xpose.msra.mxu0 0.0
  %1357 = vmatprep.subr.mxu0 0.0
  %1358 = vmatpush1.xpose.msra.mxu0 0.0
  %1359 = vmatprep.subr.mxu0 0.0
  %1360 = vmatpush1.xpose.msra.mxu0 0.0
  %1361 = vmatprep.subr.mxu0 0.0
  %1362 = vmatpush1.xpose.msra.mxu0 0.0
  %1363 = vmatprep.subr.mxu0 0.0
  %1364 = vmatpush1.xpose.msra.mxu0 0.0
  %1365 = vmatprep.subr.mxu0 0.0
  %1366 = vmatpush1.xpose.msra.mxu0 0.0
  %1367 = vmatprep.subr.mxu0 0.0
  %1368 = vmatpush1.xpose.msra.mxu0 0.0
  %1369 = vmatprep.mubr.f32.mxu0 0.0
  %1370 = vmatmul.mubr.f32.gmra.mrb[0].mxu0 %v1273
  %v1371 = vpop.f32.mrb[0].mxu0
  %v1372 = vadd.f32 0.0, %v1371
  %v1373 = vpop.f32.mrb[0].mxu0
  %1374 = vmatprep.mubr.f32.mxu0 0.0
  %1375 = vmatmul.mubr.f32.gmra.mrb[0].mxu0 %v1275
  %v1376 = vpop.f32.mrb[0].mxu0
  %v1377 = vadd.f32 0.0, %v1376
  %v1378 = vpop.f32.mrb[0].mxu0
  %1379 = vmatprep.mubr.f32.mxu0 0.0
  %1380 = vmatmul.mubr.f32.gmra.mrb[0].mxu0 %v1277
  %v1381 = vpop.f32.mrb[0].mxu0
  %v1382 = vadd.f32 0.0, %v1381
  %v1383 = vpop.f32.mrb[0].mxu0
  %1384 = vmatprep.mubr.f32.mxu0 0.0
  %1385 = vmatmul.mubr.f32.gmra.mrb[0].mxu0 %v1279
  %v1386 = vpop.f32.mrb[0].mxu0
  %v1387 = vadd.f32 0.0, %v1386
  %v1388 = vpop.f32.mrb[0].mxu0
  %1389 = vmatprep.mubr.f32.mxu0 0.0
  %1390 = vmatmul.mubr.f32.gmra.mrb[0].mxu0 %v1281
  %v1391 = vpop.f32.mrb[0].mxu0
  %v1392 = vadd.f32 0.0, %v1391
  %v1393 = vpop.f32.mrb[0].mxu0
  %1394 = vmatprep.mubr.f32.mxu0 0.0
  %1395 = vmatmul.mubr.f32.gmra.mrb[0].mxu0 %v1283
  %v1396 = vpop.f32.mrb[0].mxu0
  %v1397 = vadd.f32 0.0, %v1396
  %v1398 = vpop.f32.mrb[0].mxu0
  %1399 = vmatprep.mubr.f32.mxu0 0.0
  %1400 = vmatmul.mubr.f32.gmra.mrb[0].mxu0 %v1285
  %v1401 = vpop.f32.mrb[0].mxu0
  %v1402 = vadd.f32 0.0, %v1401
  %v1403 = vpop.f32.mrb[0].mxu0
  %1404 = vmatprep.mubr.f32.mxu0 0.0
  %1405 = vmatmul.mubr.f32.gmra.mrb[0].mxu0 %v1287
  %v1406 = vpop.f32.mrb[0].mxu0
  %v1407 = vadd.f32 0.0, %v1406
  %v1408 = vpop.f32.mrb[0].mxu0
  %1409 = vdwg.mxu0
  %v1410 = vmul.f32 %v1372, 0.35355338
  %v1411 = vmul.f32 %v1377, 0.35355338
  %v1412 = vmul.f32 %v1382, 0.35355338
  %v1413 = vmul.f32 %v1387, 0.35355338
  %v1414 = vmul.f32 %v1392, 0.35355338
  %v1415 = vmul.f32 %v1397, 0.35355338
  %v1416 = vmul.f32 %v1402, 0.35355338
  %v1417 = vmul.f32 %v1407, 0.35355338
  %v1418 = vadd.f32 %v1410, %v22
  %v1419 = vadd.f32 %v1411, %v23
  %v1420 = vadd.f32 %v1412, %v24
  %v1421 = vadd.f32 %v1413, %v25
  %v1422 = vadd.f32 %v1414, %v26
  %v1423 = vadd.f32 %v1415, %v27
  %v1424 = vadd.f32 %v1416, %v28
  %v1425 = vadd.f32 %v1417, %v29
  %v1426 = vsel %vm502, %v1418, -inf
  %1427 = vmax.xlane.f32.xlu0 %v1426
  %v1428 = vpop.xlane.xlu0 %1427
  %v1429 = vsel %vm502, %v1419, -inf
  %1430 = vmax.xlane.f32.xlu0 %v1429
  %v1431 = vpop.xlane.xlu0 %1430
  %v1432 = vsel %vm502, %v1420, -inf
  %1433 = vmax.xlane.f32.xlu0 %v1432
  %v1434 = vpop.xlane.xlu0 %1433
  %v1435 = vsel %vm502, %v1421, -inf
  %1436 = vmax.xlane.f32.xlu0 %v1435
  %v1437 = vpop.xlane.xlu0 %1436
  %v1438 = vsel %vm502, %v1422, -inf
  %1439 = vmax.xlane.f32.xlu0 %v1438
  %v1440 = vpop.xlane.xlu0 %1439
  %v1441 = vsel %vm502, %v1423, -inf
  %1442 = vmax.xlane.f32.xlu0 %v1441
  %v1443 = vpop.xlane.xlu0 %1442
  %v1444 = vsel %vm502, %v1424, -inf
  %1445 = vmax.xlane.f32.xlu0 %v1444
  %v1446 = vpop.xlane.xlu0 %1445
  %v1447 = vsel %vm502, %v1425, -inf
  %1448 = vmax.xlane.f32.xlu0 %v1447
  %v1449 = vpop.xlane.xlu0 %1448
  %v1450 = vsub.f32 %v1418, %v1428
  %v1451 = vsub.f32 %v1419, %v1431
  %v1452 = vsub.f32 %v1420, %v1434
  %v1453 = vsub.f32 %v1421, %v1437
  %v1454 = vsub.f32 %v1422, %v1440
  %v1455 = vsub.f32 %v1423, %v1443
  %v1456 = vsub.f32 %v1424, %v1446
  %v1457 = vsub.f32 %v1425, %v1449
  %v1458 = vmul.f32 %v1450, 1.442695
  %v1459 = vpow.pop %v1458
  %v1460 = vmul.f32 %v1451, 1.442695
  %v1461 = vpow.pop %v1460
  %v1462 = vmul.f32 %v1452, 1.442695
  %v1463 = vpow.pop %v1462
  %v1464 = vmul.f32 %v1453, 1.442695
  %v1465 = vpow.pop %v1464
  %v1466 = vmul.f32 %v1454, 1.442695
  %v1467 = vpow.pop %v1466
  %v1468 = vmul.f32 %v1455, 1.442695
  %v1469 = vpow.pop %v1468
  %v1470 = vmul.f32 %v1456, 1.442695
  %v1471 = vpow.pop %v1470
  %v1472 = vmul.f32 %v1457, 1.442695
  %v1473 = vpow.pop %v1472
  %v1474 = vsel %vm502, %v1459, 0.0
  %1475 = vadd.xlane.f32.xlu0 %v1474
  %v1476 = vpop.xlane.xlu0 %1475
  %v1477 = vsel %vm502, %v1461, 0.0
  %1478 = vadd.xlane.f32.xlu0 %v1477
  %v1479 = vpop.xlane.xlu0 %1478
  %v1480 = vsel %vm502, %v1463, 0.0
  %1481 = vadd.xlane.f32.xlu0 %v1480
  %v1482 = vpop.xlane.xlu0 %1481
  %v1483 = vsel %vm502, %v1465, 0.0
  %1484 = vadd.xlane.f32.xlu0 %v1483
  %v1485 = vpop.xlane.xlu0 %1484
  %v1486 = vsel %vm502, %v1467, 0.0
  %1487 = vadd.xlane.f32.xlu0 %v1486
  %v1488 = vpop.xlane.xlu0 %1487
  %v1489 = vsel %vm502, %v1469, 0.0
  %1490 = vadd.xlane.f32.xlu0 %v1489
  %v1491 = vpop.xlane.xlu0 %1490
  %v1492 = vsel %vm502, %v1471, 0.0
  %1493 = vadd.xlane.f32.xlu0 %v1492
  %v1494 = vpop.xlane.xlu0 %1493
  %v1495 = vsel %vm502, %v1473, 0.0
  %1496 = vadd.xlane.f32.xlu0 %v1495
  %v1497 = vpop.xlane.xlu0 %1496
  %v1498 = vrcp.pop %v1476
  %v1499 = vrcp.pop %v1479
  %v1500 = vrcp.pop %v1482
  %v1501 = vrcp.pop %v1485
  %v1502 = vrcp.pop %v1488
  %v1503 = vrcp.pop %v1491
  %v1504 = vrcp.pop %v1494
  %v1505 = vrcp.pop %v1497
  %v1506 = vmul.f32 %v1459, %v1498
  %v1507 = vmul.f32 %v1461, %v1499
  %v1508 = vmul.f32 %v1463, %v1500
  %v1509 = vmul.f32 %v1465, %v1501
  %v1510 = vmul.f32 %v1467, %v1502
  %v1511 = vmul.f32 %v1469, %v1503
  %v1512 = vmul.f32 %v1471, %v1504
  %v1513 = vmul.f32 %v1473, %v1505
  %1514 = vrot.lane.b32.xlu0 %v1235, 64
  %v1515 = vpop.permute.xlu0 %1514
  %1516 = vrot.lane.b32.xlu0 %v1240, 64
  %v1517 = vpop.permute.xlu0 %1516
  %1518 = vrot.lane.b32.xlu0 %v1246, 64
  %v1519 = vpop.permute.xlu0 %1518
  %1520 = vrot.lane.b32.xlu0 %v1248, 64
  %v1521 = vpop.permute.xlu0 %1520
  %1522 = vrot.lane.b32.xlu0 %v1250, 64
  %v1523 = vpop.permute.xlu0 %1522
  %1524 = vrot.lane.b32.xlu0 %v1252, 64
  %v1525 = vpop.permute.xlu0 %1524
  %1526 = vrot.lane.b32.xlu0 %v1254, 64
  %v1527 = vpop.permute.xlu0 %1526
  %1528 = vrot.lane.b32.xlu0 %v1256, 64
  %v1529 = vpop.permute.xlu0 %1528
  %v1539 = vsel %vm502, %v1506, 0
  %v1542 = vsel %vm502, %v1507, 0
  %v1545 = vsel %vm502, %v1508, 0
  %v1548 = vsel %vm502, %v1509, 0
  %v1551 = vsel %vm502, %v1510, 0
  %v1554 = vsel %vm502, %v1511, 0
  %v1557 = vsel %vm502, %v1512, 0
  %v1560 = vsel %vm502, %v1513, 0
  %1562 = vmatprep.subr.mxu0 0.0
  %1563 = vmatpush1.msra.mxu0 %v1515
  %1564 = vmatprep.subr.mxu0 0.0
  %1565 = vmatpush1.msra.mxu0 %v1517
  %1566 = vmatprep.subr.mxu0 0.0
  %1567 = vmatpush1.msra.mxu0 %v1519
  %1568 = vmatprep.subr.mxu0 0.0
  %1569 = vmatpush1.msra.mxu0 %v1521
  %1570 = vmatprep.subr.mxu0 0.0
  %1571 = vmatpush1.msra.mxu0 %v1523
  %1572 = vmatprep.subr.mxu0 0.0
  %1573 = vmatpush1.msra.mxu0 %v1525
  %1574 = vmatprep.subr.mxu0 0.0
  %1575 = vmatpush1.msra.mxu0 %v1527
  %1576 = vmatprep.subr.mxu0 0.0
  %1577 = vmatpush1.msra.mxu0 %v1529
  %1578 = vmatprep.subr.mxu0 0.0
  %1579 = vmatpush1.msra.mxu0 0.0
  %1580 = vmatprep.subr.mxu0 0.0
  %1581 = vmatpush1.msra.mxu0 0.0
  %1582 = vmatprep.subr.mxu0 0.0
  %1583 = vmatpush1.msra.mxu0 0.0
  %1584 = vmatprep.subr.mxu0 0.0
  %1585 = vmatpush1.msra.mxu0 0.0
  %1586 = vmatprep.subr.mxu0 0.0
  %1587 = vmatpush1.msra.mxu0 0.0
  %1588 = vmatprep.subr.mxu0 0.0
  %1589 = vmatpush1.msra.mxu0 0.0
  %1590 = vmatprep.subr.mxu0 0.0
  %1591 = vmatpush1.msra.mxu0 0.0
  %1592 = vmatprep.subr.mxu0 0.0
  %1593 = vmatpush1.msra.mxu0 0.0
  %1594 = vmatprep.subr.mxu0 0.0
  %1595 = vmatpush1.msra.mxu0 0.0
  %1596 = vmatprep.subr.mxu0 0.0
  %1597 = vmatpush1.msra.mxu0 0.0
  %1598 = vmatprep.subr.mxu0 0.0
  %1599 = vmatpush1.msra.mxu0 0.0
  %1600 = vmatprep.subr.mxu0 0.0
  %1601 = vmatpush1.msra.mxu0 0.0
  %1602 = vmatprep.subr.mxu0 0.0
  %1603 = vmatpush1.msra.mxu0 0.0
  %1604 = vmatprep.subr.mxu0 0.0
  %1605 = vmatpush1.msra.mxu0 0.0
  %1606 = vmatprep.subr.mxu0 0.0
  %1607 = vmatpush1.msra.mxu0 0.0
  %1608 = vmatprep.subr.mxu0 0.0
  %1609 = vmatpush1.msra.mxu0 0.0
  %1610 = vmatprep.subr.mxu0 0.0
  %1611 = vmatpush1.msra.mxu0 0.0
  %1612 = vmatprep.subr.mxu0 0.0
  %1613 = vmatpush1.msra.mxu0 0.0
  %1614 = vmatprep.subr.mxu0 0.0
  %1615 = vmatpush1.msra.mxu0 0.0
  %1616 = vmatprep.subr.mxu0 0.0
  %1617 = vmatpush1.msra.mxu0 0.0
  %1618 = vmatprep.subr.mxu0 0.0
  %1619 = vmatpush1.msra.mxu0 0.0
  %1620 = vmatprep.subr.mxu0 0.0
  %1621 = vmatpush1.msra.mxu0 0.0
  %1622 = vmatprep.subr.mxu0 0.0
  %1623 = vmatpush1.msra.mxu0 0.0
  %1624 = vmatprep.subr.mxu0 0.0
  %1625 = vmatpush1.msra.mxu0 0.0
  %1626 = vmatprep.mubr.f32.mxu0 0.0
  %1627 = vmatmul.mubr.f32.gmra.mrb[0].mxu0 %v1539
  %v1628 = vpop.f32.mrb[0].mxu0
  %v1629 = vadd.f32 0.0, %v1628
  %v1630 = vpop.f32.mrb[0].mxu0
  %1631 = vmatprep.mubr.f32.mxu0 0.0
  %1632 = vmatmul.mubr.f32.gmra.mrb[0].mxu0 %v1542
  %v1633 = vpop.f32.mrb[0].mxu0
  %v1634 = vadd.f32 0.0, %v1633
  %v1635 = vpop.f32.mrb[0].mxu0
  %1636 = vmatprep.mubr.f32.mxu0 0.0
  %1637 = vmatmul.mubr.f32.gmra.mrb[0].mxu0 %v1545
  %v1638 = vpop.f32.mrb[0].mxu0
  %v1639 = vadd.f32 0.0, %v1638
  %v1640 = vpop.f32.mrb[0].mxu0
  %1641 = vmatprep.mubr.f32.mxu0 0.0
  %1642 = vmatmul.mubr.f32.gmra.mrb[0].mxu0 %v1548
  %v1643 = vpop.f32.mrb[0].mxu0
  %v1644 = vadd.f32 0.0, %v1643
  %v1645 = vpop.f32.mrb[0].mxu0
  %1646 = vmatprep.mubr.f32.mxu0 0.0
  %1647 = vmatmul.mubr.f32.gmra.mrb[0].mxu0 %v1551
  %v1648 = vpop.f32.mrb[0].mxu0
  %v1649 = vadd.f32 0.0, %v1648
  %v1650 = vpop.f32.mrb[0].mxu0
  %1651 = vmatprep.mubr.f32.mxu0 0.0
  %1652 = vmatmul.mubr.f32.gmra.mrb[0].mxu0 %v1554
  %v1653 = vpop.f32.mrb[0].mxu0
  %v1654 = vadd.f32 0.0, %v1653
  %v1655 = vpop.f32.mrb[0].mxu0
  %1656 = vmatprep.mubr.f32.mxu0 0.0
  %1657 = vmatmul.mubr.f32.gmra.mrb[0].mxu0 %v1557
  %v1658 = vpop.f32.mrb[0].mxu0
  %v1659 = vadd.f32 0.0, %v1658
  %v1660 = vpop.f32.mrb[0].mxu0
  %1661 = vmatprep.mubr.f32.mxu0 0.0
  %1662 = vmatmul.mubr.f32.gmra.mrb[0].mxu0 %v1560
  %v1663 = vpop.f32.mrb[0].mxu0
  %v1664 = vadd.f32 0.0, %v1663
  %v1665 = vpop.f32.mrb[0].mxu0
  %1666 = vdwg.mxu0
  %1669 = vrot.lane.b32.xlu0 %v1639, 8
  %v1670 = vpop.permute.xlu0 %1669
  %1671 = vrot.lane.b32.xlu0 %v1644, 8
  %v1672 = vpop.permute.xlu0 %1671
  %1677 = vrot.lane.b32.xlu0 %v1649, 16
  %v1678 = vpop.permute.xlu0 %1677
  %1679 = vrot.lane.b32.xlu0 %v1654, 16
  %v1680 = vpop.permute.xlu0 %1679
  %1685 = vrot.lane.b32.xlu0 %v1659, 24
  %v1686 = vpop.permute.xlu0 %1685
  %1687 = vrot.lane.b32.xlu0 %v1664, 24
  %v1688 = vpop.permute.xlu0 %1687
  %v1691 = vsel %vm348, %v1629, %v1670
  %v1692 = vsel %vm348, %v1634, %v1672
  %v1693 = vsel %vm770, %v1691, %v1678
  %v1694 = vsel %vm770, %v1692, %v1680
  %v1695 = vsel %vm773, %v1693, %v1686
  %v1696 = vsel %vm773, %v1694, %v1688
  %v1697 = vlaneseq
  %v1698 = vshrl.u32 %v1697, 7
  %v1699 = vsub.s32 0, %v1698
  %v1700 = vrot.slane %v1139, %v1699
  %v1702 = vsel %vm165, %v1695, 0
  %v1705 = vsel %vm165, %v1696, 0
  %1707 = vmatprep.subr.mxu0 0.0
  %1708 = vmatpush1.msra.mxu0 %v1135
  %1709 = vmatprep.subr.mxu0 0.0
  %1710 = vmatpush1.msra.mxu0 %v1136
  %1711 = vmatprep.subr.mxu0 0.0
  %1712 = vmatpush1.msra.mxu0 %v1137
  %1713 = vmatprep.subr.mxu0 0.0
  %1714 = vmatpush1.msra.mxu0 %v1138
  %1715 = vmatprep.subr.mxu0 0.0
  %1716 = vmatpush1.msra.mxu0 0.0
  %1717 = vmatprep.subr.mxu0 0.0
  %1718 = vmatpush1.msra.mxu0 0.0
  %1719 = vmatprep.subr.mxu0 0.0
  %1720 = vmatpush1.msra.mxu0 0.0
  %1721 = vmatprep.subr.mxu0 0.0
  %1722 = vmatpush1.msra.mxu0 0.0
  %1723 = vmatprep.subr.mxu0 0.0
  %1724 = vmatpush1.msra.mxu0 0.0
  %1725 = vmatprep.subr.mxu0 0.0
  %1726 = vmatpush1.msra.mxu0 0.0
  %1727 = vmatprep.subr.mxu0 0.0
  %1728 = vmatpush1.msra.mxu0 0.0
  %1729 = vmatprep.subr.mxu0 0.0
  %1730 = vmatpush1.msra.mxu0 0.0
  %1731 = vmatprep.subr.mxu0 0.0
  %1732 = vmatpush1.msra.mxu0 0.0
  %1733 = vmatprep.subr.mxu0 0.0
  %1734 = vmatpush1.msra.mxu0 0.0
  %1735 = vmatprep.subr.mxu0 0.0
  %1736 = vmatpush1.msra.mxu0 0.0
  %1737 = vmatprep.subr.mxu0 0.0
  %1738 = vmatpush1.msra.mxu0 0.0
  %1739 = vmatprep.subr.mxu0 0.0
  %1740 = vmatpush1.msra.mxu0 0.0
  %1741 = vmatprep.subr.mxu0 0.0
  %1742 = vmatpush1.msra.mxu0 0.0
  %1743 = vmatprep.subr.mxu0 0.0
  %1744 = vmatpush1.msra.mxu0 0.0
  %1745 = vmatprep.subr.mxu0 0.0
  %1746 = vmatpush1.msra.mxu0 0.0
  %1747 = vmatprep.subr.mxu0 0.0
  %1748 = vmatpush1.msra.mxu0 0.0
  %1749 = vmatprep.subr.mxu0 0.0
  %1750 = vmatpush1.msra.mxu0 0.0
  %1751 = vmatprep.subr.mxu0 0.0
  %1752 = vmatpush1.msra.mxu0 0.0
  %1753 = vmatprep.subr.mxu0 0.0
  %1754 = vmatpush1.msra.mxu0 0.0
  %1755 = vmatprep.subr.mxu0 0.0
  %1756 = vmatpush1.msra.mxu0 0.0
  %1757 = vmatprep.subr.mxu0 0.0
  %1758 = vmatpush1.msra.mxu0 0.0
  %1759 = vmatprep.subr.mxu0 0.0
  %1760 = vmatpush1.msra.mxu0 0.0
  %1761 = vmatprep.subr.mxu0 0.0
  %1762 = vmatpush1.msra.mxu0 0.0
  %1763 = vmatprep.subr.mxu0 0.0
  %1764 = vmatpush1.msra.mxu0 0.0
  %1765 = vmatprep.subr.mxu0 0.0
  %1766 = vmatpush1.msra.mxu0 0.0
  %1767 = vmatprep.subr.mxu0 0.0
  %1768 = vmatpush1.msra.mxu0 0.0
  %1769 = vmatprep.subr.mxu0 0.0
  %1770 = vmatpush1.msra.mxu0 0.0
  %1771 = vmatprep.mubr.f32.mxu0 0.0
  %1772 = vmatmul.mubr.f32.gmra.mrb[0].mxu0 %v1702
  %v1773 = vpop.f32.mrb[0].mxu0
  %v1774 = vadd.f32 %v1700, %v1773
  %v1775 = vpop.f32.mrb[0].mxu0
  %1776 = vmatprep.mubr.f32.mxu0 0.0
  %1777 = vmatmul.mubr.f32.gmra.mrb[0].mxu0 %v1705
  %v1778 = vpop.f32.mrb[0].mxu0
  %v1779 = vadd.f32 %v1700, %v1778
  %v1780 = vpop.f32.mrb[0].mxu0
  %1781 = vdwg.mxu0
  %v1782 = vadd.f32 %v1127, %v1774
  %v1783 = vadd.f32 %v1128, %v1779
  %v1784 = vsel %vm165, %v1782, 0.0
  %1785 = vadd.xlane.f32.xlu0 %v1784
  %v1786 = vpop.xlane.xlu0 %1785
  %v1787 = vsel %vm165, %v1783, 0.0
  %1788 = vadd.xlane.f32.xlu0 %v1787
  %v1789 = vpop.xlane.xlu0 %1788
  %v1790 = vmul.f32 %v1786, %v172
  %v1791 = vmul.f32 %v1789, %v172
  %v1792 = vsub.f32 %v1782, %v1790
  %v1793 = vsub.f32 %v1783, %v1791
  %v1794 = vmul.f32 %v1792, %v1792
  %v1795 = vmul.f32 %v1793, %v1793
  %v1796 = vsel %vm165, %v1794, 0.0
  %1797 = vadd.xlane.f32.xlu0 %v1796
  %v1798 = vpop.xlane.xlu0 %1797
  %v1799 = vsel %vm165, %v1795, 0.0
  %1800 = vadd.xlane.f32.xlu0 %v1799
  %v1801 = vpop.xlane.xlu0 %1800
  %v1802 = vmul.f32 %v1798, %v172
  %v1803 = vmul.f32 %v1801, %v172
  %v1804 = vadd.f32 %v1802, 1e-12
  %v1805 = vadd.f32 %v1803, 1e-12
  %v1806 = vrsqrt.pop %v1804
  %v1807 = vrsqrt.pop %v1805
  %v1808 = vmul.f32 %v1792, %v1806
  %v1809 = vmul.f32 %v1793, %v1807
  %v1810 = vlaneseq
  %v1811 = vshrl.u32 %v1810, 7
  %v1812 = vsub.s32 0, %v1811
  %v1813 = vrot.slane %v1140, %v1812
  %v1814 = vmul.f32 %v1808, %v1813
  %v1815 = vmul.f32 %v1809, %v1813
  %v1816 = vlaneseq
  %v1817 = vshrl.u32 %v1816, 7
  %v1818 = vsub.s32 0, %v1817
  %v1819 = vrot.slane %v1141, %v1818
  %v1820 = vadd.f32 %v1814, %v1819
  %v1821 = vadd.f32 %v1815, %v1819
  %v1822 = vlaneseq
  %v1823 = vshrl.u32 %v1822, 7
  %v1824 = vsub.s32 0, %v1823
  %v1825 = vrot.slane %v1146, %v1824
  %v1827 = vsel %vm165, %v1820, 0
  %v1830 = vsel %vm165, %v1821, 0
  %1832 = vmatprep.subr.mxu0 0.0
  %1833 = vmatpush1.msra.mxu0 %v1142
  %1834 = vmatprep.subr.mxu0 0.0
  %1835 = vmatpush1.msra.mxu0 %v1143
  %1836 = vmatprep.subr.mxu0 0.0
  %1837 = vmatpush1.msra.mxu0 %v1144
  %1838 = vmatprep.subr.mxu0 0.0
  %1839 = vmatpush1.msra.mxu0 %v1145
  %1840 = vmatprep.subr.mxu0 0.0
  %1841 = vmatpush1.msra.mxu0 0.0
  %1842 = vmatprep.subr.mxu0 0.0
  %1843 = vmatpush1.msra.mxu0 0.0
  %1844 = vmatprep.subr.mxu0 0.0
  %1845 = vmatpush1.msra.mxu0 0.0
  %1846 = vmatprep.subr.mxu0 0.0
  %1847 = vmatpush1.msra.mxu0 0.0
  %1848 = vmatprep.subr.mxu0 0.0
  %1849 = vmatpush1.msra.mxu0 0.0
  %1850 = vmatprep.subr.mxu0 0.0
  %1851 = vmatpush1.msra.mxu0 0.0
  %1852 = vmatprep.subr.mxu0 0.0
  %1853 = vmatpush1.msra.mxu0 0.0
  %1854 = vmatprep.subr.mxu0 0.0
  %1855 = vmatpush1.msra.mxu0 0.0
  %1856 = vmatprep.subr.mxu0 0.0
  %1857 = vmatpush1.msra.mxu0 0.0
  %1858 = vmatprep.subr.mxu0 0.0
  %1859 = vmatpush1.msra.mxu0 0.0
  %1860 = vmatprep.subr.mxu0 0.0
  %1861 = vmatpush1.msra.mxu0 0.0
  %1862 = vmatprep.subr.mxu0 0.0
  %1863 = vmatpush1.msra.mxu0 0.0
  %1864 = vmatprep.subr.mxu0 0.0
  %1865 = vmatpush1.msra.mxu0 0.0
  %1866 = vmatprep.subr.mxu0 0.0
  %1867 = vmatpush1.msra.mxu0 0.0
  %1868 = vmatprep.subr.mxu0 0.0
  %1869 = vmatpush1.msra.mxu0 0.0
  %1870 = vmatprep.subr.mxu0 0.0
  %1871 = vmatpush1.msra.mxu0 0.0
  %1872 = vmatprep.subr.mxu0 0.0
  %1873 = vmatpush1.msra.mxu0 0.0
  %1874 = vmatprep.subr.mxu0 0.0
  %1875 = vmatpush1.msra.mxu0 0.0
  %1876 = vmatprep.subr.mxu0 0.0
  %1877 = vmatpush1.msra.mxu0 0.0
  %1878 = vmatprep.subr.mxu0 0.0
  %1879 = vmatpush1.msra.mxu0 0.0
  %1880 = vmatprep.subr.mxu0 0.0
  %1881 = vmatpush1.msra.mxu0 0.0
  %1882 = vmatprep.subr.mxu0 0.0
  %1883 = vmatpush1.msra.mxu0 0.0
  %1884 = vmatprep.subr.mxu0 0.0
  %1885 = vmatpush1.msra.mxu0 0.0
  %1886 = vmatprep.subr.mxu0 0.0
  %1887 = vmatpush1.msra.mxu0 0.0
  %1888 = vmatprep.subr.mxu0 0.0
  %1889 = vmatpush1.msra.mxu0 0.0
  %1890 = vmatprep.subr.mxu0 0.0
  %1891 = vmatpush1.msra.mxu0 0.0
  %1892 = vmatprep.subr.mxu0 0.0
  %1893 = vmatpush1.msra.mxu0 0.0
  %1894 = vmatprep.subr.mxu0 0.0
  %1895 = vmatpush1.msra.mxu0 0.0
  %1896 = vmatprep.mubr.f32.mxu0 0.0
  %1897 = vmatmul.mubr.f32.gmra.mrb[0].mxu0 %v1827
  %v1898 = vpop.f32.mrb[0].mxu0
  %v1899 = vadd.f32 %v1825, %v1898
  %v1900 = vpop.f32.mrb[0].mxu0
  %1901 = vmatprep.mubr.f32.mxu0 0.0
  %1902 = vmatmul.mubr.f32.gmra.mrb[0].mxu0 %v1830
  %v1903 = vpop.f32.mrb[0].mxu0
  %v1904 = vadd.f32 %v1825, %v1903
  %v1905 = vpop.f32.mrb[0].mxu0
  %1906 = vdwg.mxu0
  %v1907 = vmul.f32 %v1899, %v1899
  %v1908 = vmul.f32 %v1904, %v1904
  %v1909 = vmul.f32 %v1899, %v1907
  %v1910 = vmul.f32 %v1904, %v1908
  %v1911 = vmul.f32 %v1909, 0.044715
  %v1912 = vmul.f32 %v1910, 0.044715
  %v1913 = vadd.f32 %v1899, %v1911
  %v1914 = vadd.f32 %v1904, %v1912
  %v1915 = vmul.f32 %v1913, 0.7978846
  %v1916 = vmul.f32 %v1914, 0.7978846
  %v1917 = vtanh.pop %v1915
  %v1918 = vtanh.pop %v1916
  %v1919 = vadd.f32 %v1917, 1.0
  %v1920 = vadd.f32 %v1918, 1.0
  %v1921 = vmul.f32 %v1919, 0.5
  %v1922 = vmul.f32 %v1920, 0.5
  %v1923 = vmul.f32 %v1899, %v1921
  %v1924 = vmul.f32 %v1904, %v1922
  %v1925 = vlaneseq
  %v1926 = vshrl.u32 %v1925, 7
  %v1927 = vsub.s32 0, %v1926
  %v1928 = vrot.slane %v1155, %v1927
  %v1930 = vsel %vm502, %v1923, 0
  %v1933 = vsel %vm502, %v1924, 0
  %1935 = vmatprep.subr.mxu0 0.0
  %1936 = vmatpush1.msra.mxu0 %v1147
  %1937 = vmatprep.subr.mxu0 0.0
  %1938 = vmatpush1.msra.mxu0 %v1148
  %1939 = vmatprep.subr.mxu0 0.0
  %1940 = vmatpush1.msra.mxu0 %v1149
  %1941 = vmatprep.subr.mxu0 0.0
  %1942 = vmatpush1.msra.mxu0 %v1150
  %1943 = vmatprep.subr.mxu0 0.0
  %1944 = vmatpush1.msra.mxu0 %v1151
  %1945 = vmatprep.subr.mxu0 0.0
  %1946 = vmatpush1.msra.mxu0 %v1152
  %1947 = vmatprep.subr.mxu0 0.0
  %1948 = vmatpush1.msra.mxu0 %v1153
  %1949 = vmatprep.subr.mxu0 0.0
  %1950 = vmatpush1.msra.mxu0 %v1154
  %1951 = vmatprep.subr.mxu0 0.0
  %1952 = vmatpush1.msra.mxu0 0.0
  %1953 = vmatprep.subr.mxu0 0.0
  %1954 = vmatpush1.msra.mxu0 0.0
  %1955 = vmatprep.subr.mxu0 0.0
  %1956 = vmatpush1.msra.mxu0 0.0
  %1957 = vmatprep.subr.mxu0 0.0
  %1958 = vmatpush1.msra.mxu0 0.0
  %1959 = vmatprep.subr.mxu0 0.0
  %1960 = vmatpush1.msra.mxu0 0.0
  %1961 = vmatprep.subr.mxu0 0.0
  %1962 = vmatpush1.msra.mxu0 0.0
  %1963 = vmatprep.subr.mxu0 0.0
  %1964 = vmatpush1.msra.mxu0 0.0
  %1965 = vmatprep.subr.mxu0 0.0
  %1966 = vmatpush1.msra.mxu0 0.0
  %1967 = vmatprep.subr.mxu0 0.0
  %1968 = vmatpush1.msra.mxu0 0.0
  %1969 = vmatprep.subr.mxu0 0.0
  %1970 = vmatpush1.msra.mxu0 0.0
  %1971 = vmatprep.subr.mxu0 0.0
  %1972 = vmatpush1.msra.mxu0 0.0
  %1973 = vmatprep.subr.mxu0 0.0
  %1974 = vmatpush1.msra.mxu0 0.0
  %1975 = vmatprep.subr.mxu0 0.0
  %1976 = vmatpush1.msra.mxu0 0.0
  %1977 = vmatprep.subr.mxu0 0.0
  %1978 = vmatpush1.msra.mxu0 0.0
  %1979 = vmatprep.subr.mxu0 0.0
  %1980 = vmatpush1.msra.mxu0 0.0
  %1981 = vmatprep.subr.mxu0 0.0
  %1982 = vmatpush1.msra.mxu0 0.0
  %1983 = vmatprep.subr.mxu0 0.0
  %1984 = vmatpush1.msra.mxu0 0.0
  %1985 = vmatprep.subr.mxu0 0.0
  %1986 = vmatpush1.msra.mxu0 0.0
  %1987 = vmatprep.subr.mxu0 0.0
  %1988 = vmatpush1.msra.mxu0 0.0
  %1989 = vmatprep.subr.mxu0 0.0
  %1990 = vmatpush1.msra.mxu0 0.0
  %1991 = vmatprep.subr.mxu0 0.0
  %1992 = vmatpush1.msra.mxu0 0.0
  %1993 = vmatprep.subr.mxu0 0.0
  %1994 = vmatpush1.msra.mxu0 0.0
  %1995 = vmatprep.subr.mxu0 0.0
  %1996 = vmatpush1.msra.mxu0 0.0
  %1997 = vmatprep.subr.mxu0 0.0
  %1998 = vmatpush1.msra.mxu0 0.0
  %1999 = vmatprep.mubr.f32.mxu0 0.0
  %2000 = vmatmul.mubr.f32.gmra.mrb[0].mxu0 %v1930
  %v2001 = vpop.f32.mrb[0].mxu0
  %v2002 = vadd.f32 %v1928, %v2001
  %v2003 = vpop.f32.mrb[0].mxu0
  %2004 = vmatprep.mubr.f32.mxu0 0.0
  %2005 = vmatmul.mubr.f32.gmra.mrb[0].mxu0 %v1933
  %v2006 = vpop.f32.mrb[0].mxu0
  %v2007 = vadd.f32 %v1928, %v2006
  %v2008 = vpop.f32.mrb[0].mxu0
  %2009 = vdwg.mxu0
  %v2010 = vadd.f32 %v1820, %v2002
  %v2011 = vadd.f32 %v1821, %v2007
  %v2012 = vsel %vm165, %v2010, 0.0
  %2013 = vadd.xlane.f32.xlu0 %v2012
  %v2014 = vpop.xlane.xlu0 %2013
  %v2015 = vsel %vm165, %v2011, 0.0
  %2016 = vadd.xlane.f32.xlu0 %v2015
  %v2017 = vpop.xlane.xlu0 %2016
  %v2018 = vmul.f32 %v2014, %v172
  %v2019 = vmul.f32 %v2017, %v172
  %v2020 = vsub.f32 %v2010, %v2018
  %v2021 = vsub.f32 %v2011, %v2019
  %v2022 = vmul.f32 %v2020, %v2020
  %v2023 = vmul.f32 %v2021, %v2021
  %v2024 = vsel %vm165, %v2022, 0.0
  %2025 = vadd.xlane.f32.xlu0 %v2024
  %v2026 = vpop.xlane.xlu0 %2025
  %v2027 = vsel %vm165, %v2023, 0.0
  %2028 = vadd.xlane.f32.xlu0 %v2027
  %v2029 = vpop.xlane.xlu0 %2028
  %v2030 = vmul.f32 %v2026, %v172
  %v2031 = vmul.f32 %v2029, %v172
  %v2032 = vadd.f32 %v2030, 1e-12
  %v2033 = vadd.f32 %v2031, 1e-12
  %v2034 = vrsqrt.pop %v2032
  %v2035 = vrsqrt.pop %v2033
  %v2036 = vmul.f32 %v2020, %v2034
  %v2037 = vmul.f32 %v2021, %v2035
  %v2038 = vlaneseq
  %v2039 = vshrl.u32 %v2038, 7
  %v2040 = vsub.s32 0, %v2039
  %v2041 = vrot.slane %v1156, %v2040
  %v2042 = vmul.f32 %v2036, %v2041
  %v2043 = vmul.f32 %v2037, %v2041
  %v2044 = vlaneseq
  %v2045 = vshrl.u32 %v2044, 7
  %v2046 = vsub.s32 0, %v2045
  %v2047 = vrot.slane %v1157, %v2046
  %v2048 = vadd.f32 %v2042, %v2047
  %v2049 = vadd.f32 %v2043, %v2047
  %v2050 = vld [vmem:[%s4] sm:$0xff]
  %v2051 = vld [vmem:[%s4 + $0x8] sm:$0xff]
  %v2052 = vld [vmem:[%s4 + $0x10] sm:$0xff]
  %v2053 = vld [vmem:[%s4 + $0x18] sm:$0xff]
  %v2054 = vld [vmem:[%s4 + $0x30] sm:$0x1]
  %v2055 = vld [vmem:[%s4 + $0x31] sm:$0x1]
  %v2056 = vld [vmem:[%s4 + $0x32] sm:$0x1]
  %v2057 = vld [vmem:[%s4 + $0x20] sm:$0xff]
  %v2058 = vld [vmem:[%s4 + $0x28] sm:$0xff]
  %v2059 = vlaneseq
  %v2060 = vshrl.u32 %v2059, 7
  %v2061 = vsub.s32 0, %v2060
  %v2062 = vrot.slane %v2054, %v2061
  %v2064 = vsel %vm165, %v2048, 0
  %v2067 = vsel %vm165, %v2049, 0
  %2069 = vmatprep.subr.mxu0 0.0
  %2070 = vmatpush1.msra.mxu0 %v2050
  %2071 = vmatprep.subr.mxu0 0.0
  %2072 = vmatpush1.msra.mxu0 %v2051
  %2073 = vmatprep.subr.mxu0 0.0
  %2074 = vmatpush1.msra.mxu0 %v2052
  %2075 = vmatprep.subr.mxu0 0.0
  %2076 = vmatpush1.msra.mxu0 %v2053
  %2077 = vmatprep.subr.mxu0 0.0
  %2078 = vmatpush1.msra.mxu0 0.0
  %2079 = vmatprep.subr.mxu0 0.0
  %2080 = vmatpush1.msra.mxu0 0.0
  %2081 = vmatprep.subr.mxu0 0.0
  %2082 = vmatpush1.msra.mxu0 0.0
  %2083 = vmatprep.subr.mxu0 0.0
  %2084 = vmatpush1.msra.mxu0 0.0
  %2085 = vmatprep.subr.mxu0 0.0
  %2086 = vmatpush1.msra.mxu0 0.0
  %2087 = vmatprep.subr.mxu0 0.0
  %2088 = vmatpush1.msra.mxu0 0.0
  %2089 = vmatprep.subr.mxu0 0.0
  %2090 = vmatpush1.msra.mxu0 0.0
  %2091 = vmatprep.subr.mxu0 0.0
  %2092 = vmatpush1.msra.mxu0 0.0
  %2093 = vmatprep.subr.mxu0 0.0
  %2094 = vmatpush1.msra.mxu0 0.0
  %2095 = vmatprep.subr.mxu0 0.0
  %2096 = vmatpush1.msra.mxu0 0.0
  %2097 = vmatprep.subr.mxu0 0.0
  %2098 = vmatpush1.msra.mxu0 0.0
  %2099 = vmatprep.subr.mxu0 0.0
  %2100 = vmatpush1.msra.mxu0 0.0
  %2101 = vmatprep.subr.mxu0 0.0
  %2102 = vmatpush1.msra.mxu0 0.0
  %2103 = vmatprep.subr.mxu0 0.0
  %2104 = vmatpush1.msra.mxu0 0.0
  %2105 = vmatprep.subr.mxu0 0.0
  %2106 = vmatpush1.msra.mxu0 0.0
  %2107 = vmatprep.subr.mxu0 0.0
  %2108 = vmatpush1.msra.mxu0 0.0
  %2109 = vmatprep.subr.mxu0 0.0
  %2110 = vmatpush1.msra.mxu0 0.0
  %2111 = vmatprep.subr.mxu0 0.0
  %2112 = vmatpush1.msra.mxu0 0.0
  %2113 = vmatprep.subr.mxu0 0.0
  %2114 = vmatpush1.msra.mxu0 0.0
  %2115 = vmatprep.subr.mxu0 0.0
  %2116 = vmatpush1.msra.mxu0 0.0
  %2117 = vmatprep.subr.mxu0 0.0
  %2118 = vmatpush1.msra.mxu0 0.0
  %2119 = vmatprep.subr.mxu0 0.0
  %2120 = vmatpush1.msra.mxu0 0.0
  %2121 = vmatprep.subr.mxu0 0.0
  %2122 = vmatpush1.msra.mxu0 0.0
  %2123 = vmatprep.subr.mxu0 0.0
  %2124 = vmatpush1.msra.mxu0 0.0
  %2125 = vmatprep.subr.mxu0 0.0
  %2126 = vmatpush1.msra.mxu0 0.0
  %2127 = vmatprep.subr.mxu0 0.0
  %2128 = vmatpush1.msra.mxu0 0.0
  %2129 = vmatprep.subr.mxu0 0.0
  %2130 = vmatpush1.msra.mxu0 0.0
  %2131 = vmatprep.subr.mxu0 0.0
  %2132 = vmatpush1.msra.mxu0 0.0
  %2133 = vmatprep.mubr.f32.mxu0 0.0
  %2134 = vmatmul.mubr.f32.gmra.mrb[0].mxu0 %v2064
  %v2135 = vpop.f32.mrb[0].mxu0
  %v2136 = vadd.f32 %v2062, %v2135
  %v2137 = vpop.f32.mrb[0].mxu0
  %2138 = vmatprep.mubr.f32.mxu0 0.0
  %2139 = vmatmul.mubr.f32.gmra.mrb[0].mxu0 %v2067
  %v2140 = vpop.f32.mrb[0].mxu0
  %v2141 = vadd.f32 %v2062, %v2140
  %v2142 = vpop.f32.mrb[0].mxu0
  %2143 = vdwg.mxu0
  %v2145 = vrot.slane %v2141, 7
  %vm2147 = vcmask 1040384
  %v2148 = vsel %vm2147, %v2136, %v2145
  %v2150 = vrot.slane %v2136, 1
  %v2152 = vsel %vm2147, %v2150, %v2141
  %v2153 = vrot.slane %v2136, 2
  %v2155 = vrot.slane %v2141, 1
  %v2157 = vsel %vm2147, %v2153, %v2155
  %v2158 = vrot.slane %v2136, 3
  %v2160 = vrot.slane %v2141, 2
  %v2162 = vsel %vm2147, %v2158, %v2160
  %v2163 = vrot.slane %v2136, 4
  %v2165 = vrot.slane %v2141, 3
  %v2167 = vsel %vm2147, %v2163, %v2165
  %v2168 = vrot.slane %v2136, 5
  %v2170 = vrot.slane %v2141, 4
  %v2172 = vsel %vm2147, %v2168, %v2170
  %v2173 = vrot.slane %v2136, 6
  %v2175 = vrot.slane %v2141, 5
  %v2177 = vsel %vm2147, %v2173, %v2175
  %v2178 = vrot.slane %v2136, 7
  %v2180 = vrot.slane %v2141, 6
  %v2182 = vsel %vm2147, %v2178, %v2180
  %2183 = vset.pattern.permute.xlu0 2
  %2184 = vperm.xlu0 %2183, %v20
  %v2185 = vpop.permute.xlu0 %2184
  %2186 = vset.pattern.permute.xlu0 2
  %2187 = vperm.xlu0 %2186, %v21
  %v2188 = vpop.permute.xlu0 %2187
  %vm2189 = vcmp.eq.s32.totalorder %v53, %v2185
  %vm2190 = vcmp.eq.s32.totalorder %v53, %v2188
  %v2191 = vsel %vm2189, 1, 0
  %v2192 = vsel %vm2190, 1, 0
  %v2193 = vcvt.s32.f32 %v2191
  %v2194 = vcvt.s32.f32 %v2192
  %v2195 = vmul.f32 %v2193, %v2136
  %v2196 = vmul.f32 %v2194, %v2141
  %v2197 = vsel %vm348, %v2195, 0.0
  %2198 = vadd.xlane.f32.xlu0 %v2197
  %v2199 = vpop.xlane.xlu0 %2198
  %v2200 = vsel %vm348, %v2196, 0.0
  %2201 = vadd.xlane.f32.xlu0 %v2200
  %v2202 = vpop.xlane.xlu0 %2201
  %v2204 = vsel %vm348, %v2193, 0
  %v2207 = vsel %vm348, %v2194, 0
  %2209 = vmatprep.subr.mxu0 0.0
  %2210 = vmatpush1.msra.mxu0 %v2057
  %2211 = vmatprep.subr.mxu0 0.0
  %2212 = vmatpush1.msra.mxu0 0.0
  %2213 = vmatprep.subr.mxu0 0.0
  %2214 = vmatpush1.msra.mxu0 0.0
  %2215 = vmatprep.subr.mxu0 0.0
  %2216 = vmatpush1.msra.mxu0 0.0
  %2217 = vmatprep.subr.mxu0 0.0
  %2218 = vmatpush1.msra.mxu0 0.0
  %2219 = vmatprep.subr.mxu0 0.0
  %2220 = vmatpush1.msra.mxu0 0.0
  %2221 = vmatprep.subr.mxu0 0.0
  %2222 = vmatpush1.msra.mxu0 0.0
  %2223 = vmatprep.subr.mxu0 0.0
  %2224 = vmatpush1.msra.mxu0 0.0
  %2225 = vmatprep.subr.mxu0 0.0
  %2226 = vmatpush1.msra.mxu0 0.0
  %2227 = vmatprep.subr.mxu0 0.0
  %2228 = vmatpush1.msra.mxu0 0.0
  %2229 = vmatprep.subr.mxu0 0.0
  %2230 = vmatpush1.msra.mxu0 0.0
  %2231 = vmatprep.subr.mxu0 0.0
  %2232 = vmatpush1.msra.mxu0 0.0
  %2233 = vmatprep.subr.mxu0 0.0
  %2234 = vmatpush1.msra.mxu0 0.0
  %2235 = vmatprep.subr.mxu0 0.0
  %2236 = vmatpush1.msra.mxu0 0.0
  %2237 = vmatprep.subr.mxu0 0.0
  %2238 = vmatpush1.msra.mxu0 0.0
  %2239 = vmatprep.subr.mxu0 0.0
  %2240 = vmatpush1.msra.mxu0 0.0
  %2241 = vmatprep.subr.mxu0 0.0
  %2242 = vmatpush1.msra.mxu0 0.0
  %2243 = vmatprep.subr.mxu0 0.0
  %2244 = vmatpush1.msra.mxu0 0.0
  %2245 = vmatprep.subr.mxu0 0.0
  %2246 = vmatpush1.msra.mxu0 0.0
  %2247 = vmatprep.subr.mxu0 0.0
  %2248 = vmatpush1.msra.mxu0 0.0
  %2249 = vmatprep.subr.mxu0 0.0
  %2250 = vmatpush1.msra.mxu0 0.0
  %2251 = vmatprep.subr.mxu0 0.0
  %2252 = vmatpush1.msra.mxu0 0.0
  %2253 = vmatprep.subr.mxu0 0.0
  %2254 = vmatpush1.msra.mxu0 0.0
  %2255 = vmatprep.subr.mxu0 0.0
  %2256 = vmatpush1.msra.mxu0 0.0
  %2257 = vmatprep.subr.mxu0 0.0
  %2258 = vmatpush1.msra.mxu0 0.0
  %2259 = vmatprep.subr.mxu0 0.0
  %2260 = vmatpush1.msra.mxu0 0.0
  %2261 = vmatprep.subr.mxu0 0.0
  %2262 = vmatpush1.msra.mxu0 0.0
  %2263 = vmatprep.subr.mxu0 0.0
  %2264 = vmatpush1.msra.mxu0 0.0
  %2265 = vmatprep.subr.mxu0 0.0
  %2266 = vmatpush1.msra.mxu0 0.0
  %2267 = vmatprep.subr.mxu0 0.0
  %2268 = vmatpush1.msra.mxu0 0.0
  %2269 = vmatprep.subr.mxu0 0.0
  %2270 = vmatpush1.msra.mxu0 0.0
  %2271 = vmatprep.subr.mxu0 0.0
  %2272 = vmatpush1.msra.mxu0 0.0
  %2273 = vmatprep.mubr.f32.mxu0 0.0
  %2274 = vmatmul.mubr.f32.gmra.mrb[0].mxu0 %v2204
  %v2275 = vpop.f32.mrb[0].mxu0
  %v2276 = vadd.f32 0.0, %v2275
  %v2277 = vpop.f32.mrb[0].mxu0
  %2278 = vmatprep.mubr.f32.mxu0 0.0
  %2279 = vmatmul.mubr.f32.gmra.mrb[0].mxu0 %v2207
  %v2280 = vpop.f32.mrb[0].mxu0
  %v2281 = vadd.f32 0.0, %v2280
  %v2282 = vpop.f32.mrb[0].mxu0
  %2283 = vdwg.mxu0
  %vm2284 = vcmask 1046528
  %v2285 = vrot.slane %v2193, 1
  %v2286 = vrot.slane %v2194, 1
  %v2287 = vsel %vm2284, %v2285, %v2286
  %v2290 = vmul.f32 %v2276, %v2287
  %v2291 = vmul.f32 %v2281, %v2286
  %v2292 = vsel %vm348, %v2290, 0.0
  %2293 = vadd.xlane.f32.xlu0 %v2292
  %v2294 = vpop.xlane.xlu0 %2293
  %vm2295 = vcmask 63488
  %v2296 = vsel %vm2295, %v2291, 0.0
  %2297 = vadd.xlane.f32.xlu0 %v2296
  %v2298 = vpop.xlane.xlu0 %2297
  %v2299 = vrot.slane %v2199, 4
  %v2300 = vadd.f32 %v2199, %v2299
  %v2301 = vrot.slane %v2300, 2
  %v2302 = vadd.f32 %v2300, %v2301
  %v2303 = vrot.slane %v2302, 1
  %v2304 = vadd.f32 %v2302, %v2303
  %v2305 = vsel %vm2284, %v2294, 0.0
  %v2306 = vrot.slane %v2305, 4
  %v2307 = vadd.f32 %v2305, %v2306
  %v2308 = vrot.slane %v2307, 2
  %v2309 = vadd.f32 %v2307, %v2308
  %v2310 = vrot.slane %v2309, 1
  %v2311 = vadd.f32 %v2309, %v2310
  %v2312 = vadd.f32 %v2304, %v2311
  %v2313 = vmul.f32 %v2193, %v2055
  %vm2314 = vcmask 57344
  %v2315 = vsel %vm2314, %v2313, 0.0
  %2316 = vadd.xlane.f32.xlu0 %v2315
  %v2317 = vpop.xlane.xlu0 %2316
  %v2318 = vadd.f32 %v2317, 0.0
  %v2319 = vadd.f32 %v2312, %v2318
  %v2321 = vrot.slane %v2056, 1
  %v2323 = vmul.f32 %v2193, %v2321
  %vm2324 = vcmask 64519
  %v2325 = vsel %vm2324, %v2323, 0.0
  %2326 = vadd.xlane.f32.xlu0 %v2325
  %v2327 = vpop.xlane.xlu0 %2326
  %v2328 = vadd.f32 %v2327, 0.0
  %v2330 = vrot.slane %v2328, 7
  %v2332 = vadd.f32 %v2319, %v2330
  %v2333 = vrot.slane %v2202, 4
  %v2334 = vadd.f32 %v2202, %v2333
  %v2335 = vrot.slane %v2334, 2
  %v2336 = vadd.f32 %v2334, %v2335
  %v2337 = vrot.slane %v2336, 1
  %v2338 = vadd.f32 %v2336, %v2337
  %v2339 = vsel %vm2284, %v2298, 0.0
  %v2340 = vrot.slane %v2339, 4
  %v2341 = vadd.f32 %v2339, %v2340
  %v2342 = vrot.slane %v2341, 2
  %v2343 = vadd.f32 %v2341, %v2342
  %v2344 = vrot.slane %v2343, 1
  %v2345 = vadd.f32 %v2343, %v2344
  %v2346 = vadd.f32 %v2338, %v2345
  %v2347 = vmul.f32 %v2194, %v2055
  %v2348 = vsel %vm2314, %v2347, 0.0
  %2349 = vadd.xlane.f32.xlu0 %v2348
  %v2350 = vpop.xlane.xlu0 %2349
  %v2351 = vadd.f32 %v2350, 0.0
  %v2352 = vadd.f32 %v2346, %v2351
  %v2353 = vmul.f32 %v2194, %v2321
  %v2354 = vsel %vm2324, %v2353, 0.0
  %2355 = vadd.xlane.f32.xlu0 %v2354
  %v2356 = vpop.xlane.xlu0 %2355
  %v2357 = vadd.f32 %v2356, 0.0
  %v2359 = vrot.slane %v2357, 7
  %v2361 = vadd.f32 %v2352, %v2359
  %v2363 = vrot.slane %v2361, 7
  %v2365 = vsel %vm2147, %v2332, %v2363
  %v2366 = vlaneseq
  %v2367 = vshrl.u32 %v2366, 7
  %v2368 = vsub.s32 0, %v2367
  %v2369 = vrot.slane %v2055, %v2368
  %v2370 = vadd.f32 %v2369, %v2148
  %v2373 = vunpack.c.l.s4 1966171168
  %v2374 = vunpack.c.0.s8 %v2373
  %v2375 = vlaneseq
  %v2376 = vshrl.u32 %v2375, 7
  %v2377 = vsub.s32 %v2374, %v2376
  %v2378 = vrot.slane %v2370, %v2377
  %v2379 = vcombine.high %v2378, %v2378
  %v2381 = vunpack.c.l.s4 1966171168
  %v2382 = vunpack.c.0.s8 %v2381
  %v2383 = vlaneseq
  %v2384 = vshrl.u32 %v2383, 7
  %v2385 = vsub.s32 %v2382, %v2384
  %v2386 = vrot.slane %v2378, %v2385
  %v2388 = vunpack.c.l.s4 1966171168
  %v2389 = vunpack.c.0.s8 %v2388
  %v2390 = vlaneseq
  %v2391 = vshrl.u32 %v2390, 7
  %v2392 = vsub.s32 %v2389, %v2391
  %v2393 = vrot.slane %v2379, %v2392
  %v2394 = vlaneseq
  %v2395 = vshrl.u32 %v2394, 7
  %v2396 = vsub.s32 0, %v2395
  %v2397 = vrot.slane %v2386, %v2396
  %v2398 = vlaneseq
  %v2399 = vshrl.u32 %v2398, 7
  %v2400 = vsub.s32 0, %v2399
  %v2401 = vrot.slane %v2393, %v2400
  %v2404 = vadd.f32 %v2397, %v2058
  %v2405 = vadd.f32 %v2401, %v2058
  %v2406 = vsel %vm348, %v2404, -inf
  %2407 = vmax.xlane.f32.xlu0 %v2406
  %v2408 = vpop.xlane.xlu0 %2407
  %v2409 = vsel %vm348, %v2405, -inf
  %2410 = vmax.xlane.f32.xlu0 %v2409
  %v2411 = vpop.xlane.xlu0 %2410
  %v2412 = vsub.f32 %v2404, %v2408
  %v2413 = vsub.f32 %v2405, %v2411
  %v2414 = vmul.f32 %v2412, 1.442695
  %v2415 = vpow.pop %v2414
  %v2416 = vmul.f32 %v2413, 1.442695
  %v2417 = vpow.pop %v2416
  %v2418 = vsel %vm348, %v2415, 0.0
  %2419 = vadd.xlane.f32.xlu0 %v2418
  %v2420 = vpop.xlane.xlu0 %2419
  %v2421 = vsel %vm348, %v2417, 0.0
  %2422 = vadd.xlane.f32.xlu0 %v2421
  %v2423 = vpop.xlane.xlu0 %2422
  %v2424 = vlog2.pop %v2420
  %v2425 = vmul.f32 %v2424, 0.6931472
  %v2426 = vlog2.pop %v2423
  %v2427 = vmul.f32 %v2426, 0.6931472
  %v2428 = vadd.f32 %v2408, %v2425
  %v2429 = vadd.f32 %v2411, %v2427
  %v2431 = vlaneseq
  %v2432 = vshrl.u32 %v2431, 7
  %v2433 = vsub.s32 0, %v2432
  %v2434 = vrot.slane %v2152, %v2433
  %2436 = vbcast.lane.b32.xlu0 %v2434, 256
  %v2437 = vpop.permute.xlu0 %2436
  %v2438 = vlaneseq
  %v2439 = vshrl.u32 %v2438, 7
  %v2440 = vsub.s32 1, %v2439
  %v2441 = vrot.slane %v2152, %v2440
  %2443 = vbcast.lane.b32.xlu0 %v2441, 256
  %v2444 = vpop.permute.xlu0 %2443
  %v2447 = vadd.f32 %v2428, %v2437
  %v2448 = vadd.f32 %v2429, %v2444
  %v2450 = vlaneseq
  %v2451 = vshrl.u32 %v2450, 7
  %v2452 = vsub.s32 0, %v2451
  %v2453 = vrot.slane %v2058, %v2452
  %2455 = vbcast.lane.b32.xlu0 %v2453, 256
  %v2456 = vpop.permute.xlu0 %2455
  %v2457 = vlaneseq
  %v2458 = vshrl.u32 %v2457, 7
  %v2459 = vsub.s32 1, %v2458
  %v2460 = vrot.slane %v2058, %v2459
  %2462 = vbcast.lane.b32.xlu0 %v2460, 256
  %v2463 = vpop.permute.xlu0 %2462
  %v2464 = vlaneseq
  %v2465 = vshrl.u32 %v2464, 7
  %v2466 = vsub.s32 2, %v2465
  %v2467 = vrot.slane %v2058, %v2466
  %2469 = vbcast.lane.b32.xlu0 %v2467, 256
  %v2470 = vpop.permute.xlu0 %2469
  %v2471 = vlaneseq
  %v2472 = vshrl.u32 %v2471, 7
  %v2473 = vsub.s32 3, %v2472
  %v2474 = vrot.slane %v2058, %v2473
  %2476 = vbcast.lane.b32.xlu0 %v2474, 256
  %v2477 = vpop.permute.xlu0 %2476
  %v2478 = vlaneseq
  %v2479 = vshrl.u32 %v2478, 7
  %v2480 = vsub.s32 4, %v2479
  %v2481 = vrot.slane %v2058, %v2480
  %2483 = vbcast.lane.b32.xlu0 %v2481, 256
  %v2484 = vpop.permute.xlu0 %2483
  %v2485 = vlaneseq
  %v2486 = vshrl.u32 %v2485, 7
  %v2487 = vsub.s32 5, %v2486
  %v2488 = vrot.slane %v2058, %v2487
  %2490 = vbcast.lane.b32.xlu0 %v2488, 256
  %v2491 = vpop.permute.xlu0 %2490
  %v2492 = vlaneseq
  %v2493 = vshrl.u32 %v2492, 7
  %v2494 = vsub.s32 6, %v2493
  %v2495 = vrot.slane %v2058, %v2494
  %2497 = vbcast.lane.b32.xlu0 %v2495, 256
  %v2498 = vpop.permute.xlu0 %2497
  %v2499 = vlaneseq
  %v2500 = vshrl.u32 %v2499, 7
  %v2501 = vsub.s32 7, %v2500
  %v2502 = vrot.slane %v2058, %v2501
  %2504 = vbcast.lane.b32.xlu0 %v2502, 256
  %v2505 = vpop.permute.xlu0 %2504
  %v2514 = vadd.f32 %v2447, %v2456
  %v2515 = vadd.f32 %v2447, %v2463
  %v2516 = vadd.f32 %v2447, %v2470
  %v2517 = vadd.f32 %v2447, %v2477
  %v2518 = vadd.f32 %v2447, %v2484
  %v2519 = vadd.f32 %v2447, %v2491
  %v2520 = vadd.f32 %v2447, %v2498
  %v2521 = vadd.f32 %v2447, %v2505
  %v2522 = vadd.f32 %v2448, %v2456
  %v2523 = vadd.f32 %v2448, %v2463
  %v2524 = vadd.f32 %v2448, %v2470
  %v2525 = vadd.f32 %v2448, %v2477
  %v2526 = vadd.f32 %v2448, %v2484
  %v2527 = vadd.f32 %v2448, %v2491
  %v2528 = vadd.f32 %v2448, %v2498
  %v2529 = vadd.f32 %v2448, %v2505
  %2546 = vset.pattern.permute.xlu0 0
  %2547 = vperm.xlu0 %2546, %v2514
  %v2548 = vpop.permute.xlu0 %2547
  %2549 = vset.pattern.permute.xlu0 0
  %2550 = vperm.xlu0 %2549, %v2515
  %v2551 = vpop.permute.xlu0 %2550
  %2552 = vset.pattern.permute.xlu0 0
  %2553 = vperm.xlu0 %2552, %v2516
  %v2554 = vpop.permute.xlu0 %2553
  %2555 = vset.pattern.permute.xlu0 0
  %2556 = vperm.xlu0 %2555, %v2517
  %v2557 = vpop.permute.xlu0 %2556
  %2558 = vset.pattern.permute.xlu0 0
  %2559 = vperm.xlu0 %2558, %v2518
  %v2560 = vpop.permute.xlu0 %2559
  %2561 = vset.pattern.permute.xlu0 0
  %2562 = vperm.xlu0 %2561, %v2519
  %v2563 = vpop.permute.xlu0 %2562
  %2564 = vset.pattern.permute.xlu0 0
  %2565 = vperm.xlu0 %2564, %v2520
  %v2566 = vpop.permute.xlu0 %2565
  %2567 = vset.pattern.permute.xlu0 0
  %2568 = vperm.xlu0 %2567, %v2521
  %v2569 = vpop.permute.xlu0 %2568
  %2570 = vset.pattern.permute.xlu0 0
  %2571 = vperm.xlu0 %2570, %v2522
  %v2572 = vpop.permute.xlu0 %2571
  %2573 = vset.pattern.permute.xlu0 0
  %2574 = vperm.xlu0 %2573, %v2523
  %v2575 = vpop.permute.xlu0 %2574
  %2576 = vset.pattern.permute.xlu0 0
  %2577 = vperm.xlu0 %2576, %v2524
  %v2578 = vpop.permute.xlu0 %2577
  %2579 = vset.pattern.permute.xlu0 0
  %2580 = vperm.xlu0 %2579, %v2525
  %v2581 = vpop.permute.xlu0 %2580
  %2582 = vset.pattern.permute.xlu0 0
  %2583 = vperm.xlu0 %2582, %v2526
  %v2584 = vpop.permute.xlu0 %2583
  %2585 = vset.pattern.permute.xlu0 0
  %2586 = vperm.xlu0 %2585, %v2527
  %v2587 = vpop.permute.xlu0 %2586
  %2588 = vset.pattern.permute.xlu0 0
  %2589 = vperm.xlu0 %2588, %v2528
  %v2590 = vpop.permute.xlu0 %2589
  %2591 = vset.pattern.permute.xlu0 0
  %2592 = vperm.xlu0 %2591, %v2529
  %v2593 = vpop.permute.xlu0 %2592
  %v2594 = vlaneseq
  %v2595 = vshrl.u32 %v2594, 7
  %v2596 = vsub.s32 %v53, %v2595
  %v2597 = vrot.slane %v2548, %v2596
  %v2598 = vlaneseq
  %v2599 = vshrl.u32 %v2598, 7
  %v2600 = vsub.s32 %v53, %v2599
  %v2601 = vrot.slane %v2551, %v2600
  %v2602 = vlaneseq
  %v2603 = vshrl.u32 %v2602, 7
  %v2604 = vsub.s32 %v53, %v2603
  %v2605 = vrot.slane %v2554, %v2604
  %v2606 = vlaneseq
  %v2607 = vshrl.u32 %v2606, 7
  %v2608 = vsub.s32 %v53, %v2607
  %v2609 = vrot.slane %v2557, %v2608
  %v2610 = vlaneseq
  %v2611 = vshrl.u32 %v2610, 7
  %v2612 = vsub.s32 %v53, %v2611
  %v2613 = vrot.slane %v2560, %v2612
  %v2614 = vlaneseq
  %v2615 = vshrl.u32 %v2614, 7
  %v2616 = vsub.s32 %v53, %v2615
  %v2617 = vrot.slane %v2563, %v2616
  %v2618 = vlaneseq
  %v2619 = vshrl.u32 %v2618, 7
  %v2620 = vsub.s32 %v53, %v2619
  %v2621 = vrot.slane %v2566, %v2620
  %v2622 = vlaneseq
  %v2623 = vshrl.u32 %v2622, 7
  %v2624 = vsub.s32 %v53, %v2623
  %v2625 = vrot.slane %v2569, %v2624
  %v2626 = vlaneseq
  %v2627 = vshrl.u32 %v2626, 7
  %v2628 = vsub.s32 %v53, %v2627
  %v2629 = vrot.slane %v2572, %v2628
  %v2630 = vlaneseq
  %v2631 = vshrl.u32 %v2630, 7
  %v2632 = vsub.s32 %v53, %v2631
  %v2633 = vrot.slane %v2575, %v2632
  %v2634 = vlaneseq
  %v2635 = vshrl.u32 %v2634, 7
  %v2636 = vsub.s32 %v53, %v2635
  %v2637 = vrot.slane %v2578, %v2636
  %v2638 = vlaneseq
  %v2639 = vshrl.u32 %v2638, 7
  %v2640 = vsub.s32 %v53, %v2639
  %v2641 = vrot.slane %v2581, %v2640
  %v2642 = vlaneseq
  %v2643 = vshrl.u32 %v2642, 7
  %v2644 = vsub.s32 %v53, %v2643
  %v2645 = vrot.slane %v2584, %v2644
  %v2646 = vlaneseq
  %v2647 = vshrl.u32 %v2646, 7
  %v2648 = vsub.s32 %v53, %v2647
  %v2649 = vrot.slane %v2587, %v2648
  %v2650 = vlaneseq
  %v2651 = vshrl.u32 %v2650, 7
  %v2652 = vsub.s32 %v53, %v2651
  %v2653 = vrot.slane %v2590, %v2652
  %v2654 = vlaneseq
  %v2655 = vshrl.u32 %v2654, 7
  %v2656 = vsub.s32 %v53, %v2655
  %v2657 = vrot.slane %v2593, %v2656
  %vm2658 = vcmask 1041409
  %v2659 = vsel %vm2658, %v2601, %v2597
  %vm2660 = vcmask 1042434
  %v2661 = vsel %vm2660, %v2605, %v2659
  %vm2662 = vcmask 1043459
  %v2663 = vsel %vm2662, %v2609, %v2661
  %vm2664 = vcmask 1044484
  %v2665 = vsel %vm2664, %v2613, %v2663
  %vm2666 = vcmask 1045509
  %v2667 = vsel %vm2666, %v2617, %v2665
  %vm2668 = vcmask 1046534
  %v2669 = vsel %vm2668, %v2621, %v2667
  %vm2670 = vcmask 1047559
  %v2671 = vsel %vm2670, %v2625, %v2669
  %v2672 = vsel %vm2658, %v2633, %v2629
  %v2673 = vsel %vm2660, %v2637, %v2672
  %v2674 = vsel %vm2662, %v2641, %v2673
  %v2675 = vsel %vm2664, %v2645, %v2674
  %v2676 = vsel %vm2666, %v2649, %v2675
  %v2677 = vsel %vm2668, %v2653, %v2676
  %v2678 = vsel %vm2670, %v2657, %v2677
  %v2681 = vsel %vm348, %v2671, -inf
  %2682 = vmax.xlane.f32.xlu0 %v2681
  %v2683 = vpop.xlane.xlu0 %2682
  %v2684 = vsel %vm348, %v2678, -inf
  %2685 = vmax.xlane.f32.xlu0 %v2684
  %v2686 = vpop.xlane.xlu0 %2685
  %v2689 = vlaneseq
  %v2690 = vshrl.u32 %v2689, 7
  %v2691 = vsub.s32 0, %v2690
  %v2692 = vrot.slane %v2683, %v2691
  %v2693 = vlaneseq
  %v2694 = vshrl.u32 %v2693, 7
  %v2695 = vsub.s32 1, %v2694
  %v2696 = vrot.slane %v2683, %v2695
  %v2697 = vlaneseq
  %v2698 = vshrl.u32 %v2697, 7
  %v2699 = vsub.s32 2, %v2698
  %v2700 = vrot.slane %v2683, %v2699
  %v2701 = vlaneseq
  %v2702 = vshrl.u32 %v2701, 7
  %v2703 = vsub.s32 3, %v2702
  %v2704 = vrot.slane %v2683, %v2703
  %v2705 = vlaneseq
  %v2706 = vshrl.u32 %v2705, 7
  %v2707 = vsub.s32 4, %v2706
  %v2708 = vrot.slane %v2683, %v2707
  %v2709 = vlaneseq
  %v2710 = vshrl.u32 %v2709, 7
  %v2711 = vsub.s32 5, %v2710
  %v2712 = vrot.slane %v2683, %v2711
  %v2713 = vlaneseq
  %v2714 = vshrl.u32 %v2713, 7
  %v2715 = vsub.s32 6, %v2714
  %v2716 = vrot.slane %v2683, %v2715
  %v2717 = vlaneseq
  %v2718 = vshrl.u32 %v2717, 7
  %v2719 = vsub.s32 7, %v2718
  %v2720 = vrot.slane %v2683, %v2719
  %v2721 = vlaneseq
  %v2722 = vshrl.u32 %v2721, 7
  %v2723 = vsub.s32 0, %v2722
  %v2724 = vrot.slane %v2686, %v2723
  %v2725 = vlaneseq
  %v2726 = vshrl.u32 %v2725, 7
  %v2727 = vsub.s32 1, %v2726
  %v2728 = vrot.slane %v2686, %v2727
  %v2729 = vlaneseq
  %v2730 = vshrl.u32 %v2729, 7
  %v2731 = vsub.s32 2, %v2730
  %v2732 = vrot.slane %v2686, %v2731
  %v2733 = vlaneseq
  %v2734 = vshrl.u32 %v2733, 7
  %v2735 = vsub.s32 3, %v2734
  %v2736 = vrot.slane %v2686, %v2735
  %v2737 = vlaneseq
  %v2738 = vshrl.u32 %v2737, 7
  %v2739 = vsub.s32 4, %v2738
  %v2740 = vrot.slane %v2686, %v2739
  %v2741 = vlaneseq
  %v2742 = vshrl.u32 %v2741, 7
  %v2743 = vsub.s32 5, %v2742
  %v2744 = vrot.slane %v2686, %v2743
  %v2745 = vlaneseq
  %v2746 = vshrl.u32 %v2745, 7
  %v2747 = vsub.s32 6, %v2746
  %v2748 = vrot.slane %v2686, %v2747
  %v2749 = vlaneseq
  %v2750 = vshrl.u32 %v2749, 7
  %v2751 = vsub.s32 7, %v2750
  %v2752 = vrot.slane %v2686, %v2751
  %v2769 = vsub.f32 %v2514, %v2692
  %v2770 = vsub.f32 %v2515, %v2696
  %v2771 = vsub.f32 %v2516, %v2700
  %v2772 = vsub.f32 %v2517, %v2704
  %v2773 = vsub.f32 %v2518, %v2708
  %v2774 = vsub.f32 %v2519, %v2712
  %v2775 = vsub.f32 %v2520, %v2716
  %v2776 = vsub.f32 %v2521, %v2720
  %v2777 = vsub.f32 %v2522, %v2724
  %v2778 = vsub.f32 %v2523, %v2728
  %v2779 = vsub.f32 %v2524, %v2732
  %v2780 = vsub.f32 %v2525, %v2736
  %v2781 = vsub.f32 %v2526, %v2740
  %v2782 = vsub.f32 %v2527, %v2744
  %v2783 = vsub.f32 %v2528, %v2748
  %v2784 = vsub.f32 %v2529, %v2752
  %v2785 = vmul.f32 %v2769, 1.442695
  %v2786 = vpow.pop %v2785
  %v2787 = vmul.f32 %v2770, 1.442695
  %v2788 = vpow.pop %v2787
  %v2789 = vmul.f32 %v2771, 1.442695
  %v2790 = vpow.pop %v2789
  %v2791 = vmul.f32 %v2772, 1.442695
  %v2792 = vpow.pop %v2791
  %v2793 = vmul.f32 %v2773, 1.442695
  %v2794 = vpow.pop %v2793
  %v2795 = vmul.f32 %v2774, 1.442695
  %v2796 = vpow.pop %v2795
  %v2797 = vmul.f32 %v2775, 1.442695
  %v2798 = vpow.pop %v2797
  %v2799 = vmul.f32 %v2776, 1.442695
  %v2800 = vpow.pop %v2799
  %v2801 = vmul.f32 %v2777, 1.442695
  %v2802 = vpow.pop %v2801
  %v2803 = vmul.f32 %v2778, 1.442695
  %v2804 = vpow.pop %v2803
  %v2805 = vmul.f32 %v2779, 1.442695
  %v2806 = vpow.pop %v2805
  %v2807 = vmul.f32 %v2780, 1.442695
  %v2808 = vpow.pop %v2807
  %v2809 = vmul.f32 %v2781, 1.442695
  %v2810 = vpow.pop %v2809
  %v2811 = vmul.f32 %v2782, 1.442695
  %v2812 = vpow.pop %v2811
  %v2813 = vmul.f32 %v2783, 1.442695
  %v2814 = vpow.pop %v2813
  %v2815 = vmul.f32 %v2784, 1.442695
  %v2816 = vpow.pop %v2815
  %2833 = vset.pattern.permute.xlu0 0
  %2834 = vperm.xlu0 %2833, %v2786
  %v2835 = vpop.permute.xlu0 %2834
  %2836 = vset.pattern.permute.xlu0 0
  %2837 = vperm.xlu0 %2836, %v2788
  %v2838 = vpop.permute.xlu0 %2837
  %2839 = vset.pattern.permute.xlu0 0
  %2840 = vperm.xlu0 %2839, %v2790
  %v2841 = vpop.permute.xlu0 %2840
  %2842 = vset.pattern.permute.xlu0 0
  %2843 = vperm.xlu0 %2842, %v2792
  %v2844 = vpop.permute.xlu0 %2843
  %2845 = vset.pattern.permute.xlu0 0
  %2846 = vperm.xlu0 %2845, %v2794
  %v2847 = vpop.permute.xlu0 %2846
  %2848 = vset.pattern.permute.xlu0 0
  %2849 = vperm.xlu0 %2848, %v2796
  %v2850 = vpop.permute.xlu0 %2849
  %2851 = vset.pattern.permute.xlu0 0
  %2852 = vperm.xlu0 %2851, %v2798
  %v2853 = vpop.permute.xlu0 %2852
  %2854 = vset.pattern.permute.xlu0 0
  %2855 = vperm.xlu0 %2854, %v2800
  %v2856 = vpop.permute.xlu0 %2855
  %2857 = vset.pattern.permute.xlu0 0
  %2858 = vperm.xlu0 %2857, %v2802
  %v2859 = vpop.permute.xlu0 %2858
  %2860 = vset.pattern.permute.xlu0 0
  %2861 = vperm.xlu0 %2860, %v2804
  %v2862 = vpop.permute.xlu0 %2861
  %2863 = vset.pattern.permute.xlu0 0
  %2864 = vperm.xlu0 %2863, %v2806
  %v2865 = vpop.permute.xlu0 %2864
  %2866 = vset.pattern.permute.xlu0 0
  %2867 = vperm.xlu0 %2866, %v2808
  %v2868 = vpop.permute.xlu0 %2867
  %2869 = vset.pattern.permute.xlu0 0
  %2870 = vperm.xlu0 %2869, %v2810
  %v2871 = vpop.permute.xlu0 %2870
  %2872 = vset.pattern.permute.xlu0 0
  %2873 = vperm.xlu0 %2872, %v2812
  %v2874 = vpop.permute.xlu0 %2873
  %2875 = vset.pattern.permute.xlu0 0
  %2876 = vperm.xlu0 %2875, %v2814
  %v2877 = vpop.permute.xlu0 %2876
  %2878 = vset.pattern.permute.xlu0 0
  %2879 = vperm.xlu0 %2878, %v2816
  %v2880 = vpop.permute.xlu0 %2879
  %v2881 = vlaneseq
  %v2882 = vshrl.u32 %v2881, 7
  %v2883 = vsub.s32 %v53, %v2882
  %v2884 = vrot.slane %v2835, %v2883
  %v2885 = vlaneseq
  %v2886 = vshrl.u32 %v2885, 7
  %v2887 = vsub.s32 %v53, %v2886
  %v2888 = vrot.slane %v2838, %v2887
  %v2889 = vlaneseq
  %v2890 = vshrl.u32 %v2889, 7
  %v2891 = vsub.s32 %v53, %v2890
  %v2892 = vrot.slane %v2841, %v2891
  %v2893 = vlaneseq
  %v2894 = vshrl.u32 %v2893, 7
  %v2895 = vsub.s32 %v53, %v2894
  %v2896 = vrot.slane %v2844, %v2895
  %v2897 = vlaneseq
  %v2898 = vshrl.u32 %v2897, 7
  %v2899 = vsub.s32 %v53, %v2898
  %v2900 = vrot.slane %v2847, %v2899
  %v2901 = vlaneseq
  %v2902 = vshrl.u32 %v2901, 7
  %v2903 = vsub.s32 %v53, %v2902
  %v2904 = vrot.slane %v2850, %v2903
  %v2905 = vlaneseq
  %v2906 = vshrl.u32 %v2905, 7
  %v2907 = vsub.s32 %v53, %v2906
  %v2908 = vrot.slane %v2853, %v2907
  %v2909 = vlaneseq
  %v2910 = vshrl.u32 %v2909, 7
  %v2911 = vsub.s32 %v53, %v2910
  %v2912 = vrot.slane %v2856, %v2911
  %v2913 = vlaneseq
  %v2914 = vshrl.u32 %v2913, 7
  %v2915 = vsub.s32 %v53, %v2914
  %v2916 = vrot.slane %v2859, %v2915
  %v2917 = vlaneseq
  %v2918 = vshrl.u32 %v2917, 7
  %v2919 = vsub.s32 %v53, %v2918
  %v2920 = vrot.slane %v2862, %v2919
  %v2921 = vlaneseq
  %v2922 = vshrl.u32 %v2921, 7
  %v2923 = vsub.s32 %v53, %v2922
  %v2924 = vrot.slane %v2865, %v2923
  %v2925 = vlaneseq
  %v2926 = vshrl.u32 %v2925, 7
  %v2927 = vsub.s32 %v53, %v2926
  %v2928 = vrot.slane %v2868, %v2927
  %v2929 = vlaneseq
  %v2930 = vshrl.u32 %v2929, 7
  %v2931 = vsub.s32 %v53, %v2930
  %v2932 = vrot.slane %v2871, %v2931
  %v2933 = vlaneseq
  %v2934 = vshrl.u32 %v2933, 7
  %v2935 = vsub.s32 %v53, %v2934
  %v2936 = vrot.slane %v2874, %v2935
  %v2937 = vlaneseq
  %v2938 = vshrl.u32 %v2937, 7
  %v2939 = vsub.s32 %v53, %v2938
  %v2940 = vrot.slane %v2877, %v2939
  %v2941 = vlaneseq
  %v2942 = vshrl.u32 %v2941, 7
  %v2943 = vsub.s32 %v53, %v2942
  %v2944 = vrot.slane %v2880, %v2943
  %v2945 = vsel %vm2658, %v2888, %v2884
  %v2946 = vsel %vm2660, %v2892, %v2945
  %v2947 = vsel %vm2662, %v2896, %v2946
  %v2948 = vsel %vm2664, %v2900, %v2947
  %v2949 = vsel %vm2666, %v2904, %v2948
  %v2950 = vsel %vm2668, %v2908, %v2949
  %v2951 = vsel %vm2670, %v2912, %v2950
  %v2952 = vsel %vm2658, %v2920, %v2916
  %v2953 = vsel %vm2660, %v2924, %v2952
  %v2954 = vsel %vm2662, %v2928, %v2953
  %v2955 = vsel %vm2664, %v2932, %v2954
  %v2956 = vsel %vm2666, %v2936, %v2955
  %v2957 = vsel %vm2668, %v2940, %v2956
  %v2958 = vsel %vm2670, %v2944, %v2957
  %v2961 = vsel %vm348, %v2951, 0.0
  %2962 = vadd.xlane.f32.xlu0 %v2961
  %v2963 = vpop.xlane.xlu0 %2962
  %v2964 = vsel %vm348, %v2958, 0.0
  %2965 = vadd.xlane.f32.xlu0 %v2964
  %v2966 = vpop.xlane.xlu0 %2965
  %v2967 = vlog2.pop %v2963
  %v2968 = vmul.f32 %v2967, 0.6931472
  %v2969 = vlog2.pop %v2966
  %v2970 = vmul.f32 %v2969, 0.6931472
  %v2971 = vadd.f32 %v2683, %v2968
  %v2972 = vadd.f32 %v2686, %v2970
  %v2974 = vlaneseq
  %v2975 = vshrl.u32 %v2974, 7
  %v2976 = vsub.s32 0, %v2975
  %v2977 = vrot.slane %v2157, %v2976
  %2979 = vbcast.lane.b32.xlu0 %v2977, 256
  %v2980 = vpop.permute.xlu0 %2979
  %v2981 = vlaneseq
  %v2982 = vshrl.u32 %v2981, 7
  %v2983 = vsub.s32 1, %v2982
  %v2984 = vrot.slane %v2157, %v2983
  %2986 = vbcast.lane.b32.xlu0 %v2984, 256
  %v2987 = vpop.permute.xlu0 %2986
  %v2990 = vadd.f32 %v2971, %v2980
  %v2991 = vadd.f32 %v2972, %v2987
  %v2992 = vadd.f32 %v2990, %v2456
  %v2993 = vadd.f32 %v2990, %v2463
  %v2994 = vadd.f32 %v2990, %v2470
  %v2995 = vadd.f32 %v2990, %v2477
  %v2996 = vadd.f32 %v2990, %v2484
  %v2997 = vadd.f32 %v2990, %v2491
  %v2998 = vadd.f32 %v2990, %v2498
  %v2999 = vadd.f32 %v2990, %v2505
  %v3000 = vadd.f32 %v2991, %v2456
  %v3001 = vadd.f32 %v2991, %v2463
  %v3002 = vadd.f32 %v2991, %v2470
  %v3003 = vadd.f32 %v2991, %v2477
  %v3004 = vadd.f32 %v2991, %v2484
  %v3005 = vadd.f32 %v2991, %v2491
  %v3006 = vadd.f32 %v2991, %v2498
  %v3007 = vadd.f32 %v2991, %v2505
  %3024 = vset.pattern.permute.xlu0 0
  %3025 = vperm.xlu0 %3024, %v2992
  %v3026 = vpop.permute.xlu0 %3025
  %3027 = vset.pattern.permute.xlu0 0
  %3028 = vperm.xlu0 %3027, %v2993
  %v3029 = vpop.permute.xlu0 %3028
  %3030 = vset.pattern.permute.xlu0 0
  %3031 = vperm.xlu0 %3030, %v2994
  %v3032 = vpop.permute.xlu0 %3031
  %3033 = vset.pattern.permute.xlu0 0
  %3034 = vperm.xlu0 %3033, %v2995
  %v3035 = vpop.permute.xlu0 %3034
  %3036 = vset.pattern.permute.xlu0 0
  %3037 = vperm.xlu0 %3036, %v2996
  %v3038 = vpop.permute.xlu0 %3037
  %3039 = vset.pattern.permute.xlu0 0
  %3040 = vperm.xlu0 %3039, %v2997
  %v3041 = vpop.permute.xlu0 %3040
  %3042 = vset.pattern.permute.xlu0 0
  %3043 = vperm.xlu0 %3042, %v2998
  %v3044 = vpop.permute.xlu0 %3043
  %3045 = vset.pattern.permute.xlu0 0
  %3046 = vperm.xlu0 %3045, %v2999
  %v3047 = vpop.permute.xlu0 %3046
  %3048 = vset.pattern.permute.xlu0 0
  %3049 = vperm.xlu0 %3048, %v3000
  %v3050 = vpop.permute.xlu0 %3049
  %3051 = vset.pattern.permute.xlu0 0
  %3052 = vperm.xlu0 %3051, %v3001
  %v3053 = vpop.permute.xlu0 %3052
  %3054 = vset.pattern.permute.xlu0 0
  %3055 = vperm.xlu0 %3054, %v3002
  %v3056 = vpop.permute.xlu0 %3055
  %3057 = vset.pattern.permute.xlu0 0
  %3058 = vperm.xlu0 %3057, %v3003
  %v3059 = vpop.permute.xlu0 %3058
  %3060 = vset.pattern.permute.xlu0 0
  %3061 = vperm.xlu0 %3060, %v3004
  %v3062 = vpop.permute.xlu0 %3061
  %3063 = vset.pattern.permute.xlu0 0
  %3064 = vperm.xlu0 %3063, %v3005
  %v3065 = vpop.permute.xlu0 %3064
  %3066 = vset.pattern.permute.xlu0 0
  %3067 = vperm.xlu0 %3066, %v3006
  %v3068 = vpop.permute.xlu0 %3067
  %3069 = vset.pattern.permute.xlu0 0
  %3070 = vperm.xlu0 %3069, %v3007
  %v3071 = vpop.permute.xlu0 %3070
  %v3072 = vlaneseq
  %v3073 = vshrl.u32 %v3072, 7
  %v3074 = vsub.s32 %v53, %v3073
  %v3075 = vrot.slane %v3026, %v3074
  %v3076 = vlaneseq
  %v3077 = vshrl.u32 %v3076, 7
  %v3078 = vsub.s32 %v53, %v3077
  %v3079 = vrot.slane %v3029, %v3078
  %v3080 = vlaneseq
  %v3081 = vshrl.u32 %v3080, 7
  %v3082 = vsub.s32 %v53, %v3081
  %v3083 = vrot.slane %v3032, %v3082
  %v3084 = vlaneseq
  %v3085 = vshrl.u32 %v3084, 7
  %v3086 = vsub.s32 %v53, %v3085
  %v3087 = vrot.slane %v3035, %v3086
  %v3088 = vlaneseq
  %v3089 = vshrl.u32 %v3088, 7
  %v3090 = vsub.s32 %v53, %v3089
  %v3091 = vrot.slane %v3038, %v3090
  %v3092 = vlaneseq
  %v3093 = vshrl.u32 %v3092, 7
  %v3094 = vsub.s32 %v53, %v3093
  %v3095 = vrot.slane %v3041, %v3094
  %v3096 = vlaneseq
  %v3097 = vshrl.u32 %v3096, 7
  %v3098 = vsub.s32 %v53, %v3097
  %v3099 = vrot.slane %v3044, %v3098
  %v3100 = vlaneseq
  %v3101 = vshrl.u32 %v3100, 7
  %v3102 = vsub.s32 %v53, %v3101
  %v3103 = vrot.slane %v3047, %v3102
  %v3104 = vlaneseq
  %v3105 = vshrl.u32 %v3104, 7
  %v3106 = vsub.s32 %v53, %v3105
  %v3107 = vrot.slane %v3050, %v3106
  %v3108 = vlaneseq
  %v3109 = vshrl.u32 %v3108, 7
  %v3110 = vsub.s32 %v53, %v3109
  %v3111 = vrot.slane %v3053, %v3110
  %v3112 = vlaneseq
  %v3113 = vshrl.u32 %v3112, 7
  %v3114 = vsub.s32 %v53, %v3113
  %v3115 = vrot.slane %v3056, %v3114
  %v3116 = vlaneseq
  %v3117 = vshrl.u32 %v3116, 7
  %v3118 = vsub.s32 %v53, %v3117
  %v3119 = vrot.slane %v3059, %v3118
  %v3120 = vlaneseq
  %v3121 = vshrl.u32 %v3120, 7
  %v3122 = vsub.s32 %v53, %v3121
  %v3123 = vrot.slane %v3062, %v3122
  %v3124 = vlaneseq
  %v3125 = vshrl.u32 %v3124, 7
  %v3126 = vsub.s32 %v53, %v3125
  %v3127 = vrot.slane %v3065, %v3126
  %v3128 = vlaneseq
  %v3129 = vshrl.u32 %v3128, 7
  %v3130 = vsub.s32 %v53, %v3129
  %v3131 = vrot.slane %v3068, %v3130
  %v3132 = vlaneseq
  %v3133 = vshrl.u32 %v3132, 7
  %v3134 = vsub.s32 %v53, %v3133
  %v3135 = vrot.slane %v3071, %v3134
  %v3136 = vsel %vm2658, %v3079, %v3075
  %v3137 = vsel %vm2660, %v3083, %v3136
  %v3138 = vsel %vm2662, %v3087, %v3137
  %v3139 = vsel %vm2664, %v3091, %v3138
  %v3140 = vsel %vm2666, %v3095, %v3139
  %v3141 = vsel %vm2668, %v3099, %v3140
  %v3142 = vsel %vm2670, %v3103, %v3141
  %v3143 = vsel %vm2658, %v3111, %v3107
  %v3144 = vsel %vm2660, %v3115, %v3143
  %v3145 = vsel %vm2662, %v3119, %v3144
  %v3146 = vsel %vm2664, %v3123, %v3145
  %v3147 = vsel %vm2666, %v3127, %v3146
  %v3148 = vsel %vm2668, %v3131, %v3147
  %v3149 = vsel %vm2670, %v3135, %v3148
  %v3152 = vsel %vm348, %v3142, -inf
  %3153 = vmax.xlane.f32.xlu0 %v3152
  %v3154 = vpop.xlane.xlu0 %3153
  %v3155 = vsel %vm348, %v3149, -inf
  %3156 = vmax.xlane.f32.xlu0 %v3155
  %v3157 = vpop.xlane.xlu0 %3156
  %v3160 = vlaneseq
  %v3161 = vshrl.u32 %v3160, 7
  %v3162 = vsub.s32 0, %v3161
  %v3163 = vrot.slane %v3154, %v3162
  %v3164 = vlaneseq
  %v3165 = vshrl.u32 %v3164, 7
  %v3166 = vsub.s32 1, %v3165
  %v3167 = vrot.slane %v3154, %v3166
  %v3168 = vlaneseq
  %v3169 = vshrl.u32 %v3168, 7
  %v3170 = vsub.s32 2, %v3169
  %v3171 = vrot.slane %v3154, %v3170
  %v3172 = vlaneseq
  %v3173 = vshrl.u32 %v3172, 7
  %v3174 = vsub.s32 3, %v3173
  %v3175 = vrot.slane %v3154, %v3174
  %v3176 = vlaneseq
  %v3177 = vshrl.u32 %v3176, 7
  %v3178 = vsub.s32 4, %v3177
  %v3179 = vrot.slane %v3154, %v3178
  %v3180 = vlaneseq
  %v3181 = vshrl.u32 %v3180, 7
  %v3182 = vsub.s32 5, %v3181
  %v3183 = vrot.slane %v3154, %v3182
  %v3184 = vlaneseq
  %v3185 = vshrl.u32 %v3184, 7
  %v3186 = vsub.s32 6, %v3185
  %v3187 = vrot.slane %v3154, %v3186
  %v3188 = vlaneseq
  %v3189 = vshrl.u32 %v3188, 7
  %v3190 = vsub.s32 7, %v3189
  %v3191 = vrot.slane %v3154, %v3190
  %v3192 = vlaneseq
  %v3193 = vshrl.u32 %v3192, 7
  %v3194 = vsub.s32 0, %v3193
  %v3195 = vrot.slane %v3157, %v3194
  %v3196 = vlaneseq
  %v3197 = vshrl.u32 %v3196, 7
  %v3198 = vsub.s32 1, %v3197
  %v3199 = vrot.slane %v3157, %v3198
  %v3200 = vlaneseq
  %v3201 = vshrl.u32 %v3200, 7
  %v3202 = vsub.s32 2, %v3201
  %v3203 = vrot.slane %v3157, %v3202
  %v3204 = vlaneseq
  %v3205 = vshrl.u32 %v3204, 7
  %v3206 = vsub.s32 3, %v3205
  %v3207 = vrot.slane %v3157, %v3206
  %v3208 = vlaneseq
  %v3209 = vshrl.u32 %v3208, 7
  %v3210 = vsub.s32 4, %v3209
  %v3211 = vrot.slane %v3157, %v3210
  %v3212 = vlaneseq
  %v3213 = vshrl.u32 %v3212, 7
  %v3214 = vsub.s32 5, %v3213
  %v3215 = vrot.slane %v3157, %v3214
  %v3216 = vlaneseq
  %v3217 = vshrl.u32 %v3216, 7
  %v3218 = vsub.s32 6, %v3217
  %v3219 = vrot.slane %v3157, %v3218
  %v3220 = vlaneseq
  %v3221 = vshrl.u32 %v3220, 7
  %v3222 = vsub.s32 7, %v3221
  %v3223 = vrot.slane %v3157, %v3222
  %v3240 = vsub.f32 %v2992, %v3163
  %v3241 = vsub.f32 %v2993, %v3167
  %v3242 = vsub.f32 %v2994, %v3171
  %v3243 = vsub.f32 %v2995, %v3175
  %v3244 = vsub.f32 %v2996, %v3179
  %v3245 = vsub.f32 %v2997, %v3183
  %v3246 = vsub.f32 %v2998, %v3187
  %v3247 = vsub.f32 %v2999, %v3191
  %v3248 = vsub.f32 %v3000, %v3195
  %v3249 = vsub.f32 %v3001, %v3199
  %v3250 = vsub.f32 %v3002, %v3203
  %v3251 = vsub.f32 %v3003, %v3207
  %v3252 = vsub.f32 %v3004, %v3211
  %v3253 = vsub.f32 %v3005, %v3215
  %v3254 = vsub.f32 %v3006, %v3219
  %v3255 = vsub.f32 %v3007, %v3223
  %v3256 = vmul.f32 %v3240, 1.442695
  %v3257 = vpow.pop %v3256
  %v3258 = vmul.f32 %v3241, 1.442695
  %v3259 = vpow.pop %v3258
  %v3260 = vmul.f32 %v3242, 1.442695
  %v3261 = vpow.pop %v3260
  %v3262 = vmul.f32 %v3243, 1.442695
  %v3263 = vpow.pop %v3262
  %v3264 = vmul.f32 %v3244, 1.442695
  %v3265 = vpow.pop %v3264
  %v3266 = vmul.f32 %v3245, 1.442695
  %v3267 = vpow.pop %v3266
  %v3268 = vmul.f32 %v3246, 1.442695
  %v3269 = vpow.pop %v3268
  %v3270 = vmul.f32 %v3247, 1.442695
  %v3271 = vpow.pop %v3270
  %v3272 = vmul.f32 %v3248, 1.442695
  %v3273 = vpow.pop %v3272
  %v3274 = vmul.f32 %v3249, 1.442695
  %v3275 = vpow.pop %v3274
  %v3276 = vmul.f32 %v3250, 1.442695
  %v3277 = vpow.pop %v3276
  %v3278 = vmul.f32 %v3251, 1.442695
  %v3279 = vpow.pop %v3278
  %v3280 = vmul.f32 %v3252, 1.442695
  %v3281 = vpow.pop %v3280
  %v3282 = vmul.f32 %v3253, 1.442695
  %v3283 = vpow.pop %v3282
  %v3284 = vmul.f32 %v3254, 1.442695
  %v3285 = vpow.pop %v3284
  %v3286 = vmul.f32 %v3255, 1.442695
  %v3287 = vpow.pop %v3286
  %3304 = vset.pattern.permute.xlu0 0
  %3305 = vperm.xlu0 %3304, %v3257
  %v3306 = vpop.permute.xlu0 %3305
  %3307 = vset.pattern.permute.xlu0 0
  %3308 = vperm.xlu0 %3307, %v3259
  %v3309 = vpop.permute.xlu0 %3308
  %3310 = vset.pattern.permute.xlu0 0
  %3311 = vperm.xlu0 %3310, %v3261
  %v3312 = vpop.permute.xlu0 %3311
  %3313 = vset.pattern.permute.xlu0 0
  %3314 = vperm.xlu0 %3313, %v3263
  %v3315 = vpop.permute.xlu0 %3314
  %3316 = vset.pattern.permute.xlu0 0
  %3317 = vperm.xlu0 %3316, %v3265
  %v3318 = vpop.permute.xlu0 %3317
  %3319 = vset.pattern.permute.xlu0 0
  %3320 = vperm.xlu0 %3319, %v3267
  %v3321 = vpop.permute.xlu0 %3320
  %3322 = vset.pattern.permute.xlu0 0
  %3323 = vperm.xlu0 %3322, %v3269
  %v3324 = vpop.permute.xlu0 %3323
  %3325 = vset.pattern.permute.xlu0 0
  %3326 = vperm.xlu0 %3325, %v3271
  %v3327 = vpop.permute.xlu0 %3326
  %3328 = vset.pattern.permute.xlu0 0
  %3329 = vperm.xlu0 %3328, %v3273
  %v3330 = vpop.permute.xlu0 %3329
  %3331 = vset.pattern.permute.xlu0 0
  %3332 = vperm.xlu0 %3331, %v3275
  %v3333 = vpop.permute.xlu0 %3332
  %3334 = vset.pattern.permute.xlu0 0
  %3335 = vperm.xlu0 %3334, %v3277
  %v3336 = vpop.permute.xlu0 %3335
  %3337 = vset.pattern.permute.xlu0 0
  %3338 = vperm.xlu0 %3337, %v3279
  %v3339 = vpop.permute.xlu0 %3338
  %3340 = vset.pattern.permute.xlu0 0
  %3341 = vperm.xlu0 %3340, %v3281
  %v3342 = vpop.permute.xlu0 %3341
  %3343 = vset.pattern.permute.xlu0 0
  %3344 = vperm.xlu0 %3343, %v3283
  %v3345 = vpop.permute.xlu0 %3344
  %3346 = vset.pattern.permute.xlu0 0
  %3347 = vperm.xlu0 %3346, %v3285
  %v3348 = vpop.permute.xlu0 %3347
  %3349 = vset.pattern.permute.xlu0 0
  %3350 = vperm.xlu0 %3349, %v3287
  %v3351 = vpop.permute.xlu0 %3350
  %v3352 = vlaneseq
  %v3353 = vshrl.u32 %v3352, 7
  %v3354 = vsub.s32 %v53, %v3353
  %v3355 = vrot.slane %v3306, %v3354
  %v3356 = vlaneseq
  %v3357 = vshrl.u32 %v3356, 7
  %v3358 = vsub.s32 %v53, %v3357
  %v3359 = vrot.slane %v3309, %v3358
  %v3360 = vlaneseq
  %v3361 = vshrl.u32 %v3360, 7
  %v3362 = vsub.s32 %v53, %v3361
  %v3363 = vrot.slane %v3312, %v3362
  %v3364 = vlaneseq
  %v3365 = vshrl.u32 %v3364, 7
  %v3366 = vsub.s32 %v53, %v3365
  %v3367 = vrot.slane %v3315, %v3366
  %v3368 = vlaneseq
  %v3369 = vshrl.u32 %v3368, 7
  %v3370 = vsub.s32 %v53, %v3369
  %v3371 = vrot.slane %v3318, %v3370
  %v3372 = vlaneseq
  %v3373 = vshrl.u32 %v3372, 7
  %v3374 = vsub.s32 %v53, %v3373
  %v3375 = vrot.slane %v3321, %v3374
  %v3376 = vlaneseq
  %v3377 = vshrl.u32 %v3376, 7
  %v3378 = vsub.s32 %v53, %v3377
  %v3379 = vrot.slane %v3324, %v3378
  %v3380 = vlaneseq
  %v3381 = vshrl.u32 %v3380, 7
  %v3382 = vsub.s32 %v53, %v3381
  %v3383 = vrot.slane %v3327, %v3382
  %v3384 = vlaneseq
  %v3385 = vshrl.u32 %v3384, 7
  %v3386 = vsub.s32 %v53, %v3385
  %v3387 = vrot.slane %v3330, %v3386
  %v3388 = vlaneseq
  %v3389 = vshrl.u32 %v3388, 7
  %v3390 = vsub.s32 %v53, %v3389
  %v3391 = vrot.slane %v3333, %v3390
  %v3392 = vlaneseq
  %v3393 = vshrl.u32 %v3392, 7
  %v3394 = vsub.s32 %v53, %v3393
  %v3395 = vrot.slane %v3336, %v3394
  %v3396 = vlaneseq
  %v3397 = vshrl.u32 %v3396, 7
  %v3398 = vsub.s32 %v53, %v3397
  %v3399 = vrot.slane %v3339, %v3398
  %v3400 = vlaneseq
  %v3401 = vshrl.u32 %v3400, 7
  %v3402 = vsub.s32 %v53, %v3401
  %v3403 = vrot.slane %v3342, %v3402
  %v3404 = vlaneseq
  %v3405 = vshrl.u32 %v3404, 7
  %v3406 = vsub.s32 %v53, %v3405
  %v3407 = vrot.slane %v3345, %v3406
  %v3408 = vlaneseq
  %v3409 = vshrl.u32 %v3408, 7
  %v3410 = vsub.s32 %v53, %v3409
  %v3411 = vrot.slane %v3348, %v3410
  %v3412 = vlaneseq
  %v3413 = vshrl.u32 %v3412, 7
  %v3414 = vsub.s32 %v53, %v3413
  %v3415 = vrot.slane %v3351, %v3414
  %v3416 = vsel %vm2658, %v3359, %v3355
  %v3417 = vsel %vm2660, %v3363, %v3416
  %v3418 = vsel %vm2662, %v3367, %v3417
  %v3419 = vsel %vm2664, %v3371, %v3418
  %v3420 = vsel %vm2666, %v3375, %v3419
  %v3421 = vsel %vm2668, %v3379, %v3420
  %v3422 = vsel %vm2670, %v3383, %v3421
  %v3423 = vsel %vm2658, %v3391, %v3387
  %v3424 = vsel %vm2660, %v3395, %v3423
  %v3425 = vsel %vm2662, %v3399, %v3424
  %v3426 = vsel %vm2664, %v3403, %v3425
  %v3427 = vsel %vm2666, %v3407, %v3426
  %v3428 = vsel %vm2668, %v3411, %v3427
  %v3429 = vsel %vm2670, %v3415, %v3428
  %v3432 = vsel %vm348, %v3422, 0.0
  %3433 = vadd.xlane.f32.xlu0 %v3432
  %v3434 = vpop.xlane.xlu0 %3433
  %v3435 = vsel %vm348, %v3429, 0.0
  %3436 = vadd.xlane.f32.xlu0 %v3435
  %v3437 = vpop.xlane.xlu0 %3436
  %v3438 = vlog2.pop %v3434
  %v3439 = vmul.f32 %v3438, 0.6931472
  %v3440 = vlog2.pop %v3437
  %v3441 = vmul.f32 %v3440, 0.6931472
  %v3442 = vadd.f32 %v3154, %v3439
  %v3443 = vadd.f32 %v3157, %v3441
  %v3445 = vlaneseq
  %v3446 = vshrl.u32 %v3445, 7
  %v3447 = vsub.s32 0, %v3446
  %v3448 = vrot.slane %v2162, %v3447
  %3450 = vbcast.lane.b32.xlu0 %v3448, 256
  %v3451 = vpop.permute.xlu0 %3450
  %v3452 = vlaneseq
  %v3453 = vshrl.u32 %v3452, 7
  %v3454 = vsub.s32 1, %v3453
  %v3455 = vrot.slane %v2162, %v3454
  %3457 = vbcast.lane.b32.xlu0 %v3455, 256
  %v3458 = vpop.permute.xlu0 %3457
  %v3461 = vadd.f32 %v3442, %v3451
  %v3462 = vadd.f32 %v3443, %v3458
  %v3463 = vadd.f32 %v3461, %v2456
  %v3464 = vadd.f32 %v3461, %v2463
  %v3465 = vadd.f32 %v3461, %v2470
  %v3466 = vadd.f32 %v3461, %v2477
  %v3467 = vadd.f32 %v3461, %v2484
  %v3468 = vadd.f32 %v3461, %v2491
  %v3469 = vadd.f32 %v3461, %v2498
  %v3470 = vadd.f32 %v3461, %v2505
  %v3471 = vadd.f32 %v3462, %v2456
  %v3472 = vadd.f32 %v3462, %v2463
  %v3473 = vadd.f32 %v3462, %v2470
  %v3474 = vadd.f32 %v3462, %v2477
  %v3475 = vadd.f32 %v3462, %v2484
  %v3476 = vadd.f32 %v3462, %v2491
  %v3477 = vadd.f32 %v3462, %v2498
  %v3478 = vadd.f32 %v3462, %v2505
  %3495 = vset.pattern.permute.xlu0 0
  %3496 = vperm.xlu0 %3495, %v3463
  %v3497 = vpop.permute.xlu0 %3496
  %3498 = vset.pattern.permute.xlu0 0
  %3499 = vperm.xlu0 %3498, %v3464
  %v3500 = vpop.permute.xlu0 %3499
  %3501 = vset.pattern.permute.xlu0 0
  %3502 = vperm.xlu0 %3501, %v3465
  %v3503 = vpop.permute.xlu0 %3502
  %3504 = vset.pattern.permute.xlu0 0
  %3505 = vperm.xlu0 %3504, %v3466
  %v3506 = vpop.permute.xlu0 %3505
  %3507 = vset.pattern.permute.xlu0 0
  %3508 = vperm.xlu0 %3507, %v3467
  %v3509 = vpop.permute.xlu0 %3508
  %3510 = vset.pattern.permute.xlu0 0
  %3511 = vperm.xlu0 %3510, %v3468
  %v3512 = vpop.permute.xlu0 %3511
  %3513 = vset.pattern.permute.xlu0 0
  %3514 = vperm.xlu0 %3513, %v3469
  %v3515 = vpop.permute.xlu0 %3514
  %3516 = vset.pattern.permute.xlu0 0
  %3517 = vperm.xlu0 %3516, %v3470
  %v3518 = vpop.permute.xlu0 %3517
  %3519 = vset.pattern.permute.xlu0 0
  %3520 = vperm.xlu0 %3519, %v3471
  %v3521 = vpop.permute.xlu0 %3520
  %3522 = vset.pattern.permute.xlu0 0
  %3523 = vperm.xlu0 %3522, %v3472
  %v3524 = vpop.permute.xlu0 %3523
  %3525 = vset.pattern.permute.xlu0 0
  %3526 = vperm.xlu0 %3525, %v3473
  %v3527 = vpop.permute.xlu0 %3526
  %3528 = vset.pattern.permute.xlu0 0
  %3529 = vperm.xlu0 %3528, %v3474
  %v3530 = vpop.permute.xlu0 %3529
  %3531 = vset.pattern.permute.xlu0 0
  %3532 = vperm.xlu0 %3531, %v3475
  %v3533 = vpop.permute.xlu0 %3532
  %3534 = vset.pattern.permute.xlu0 0
  %3535 = vperm.xlu0 %3534, %v3476
  %v3536 = vpop.permute.xlu0 %3535
  %3537 = vset.pattern.permute.xlu0 0
  %3538 = vperm.xlu0 %3537, %v3477
  %v3539 = vpop.permute.xlu0 %3538
  %3540 = vset.pattern.permute.xlu0 0
  %3541 = vperm.xlu0 %3540, %v3478
  %v3542 = vpop.permute.xlu0 %3541
  %v3543 = vlaneseq
  %v3544 = vshrl.u32 %v3543, 7
  %v3545 = vsub.s32 %v53, %v3544
  %v3546 = vrot.slane %v3497, %v3545
  %v3547 = vlaneseq
  %v3548 = vshrl.u32 %v3547, 7
  %v3549 = vsub.s32 %v53, %v3548
  %v3550 = vrot.slane %v3500, %v3549
  %v3551 = vlaneseq
  %v3552 = vshrl.u32 %v3551, 7
  %v3553 = vsub.s32 %v53, %v3552
  %v3554 = vrot.slane %v3503, %v3553
  %v3555 = vlaneseq
  %v3556 = vshrl.u32 %v3555, 7
  %v3557 = vsub.s32 %v53, %v3556
  %v3558 = vrot.slane %v3506, %v3557
  %v3559 = vlaneseq
  %v3560 = vshrl.u32 %v3559, 7
  %v3561 = vsub.s32 %v53, %v3560
  %v3562 = vrot.slane %v3509, %v3561
  %v3563 = vlaneseq
  %v3564 = vshrl.u32 %v3563, 7
  %v3565 = vsub.s32 %v53, %v3564
  %v3566 = vrot.slane %v3512, %v3565
  %v3567 = vlaneseq
  %v3568 = vshrl.u32 %v3567, 7
  %v3569 = vsub.s32 %v53, %v3568
  %v3570 = vrot.slane %v3515, %v3569
  %v3571 = vlaneseq
  %v3572 = vshrl.u32 %v3571, 7
  %v3573 = vsub.s32 %v53, %v3572
  %v3574 = vrot.slane %v3518, %v3573
  %v3575 = vlaneseq
  %v3576 = vshrl.u32 %v3575, 7
  %v3577 = vsub.s32 %v53, %v3576
  %v3578 = vrot.slane %v3521, %v3577
  %v3579 = vlaneseq
  %v3580 = vshrl.u32 %v3579, 7
  %v3581 = vsub.s32 %v53, %v3580
  %v3582 = vrot.slane %v3524, %v3581
  %v3583 = vlaneseq
  %v3584 = vshrl.u32 %v3583, 7
  %v3585 = vsub.s32 %v53, %v3584
  %v3586 = vrot.slane %v3527, %v3585
  %v3587 = vlaneseq
  %v3588 = vshrl.u32 %v3587, 7
  %v3589 = vsub.s32 %v53, %v3588
  %v3590 = vrot.slane %v3530, %v3589
  %v3591 = vlaneseq
  %v3592 = vshrl.u32 %v3591, 7
  %v3593 = vsub.s32 %v53, %v3592
  %v3594 = vrot.slane %v3533, %v3593
  %v3595 = vlaneseq
  %v3596 = vshrl.u32 %v3595, 7
  %v3597 = vsub.s32 %v53, %v3596
  %v3598 = vrot.slane %v3536, %v3597
  %v3599 = vlaneseq
  %v3600 = vshrl.u32 %v3599, 7
  %v3601 = vsub.s32 %v53, %v3600
  %v3602 = vrot.slane %v3539, %v3601
  %v3603 = vlaneseq
  %v3604 = vshrl.u32 %v3603, 7
  %v3605 = vsub.s32 %v53, %v3604
  %v3606 = vrot.slane %v3542, %v3605
  %v3607 = vsel %vm2658, %v3550, %v3546
  %v3608 = vsel %vm2660, %v3554, %v3607
  %v3609 = vsel %vm2662, %v3558, %v3608
  %v3610 = vsel %vm2664, %v3562, %v3609
  %v3611 = vsel %vm2666, %v3566, %v3610
  %v3612 = vsel %vm2668, %v3570, %v3611
  %v3613 = vsel %vm2670, %v3574, %v3612
  %v3614 = vsel %vm2658, %v3582, %v3578
  %v3615 = vsel %vm2660, %v3586, %v3614
  %v3616 = vsel %vm2662, %v3590, %v3615
  %v3617 = vsel %vm2664, %v3594, %v3616
  %v3618 = vsel %vm2666, %v3598, %v3617
  %v3619 = vsel %vm2668, %v3602, %v3618
  %v3620 = vsel %vm2670, %v3606, %v3619
  %v3623 = vsel %vm348, %v3613, -inf
  %3624 = vmax.xlane.f32.xlu0 %v3623
  %v3625 = vpop.xlane.xlu0 %3624
  %v3626 = vsel %vm348, %v3620, -inf
  %3627 = vmax.xlane.f32.xlu0 %v3626
  %v3628 = vpop.xlane.xlu0 %3627
  %v3631 = vlaneseq
  %v3632 = vshrl.u32 %v3631, 7
  %v3633 = vsub.s32 0, %v3632
  %v3634 = vrot.slane %v3625, %v3633
  %v3635 = vlaneseq
  %v3636 = vshrl.u32 %v3635, 7
  %v3637 = vsub.s32 1, %v3636
  %v3638 = vrot.slane %v3625, %v3637
  %v3639 = vlaneseq
  %v3640 = vshrl.u32 %v3639, 7
  %v3641 = vsub.s32 2, %v3640
  %v3642 = vrot.slane %v3625, %v3641
  %v3643 = vlaneseq
  %v3644 = vshrl.u32 %v3643, 7
  %v3645 = vsub.s32 3, %v3644
  %v3646 = vrot.slane %v3625, %v3645
  %v3647 = vlaneseq
  %v3648 = vshrl.u32 %v3647, 7
  %v3649 = vsub.s32 4, %v3648
  %v3650 = vrot.slane %v3625, %v3649
  %v3651 = vlaneseq
  %v3652 = vshrl.u32 %v3651, 7
  %v3653 = vsub.s32 5, %v3652
  %v3654 = vrot.slane %v3625, %v3653
  %v3655 = vlaneseq
  %v3656 = vshrl.u32 %v3655, 7
  %v3657 = vsub.s32 6, %v3656
  %v3658 = vrot.slane %v3625, %v3657
  %v3659 = vlaneseq
  %v3660 = vshrl.u32 %v3659, 7
  %v3661 = vsub.s32 7, %v3660
  %v3662 = vrot.slane %v3625, %v3661
  %v3663 = vlaneseq
  %v3664 = vshrl.u32 %v3663, 7
  %v3665 = vsub.s32 0, %v3664
  %v3666 = vrot.slane %v3628, %v3665
  %v3667 = vlaneseq
  %v3668 = vshrl.u32 %v3667, 7
  %v3669 = vsub.s32 1, %v3668
  %v3670 = vrot.slane %v3628, %v3669
  %v3671 = vlaneseq
  %v3672 = vshrl.u32 %v3671, 7
  %v3673 = vsub.s32 2, %v3672
  %v3674 = vrot.slane %v3628, %v3673
  %v3675 = vlaneseq
  %v3676 = vshrl.u32 %v3675, 7
  %v3677 = vsub.s32 3, %v3676
  %v3678 = vrot.slane %v3628, %v3677
  %v3679 = vlaneseq
  %v3680 = vshrl.u32 %v3679, 7
  %v3681 = vsub.s32 4, %v3680
  %v3682 = vrot.slane %v3628, %v3681
  %v3683 = vlaneseq
  %v3684 = vshrl.u32 %v3683, 7
  %v3685 = vsub.s32 5, %v3684
  %v3686 = vrot.slane %v3628, %v3685
  %v3687 = vlaneseq
  %v3688 = vshrl.u32 %v3687, 7
  %v3689 = vsub.s32 6, %v3688
  %v3690 = vrot.slane %v3628, %v3689
  %v3691 = vlaneseq
  %v3692 = vshrl.u32 %v3691, 7
  %v3693 = vsub.s32 7, %v3692
  %v3694 = vrot.slane %v3628, %v3693
  %v3711 = vsub.f32 %v3463, %v3634
  %v3712 = vsub.f32 %v3464, %v3638
  %v3713 = vsub.f32 %v3465, %v3642
  %v3714 = vsub.f32 %v3466, %v3646
  %v3715 = vsub.f32 %v3467, %v3650
  %v3716 = vsub.f32 %v3468, %v3654
  %v3717 = vsub.f32 %v3469, %v3658
  %v3718 = vsub.f32 %v3470, %v3662
  %v3719 = vsub.f32 %v3471, %v3666
  %v3720 = vsub.f32 %v3472, %v3670
  %v3721 = vsub.f32 %v3473, %v3674
  %v3722 = vsub.f32 %v3474, %v3678
  %v3723 = vsub.f32 %v3475, %v3682
  %v3724 = vsub.f32 %v3476, %v3686
  %v3725 = vsub.f32 %v3477, %v3690
  %v3726 = vsub.f32 %v3478, %v3694
  %v3727 = vmul.f32 %v3711, 1.442695
  %v3728 = vpow.pop %v3727
  %v3729 = vmul.f32 %v3712, 1.442695
  %v3730 = vpow.pop %v3729
  %v3731 = vmul.f32 %v3713, 1.442695
  %v3732 = vpow.pop %v3731
  %v3733 = vmul.f32 %v3714, 1.442695
  %v3734 = vpow.pop %v3733
  %v3735 = vmul.f32 %v3715, 1.442695
  %v3736 = vpow.pop %v3735
  %v3737 = vmul.f32 %v3716, 1.442695
  %v3738 = vpow.pop %v3737
  %v3739 = vmul.f32 %v3717, 1.442695
  %v3740 = vpow.pop %v3739
  %v3741 = vmul.f32 %v3718, 1.442695
  %v3742 = vpow.pop %v3741
  %v3743 = vmul.f32 %v3719, 1.442695
  %v3744 = vpow.pop %v3743
  %v3745 = vmul.f32 %v3720, 1.442695
  %v3746 = vpow.pop %v3745
  %v3747 = vmul.f32 %v3721, 1.442695
  %v3748 = vpow.pop %v3747
  %v3749 = vmul.f32 %v3722, 1.442695
  %v3750 = vpow.pop %v3749
  %v3751 = vmul.f32 %v3723, 1.442695
  %v3752 = vpow.pop %v3751
  %v3753 = vmul.f32 %v3724, 1.442695
  %v3754 = vpow.pop %v3753
  %v3755 = vmul.f32 %v3725, 1.442695
  %v3756 = vpow.pop %v3755
  %v3757 = vmul.f32 %v3726, 1.442695
  %v3758 = vpow.pop %v3757
  %3775 = vset.pattern.permute.xlu0 0
  %3776 = vperm.xlu0 %3775, %v3728
  %v3777 = vpop.permute.xlu0 %3776
  %3778 = vset.pattern.permute.xlu0 0
  %3779 = vperm.xlu0 %3778, %v3730
  %v3780 = vpop.permute.xlu0 %3779
  %3781 = vset.pattern.permute.xlu0 0
  %3782 = vperm.xlu0 %3781, %v3732
  %v3783 = vpop.permute.xlu0 %3782
  %3784 = vset.pattern.permute.xlu0 0
  %3785 = vperm.xlu0 %3784, %v3734
  %v3786 = vpop.permute.xlu0 %3785
  %3787 = vset.pattern.permute.xlu0 0
  %3788 = vperm.xlu0 %3787, %v3736
  %v3789 = vpop.permute.xlu0 %3788
  %3790 = vset.pattern.permute.xlu0 0
  %3791 = vperm.xlu0 %3790, %v3738
  %v3792 = vpop.permute.xlu0 %3791
  %3793 = vset.pattern.permute.xlu0 0
  %3794 = vperm.xlu0 %3793, %v3740
  %v3795 = vpop.permute.xlu0 %3794
  %3796 = vset.pattern.permute.xlu0 0
  %3797 = vperm.xlu0 %3796, %v3742
  %v3798 = vpop.permute.xlu0 %3797
  %3799 = vset.pattern.permute.xlu0 0
  %3800 = vperm.xlu0 %3799, %v3744
  %v3801 = vpop.permute.xlu0 %3800
  %3802 = vset.pattern.permute.xlu0 0
  %3803 = vperm.xlu0 %3802, %v3746
  %v3804 = vpop.permute.xlu0 %3803
  %3805 = vset.pattern.permute.xlu0 0
  %3806 = vperm.xlu0 %3805, %v3748
  %v3807 = vpop.permute.xlu0 %3806
  %3808 = vset.pattern.permute.xlu0 0
  %3809 = vperm.xlu0 %3808, %v3750
  %v3810 = vpop.permute.xlu0 %3809
  %3811 = vset.pattern.permute.xlu0 0
  %3812 = vperm.xlu0 %3811, %v3752
  %v3813 = vpop.permute.xlu0 %3812
  %3814 = vset.pattern.permute.xlu0 0
  %3815 = vperm.xlu0 %3814, %v3754
  %v3816 = vpop.permute.xlu0 %3815
  %3817 = vset.pattern.permute.xlu0 0
  %3818 = vperm.xlu0 %3817, %v3756
  %v3819 = vpop.permute.xlu0 %3818
  %3820 = vset.pattern.permute.xlu0 0
  %3821 = vperm.xlu0 %3820, %v3758
  %v3822 = vpop.permute.xlu0 %3821
  %v3823 = vlaneseq
  %v3824 = vshrl.u32 %v3823, 7
  %v3825 = vsub.s32 %v53, %v3824
  %v3826 = vrot.slane %v3777, %v3825
  %v3827 = vlaneseq
  %v3828 = vshrl.u32 %v3827, 7
  %v3829 = vsub.s32 %v53, %v3828
  %v3830 = vrot.slane %v3780, %v3829
  %v3831 = vlaneseq
  %v3832 = vshrl.u32 %v3831, 7
  %v3833 = vsub.s32 %v53, %v3832
  %v3834 = vrot.slane %v3783, %v3833
  %v3835 = vlaneseq
  %v3836 = vshrl.u32 %v3835, 7
  %v3837 = vsub.s32 %v53, %v3836
  %v3838 = vrot.slane %v3786, %v3837
  %v3839 = vlaneseq
  %v3840 = vshrl.u32 %v3839, 7
  %v3841 = vsub.s32 %v53, %v3840
  %v3842 = vrot.slane %v3789, %v3841
  %v3843 = vlaneseq
  %v3844 = vshrl.u32 %v3843, 7
  %v3845 = vsub.s32 %v53, %v3844
  %v3846 = vrot.slane %v3792, %v3845
  %v3847 = vlaneseq
  %v3848 = vshrl.u32 %v3847, 7
  %v3849 = vsub.s32 %v53, %v3848
  %v3850 = vrot.slane %v3795, %v3849
  %v3851 = vlaneseq
  %v3852 = vshrl.u32 %v3851, 7
  %v3853 = vsub.s32 %v53, %v3852
  %v3854 = vrot.slane %v3798, %v3853
  %v3855 = vlaneseq
  %v3856 = vshrl.u32 %v3855, 7
  %v3857 = vsub.s32 %v53, %v3856
  %v3858 = vrot.slane %v3801, %v3857
  %v3859 = vlaneseq
  %v3860 = vshrl.u32 %v3859, 7
  %v3861 = vsub.s32 %v53, %v3860
  %v3862 = vrot.slane %v3804, %v3861
  %v3863 = vlaneseq
  %v3864 = vshrl.u32 %v3863, 7
  %v3865 = vsub.s32 %v53, %v3864
  %v3866 = vrot.slane %v3807, %v3865
  %v3867 = vlaneseq
  %v3868 = vshrl.u32 %v3867, 7
  %v3869 = vsub.s32 %v53, %v3868
  %v3870 = vrot.slane %v3810, %v3869
  %v3871 = vlaneseq
  %v3872 = vshrl.u32 %v3871, 7
  %v3873 = vsub.s32 %v53, %v3872
  %v3874 = vrot.slane %v3813, %v3873
  %v3875 = vlaneseq
  %v3876 = vshrl.u32 %v3875, 7
  %v3877 = vsub.s32 %v53, %v3876
  %v3878 = vrot.slane %v3816, %v3877
  %v3879 = vlaneseq
  %v3880 = vshrl.u32 %v3879, 7
  %v3881 = vsub.s32 %v53, %v3880
  %v3882 = vrot.slane %v3819, %v3881
  %v3883 = vlaneseq
  %v3884 = vshrl.u32 %v3883, 7
  %v3885 = vsub.s32 %v53, %v3884
  %v3886 = vrot.slane %v3822, %v3885
  %v3887 = vsel %vm2658, %v3830, %v3826
  %v3888 = vsel %vm2660, %v3834, %v3887
  %v3889 = vsel %vm2662, %v3838, %v3888
  %v3890 = vsel %vm2664, %v3842, %v3889
  %v3891 = vsel %vm2666, %v3846, %v3890
  %v3892 = vsel %vm2668, %v3850, %v3891
  %v3893 = vsel %vm2670, %v3854, %v3892
  %v3894 = vsel %vm2658, %v3862, %v3858
  %v3895 = vsel %vm2660, %v3866, %v3894
  %v3896 = vsel %vm2662, %v3870, %v3895
  %v3897 = vsel %vm2664, %v3874, %v3896
  %v3898 = vsel %vm2666, %v3878, %v3897
  %v3899 = vsel %vm2668, %v3882, %v3898
  %v3900 = vsel %vm2670, %v3886, %v3899
  %v3903 = vsel %vm348, %v3893, 0.0
  %3904 = vadd.xlane.f32.xlu0 %v3903
  %v3905 = vpop.xlane.xlu0 %3904
  %v3906 = vsel %vm348, %v3900, 0.0
  %3907 = vadd.xlane.f32.xlu0 %v3906
  %v3908 = vpop.xlane.xlu0 %3907
  %v3909 = vlog2.pop %v3905
  %v3910 = vmul.f32 %v3909, 0.6931472
  %v3911 = vlog2.pop %v3908
  %v3912 = vmul.f32 %v3911, 0.6931472
  %v3913 = vadd.f32 %v3625, %v3910
  %v3914 = vadd.f32 %v3628, %v3912
  %v3916 = vlaneseq
  %v3917 = vshrl.u32 %v3916, 7
  %v3918 = vsub.s32 0, %v3917
  %v3919 = vrot.slane %v2167, %v3918
  %3921 = vbcast.lane.b32.xlu0 %v3919, 256
  %v3922 = vpop.permute.xlu0 %3921
  %v3923 = vlaneseq
  %v3924 = vshrl.u32 %v3923, 7
  %v3925 = vsub.s32 1, %v3924
  %v3926 = vrot.slane %v2167, %v3925
  %3928 = vbcast.lane.b32.xlu0 %v3926, 256
  %v3929 = vpop.permute.xlu0 %3928
  %v3932 = vadd.f32 %v3913, %v3922
  %v3933 = vadd.f32 %v3914, %v3929
  %v3934 = vadd.f32 %v3932, %v2456
  %v3935 = vadd.f32 %v3932, %v2463
  %v3936 = vadd.f32 %v3932, %v2470
  %v3937 = vadd.f32 %v3932, %v2477
  %v3938 = vadd.f32 %v3932, %v2484
  %v3939 = vadd.f32 %v3932, %v2491
  %v3940 = vadd.f32 %v3932, %v2498
  %v3941 = vadd.f32 %v3932, %v2505
  %v3942 = vadd.f32 %v3933, %v2456
  %v3943 = vadd.f32 %v3933, %v2463
  %v3944 = vadd.f32 %v3933, %v2470
  %v3945 = vadd.f32 %v3933, %v2477
  %v3946 = vadd.f32 %v3933, %v2484
  %v3947 = vadd.f32 %v3933, %v2491
  %v3948 = vadd.f32 %v3933, %v2498
  %v3949 = vadd.f32 %v3933, %v2505
  %3966 = vset.pattern.permute.xlu0 0
  %3967 = vperm.xlu0 %3966, %v3934
  %v3968 = vpop.permute.xlu0 %3967
  %3969 = vset.pattern.permute.xlu0 0
  %3970 = vperm.xlu0 %3969, %v3935
  %v3971 = vpop.permute.xlu0 %3970
  %3972 = vset.pattern.permute.xlu0 0
  %3973 = vperm.xlu0 %3972, %v3936
  %v3974 = vpop.permute.xlu0 %3973
  %3975 = vset.pattern.permute.xlu0 0
  %3976 = vperm.xlu0 %3975, %v3937
  %v3977 = vpop.permute.xlu0 %3976
  %3978 = vset.pattern.permute.xlu0 0
  %3979 = vperm.xlu0 %3978, %v3938
  %v3980 = vpop.permute.xlu0 %3979
  %3981 = vset.pattern.permute.xlu0 0
  %3982 = vperm.xlu0 %3981, %v3939
  %v3983 = vpop.permute.xlu0 %3982
  %3984 = vset.pattern.permute.xlu0 0
  %3985 = vperm.xlu0 %3984, %v3940
  %v3986 = vpop.permute.xlu0 %3985
  %3987 = vset.pattern.permute.xlu0 0
  %3988 = vperm.xlu0 %3987, %v3941
  %v3989 = vpop.permute.xlu0 %3988
  %3990 = vset.pattern.permute.xlu0 0
  %3991 = vperm.xlu0 %3990, %v3942
  %v3992 = vpop.permute.xlu0 %3991
  %3993 = vset.pattern.permute.xlu0 0
  %3994 = vperm.xlu0 %3993, %v3943
  %v3995 = vpop.permute.xlu0 %3994
  %3996 = vset.pattern.permute.xlu0 0
  %3997 = vperm.xlu0 %3996, %v3944
  %v3998 = vpop.permute.xlu0 %3997
  %3999 = vset.pattern.permute.xlu0 0
  %4000 = vperm.xlu0 %3999, %v3945
  %v4001 = vpop.permute.xlu0 %4000
  %4002 = vset.pattern.permute.xlu0 0
  %4003 = vperm.xlu0 %4002, %v3946
  %v4004 = vpop.permute.xlu0 %4003
  %4005 = vset.pattern.permute.xlu0 0
  %4006 = vperm.xlu0 %4005, %v3947
  %v4007 = vpop.permute.xlu0 %4006
  %4008 = vset.pattern.permute.xlu0 0
  %4009 = vperm.xlu0 %4008, %v3948
  %v4010 = vpop.permute.xlu0 %4009
  %4011 = vset.pattern.permute.xlu0 0
  %4012 = vperm.xlu0 %4011, %v3949
  %v4013 = vpop.permute.xlu0 %4012
  %v4014 = vlaneseq
  %v4015 = vshrl.u32 %v4014, 7
  %v4016 = vsub.s32 %v53, %v4015
  %v4017 = vrot.slane %v3968, %v4016
  %v4018 = vlaneseq
  %v4019 = vshrl.u32 %v4018, 7
  %v4020 = vsub.s32 %v53, %v4019
  %v4021 = vrot.slane %v3971, %v4020
  %v4022 = vlaneseq
  %v4023 = vshrl.u32 %v4022, 7
  %v4024 = vsub.s32 %v53, %v4023
  %v4025 = vrot.slane %v3974, %v4024
  %v4026 = vlaneseq
  %v4027 = vshrl.u32 %v4026, 7
  %v4028 = vsub.s32 %v53, %v4027
  %v4029 = vrot.slane %v3977, %v4028
  %v4030 = vlaneseq
  %v4031 = vshrl.u32 %v4030, 7
  %v4032 = vsub.s32 %v53, %v4031
  %v4033 = vrot.slane %v3980, %v4032
  %v4034 = vlaneseq
  %v4035 = vshrl.u32 %v4034, 7
  %v4036 = vsub.s32 %v53, %v4035
  %v4037 = vrot.slane %v3983, %v4036
  %v4038 = vlaneseq
  %v4039 = vshrl.u32 %v4038, 7
  %v4040 = vsub.s32 %v53, %v4039
  %v4041 = vrot.slane %v3986, %v4040
  %v4042 = vlaneseq
  %v4043 = vshrl.u32 %v4042, 7
  %v4044 = vsub.s32 %v53, %v4043
  %v4045 = vrot.slane %v3989, %v4044
  %v4046 = vlaneseq
  %v4047 = vshrl.u32 %v4046, 7
  %v4048 = vsub.s32 %v53, %v4047
  %v4049 = vrot.slane %v3992, %v4048
  %v4050 = vlaneseq
  %v4051 = vshrl.u32 %v4050, 7
  %v4052 = vsub.s32 %v53, %v4051
  %v4053 = vrot.slane %v3995, %v4052
  %v4054 = vlaneseq
  %v4055 = vshrl.u32 %v4054, 7
  %v4056 = vsub.s32 %v53, %v4055
  %v4057 = vrot.slane %v3998, %v4056
  %v4058 = vlaneseq
  %v4059 = vshrl.u32 %v4058, 7
  %v4060 = vsub.s32 %v53, %v4059
  %v4061 = vrot.slane %v4001, %v4060
  %v4062 = vlaneseq
  %v4063 = vshrl.u32 %v4062, 7
  %v4064 = vsub.s32 %v53, %v4063
  %v4065 = vrot.slane %v4004, %v4064
  %v4066 = vlaneseq
  %v4067 = vshrl.u32 %v4066, 7
  %v4068 = vsub.s32 %v53, %v4067
  %v4069 = vrot.slane %v4007, %v4068
  %v4070 = vlaneseq
  %v4071 = vshrl.u32 %v4070, 7
  %v4072 = vsub.s32 %v53, %v4071
  %v4073 = vrot.slane %v4010, %v4072
  %v4074 = vlaneseq
  %v4075 = vshrl.u32 %v4074, 7
  %v4076 = vsub.s32 %v53, %v4075
  %v4077 = vrot.slane %v4013, %v4076
  %v4078 = vsel %vm2658, %v4021, %v4017
  %v4079 = vsel %vm2660, %v4025, %v4078
  %v4080 = vsel %vm2662, %v4029, %v4079
  %v4081 = vsel %vm2664, %v4033, %v4080
  %v4082 = vsel %vm2666, %v4037, %v4081
  %v4083 = vsel %vm2668, %v4041, %v4082
  %v4084 = vsel %vm2670, %v4045, %v4083
  %v4085 = vsel %vm2658, %v4053, %v4049
  %v4086 = vsel %vm2660, %v4057, %v4085
  %v4087 = vsel %vm2662, %v4061, %v4086
  %v4088 = vsel %vm2664, %v4065, %v4087
  %v4089 = vsel %vm2666, %v4069, %v4088
  %v4090 = vsel %vm2668, %v4073, %v4089
  %v4091 = vsel %vm2670, %v4077, %v4090
  %v4094 = vsel %vm348, %v4084, -inf
  %4095 = vmax.xlane.f32.xlu0 %v4094
  %v4096 = vpop.xlane.xlu0 %4095
  %v4097 = vsel %vm348, %v4091, -inf
  %4098 = vmax.xlane.f32.xlu0 %v4097
  %v4099 = vpop.xlane.xlu0 %4098
  %v4102 = vlaneseq
  %v4103 = vshrl.u32 %v4102, 7
  %v4104 = vsub.s32 0, %v4103
  %v4105 = vrot.slane %v4096, %v4104
  %v4106 = vlaneseq
  %v4107 = vshrl.u32 %v4106, 7
  %v4108 = vsub.s32 1, %v4107
  %v4109 = vrot.slane %v4096, %v4108
  %v4110 = vlaneseq
  %v4111 = vshrl.u32 %v4110, 7
  %v4112 = vsub.s32 2, %v4111
  %v4113 = vrot.slane %v4096, %v4112
  %v4114 = vlaneseq
  %v4115 = vshrl.u32 %v4114, 7
  %v4116 = vsub.s32 3, %v4115
  %v4117 = vrot.slane %v4096, %v4116
  %v4118 = vlaneseq
  %v4119 = vshrl.u32 %v4118, 7
  %v4120 = vsub.s32 4, %v4119
  %v4121 = vrot.slane %v4096, %v4120
  %v4122 = vlaneseq
  %v4123 = vshrl.u32 %v4122, 7
  %v4124 = vsub.s32 5, %v4123
  %v4125 = vrot.slane %v4096, %v4124
  %v4126 = vlaneseq
  %v4127 = vshrl.u32 %v4126, 7
  %v4128 = vsub.s32 6, %v4127
  %v4129 = vrot.slane %v4096, %v4128
  %v4130 = vlaneseq
  %v4131 = vshrl.u32 %v4130, 7
  %v4132 = vsub.s32 7, %v4131
  %v4133 = vrot.slane %v4096, %v4132
  %v4134 = vlaneseq
  %v4135 = vshrl.u32 %v4134, 7
  %v4136 = vsub.s32 0, %v4135
  %v4137 = vrot.slane %v4099, %v4136
  %v4138 = vlaneseq
  %v4139 = vshrl.u32 %v4138, 7
  %v4140 = vsub.s32 1, %v4139
  %v4141 = vrot.slane %v4099, %v4140
  %v4142 = vlaneseq
  %v4143 = vshrl.u32 %v4142, 7
  %v4144 = vsub.s32 2, %v4143
  %v4145 = vrot.slane %v4099, %v4144
  %v4146 = vlaneseq
  %v4147 = vshrl.u32 %v4146, 7
  %v4148 = vsub.s32 3, %v4147
  %v4149 = vrot.slane %v4099, %v4148
  %v4150 = vlaneseq
  %v4151 = vshrl.u32 %v4150, 7
  %v4152 = vsub.s32 4, %v4151
  %v4153 = vrot.slane %v4099, %v4152
  %v4154 = vlaneseq
  %v4155 = vshrl.u32 %v4154, 7
  %v4156 = vsub.s32 5, %v4155
  %v4157 = vrot.slane %v4099, %v4156
  %v4158 = vlaneseq
  %v4159 = vshrl.u32 %v4158, 7
  %v4160 = vsub.s32 6, %v4159
  %v4161 = vrot.slane %v4099, %v4160
  %v4162 = vlaneseq
  %v4163 = vshrl.u32 %v4162, 7
  %v4164 = vsub.s32 7, %v4163
  %v4165 = vrot.slane %v4099, %v4164
  %v4182 = vsub.f32 %v3934, %v4105
  %v4183 = vsub.f32 %v3935, %v4109
  %v4184 = vsub.f32 %v3936, %v4113
  %v4185 = vsub.f32 %v3937, %v4117
  %v4186 = vsub.f32 %v3938, %v4121
  %v4187 = vsub.f32 %v3939, %v4125
  %v4188 = vsub.f32 %v3940, %v4129
  %v4189 = vsub.f32 %v3941, %v4133
  %v4190 = vsub.f32 %v3942, %v4137
  %v4191 = vsub.f32 %v3943, %v4141
  %v4192 = vsub.f32 %v3944, %v4145
  %v4193 = vsub.f32 %v3945, %v4149
  %v4194 = vsub.f32 %v3946, %v4153
  %v4195 = vsub.f32 %v3947, %v4157
  %v4196 = vsub.f32 %v3948, %v4161
  %v4197 = vsub.f32 %v3949, %v4165
  %v4198 = vmul.f32 %v4182, 1.442695
  %v4199 = vpow.pop %v4198
  %v4200 = vmul.f32 %v4183, 1.442695
  %v4201 = vpow.pop %v4200
  %v4202 = vmul.f32 %v4184, 1.442695
  %v4203 = vpow.pop %v4202
  %v4204 = vmul.f32 %v4185, 1.442695
  %v4205 = vpow.pop %v4204
  %v4206 = vmul.f32 %v4186, 1.442695
  %v4207 = vpow.pop %v4206
  %v4208 = vmul.f32 %v4187, 1.442695
  %v4209 = vpow.pop %v4208
  %v4210 = vmul.f32 %v4188, 1.442695
  %v4211 = vpow.pop %v4210
  %v4212 = vmul.f32 %v4189, 1.442695
  %v4213 = vpow.pop %v4212
  %v4214 = vmul.f32 %v4190, 1.442695
  %v4215 = vpow.pop %v4214
  %v4216 = vmul.f32 %v4191, 1.442695
  %v4217 = vpow.pop %v4216
  %v4218 = vmul.f32 %v4192, 1.442695
  %v4219 = vpow.pop %v4218
  %v4220 = vmul.f32 %v4193, 1.442695
  %v4221 = vpow.pop %v4220
  %v4222 = vmul.f32 %v4194, 1.442695
  %v4223 = vpow.pop %v4222
  %v4224 = vmul.f32 %v4195, 1.442695
  %v4225 = vpow.pop %v4224
  %v4226 = vmul.f32 %v4196, 1.442695
  %v4227 = vpow.pop %v4226
  %v4228 = vmul.f32 %v4197, 1.442695
  %v4229 = vpow.pop %v4228
  %4246 = vset.pattern.permute.xlu0 0
  %4247 = vperm.xlu0 %4246, %v4199
  %v4248 = vpop.permute.xlu0 %4247
  %4249 = vset.pattern.permute.xlu0 0
  %4250 = vperm.xlu0 %4249, %v4201
  %v4251 = vpop.permute.xlu0 %4250
  %4252 = vset.pattern.permute.xlu0 0
  %4253 = vperm.xlu0 %4252, %v4203
  %v4254 = vpop.permute.xlu0 %4253
  %4255 = vset.pattern.permute.xlu0 0
  %4256 = vperm.xlu0 %4255, %v4205
  %v4257 = vpop.permute.xlu0 %4256
  %4258 = vset.pattern.permute.xlu0 0
  %4259 = vperm.xlu0 %4258, %v4207
  %v4260 = vpop.permute.xlu0 %4259
  %4261 = vset.pattern.permute.xlu0 0
  %4262 = vperm.xlu0 %4261, %v4209
  %v4263 = vpop.permute.xlu0 %4262
  %4264 = vset.pattern.permute.xlu0 0
  %4265 = vperm.xlu0 %4264, %v4211
  %v4266 = vpop.permute.xlu0 %4265
  %4267 = vset.pattern.permute.xlu0 0
  %4268 = vperm.xlu0 %4267, %v4213
  %v4269 = vpop.permute.xlu0 %4268
  %4270 = vset.pattern.permute.xlu0 0
  %4271 = vperm.xlu0 %4270, %v4215
  %v4272 = vpop.permute.xlu0 %4271
  %4273 = vset.pattern.permute.xlu0 0
  %4274 = vperm.xlu0 %4273, %v4217
  %v4275 = vpop.permute.xlu0 %4274
  %4276 = vset.pattern.permute.xlu0 0
  %4277 = vperm.xlu0 %4276, %v4219
  %v4278 = vpop.permute.xlu0 %4277
  %4279 = vset.pattern.permute.xlu0 0
  %4280 = vperm.xlu0 %4279, %v4221
  %v4281 = vpop.permute.xlu0 %4280
  %4282 = vset.pattern.permute.xlu0 0
  %4283 = vperm.xlu0 %4282, %v4223
  %v4284 = vpop.permute.xlu0 %4283
  %4285 = vset.pattern.permute.xlu0 0
  %4286 = vperm.xlu0 %4285, %v4225
  %v4287 = vpop.permute.xlu0 %4286
  %4288 = vset.pattern.permute.xlu0 0
  %4289 = vperm.xlu0 %4288, %v4227
  %v4290 = vpop.permute.xlu0 %4289
  %4291 = vset.pattern.permute.xlu0 0
  %4292 = vperm.xlu0 %4291, %v4229
  %v4293 = vpop.permute.xlu0 %4292
  %v4294 = vlaneseq
  %v4295 = vshrl.u32 %v4294, 7
  %v4296 = vsub.s32 %v53, %v4295
  %v4297 = vrot.slane %v4248, %v4296
  %v4298 = vlaneseq
  %v4299 = vshrl.u32 %v4298, 7
  %v4300 = vsub.s32 %v53, %v4299
  %v4301 = vrot.slane %v4251, %v4300
  %v4302 = vlaneseq
  %v4303 = vshrl.u32 %v4302, 7
  %v4304 = vsub.s32 %v53, %v4303
  %v4305 = vrot.slane %v4254, %v4304
  %v4306 = vlaneseq
  %v4307 = vshrl.u32 %v4306, 7
  %v4308 = vsub.s32 %v53, %v4307
  %v4309 = vrot.slane %v4257, %v4308
  %v4310 = vlaneseq
  %v4311 = vshrl.u32 %v4310, 7
  %v4312 = vsub.s32 %v53, %v4311
  %v4313 = vrot.slane %v4260, %v4312
  %v4314 = vlaneseq
  %v4315 = vshrl.u32 %v4314, 7
  %v4316 = vsub.s32 %v53, %v4315
  %v4317 = vrot.slane %v4263, %v4316
  %v4318 = vlaneseq
  %v4319 = vshrl.u32 %v4318, 7
  %v4320 = vsub.s32 %v53, %v4319
  %v4321 = vrot.slane %v4266, %v4320
  %v4322 = vlaneseq
  %v4323 = vshrl.u32 %v4322, 7
  %v4324 = vsub.s32 %v53, %v4323
  %v4325 = vrot.slane %v4269, %v4324
  %v4326 = vlaneseq
  %v4327 = vshrl.u32 %v4326, 7
  %v4328 = vsub.s32 %v53, %v4327
  %v4329 = vrot.slane %v4272, %v4328
  %v4330 = vlaneseq
  %v4331 = vshrl.u32 %v4330, 7
  %v4332 = vsub.s32 %v53, %v4331
  %v4333 = vrot.slane %v4275, %v4332
  %v4334 = vlaneseq
  %v4335 = vshrl.u32 %v4334, 7
  %v4336 = vsub.s32 %v53, %v4335
  %v4337 = vrot.slane %v4278, %v4336
  %v4338 = vlaneseq
  %v4339 = vshrl.u32 %v4338, 7
  %v4340 = vsub.s32 %v53, %v4339
  %v4341 = vrot.slane %v4281, %v4340
  %v4342 = vlaneseq
  %v4343 = vshrl.u32 %v4342, 7
  %v4344 = vsub.s32 %v53, %v4343
  %v4345 = vrot.slane %v4284, %v4344
  %v4346 = vlaneseq
  %v4347 = vshrl.u32 %v4346, 7
  %v4348 = vsub.s32 %v53, %v4347
  %v4349 = vrot.slane %v4287, %v4348
  %v4350 = vlaneseq
  %v4351 = vshrl.u32 %v4350, 7
  %v4352 = vsub.s32 %v53, %v4351
  %v4353 = vrot.slane %v4290, %v4352
  %v4354 = vlaneseq
  %v4355 = vshrl.u32 %v4354, 7
  %v4356 = vsub.s32 %v53, %v4355
  %v4357 = vrot.slane %v4293, %v4356
  %v4358 = vsel %vm2658, %v4301, %v4297
  %v4359 = vsel %vm2660, %v4305, %v4358
  %v4360 = vsel %vm2662, %v4309, %v4359
  %v4361 = vsel %vm2664, %v4313, %v4360
  %v4362 = vsel %vm2666, %v4317, %v4361
  %v4363 = vsel %vm2668, %v4321, %v4362
  %v4364 = vsel %vm2670, %v4325, %v4363
  %v4365 = vsel %vm2658, %v4333, %v4329
  %v4366 = vsel %vm2660, %v4337, %v4365
  %v4367 = vsel %vm2662, %v4341, %v4366
  %v4368 = vsel %vm2664, %v4345, %v4367
  %v4369 = vsel %vm2666, %v4349, %v4368
  %v4370 = vsel %vm2668, %v4353, %v4369
  %v4371 = vsel %vm2670, %v4357, %v4370
  %v4374 = vsel %vm348, %v4364, 0.0
  %4375 = vadd.xlane.f32.xlu0 %v4374
  %v4376 = vpop.xlane.xlu0 %4375
  %v4377 = vsel %vm348, %v4371, 0.0
  %4378 = vadd.xlane.f32.xlu0 %v4377
  %v4379 = vpop.xlane.xlu0 %4378
  %v4380 = vlog2.pop %v4376
  %v4381 = vmul.f32 %v4380, 0.6931472
  %v4382 = vlog2.pop %v4379
  %v4383 = vmul.f32 %v4382, 0.6931472
  %v4384 = vadd.f32 %v4096, %v4381
  %v4385 = vadd.f32 %v4099, %v4383
  %v4387 = vlaneseq
  %v4388 = vshrl.u32 %v4387, 7
  %v4389 = vsub.s32 0, %v4388
  %v4390 = vrot.slane %v2172, %v4389
  %4392 = vbcast.lane.b32.xlu0 %v4390, 256
  %v4393 = vpop.permute.xlu0 %4392
  %v4394 = vlaneseq
  %v4395 = vshrl.u32 %v4394, 7
  %v4396 = vsub.s32 1, %v4395
  %v4397 = vrot.slane %v2172, %v4396
  %4399 = vbcast.lane.b32.xlu0 %v4397, 256
  %v4400 = vpop.permute.xlu0 %4399
  %v4403 = vadd.f32 %v4384, %v4393
  %v4404 = vadd.f32 %v4385, %v4400
  %v4405 = vadd.f32 %v4403, %v2456
  %v4406 = vadd.f32 %v4403, %v2463
  %v4407 = vadd.f32 %v4403, %v2470
  %v4408 = vadd.f32 %v4403, %v2477
  %v4409 = vadd.f32 %v4403, %v2484
  %v4410 = vadd.f32 %v4403, %v2491
  %v4411 = vadd.f32 %v4403, %v2498
  %v4412 = vadd.f32 %v4403, %v2505
  %v4413 = vadd.f32 %v4404, %v2456
  %v4414 = vadd.f32 %v4404, %v2463
  %v4415 = vadd.f32 %v4404, %v2470
  %v4416 = vadd.f32 %v4404, %v2477
  %v4417 = vadd.f32 %v4404, %v2484
  %v4418 = vadd.f32 %v4404, %v2491
  %v4419 = vadd.f32 %v4404, %v2498
  %v4420 = vadd.f32 %v4404, %v2505
  %4437 = vset.pattern.permute.xlu0 0
  %4438 = vperm.xlu0 %4437, %v4405
  %v4439 = vpop.permute.xlu0 %4438
  %4440 = vset.pattern.permute.xlu0 0
  %4441 = vperm.xlu0 %4440, %v4406
  %v4442 = vpop.permute.xlu0 %4441
  %4443 = vset.pattern.permute.xlu0 0
  %4444 = vperm.xlu0 %4443, %v4407
  %v4445 = vpop.permute.xlu0 %4444
  %4446 = vset.pattern.permute.xlu0 0
  %4447 = vperm.xlu0 %4446, %v4408
  %v4448 = vpop.permute.xlu0 %4447
  %4449 = vset.pattern.permute.xlu0 0
  %4450 = vperm.xlu0 %4449, %v4409
  %v4451 = vpop.permute.xlu0 %4450
  %4452 = vset.pattern.permute.xlu0 0
  %4453 = vperm.xlu0 %4452, %v4410
  %v4454 = vpop.permute.xlu0 %4453
  %4455 = vset.pattern.permute.xlu0 0
  %4456 = vperm.xlu0 %4455, %v4411
  %v4457 = vpop.permute.xlu0 %4456
  %4458 = vset.pattern.permute.xlu0 0
  %4459 = vperm.xlu0 %4458, %v4412
  %v4460 = vpop.permute.xlu0 %4459
  %4461 = vset.pattern.permute.xlu0 0
  %4462 = vperm.xlu0 %4461, %v4413
  %v4463 = vpop.permute.xlu0 %4462
  %4464 = vset.pattern.permute.xlu0 0
  %4465 = vperm.xlu0 %4464, %v4414
  %v4466 = vpop.permute.xlu0 %4465
  %4467 = vset.pattern.permute.xlu0 0
  %4468 = vperm.xlu0 %4467, %v4415
  %v4469 = vpop.permute.xlu0 %4468
  %4470 = vset.pattern.permute.xlu0 0
  %4471 = vperm.xlu0 %4470, %v4416
  %v4472 = vpop.permute.xlu0 %4471
  %4473 = vset.pattern.permute.xlu0 0
  %4474 = vperm.xlu0 %4473, %v4417
  %v4475 = vpop.permute.xlu0 %4474
  %4476 = vset.pattern.permute.xlu0 0
  %4477 = vperm.xlu0 %4476, %v4418
  %v4478 = vpop.permute.xlu0 %4477
  %4479 = vset.pattern.permute.xlu0 0
  %4480 = vperm.xlu0 %4479, %v4419
  %v4481 = vpop.permute.xlu0 %4480
  %4482 = vset.pattern.permute.xlu0 0
  %4483 = vperm.xlu0 %4482, %v4420
  %v4484 = vpop.permute.xlu0 %4483
  %v4485 = vlaneseq
  %v4486 = vshrl.u32 %v4485, 7
  %v4487 = vsub.s32 %v53, %v4486
  %v4488 = vrot.slane %v4439, %v4487
  %v4489 = vlaneseq
  %v4490 = vshrl.u32 %v4489, 7
  %v4491 = vsub.s32 %v53, %v4490
  %v4492 = vrot.slane %v4442, %v4491
  %v4493 = vlaneseq
  %v4494 = vshrl.u32 %v4493, 7
  %v4495 = vsub.s32 %v53, %v4494
  %v4496 = vrot.slane %v4445, %v4495
  %v4497 = vlaneseq
  %v4498 = vshrl.u32 %v4497, 7
  %v4499 = vsub.s32 %v53, %v4498
  %v4500 = vrot.slane %v4448, %v4499
  %v4501 = vlaneseq
  %v4502 = vshrl.u32 %v4501, 7
  %v4503 = vsub.s32 %v53, %v4502
  %v4504 = vrot.slane %v4451, %v4503
  %v4505 = vlaneseq
  %v4506 = vshrl.u32 %v4505, 7
  %v4507 = vsub.s32 %v53, %v4506
  %v4508 = vrot.slane %v4454, %v4507
  %v4509 = vlaneseq
  %v4510 = vshrl.u32 %v4509, 7
  %v4511 = vsub.s32 %v53, %v4510
  %v4512 = vrot.slane %v4457, %v4511
  %v4513 = vlaneseq
  %v4514 = vshrl.u32 %v4513, 7
  %v4515 = vsub.s32 %v53, %v4514
  %v4516 = vrot.slane %v4460, %v4515
  %v4517 = vlaneseq
  %v4518 = vshrl.u32 %v4517, 7
  %v4519 = vsub.s32 %v53, %v4518
  %v4520 = vrot.slane %v4463, %v4519
  %v4521 = vlaneseq
  %v4522 = vshrl.u32 %v4521, 7
  %v4523 = vsub.s32 %v53, %v4522
  %v4524 = vrot.slane %v4466, %v4523
  %v4525 = vlaneseq
  %v4526 = vshrl.u32 %v4525, 7
  %v4527 = vsub.s32 %v53, %v4526
  %v4528 = vrot.slane %v4469, %v4527
  %v4529 = vlaneseq
  %v4530 = vshrl.u32 %v4529, 7
  %v4531 = vsub.s32 %v53, %v4530
  %v4532 = vrot.slane %v4472, %v4531
  %v4533 = vlaneseq
  %v4534 = vshrl.u32 %v4533, 7
  %v4535 = vsub.s32 %v53, %v4534
  %v4536 = vrot.slane %v4475, %v4535
  %v4537 = vlaneseq
  %v4538 = vshrl.u32 %v4537, 7
  %v4539 = vsub.s32 %v53, %v4538
  %v4540 = vrot.slane %v4478, %v4539
  %v4541 = vlaneseq
  %v4542 = vshrl.u32 %v4541, 7
  %v4543 = vsub.s32 %v53, %v4542
  %v4544 = vrot.slane %v4481, %v4543
  %v4545 = vlaneseq
  %v4546 = vshrl.u32 %v4545, 7
  %v4547 = vsub.s32 %v53, %v4546
  %v4548 = vrot.slane %v4484, %v4547
  %v4549 = vsel %vm2658, %v4492, %v4488
  %v4550 = vsel %vm2660, %v4496, %v4549
  %v4551 = vsel %vm2662, %v4500, %v4550
  %v4552 = vsel %vm2664, %v4504, %v4551
  %v4553 = vsel %vm2666, %v4508, %v4552
  %v4554 = vsel %vm2668, %v4512, %v4553
  %v4555 = vsel %vm2670, %v4516, %v4554
  %v4556 = vsel %vm2658, %v4524, %v4520
  %v4557 = vsel %vm2660, %v4528, %v4556
  %v4558 = vsel %vm2662, %v4532, %v4557
  %v4559 = vsel %vm2664, %v4536, %v4558
  %v4560 = vsel %vm2666, %v4540, %v4559
  %v4561 = vsel %vm2668, %v4544, %v4560
  %v4562 = vsel %vm2670, %v4548, %v4561
  %v4565 = vsel %vm348, %v4555, -inf
  %4566 = vmax.xlane.f32.xlu0 %v4565
  %v4567 = vpop.xlane.xlu0 %4566
  %v4568 = vsel %vm348, %v4562, -inf
  %4569 = vmax.xlane.f32.xlu0 %v4568
  %v4570 = vpop.xlane.xlu0 %4569
  %v4573 = vlaneseq
  %v4574 = vshrl.u32 %v4573, 7
  %v4575 = vsub.s32 0, %v4574
  %v4576 = vrot.slane %v4567, %v4575
  %v4577 = vlaneseq
  %v4578 = vshrl.u32 %v4577, 7
  %v4579 = vsub.s32 1, %v4578
  %v4580 = vrot.slane %v4567, %v4579
  %v4581 = vlaneseq
  %v4582 = vshrl.u32 %v4581, 7
  %v4583 = vsub.s32 2, %v4582
  %v4584 = vrot.slane %v4567, %v4583
  %v4585 = vlaneseq
  %v4586 = vshrl.u32 %v4585, 7
  %v4587 = vsub.s32 3, %v4586
  %v4588 = vrot.slane %v4567, %v4587
  %v4589 = vlaneseq
  %v4590 = vshrl.u32 %v4589, 7
  %v4591 = vsub.s32 4, %v4590
  %v4592 = vrot.slane %v4567, %v4591
  %v4593 = vlaneseq
  %v4594 = vshrl.u32 %v4593, 7
  %v4595 = vsub.s32 5, %v4594
  %v4596 = vrot.slane %v4567, %v4595
  %v4597 = vlaneseq
  %v4598 = vshrl.u32 %v4597, 7
  %v4599 = vsub.s32 6, %v4598
  %v4600 = vrot.slane %v4567, %v4599
  %v4601 = vlaneseq
  %v4602 = vshrl.u32 %v4601, 7
  %v4603 = vsub.s32 7, %v4602
  %v4604 = vrot.slane %v4567, %v4603
  %v4605 = vlaneseq
  %v4606 = vshrl.u32 %v4605, 7
  %v4607 = vsub.s32 0, %v4606
  %v4608 = vrot.slane %v4570, %v4607
  %v4609 = vlaneseq
  %v4610 = vshrl.u32 %v4609, 7
  %v4611 = vsub.s32 1, %v4610
  %v4612 = vrot.slane %v4570, %v4611
  %v4613 = vlaneseq
  %v4614 = vshrl.u32 %v4613, 7
  %v4615 = vsub.s32 2, %v4614
  %v4616 = vrot.slane %v4570, %v4615
  %v4617 = vlaneseq
  %v4618 = vshrl.u32 %v4617, 7
  %v4619 = vsub.s32 3, %v4618
  %v4620 = vrot.slane %v4570, %v4619
  %v4621 = vlaneseq
  %v4622 = vshrl.u32 %v4621, 7
  %v4623 = vsub.s32 4, %v4622
  %v4624 = vrot.slane %v4570, %v4623
  %v4625 = vlaneseq
  %v4626 = vshrl.u32 %v4625, 7
  %v4627 = vsub.s32 5, %v4626
  %v4628 = vrot.slane %v4570, %v4627
  %v4629 = vlaneseq
  %v4630 = vshrl.u32 %v4629, 7
  %v4631 = vsub.s32 6, %v4630
  %v4632 = vrot.slane %v4570, %v4631
  %v4633 = vlaneseq
  %v4634 = vshrl.u32 %v4633, 7
  %v4635 = vsub.s32 7, %v4634
  %v4636 = vrot.slane %v4570, %v4635
  %v4653 = vsub.f32 %v4405, %v4576
  %v4654 = vsub.f32 %v4406, %v4580
  %v4655 = vsub.f32 %v4407, %v4584
  %v4656 = vsub.f32 %v4408, %v4588
  %v4657 = vsub.f32 %v4409, %v4592
  %v4658 = vsub.f32 %v4410, %v4596
  %v4659 = vsub.f32 %v4411, %v4600
  %v4660 = vsub.f32 %v4412, %v4604
  %v4661 = vsub.f32 %v4413, %v4608
  %v4662 = vsub.f32 %v4414, %v4612
  %v4663 = vsub.f32 %v4415, %v4616
  %v4664 = vsub.f32 %v4416, %v4620
  %v4665 = vsub.f32 %v4417, %v4624
  %v4666 = vsub.f32 %v4418, %v4628
  %v4667 = vsub.f32 %v4419, %v4632
  %v4668 = vsub.f32 %v4420, %v4636
  %v4669 = vmul.f32 %v4653, 1.442695
  %v4670 = vpow.pop %v4669
  %v4671 = vmul.f32 %v4654, 1.442695
  %v4672 = vpow.pop %v4671
  %v4673 = vmul.f32 %v4655, 1.442695
  %v4674 = vpow.pop %v4673
  %v4675 = vmul.f32 %v4656, 1.442695
  %v4676 = vpow.pop %v4675
  %v4677 = vmul.f32 %v4657, 1.442695
  %v4678 = vpow.pop %v4677
  %v4679 = vmul.f32 %v4658, 1.442695
  %v4680 = vpow.pop %v4679
  %v4681 = vmul.f32 %v4659, 1.442695
  %v4682 = vpow.pop %v4681
  %v4683 = vmul.f32 %v4660, 1.442695
  %v4684 = vpow.pop %v4683
  %v4685 = vmul.f32 %v4661, 1.442695
  %v4686 = vpow.pop %v4685
  %v4687 = vmul.f32 %v4662, 1.442695
  %v4688 = vpow.pop %v4687
  %v4689 = vmul.f32 %v4663, 1.442695
  %v4690 = vpow.pop %v4689
  %v4691 = vmul.f32 %v4664, 1.442695
  %v4692 = vpow.pop %v4691
  %v4693 = vmul.f32 %v4665, 1.442695
  %v4694 = vpow.pop %v4693
  %v4695 = vmul.f32 %v4666, 1.442695
  %v4696 = vpow.pop %v4695
  %v4697 = vmul.f32 %v4667, 1.442695
  %v4698 = vpow.pop %v4697
  %v4699 = vmul.f32 %v4668, 1.442695
  %v4700 = vpow.pop %v4699
  %4717 = vset.pattern.permute.xlu0 0
  %4718 = vperm.xlu0 %4717, %v4670
  %v4719 = vpop.permute.xlu0 %4718
  %4720 = vset.pattern.permute.xlu0 0
  %4721 = vperm.xlu0 %4720, %v4672
  %v4722 = vpop.permute.xlu0 %4721
  %4723 = vset.pattern.permute.xlu0 0
  %4724 = vperm.xlu0 %4723, %v4674
  %v4725 = vpop.permute.xlu0 %4724
  %4726 = vset.pattern.permute.xlu0 0
  %4727 = vperm.xlu0 %4726, %v4676
  %v4728 = vpop.permute.xlu0 %4727
  %4729 = vset.pattern.permute.xlu0 0
  %4730 = vperm.xlu0 %4729, %v4678
  %v4731 = vpop.permute.xlu0 %4730
  %4732 = vset.pattern.permute.xlu0 0
  %4733 = vperm.xlu0 %4732, %v4680
  %v4734 = vpop.permute.xlu0 %4733
  %4735 = vset.pattern.permute.xlu0 0
  %4736 = vperm.xlu0 %4735, %v4682
  %v4737 = vpop.permute.xlu0 %4736
  %4738 = vset.pattern.permute.xlu0 0
  %4739 = vperm.xlu0 %4738, %v4684
  %v4740 = vpop.permute.xlu0 %4739
  %4741 = vset.pattern.permute.xlu0 0
  %4742 = vperm.xlu0 %4741, %v4686
  %v4743 = vpop.permute.xlu0 %4742
  %4744 = vset.pattern.permute.xlu0 0
  %4745 = vperm.xlu0 %4744, %v4688
  %v4746 = vpop.permute.xlu0 %4745
  %4747 = vset.pattern.permute.xlu0 0
  %4748 = vperm.xlu0 %4747, %v4690
  %v4749 = vpop.permute.xlu0 %4748
  %4750 = vset.pattern.permute.xlu0 0
  %4751 = vperm.xlu0 %4750, %v4692
  %v4752 = vpop.permute.xlu0 %4751
  %4753 = vset.pattern.permute.xlu0 0
  %4754 = vperm.xlu0 %4753, %v4694
  %v4755 = vpop.permute.xlu0 %4754
  %4756 = vset.pattern.permute.xlu0 0
  %4757 = vperm.xlu0 %4756, %v4696
  %v4758 = vpop.permute.xlu0 %4757
  %4759 = vset.pattern.permute.xlu0 0
  %4760 = vperm.xlu0 %4759, %v4698
  %v4761 = vpop.permute.xlu0 %4760
  %4762 = vset.pattern.permute.xlu0 0
  %4763 = vperm.xlu0 %4762, %v4700
  %v4764 = vpop.permute.xlu0 %4763
  %v4765 = vlaneseq
  %v4766 = vshrl.u32 %v4765, 7
  %v4767 = vsub.s32 %v53, %v4766
  %v4768 = vrot.slane %v4719, %v4767
  %v4769 = vlaneseq
  %v4770 = vshrl.u32 %v4769, 7
  %v4771 = vsub.s32 %v53, %v4770
  %v4772 = vrot.slane %v4722, %v4771
  %v4773 = vlaneseq
  %v4774 = vshrl.u32 %v4773, 7
  %v4775 = vsub.s32 %v53, %v4774
  %v4776 = vrot.slane %v4725, %v4775
  %v4777 = vlaneseq
  %v4778 = vshrl.u32 %v4777, 7
  %v4779 = vsub.s32 %v53, %v4778
  %v4780 = vrot.slane %v4728, %v4779
  %v4781 = vlaneseq
  %v4782 = vshrl.u32 %v4781, 7
  %v4783 = vsub.s32 %v53, %v4782
  %v4784 = vrot.slane %v4731, %v4783
  %v4785 = vlaneseq
  %v4786 = vshrl.u32 %v4785, 7
  %v4787 = vsub.s32 %v53, %v4786
  %v4788 = vrot.slane %v4734, %v4787
  %v4789 = vlaneseq
  %v4790 = vshrl.u32 %v4789, 7
  %v4791 = vsub.s32 %v53, %v4790
  %v4792 = vrot.slane %v4737, %v4791
  %v4793 = vlaneseq
  %v4794 = vshrl.u32 %v4793, 7
  %v4795 = vsub.s32 %v53, %v4794
  %v4796 = vrot.slane %v4740, %v4795
  %v4797 = vlaneseq
  %v4798 = vshrl.u32 %v4797, 7
  %v4799 = vsub.s32 %v53, %v4798
  %v4800 = vrot.slane %v4743, %v4799
  %v4801 = vlaneseq
  %v4802 = vshrl.u32 %v4801, 7
  %v4803 = vsub.s32 %v53, %v4802
  %v4804 = vrot.slane %v4746, %v4803
  %v4805 = vlaneseq
  %v4806 = vshrl.u32 %v4805, 7
  %v4807 = vsub.s32 %v53, %v4806
  %v4808 = vrot.slane %v4749, %v4807
  %v4809 = vlaneseq
  %v4810 = vshrl.u32 %v4809, 7
  %v4811 = vsub.s32 %v53, %v4810
  %v4812 = vrot.slane %v4752, %v4811
  %v4813 = vlaneseq
  %v4814 = vshrl.u32 %v4813, 7
  %v4815 = vsub.s32 %v53, %v4814
  %v4816 = vrot.slane %v4755, %v4815
  %v4817 = vlaneseq
  %v4818 = vshrl.u32 %v4817, 7
  %v4819 = vsub.s32 %v53, %v4818
  %v4820 = vrot.slane %v4758, %v4819
  %v4821 = vlaneseq
  %v4822 = vshrl.u32 %v4821, 7
  %v4823 = vsub.s32 %v53, %v4822
  %v4824 = vrot.slane %v4761, %v4823
  %v4825 = vlaneseq
  %v4826 = vshrl.u32 %v4825, 7
  %v4827 = vsub.s32 %v53, %v4826
  %v4828 = vrot.slane %v4764, %v4827
  %v4829 = vsel %vm2658, %v4772, %v4768
  %v4830 = vsel %vm2660, %v4776, %v4829
  %v4831 = vsel %vm2662, %v4780, %v4830
  %v4832 = vsel %vm2664, %v4784, %v4831
  %v4833 = vsel %vm2666, %v4788, %v4832
  %v4834 = vsel %vm2668, %v4792, %v4833
  %v4835 = vsel %vm2670, %v4796, %v4834
  %v4836 = vsel %vm2658, %v4804, %v4800
  %v4837 = vsel %vm2660, %v4808, %v4836
  %v4838 = vsel %vm2662, %v4812, %v4837
  %v4839 = vsel %vm2664, %v4816, %v4838
  %v4840 = vsel %vm2666, %v4820, %v4839
  %v4841 = vsel %vm2668, %v4824, %v4840
  %v4842 = vsel %vm2670, %v4828, %v4841
  %v4845 = vsel %vm348, %v4835, 0.0
  %4846 = vadd.xlane.f32.xlu0 %v4845
  %v4847 = vpop.xlane.xlu0 %4846
  %v4848 = vsel %vm348, %v4842, 0.0
  %4849 = vadd.xlane.f32.xlu0 %v4848
  %v4850 = vpop.xlane.xlu0 %4849
  %v4851 = vlog2.pop %v4847
  %v4852 = vmul.f32 %v4851, 0.6931472
  %v4853 = vlog2.pop %v4850
  %v4854 = vmul.f32 %v4853, 0.6931472
  %v4855 = vadd.f32 %v4567, %v4852
  %v4856 = vadd.f32 %v4570, %v4854
  %v4858 = vlaneseq
  %v4859 = vshrl.u32 %v4858, 7
  %v4860 = vsub.s32 0, %v4859
  %v4861 = vrot.slane %v2177, %v4860
  %4863 = vbcast.lane.b32.xlu0 %v4861, 256
  %v4864 = vpop.permute.xlu0 %4863
  %v4865 = vlaneseq
  %v4866 = vshrl.u32 %v4865, 7
  %v4867 = vsub.s32 1, %v4866
  %v4868 = vrot.slane %v2177, %v4867
  %4870 = vbcast.lane.b32.xlu0 %v4868, 256
  %v4871 = vpop.permute.xlu0 %4870
  %v4874 = vadd.f32 %v4855, %v4864
  %v4875 = vadd.f32 %v4856, %v4871
  %v4876 = vadd.f32 %v4874, %v2456
  %v4877 = vadd.f32 %v4874, %v2463
  %v4878 = vadd.f32 %v4874, %v2470
  %v4879 = vadd.f32 %v4874, %v2477
  %v4880 = vadd.f32 %v4874, %v2484
  %v4881 = vadd.f32 %v4874, %v2491
  %v4882 = vadd.f32 %v4874, %v2498
  %v4883 = vadd.f32 %v4874, %v2505
  %v4884 = vadd.f32 %v4875, %v2456
  %v4885 = vadd.f32 %v4875, %v2463
  %v4886 = vadd.f32 %v4875, %v2470
  %v4887 = vadd.f32 %v4875, %v2477
  %v4888 = vadd.f32 %v4875, %v2484
  %v4889 = vadd.f32 %v4875, %v2491
  %v4890 = vadd.f32 %v4875, %v2498
  %v4891 = vadd.f32 %v4875, %v2505
  %4908 = vset.pattern.permute.xlu0 0
  %4909 = vperm.xlu0 %4908, %v4876
  %v4910 = vpop.permute.xlu0 %4909
  %4911 = vset.pattern.permute.xlu0 0
  %4912 = vperm.xlu0 %4911, %v4877
  %v4913 = vpop.permute.xlu0 %4912
  %4914 = vset.pattern.permute.xlu0 0
  %4915 = vperm.xlu0 %4914, %v4878
  %v4916 = vpop.permute.xlu0 %4915
  %4917 = vset.pattern.permute.xlu0 0
  %4918 = vperm.xlu0 %4917, %v4879
  %v4919 = vpop.permute.xlu0 %4918
  %4920 = vset.pattern.permute.xlu0 0
  %4921 = vperm.xlu0 %4920, %v4880
  %v4922 = vpop.permute.xlu0 %4921
  %4923 = vset.pattern.permute.xlu0 0
  %4924 = vperm.xlu0 %4923, %v4881
  %v4925 = vpop.permute.xlu0 %4924
  %4926 = vset.pattern.permute.xlu0 0
  %4927 = vperm.xlu0 %4926, %v4882
  %v4928 = vpop.permute.xlu0 %4927
  %4929 = vset.pattern.permute.xlu0 0
  %4930 = vperm.xlu0 %4929, %v4883
  %v4931 = vpop.permute.xlu0 %4930
  %4932 = vset.pattern.permute.xlu0 0
  %4933 = vperm.xlu0 %4932, %v4884
  %v4934 = vpop.permute.xlu0 %4933
  %4935 = vset.pattern.permute.xlu0 0
  %4936 = vperm.xlu0 %4935, %v4885
  %v4937 = vpop.permute.xlu0 %4936
  %4938 = vset.pattern.permute.xlu0 0
  %4939 = vperm.xlu0 %4938, %v4886
  %v4940 = vpop.permute.xlu0 %4939
  %4941 = vset.pattern.permute.xlu0 0
  %4942 = vperm.xlu0 %4941, %v4887
  %v4943 = vpop.permute.xlu0 %4942
  %4944 = vset.pattern.permute.xlu0 0
  %4945 = vperm.xlu0 %4944, %v4888
  %v4946 = vpop.permute.xlu0 %4945
  %4947 = vset.pattern.permute.xlu0 0
  %4948 = vperm.xlu0 %4947, %v4889
  %v4949 = vpop.permute.xlu0 %4948
  %4950 = vset.pattern.permute.xlu0 0
  %4951 = vperm.xlu0 %4950, %v4890
  %v4952 = vpop.permute.xlu0 %4951
  %4953 = vset.pattern.permute.xlu0 0
  %4954 = vperm.xlu0 %4953, %v4891
  %v4955 = vpop.permute.xlu0 %4954
  %v4956 = vlaneseq
  %v4957 = vshrl.u32 %v4956, 7
  %v4958 = vsub.s32 %v53, %v4957
  %v4959 = vrot.slane %v4910, %v4958
  %v4960 = vlaneseq
  %v4961 = vshrl.u32 %v4960, 7
  %v4962 = vsub.s32 %v53, %v4961
  %v4963 = vrot.slane %v4913, %v4962
  %v4964 = vlaneseq
  %v4965 = vshrl.u32 %v4964, 7
  %v4966 = vsub.s32 %v53, %v4965
  %v4967 = vrot.slane %v4916, %v4966
  %v4968 = vlaneseq
  %v4969 = vshrl.u32 %v4968, 7
  %v4970 = vsub.s32 %v53, %v4969
  %v4971 = vrot.slane %v4919, %v4970
  %v4972 = vlaneseq
  %v4973 = vshrl.u32 %v4972, 7
  %v4974 = vsub.s32 %v53, %v4973
  %v4975 = vrot.slane %v4922, %v4974
  %v4976 = vlaneseq
  %v4977 = vshrl.u32 %v4976, 7
  %v4978 = vsub.s32 %v53, %v4977
  %v4979 = vrot.slane %v4925, %v4978
  %v4980 = vlaneseq
  %v4981 = vshrl.u32 %v4980, 7
  %v4982 = vsub.s32 %v53, %v4981
  %v4983 = vrot.slane %v4928, %v4982
  %v4984 = vlaneseq
  %v4985 = vshrl.u32 %v4984, 7
  %v4986 = vsub.s32 %v53, %v4985
  %v4987 = vrot.slane %v4931, %v4986
  %v4988 = vlaneseq
  %v4989 = vshrl.u32 %v4988, 7
  %v4990 = vsub.s32 %v53, %v4989
  %v4991 = vrot.slane %v4934, %v4990
  %v4992 = vlaneseq
  %v4993 = vshrl.u32 %v4992, 7
  %v4994 = vsub.s32 %v53, %v4993
  %v4995 = vrot.slane %v4937, %v4994
  %v4996 = vlaneseq
  %v4997 = vshrl.u32 %v4996, 7
  %v4998 = vsub.s32 %v53, %v4997
  %v4999 = vrot.slane %v4940, %v4998
  %v5000 = vlaneseq
  %v5001 = vshrl.u32 %v5000, 7
  %v5002 = vsub.s32 %v53, %v5001
  %v5003 = vrot.slane %v4943, %v5002
  %v5004 = vlaneseq
  %v5005 = vshrl.u32 %v5004, 7
  %v5006 = vsub.s32 %v53, %v5005
  %v5007 = vrot.slane %v4946, %v5006
  %v5008 = vlaneseq
  %v5009 = vshrl.u32 %v5008, 7
  %v5010 = vsub.s32 %v53, %v5009
  %v5011 = vrot.slane %v4949, %v5010
  %v5012 = vlaneseq
  %v5013 = vshrl.u32 %v5012, 7
  %v5014 = vsub.s32 %v53, %v5013
  %v5015 = vrot.slane %v4952, %v5014
  %v5016 = vlaneseq
  %v5017 = vshrl.u32 %v5016, 7
  %v5018 = vsub.s32 %v53, %v5017
  %v5019 = vrot.slane %v4955, %v5018
  %v5020 = vsel %vm2658, %v4963, %v4959
  %v5021 = vsel %vm2660, %v4967, %v5020
  %v5022 = vsel %vm2662, %v4971, %v5021
  %v5023 = vsel %vm2664, %v4975, %v5022
  %v5024 = vsel %vm2666, %v4979, %v5023
  %v5025 = vsel %vm2668, %v4983, %v5024
  %v5026 = vsel %vm2670, %v4987, %v5025
  %v5027 = vsel %vm2658, %v4995, %v4991
  %v5028 = vsel %vm2660, %v4999, %v5027
  %v5029 = vsel %vm2662, %v5003, %v5028
  %v5030 = vsel %vm2664, %v5007, %v5029
  %v5031 = vsel %vm2666, %v5011, %v5030
  %v5032 = vsel %vm2668, %v5015, %v5031
  %v5033 = vsel %vm2670, %v5019, %v5032
  %v5036 = vsel %vm348, %v5026, -inf
  %5037 = vmax.xlane.f32.xlu0 %v5036
  %v5038 = vpop.xlane.xlu0 %5037
  %v5039 = vsel %vm348, %v5033, -inf
  %5040 = vmax.xlane.f32.xlu0 %v5039
  %v5041 = vpop.xlane.xlu0 %5040
  %v5044 = vlaneseq
  %v5045 = vshrl.u32 %v5044, 7
  %v5046 = vsub.s32 0, %v5045
  %v5047 = vrot.slane %v5038, %v5046
  %v5048 = vlaneseq
  %v5049 = vshrl.u32 %v5048, 7
  %v5050 = vsub.s32 1, %v5049
  %v5051 = vrot.slane %v5038, %v5050
  %v5052 = vlaneseq
  %v5053 = vshrl.u32 %v5052, 7
  %v5054 = vsub.s32 2, %v5053
  %v5055 = vrot.slane %v5038, %v5054
  %v5056 = vlaneseq
  %v5057 = vshrl.u32 %v5056, 7
  %v5058 = vsub.s32 3, %v5057
  %v5059 = vrot.slane %v5038, %v5058
  %v5060 = vlaneseq
  %v5061 = vshrl.u32 %v5060, 7
  %v5062 = vsub.s32 4, %v5061
  %v5063 = vrot.slane %v5038, %v5062
  %v5064 = vlaneseq
  %v5065 = vshrl.u32 %v5064, 7
  %v5066 = vsub.s32 5, %v5065
  %v5067 = vrot.slane %v5038, %v5066
  %v5068 = vlaneseq
  %v5069 = vshrl.u32 %v5068, 7
  %v5070 = vsub.s32 6, %v5069
  %v5071 = vrot.slane %v5038, %v5070
  %v5072 = vlaneseq
  %v5073 = vshrl.u32 %v5072, 7
  %v5074 = vsub.s32 7, %v5073
  %v5075 = vrot.slane %v5038, %v5074
  %v5076 = vlaneseq
  %v5077 = vshrl.u32 %v5076, 7
  %v5078 = vsub.s32 0, %v5077
  %v5079 = vrot.slane %v5041, %v5078
  %v5080 = vlaneseq
  %v5081 = vshrl.u32 %v5080, 7
  %v5082 = vsub.s32 1, %v5081
  %v5083 = vrot.slane %v5041, %v5082
  %v5084 = vlaneseq
  %v5085 = vshrl.u32 %v5084, 7
  %v5086 = vsub.s32 2, %v5085
  %v5087 = vrot.slane %v5041, %v5086
  %v5088 = vlaneseq
  %v5089 = vshrl.u32 %v5088, 7
  %v5090 = vsub.s32 3, %v5089
  %v5091 = vrot.slane %v5041, %v5090
  %v5092 = vlaneseq
  %v5093 = vshrl.u32 %v5092, 7
  %v5094 = vsub.s32 4, %v5093
  %v5095 = vrot.slane %v5041, %v5094
  %v5096 = vlaneseq
  %v5097 = vshrl.u32 %v5096, 7
  %v5098 = vsub.s32 5, %v5097
  %v5099 = vrot.slane %v5041, %v5098
  %v5100 = vlaneseq
  %v5101 = vshrl.u32 %v5100, 7
  %v5102 = vsub.s32 6, %v5101
  %v5103 = vrot.slane %v5041, %v5102
  %v5104 = vlaneseq
  %v5105 = vshrl.u32 %v5104, 7
  %v5106 = vsub.s32 7, %v5105
  %v5107 = vrot.slane %v5041, %v5106
  %v5124 = vsub.f32 %v4876, %v5047
  %v5125 = vsub.f32 %v4877, %v5051
  %v5126 = vsub.f32 %v4878, %v5055
  %v5127 = vsub.f32 %v4879, %v5059
  %v5128 = vsub.f32 %v4880, %v5063
  %v5129 = vsub.f32 %v4881, %v5067
  %v5130 = vsub.f32 %v4882, %v5071
  %v5131 = vsub.f32 %v4883, %v5075
  %v5132 = vsub.f32 %v4884, %v5079
  %v5133 = vsub.f32 %v4885, %v5083
  %v5134 = vsub.f32 %v4886, %v5087
  %v5135 = vsub.f32 %v4887, %v5091
  %v5136 = vsub.f32 %v4888, %v5095
  %v5137 = vsub.f32 %v4889, %v5099
  %v5138 = vsub.f32 %v4890, %v5103
  %v5139 = vsub.f32 %v4891, %v5107
  %v5140 = vmul.f32 %v5124, 1.442695
  %v5141 = vpow.pop %v5140
  %v5142 = vmul.f32 %v5125, 1.442695
  %v5143 = vpow.pop %v5142
  %v5144 = vmul.f32 %v5126, 1.442695
  %v5145 = vpow.pop %v5144
  %v5146 = vmul.f32 %v5127, 1.442695
  %v5147 = vpow.pop %v5146
  %v5148 = vmul.f32 %v5128, 1.442695
  %v5149 = vpow.pop %v5148
  %v5150 = vmul.f32 %v5129, 1.442695
  %v5151 = vpow.pop %v5150
  %v5152 = vmul.f32 %v5130, 1.442695
  %v5153 = vpow.pop %v5152
  %v5154 = vmul.f32 %v5131, 1.442695
  %v5155 = vpow.pop %v5154
  %v5156 = vmul.f32 %v5132, 1.442695
  %v5157 = vpow.pop %v5156
  %v5158 = vmul.f32 %v5133, 1.442695
  %v5159 = vpow.pop %v5158
  %v5160 = vmul.f32 %v5134, 1.442695
  %v5161 = vpow.pop %v5160
  %v5162 = vmul.f32 %v5135, 1.442695
  %v5163 = vpow.pop %v5162
  %v5164 = vmul.f32 %v5136, 1.442695
  %v5165 = vpow.pop %v5164
  %v5166 = vmul.f32 %v5137, 1.442695
  %v5167 = vpow.pop %v5166
  %v5168 = vmul.f32 %v5138, 1.442695
  %v5169 = vpow.pop %v5168
  %v5170 = vmul.f32 %v5139, 1.442695
  %v5171 = vpow.pop %v5170
  %5188 = vset.pattern.permute.xlu0 0
  %5189 = vperm.xlu0 %5188, %v5141
  %v5190 = vpop.permute.xlu0 %5189
  %5191 = vset.pattern.permute.xlu0 0
  %5192 = vperm.xlu0 %5191, %v5143
  %v5193 = vpop.permute.xlu0 %5192
  %5194 = vset.pattern.permute.xlu0 0
  %5195 = vperm.xlu0 %5194, %v5145
  %v5196 = vpop.permute.xlu0 %5195
  %5197 = vset.pattern.permute.xlu0 0
  %5198 = vperm.xlu0 %5197, %v5147
  %v5199 = vpop.permute.xlu0 %5198
  %5200 = vset.pattern.permute.xlu0 0
  %5201 = vperm.xlu0 %5200, %v5149
  %v5202 = vpop.permute.xlu0 %5201
  %5203 = vset.pattern.permute.xlu0 0
  %5204 = vperm.xlu0 %5203, %v5151
  %v5205 = vpop.permute.xlu0 %5204
  %5206 = vset.pattern.permute.xlu0 0
  %5207 = vperm.xlu0 %5206, %v5153
  %v5208 = vpop.permute.xlu0 %5207
  %5209 = vset.pattern.permute.xlu0 0
  %5210 = vperm.xlu0 %5209, %v5155
  %v5211 = vpop.permute.xlu0 %5210
  %5212 = vset.pattern.permute.xlu0 0
  %5213 = vperm.xlu0 %5212, %v5157
  %v5214 = vpop.permute.xlu0 %5213
  %5215 = vset.pattern.permute.xlu0 0
  %5216 = vperm.xlu0 %5215, %v5159
  %v5217 = vpop.permute.xlu0 %5216
  %5218 = vset.pattern.permute.xlu0 0
  %5219 = vperm.xlu0 %5218, %v5161
  %v5220 = vpop.permute.xlu0 %5219
  %5221 = vset.pattern.permute.xlu0 0
  %5222 = vperm.xlu0 %5221, %v5163
  %v5223 = vpop.permute.xlu0 %5222
  %5224 = vset.pattern.permute.xlu0 0
  %5225 = vperm.xlu0 %5224, %v5165
  %v5226 = vpop.permute.xlu0 %5225
  %5227 = vset.pattern.permute.xlu0 0
  %5228 = vperm.xlu0 %5227, %v5167
  %v5229 = vpop.permute.xlu0 %5228
  %5230 = vset.pattern.permute.xlu0 0
  %5231 = vperm.xlu0 %5230, %v5169
  %v5232 = vpop.permute.xlu0 %5231
  %5233 = vset.pattern.permute.xlu0 0
  %5234 = vperm.xlu0 %5233, %v5171
  %v5235 = vpop.permute.xlu0 %5234
  %v5236 = vlaneseq
  %v5237 = vshrl.u32 %v5236, 7
  %v5238 = vsub.s32 %v53, %v5237
  %v5239 = vrot.slane %v5190, %v5238
  %v5240 = vlaneseq
  %v5241 = vshrl.u32 %v5240, 7
  %v5242 = vsub.s32 %v53, %v5241
  %v5243 = vrot.slane %v5193, %v5242
  %v5244 = vlaneseq
  %v5245 = vshrl.u32 %v5244, 7
  %v5246 = vsub.s32 %v53, %v5245
  %v5247 = vrot.slane %v5196, %v5246
  %v5248 = vlaneseq
  %v5249 = vshrl.u32 %v5248, 7
  %v5250 = vsub.s32 %v53, %v5249
  %v5251 = vrot.slane %v5199, %v5250
  %v5252 = vlaneseq
  %v5253 = vshrl.u32 %v5252, 7
  %v5254 = vsub.s32 %v53, %v5253
  %v5255 = vrot.slane %v5202, %v5254
  %v5256 = vlaneseq
  %v5257 = vshrl.u32 %v5256, 7
  %v5258 = vsub.s32 %v53, %v5257
  %v5259 = vrot.slane %v5205, %v5258
  %v5260 = vlaneseq
  %v5261 = vshrl.u32 %v5260, 7
  %v5262 = vsub.s32 %v53, %v5261
  %v5263 = vrot.slane %v5208, %v5262
  %v5264 = vlaneseq
  %v5265 = vshrl.u32 %v5264, 7
  %v5266 = vsub.s32 %v53, %v5265
  %v5267 = vrot.slane %v5211, %v5266
  %v5268 = vlaneseq
  %v5269 = vshrl.u32 %v5268, 7
  %v5270 = vsub.s32 %v53, %v5269
  %v5271 = vrot.slane %v5214, %v5270
  %v5272 = vlaneseq
  %v5273 = vshrl.u32 %v5272, 7
  %v5274 = vsub.s32 %v53, %v5273
  %v5275 = vrot.slane %v5217, %v5274
  %v5276 = vlaneseq
  %v5277 = vshrl.u32 %v5276, 7
  %v5278 = vsub.s32 %v53, %v5277
  %v5279 = vrot.slane %v5220, %v5278
  %v5280 = vlaneseq
  %v5281 = vshrl.u32 %v5280, 7
  %v5282 = vsub.s32 %v53, %v5281
  %v5283 = vrot.slane %v5223, %v5282
  %v5284 = vlaneseq
  %v5285 = vshrl.u32 %v5284, 7
  %v5286 = vsub.s32 %v53, %v5285
  %v5287 = vrot.slane %v5226, %v5286
  %v5288 = vlaneseq
  %v5289 = vshrl.u32 %v5288, 7
  %v5290 = vsub.s32 %v53, %v5289
  %v5291 = vrot.slane %v5229, %v5290
  %v5292 = vlaneseq
  %v5293 = vshrl.u32 %v5292, 7
  %v5294 = vsub.s32 %v53, %v5293
  %v5295 = vrot.slane %v5232, %v5294
  %v5296 = vlaneseq
  %v5297 = vshrl.u32 %v5296, 7
  %v5298 = vsub.s32 %v53, %v5297
  %v5299 = vrot.slane %v5235, %v5298
  %v5300 = vsel %vm2658, %v5243, %v5239
  %v5301 = vsel %vm2660, %v5247, %v5300
  %v5302 = vsel %vm2662, %v5251, %v5301
  %v5303 = vsel %vm2664, %v5255, %v5302
  %v5304 = vsel %vm2666, %v5259, %v5303
  %v5305 = vsel %vm2668, %v5263, %v5304
  %v5306 = vsel %vm2670, %v5267, %v5305
  %v5307 = vsel %vm2658, %v5275, %v5271
  %v5308 = vsel %vm2660, %v5279, %v5307
  %v5309 = vsel %vm2662, %v5283, %v5308
  %v5310 = vsel %vm2664, %v5287, %v5309
  %v5311 = vsel %vm2666, %v5291, %v5310
  %v5312 = vsel %vm2668, %v5295, %v5311
  %v5313 = vsel %vm2670, %v5299, %v5312
  %v5316 = vsel %vm348, %v5306, 0.0
  %5317 = vadd.xlane.f32.xlu0 %v5316
  %v5318 = vpop.xlane.xlu0 %5317
  %v5319 = vsel %vm348, %v5313, 0.0
  %5320 = vadd.xlane.f32.xlu0 %v5319
  %v5321 = vpop.xlane.xlu0 %5320
  %v5322 = vlog2.pop %v5318
  %v5323 = vmul.f32 %v5322, 0.6931472
  %v5324 = vlog2.pop %v5321
  %v5325 = vmul.f32 %v5324, 0.6931472
  %v5326 = vadd.f32 %v5038, %v5323
  %v5327 = vadd.f32 %v5041, %v5325
  %v5329 = vlaneseq
  %v5330 = vshrl.u32 %v5329, 7
  %v5331 = vsub.s32 0, %v5330
  %v5332 = vrot.slane %v2182, %v5331
  %5334 = vbcast.lane.b32.xlu0 %v5332, 256
  %v5335 = vpop.permute.xlu0 %5334
  %v5336 = vlaneseq
  %v5337 = vshrl.u32 %v5336, 7
  %v5338 = vsub.s32 1, %v5337
  %v5339 = vrot.slane %v2182, %v5338
  %5341 = vbcast.lane.b32.xlu0 %v5339, 256
  %v5342 = vpop.permute.xlu0 %5341
  %v5345 = vadd.f32 %v5326, %v5335
  %v5346 = vadd.f32 %v5327, %v5342
  %v5347 = vlaneseq
  %v5348 = vshrl.u32 %v5347, 7
  %v5349 = vsub.s32 0, %v5348
  %v5350 = vrot.slane %v2056, %v5349
  %5353 = vbcast.lane.b32.xlu0 %v5350, 256
  %v5354 = vpop.permute.xlu0 %5353
  %v5356 = vadd.f32 %v5345, %v5354
  %v5357 = vadd.f32 %v5346, %v5354
  %5360 = vset.pattern.permute.xlu0 0
  %5361 = vperm.xlu0 %5360, %v5356
  %v5362 = vpop.permute.xlu0 %5361
  %5363 = vset.pattern.permute.xlu0 0
  %5364 = vperm.xlu0 %5363, %v5357
  %v5365 = vpop.permute.xlu0 %5364
  %v5366 = vlaneseq
  %v5367 = vshrl.u32 %v5366, 7
  %v5368 = vsub.s32 %v53, %v5367
  %v5369 = vrot.slane %v5362, %v5368
  %v5370 = vlaneseq
  %v5371 = vshrl.u32 %v5370, 7
  %v5372 = vsub.s32 %v53, %v5371
  %v5373 = vrot.slane %v5365, %v5372
  %v5374 = vsel %vm2658, %v5373, %v5369
  %vm5376 = vcmask 58368
  %v5377 = vsel %vm5376, %v5374, -inf
  %5378 = vmax.xlane.f32.xlu0 %v5377
  %v5379 = vpop.xlane.xlu0 %5378
  %v5381 = vlaneseq
  %v5382 = vshrl.u32 %v5381, 7
  %v5383 = vsub.s32 0, %v5382
  %v5384 = vrot.slane %v5379, %v5383
  %v5385 = vlaneseq
  %v5386 = vshrl.u32 %v5385, 7
  %v5387 = vsub.s32 1, %v5386
  %v5388 = vrot.slane %v5379, %v5387
  %v5391 = vsub.f32 %v5356, %v5384
  %v5392 = vsub.f32 %v5357, %v5388
  %v5393 = vmul.f32 %v5391, 1.442695
  %v5394 = vpow.pop %v5393
  %v5395 = vmul.f32 %v5392, 1.442695
  %v5396 = vpow.pop %v5395
  %5399 = vset.pattern.permute.xlu0 0
  %5400 = vperm.xlu0 %5399, %v5394
  %v5401 = vpop.permute.xlu0 %5400
  %5402 = vset.pattern.permute.xlu0 0
  %5403 = vperm.xlu0 %5402, %v5396
  %v5404 = vpop.permute.xlu0 %5403
  %v5405 = vlaneseq
  %v5406 = vshrl.u32 %v5405, 7
  %v5407 = vsub.s32 %v53, %v5406
  %v5408 = vrot.slane %v5401, %v5407
  %v5409 = vlaneseq
  %v5410 = vshrl.u32 %v5409, 7
  %v5411 = vsub.s32 %v53, %v5410
  %v5412 = vrot.slane %v5404, %v5411
  %v5413 = vsel %vm2658, %v5412, %v5408
  %v5415 = vsel %vm5376, %v5413, 0.0
  %5416 = vadd.xlane.f32.xlu0 %v5415
  %v5417 = vpop.xlane.xlu0 %5416
  %v5418 = vlog2.pop %v5417
  %v5419 = vmul.f32 %v5418, 0.6931472
  %v5420 = vadd.f32 %v5379, %v5419
  %v5421 = vsub.f32 %v5420, %v2365
  %vm5422 = vcmask 1024
  %v5423 = vsel %vm5422, %v5421, 0.0
  %v5424 = vrot.slane %v5423, 4
  %v5425 = vadd.f32 %v5423, %v5424
  %v5426 = vrot.slane %v5425, 2
  %v5427 = vadd.f32 %v5425, %v5426
  %v5428 = vrot.slane %v5427, 1
  %v5429 = vadd.f32 %v5427, %v5428
  %vm5430 = vcmp.eq.f32.partialorder %v2404, %v2408
  %vm5431 = vcmp.eq.f32.partialorder %v2405, %v2411
  %v5432 = vsel %vm5430, %v53, 8
  %v5433 = vsel %vm5431, %v53, 8
  %v5434 = vsel %vm348, %v5432, 2147483647
  %v5435 = vand.u32 %v5434, 65535
  %v5436 = vshra.s32 %v5434, 16
  %v5437 = vcvt.s32.f32 %v5435
  %v5438 = vcvt.s32.f32 %v5436
  %5439 = vmin.xlane.f32.xlu0 %v5438
  %v5440 = vpop.xlane.xlu0 %5439
  %vm5441 = vcmp.eq.f32.partialorder %v5438, %v5440
  %v5442 = vsel %vm5441, %v5437, inf
  %5443 = vmin.xlane.f32.xlu0 %v5442
  %v5444 = vpop.xlane.xlu0 %5443
  %v5445 = vcvt.f32.s32 %v5444
  %v5446 = vcvt.f32.s32 %v5440
  %v5447 = vshll.u32 %v5446, 16
  %v5448 = vadd.s32 %v5447, %v5445
  %v5449 = vsel %vm348, %v5433, 2147483647
  %v5450 = vand.u32 %v5449, 65535
  %v5451 = vshra.s32 %v5449, 16
  %v5452 = vcvt.s32.f32 %v5450
  %v5453 = vcvt.s32.f32 %v5451
  %5454 = vmin.xlane.f32.xlu0 %v5453
  %v5455 = vpop.xlane.xlu0 %5454
  %vm5456 = vcmp.eq.f32.partialorder %v5453, %v5455
  %v5457 = vsel %vm5456, %v5452, inf
  %5458 = vmin.xlane.f32.xlu0 %v5457
  %v5459 = vpop.xlane.xlu0 %5458
  %v5460 = vcvt.f32.s32 %v5459
  %v5461 = vcvt.f32.s32 %v5455
  %v5462 = vshll.u32 %v5461, 16
  %v5463 = vadd.s32 %v5462, %v5460
  %vm5464 = vcmp.lt.s32.totalorder %v5448, 7
  %v5465 = vsel %vm5464, %v5448, 7
  %vm5466 = vcmp.lt.s32.totalorder %v5463, 7
  %v5467 = vsel %vm5466, %v5463, 7
  %v5468 = vadd.f32 %v2408, %v2437
  %v5469 = vadd.f32 %v2411, %v2444
  %v5470 = vadd.f32 %v5468, %v2456
  %v5471 = vadd.f32 %v5468, %v2463
  %v5472 = vadd.f32 %v5468, %v2470
  %v5473 = vadd.f32 %v5468, %v2477
  %v5474 = vadd.f32 %v5468, %v2484
  %v5475 = vadd.f32 %v5468, %v2491
  %v5476 = vadd.f32 %v5468, %v2498
  %v5477 = vadd.f32 %v5468, %v2505
  %v5478 = vadd.f32 %v5469, %v2456
  %v5479 = vadd.f32 %v5469, %v2463
  %v5480 = vadd.f32 %v5469, %v2470
  %v5481 = vadd.f32 %v5469, %v2477
  %v5482 = vadd.f32 %v5469, %v2484
  %v5483 = vadd.f32 %v5469, %v2491
  %v5484 = vadd.f32 %v5469, %v2498
  %v5485 = vadd.f32 %v5469, %v2505
  %5502 = vset.pattern.permute.xlu0 0
  %5503 = vperm.xlu0 %5502, %v5470
  %v5504 = vpop.permute.xlu0 %5503
  %5505 = vset.pattern.permute.xlu0 0
  %5506 = vperm.xlu0 %5505, %v5471
  %v5507 = vpop.permute.xlu0 %5506
  %5508 = vset.pattern.permute.xlu0 0
  %5509 = vperm.xlu0 %5508, %v5472
  %v5510 = vpop.permute.xlu0 %5509
  %5511 = vset.pattern.permute.xlu0 0
  %5512 = vperm.xlu0 %5511, %v5473
  %v5513 = vpop.permute.xlu0 %5512
  %5514 = vset.pattern.permute.xlu0 0
  %5515 = vperm.xlu0 %5514, %v5474
  %v5516 = vpop.permute.xlu0 %5515
  %5517 = vset.pattern.permute.xlu0 0
  %5518 = vperm.xlu0 %5517, %v5475
  %v5519 = vpop.permute.xlu0 %5518
  %5520 = vset.pattern.permute.xlu0 0
  %5521 = vperm.xlu0 %5520, %v5476
  %v5522 = vpop.permute.xlu0 %5521
  %5523 = vset.pattern.permute.xlu0 0
  %5524 = vperm.xlu0 %5523, %v5477
  %v5525 = vpop.permute.xlu0 %5524
  %5526 = vset.pattern.permute.xlu0 0
  %5527 = vperm.xlu0 %5526, %v5478
  %v5528 = vpop.permute.xlu0 %5527
  %5529 = vset.pattern.permute.xlu0 0
  %5530 = vperm.xlu0 %5529, %v5479
  %v5531 = vpop.permute.xlu0 %5530
  %5532 = vset.pattern.permute.xlu0 0
  %5533 = vperm.xlu0 %5532, %v5480
  %v5534 = vpop.permute.xlu0 %5533
  %5535 = vset.pattern.permute.xlu0 0
  %5536 = vperm.xlu0 %5535, %v5481
  %v5537 = vpop.permute.xlu0 %5536
  %5538 = vset.pattern.permute.xlu0 0
  %5539 = vperm.xlu0 %5538, %v5482
  %v5540 = vpop.permute.xlu0 %5539
  %5541 = vset.pattern.permute.xlu0 0
  %5542 = vperm.xlu0 %5541, %v5483
  %v5543 = vpop.permute.xlu0 %5542
  %5544 = vset.pattern.permute.xlu0 0
  %5545 = vperm.xlu0 %5544, %v5484
  %v5546 = vpop.permute.xlu0 %5545
  %5547 = vset.pattern.permute.xlu0 0
  %5548 = vperm.xlu0 %5547, %v5485
  %v5549 = vpop.permute.xlu0 %5548
  %v5550 = vlaneseq
  %v5551 = vshrl.u32 %v5550, 7
  %v5552 = vsub.s32 %v53, %v5551
  %v5553 = vrot.slane %v5504, %v5552
  %v5554 = vlaneseq
  %v5555 = vshrl.u32 %v5554, 7
  %v5556 = vsub.s32 %v53, %v5555
  %v5557 = vrot.slane %v5507, %v5556
  %v5558 = vlaneseq
  %v5559 = vshrl.u32 %v5558, 7
  %v5560 = vsub.s32 %v53, %v5559
  %v5561 = vrot.slane %v5510, %v5560
  %v5562 = vlaneseq
  %v5563 = vshrl.u32 %v5562, 7
  %v5564 = vsub.s32 %v53, %v5563
  %v5565 = vrot.slane %v5513, %v5564
  %v5566 = vlaneseq
  %v5567 = vshrl.u32 %v5566, 7
  %v5568 = vsub.s32 %v53, %v5567
  %v5569 = vrot.slane %v5516, %v5568
  %v5570 = vlaneseq
  %v5571 = vshrl.u32 %v5570, 7
  %v5572 = vsub.s32 %v53, %v5571
  %v5573 = vrot.slane %v5519, %v5572
  %v5574 = vlaneseq
  %v5575 = vshrl.u32 %v5574, 7
  %v5576 = vsub.s32 %v53, %v5575
  %v5577 = vrot.slane %v5522, %v5576
  %v5578 = vlaneseq
  %v5579 = vshrl.u32 %v5578, 7
  %v5580 = vsub.s32 %v53, %v5579
  %v5581 = vrot.slane %v5525, %v5580
  %v5582 = vlaneseq
  %v5583 = vshrl.u32 %v5582, 7
  %v5584 = vsub.s32 %v53, %v5583
  %v5585 = vrot.slane %v5528, %v5584
  %v5586 = vlaneseq
  %v5587 = vshrl.u32 %v5586, 7
  %v5588 = vsub.s32 %v53, %v5587
  %v5589 = vrot.slane %v5531, %v5588
  %v5590 = vlaneseq
  %v5591 = vshrl.u32 %v5590, 7
  %v5592 = vsub.s32 %v53, %v5591
  %v5593 = vrot.slane %v5534, %v5592
  %v5594 = vlaneseq
  %v5595 = vshrl.u32 %v5594, 7
  %v5596 = vsub.s32 %v53, %v5595
  %v5597 = vrot.slane %v5537, %v5596
  %v5598 = vlaneseq
  %v5599 = vshrl.u32 %v5598, 7
  %v5600 = vsub.s32 %v53, %v5599
  %v5601 = vrot.slane %v5540, %v5600
  %v5602 = vlaneseq
  %v5603 = vshrl.u32 %v5602, 7
  %v5604 = vsub.s32 %v53, %v5603
  %v5605 = vrot.slane %v5543, %v5604
  %v5606 = vlaneseq
  %v5607 = vshrl.u32 %v5606, 7
  %v5608 = vsub.s32 %v53, %v5607
  %v5609 = vrot.slane %v5546, %v5608
  %v5610 = vlaneseq
  %v5611 = vshrl.u32 %v5610, 7
  %v5612 = vsub.s32 %v53, %v5611
  %v5613 = vrot.slane %v5549, %v5612
  %v5614 = vsel %vm2658, %v5557, %v5553
  %v5615 = vsel %vm2660, %v5561, %v5614
  %v5616 = vsel %vm2662, %v5565, %v5615
  %v5617 = vsel %vm2664, %v5569, %v5616
  %v5618 = vsel %vm2666, %v5573, %v5617
  %v5619 = vsel %vm2668, %v5577, %v5618
  %v5620 = vsel %vm2670, %v5581, %v5619
  %v5621 = vsel %vm2658, %v5589, %v5585
  %v5622 = vsel %vm2660, %v5593, %v5621
  %v5623 = vsel %vm2662, %v5597, %v5622
  %v5624 = vsel %vm2664, %v5601, %v5623
  %v5625 = vsel %vm2666, %v5605, %v5624
  %v5626 = vsel %vm2668, %v5609, %v5625
  %v5627 = vsel %vm2670, %v5613, %v5626
  %v5630 = vsel %vm348, %v5620, -inf
  %5631 = vmax.xlane.f32.xlu0 %v5630
  %v5632 = vpop.xlane.xlu0 %5631
  %v5633 = vsel %vm348, %v5627, -inf
  %5634 = vmax.xlane.f32.xlu0 %v5633
  %v5635 = vpop.xlane.xlu0 %5634
  %v5638 = vlaneseq
  %v5639 = vshrl.u32 %v5638, 7
  %v5640 = vsub.s32 0, %v5639
  %v5641 = vrot.slane %v5632, %v5640
  %v5642 = vlaneseq
  %v5643 = vshrl.u32 %v5642, 7
  %v5644 = vsub.s32 1, %v5643
  %v5645 = vrot.slane %v5632, %v5644
  %v5646 = vlaneseq
  %v5647 = vshrl.u32 %v5646, 7
  %v5648 = vsub.s32 2, %v5647
  %v5649 = vrot.slane %v5632, %v5648
  %v5650 = vlaneseq
  %v5651 = vshrl.u32 %v5650, 7
  %v5652 = vsub.s32 3, %v5651
  %v5653 = vrot.slane %v5632, %v5652
  %v5654 = vlaneseq
  %v5655 = vshrl.u32 %v5654, 7
  %v5656 = vsub.s32 4, %v5655
  %v5657 = vrot.slane %v5632, %v5656
  %v5658 = vlaneseq
  %v5659 = vshrl.u32 %v5658, 7
  %v5660 = vsub.s32 5, %v5659
  %v5661 = vrot.slane %v5632, %v5660
  %v5662 = vlaneseq
  %v5663 = vshrl.u32 %v5662, 7
  %v5664 = vsub.s32 6, %v5663
  %v5665 = vrot.slane %v5632, %v5664
  %v5666 = vlaneseq
  %v5667 = vshrl.u32 %v5666, 7
  %v5668 = vsub.s32 7, %v5667
  %v5669 = vrot.slane %v5632, %v5668
  %v5670 = vlaneseq
  %v5671 = vshrl.u32 %v5670, 7
  %v5672 = vsub.s32 0, %v5671
  %v5673 = vrot.slane %v5635, %v5672
  %v5674 = vlaneseq
  %v5675 = vshrl.u32 %v5674, 7
  %v5676 = vsub.s32 1, %v5675
  %v5677 = vrot.slane %v5635, %v5676
  %v5678 = vlaneseq
  %v5679 = vshrl.u32 %v5678, 7
  %v5680 = vsub.s32 2, %v5679
  %v5681 = vrot.slane %v5635, %v5680
  %v5682 = vlaneseq
  %v5683 = vshrl.u32 %v5682, 7
  %v5684 = vsub.s32 3, %v5683
  %v5685 = vrot.slane %v5635, %v5684
  %v5686 = vlaneseq
  %v5687 = vshrl.u32 %v5686, 7
  %v5688 = vsub.s32 4, %v5687
  %v5689 = vrot.slane %v5635, %v5688
  %v5690 = vlaneseq
  %v5691 = vshrl.u32 %v5690, 7
  %v5692 = vsub.s32 5, %v5691
  %v5693 = vrot.slane %v5635, %v5692
  %v5694 = vlaneseq
  %v5695 = vshrl.u32 %v5694, 7
  %v5696 = vsub.s32 6, %v5695
  %v5697 = vrot.slane %v5635, %v5696
  %v5698 = vlaneseq
  %v5699 = vshrl.u32 %v5698, 7
  %v5700 = vsub.s32 7, %v5699
  %v5701 = vrot.slane %v5635, %v5700
  %vm5718 = vcmp.eq.f32.partialorder %v5470, %v5641
  %vm5719 = vcmp.eq.f32.partialorder %v5471, %v5645
  %vm5720 = vcmp.eq.f32.partialorder %v5472, %v5649
  %vm5721 = vcmp.eq.f32.partialorder %v5473, %v5653
  %vm5722 = vcmp.eq.f32.partialorder %v5474, %v5657
  %vm5723 = vcmp.eq.f32.partialorder %v5475, %v5661
  %vm5724 = vcmp.eq.f32.partialorder %v5476, %v5665
  %vm5725 = vcmp.eq.f32.partialorder %v5477, %v5669
  %vm5726 = vcmp.eq.f32.partialorder %v5478, %v5673
  %vm5727 = vcmp.eq.f32.partialorder %v5479, %v5677
  %vm5728 = vcmp.eq.f32.partialorder %v5480, %v5681
  %vm5729 = vcmp.eq.f32.partialorder %v5481, %v5685
  %vm5730 = vcmp.eq.f32.partialorder %v5482, %v5689
  %vm5731 = vcmp.eq.f32.partialorder %v5483, %v5693
  %vm5732 = vcmp.eq.f32.partialorder %v5484, %v5697
  %vm5733 = vcmp.eq.f32.partialorder %v5485, %v5701
  %5735 = vbcast.lane.b32.xlu0 %v53, 256
  %v5736 = vpop.permute.xlu0 %5735
  %v5737 = vsel %vm5718, %v5736, 8
  %v5738 = vsel %vm5719, %v5736, 8
  %v5739 = vsel %vm5720, %v5736, 8
  %v5740 = vsel %vm5721, %v5736, 8
  %v5741 = vsel %vm5722, %v5736, 8
  %v5742 = vsel %vm5723, %v5736, 8
  %v5743 = vsel %vm5724, %v5736, 8
  %v5744 = vsel %vm5725, %v5736, 8
  %v5745 = vsel %vm5726, %v5736, 8
  %v5746 = vsel %vm5727, %v5736, 8
  %v5747 = vsel %vm5728, %v5736, 8
  %v5748 = vsel %vm5729, %v5736, 8
  %v5749 = vsel %vm5730, %v5736, 8
  %v5750 = vsel %vm5731, %v5736, 8
  %v5751 = vsel %vm5732, %v5736, 8
  %v5752 = vsel %vm5733, %v5736, 8
  %5753 = vset.pattern.permute.xlu0 0
  %5754 = vperm.xlu0 %5753, %v5737
  %v5755 = vpop.permute.xlu0 %5754
  %5756 = vset.pattern.permute.xlu0 0
  %5757 = vperm.xlu0 %5756, %v5738
  %v5758 = vpop.permute.xlu0 %5757
  %5759 = vset.pattern.permute.xlu0 0
  %5760 = vperm.xlu0 %5759, %v5739
  %v5761 = vpop.permute.xlu0 %5760
  %5762 = vset.pattern.permute.xlu0 0
  %5763 = vperm.xlu0 %5762, %v5740
  %v5764 = vpop.permute.xlu0 %5763
  %5765 = vset.pattern.permute.xlu0 0
  %5766 = vperm.xlu0 %5765, %v5741
  %v5767 = vpop.permute.xlu0 %5766
  %5768 = vset.pattern.permute.xlu0 0
  %5769 = vperm.xlu0 %5768, %v5742
  %v5770 = vpop.permute.xlu0 %5769
  %5771 = vset.pattern.permute.xlu0 0
  %5772 = vperm.xlu0 %5771, %v5743
  %v5773 = vpop.permute.xlu0 %5772
  %5774 = vset.pattern.permute.xlu0 0
  %5775 = vperm.xlu0 %5774, %v5744
  %v5776 = vpop.permute.xlu0 %5775
  %5777 = vset.pattern.permute.xlu0 0
  %5778 = vperm.xlu0 %5777, %v5745
  %v5779 = vpop.permute.xlu0 %5778
  %5780 = vset.pattern.permute.xlu0 0
  %5781 = vperm.xlu0 %5780, %v5746
  %v5782 = vpop.permute.xlu0 %5781
  %5783 = vset.pattern.permute.xlu0 0
  %5784 = vperm.xlu0 %5783, %v5747
  %v5785 = vpop.permute.xlu0 %5784
  %5786 = vset.pattern.permute.xlu0 0
  %5787 = vperm.xlu0 %5786, %v5748
  %v5788 = vpop.permute.xlu0 %5787
  %5789 = vset.pattern.permute.xlu0 0
  %5790 = vperm.xlu0 %5789, %v5749
  %v5791 = vpop.permute.xlu0 %5790
  %5792 = vset.pattern.permute.xlu0 0
  %5793 = vperm.xlu0 %5792, %v5750
  %v5794 = vpop.permute.xlu0 %5793
  %5795 = vset.pattern.permute.xlu0 0
  %5796 = vperm.xlu0 %5795, %v5751
  %v5797 = vpop.permute.xlu0 %5796
  %5798 = vset.pattern.permute.xlu0 0
  %5799 = vperm.xlu0 %5798, %v5752
  %v5800 = vpop.permute.xlu0 %5799
  %v5801 = vlaneseq
  %v5802 = vshrl.u32 %v5801, 7
  %v5803 = vsub.s32 %v53, %v5802
  %v5804 = vrot.slane %v5755, %v5803
  %v5805 = vlaneseq
  %v5806 = vshrl.u32 %v5805, 7
  %v5807 = vsub.s32 %v53, %v5806
  %v5808 = vrot.slane %v5758, %v5807
  %v5809 = vlaneseq
  %v5810 = vshrl.u32 %v5809, 7
  %v5811 = vsub.s32 %v53, %v5810
  %v5812 = vrot.slane %v5761, %v5811
  %v5813 = vlaneseq
  %v5814 = vshrl.u32 %v5813, 7
  %v5815 = vsub.s32 %v53, %v5814
  %v5816 = vrot.slane %v5764, %v5815
  %v5817 = vlaneseq
  %v5818 = vshrl.u32 %v5817, 7
  %v5819 = vsub.s32 %v53, %v5818
  %v5820 = vrot.slane %v5767, %v5819
  %v5821 = vlaneseq
  %v5822 = vshrl.u32 %v5821, 7
  %v5823 = vsub.s32 %v53, %v5822
  %v5824 = vrot.slane %v5770, %v5823
  %v5825 = vlaneseq
  %v5826 = vshrl.u32 %v5825, 7
  %v5827 = vsub.s32 %v53, %v5826
  %v5828 = vrot.slane %v5773, %v5827
  %v5829 = vlaneseq
  %v5830 = vshrl.u32 %v5829, 7
  %v5831 = vsub.s32 %v53, %v5830
  %v5832 = vrot.slane %v5776, %v5831
  %v5833 = vlaneseq
  %v5834 = vshrl.u32 %v5833, 7
  %v5835 = vsub.s32 %v53, %v5834
  %v5836 = vrot.slane %v5779, %v5835
  %v5837 = vlaneseq
  %v5838 = vshrl.u32 %v5837, 7
  %v5839 = vsub.s32 %v53, %v5838
  %v5840 = vrot.slane %v5782, %v5839
  %v5841 = vlaneseq
  %v5842 = vshrl.u32 %v5841, 7
  %v5843 = vsub.s32 %v53, %v5842
  %v5844 = vrot.slane %v5785, %v5843
  %v5845 = vlaneseq
  %v5846 = vshrl.u32 %v5845, 7
  %v5847 = vsub.s32 %v53, %v5846
  %v5848 = vrot.slane %v5788, %v5847
  %v5849 = vlaneseq
  %v5850 = vshrl.u32 %v5849, 7
  %v5851 = vsub.s32 %v53, %v5850
  %v5852 = vrot.slane %v5791, %v5851
  %v5853 = vlaneseq
  %v5854 = vshrl.u32 %v5853, 7
  %v5855 = vsub.s32 %v53, %v5854
  %v5856 = vrot.slane %v5794, %v5855
  %v5857 = vlaneseq
  %v5858 = vshrl.u32 %v5857, 7
  %v5859 = vsub.s32 %v53, %v5858
  %v5860 = vrot.slane %v5797, %v5859
  %v5861 = vlaneseq
  %v5862 = vshrl.u32 %v5861, 7
  %v5863 = vsub.s32 %v53, %v5862
  %v5864 = vrot.slane %v5800, %v5863
  %v5865 = vsel %vm2658, %v5808, %v5804
  %v5866 = vsel %vm2660, %v5812, %v5865
  %v5867 = vsel %vm2662, %v5816, %v5866
  %v5868 = vsel %vm2664, %v5820, %v5867
  %v5869 = vsel %vm2666, %v5824, %v5868
  %v5870 = vsel %vm2668, %v5828, %v5869
  %v5871 = vsel %vm2670, %v5832, %v5870
  %v5872 = vsel %vm2658, %v5840, %v5836
  %v5873 = vsel %vm2660, %v5844, %v5872
  %v5874 = vsel %vm2662, %v5848, %v5873
  %v5875 = vsel %vm2664, %v5852, %v5874
  %v5876 = vsel %vm2666, %v5856, %v5875
  %v5877 = vsel %vm2668, %v5860, %v5876
  %v5878 = vsel %vm2670, %v5864, %v5877
  %v5879 = vsel %vm348, %v5871, 2147483647
  %v5880 = vand.u32 %v5879, 65535
  %v5881 = vshra.s32 %v5879, 16
  %v5882 = vcvt.s32.f32 %v5880
  %v5883 = vcvt.s32.f32 %v5881
  %5884 = vmin.xlane.f32.xlu0 %v5883
  %v5885 = vpop.xlane.xlu0 %5884
  %vm5886 = vcmp.eq.f32.partialorder %v5883, %v5885
  %v5887 = vsel %vm5886, %v5882, inf
  %5888 = vmin.xlane.f32.xlu0 %v5887
  %v5889 = vpop.xlane.xlu0 %5888
  %v5890 = vcvt.f32.s32 %v5889
  %v5891 = vcvt.f32.s32 %v5885
  %v5892 = vshll.u32 %v5891, 16
  %v5893 = vadd.s32 %v5892, %v5890
  %v5894 = vsel %vm348, %v5878, 2147483647
  %v5895 = vand.u32 %v5894, 65535
  %v5896 = vshra.s32 %v5894, 16
  %v5897 = vcvt.s32.f32 %v5895
  %v5898 = vcvt.s32.f32 %v5896
  %5899 = vmin.xlane.f32.xlu0 %v5898
  %v5900 = vpop.xlane.xlu0 %5899
  %vm5901 = vcmp.eq.f32.partialorder %v5898, %v5900
  %v5902 = vsel %vm5901, %v5897, inf
  %5903 = vmin.xlane.f32.xlu0 %v5902
  %v5904 = vpop.xlane.xlu0 %5903
  %v5905 = vcvt.f32.s32 %v5904
  %v5906 = vcvt.f32.s32 %v5900
  %v5907 = vshll.u32 %v5906, 16
  %v5908 = vadd.s32 %v5907, %v5905
  %vm5909 = vcmp.lt.s32.totalorder %v5893, 7
  %v5910 = vsel %vm5909, %v5893, 7
  %vm5911 = vcmp.lt.s32.totalorder %v5908, 7
  %v5912 = vsel %vm5911, %v5908, 7
  %v5913 = vadd.f32 %v5632, %v2980
  %v5914 = vadd.f32 %v5635, %v2987
  %v5915 = vadd.f32 %v5913, %v2456
  %v5916 = vadd.f32 %v5913, %v2463
  %v5917 = vadd.f32 %v5913, %v2470
  %v5918 = vadd.f32 %v5913, %v2477
  %v5919 = vadd.f32 %v5913, %v2484
  %v5920 = vadd.f32 %v5913, %v2491
  %v5921 = vadd.f32 %v5913, %v2498
  %v5922 = vadd.f32 %v5913, %v2505
  %v5923 = vadd.f32 %v5914, %v2456
  %v5924 = vadd.f32 %v5914, %v2463
  %v5925 = vadd.f32 %v5914, %v2470
  %v5926 = vadd.f32 %v5914, %v2477
  %v5927 = vadd.f32 %v5914, %v2484
  %v5928 = vadd.f32 %v5914, %v2491
  %v5929 = vadd.f32 %v5914, %v2498
  %v5930 = vadd.f32 %v5914, %v2505
  %5947 = vset.pattern.permute.xlu0 0
  %5948 = vperm.xlu0 %5947, %v5915
  %v5949 = vpop.permute.xlu0 %5948
  %5950 = vset.pattern.permute.xlu0 0
  %5951 = vperm.xlu0 %5950, %v5916
  %v5952 = vpop.permute.xlu0 %5951
  %5953 = vset.pattern.permute.xlu0 0
  %5954 = vperm.xlu0 %5953, %v5917
  %v5955 = vpop.permute.xlu0 %5954
  %5956 = vset.pattern.permute.xlu0 0
  %5957 = vperm.xlu0 %5956, %v5918
  %v5958 = vpop.permute.xlu0 %5957
  %5959 = vset.pattern.permute.xlu0 0
  %5960 = vperm.xlu0 %5959, %v5919
  %v5961 = vpop.permute.xlu0 %5960
  %5962 = vset.pattern.permute.xlu0 0
  %5963 = vperm.xlu0 %5962, %v5920
  %v5964 = vpop.permute.xlu0 %5963
  %5965 = vset.pattern.permute.xlu0 0
  %5966 = vperm.xlu0 %5965, %v5921
  %v5967 = vpop.permute.xlu0 %5966
  %5968 = vset.pattern.permute.xlu0 0
  %5969 = vperm.xlu0 %5968, %v5922
  %v5970 = vpop.permute.xlu0 %5969
  %5971 = vset.pattern.permute.xlu0 0
  %5972 = vperm.xlu0 %5971, %v5923
  %v5973 = vpop.permute.xlu0 %5972
  %5974 = vset.pattern.permute.xlu0 0
  %5975 = vperm.xlu0 %5974, %v5924
  %v5976 = vpop.permute.xlu0 %5975
  %5977 = vset.pattern.permute.xlu0 0
  %5978 = vperm.xlu0 %5977, %v5925
  %v5979 = vpop.permute.xlu0 %5978
  %5980 = vset.pattern.permute.xlu0 0
  %5981 = vperm.xlu0 %5980, %v5926
  %v5982 = vpop.permute.xlu0 %5981
  %5983 = vset.pattern.permute.xlu0 0
  %5984 = vperm.xlu0 %5983, %v5927
  %v5985 = vpop.permute.xlu0 %5984
  %5986 = vset.pattern.permute.xlu0 0
  %5987 = vperm.xlu0 %5986, %v5928
  %v5988 = vpop.permute.xlu0 %5987
  %5989 = vset.pattern.permute.xlu0 0
  %5990 = vperm.xlu0 %5989, %v5929
  %v5991 = vpop.permute.xlu0 %5990
  %5992 = vset.pattern.permute.xlu0 0
  %5993 = vperm.xlu0 %5992, %v5930
  %v5994 = vpop.permute.xlu0 %5993
  %v5995 = vlaneseq
  %v5996 = vshrl.u32 %v5995, 7
  %v5997 = vsub.s32 %v53, %v5996
  %v5998 = vrot.slane %v5949, %v5997
  %v5999 = vlaneseq
  %v6000 = vshrl.u32 %v5999, 7
  %v6001 = vsub.s32 %v53, %v6000
  %v6002 = vrot.slane %v5952, %v6001
  %v6003 = vlaneseq
  %v6004 = vshrl.u32 %v6003, 7
  %v6005 = vsub.s32 %v53, %v6004
  %v6006 = vrot.slane %v5955, %v6005
  %v6007 = vlaneseq
  %v6008 = vshrl.u32 %v6007, 7
  %v6009 = vsub.s32 %v53, %v6008
  %v6010 = vrot.slane %v5958, %v6009
  %v6011 = vlaneseq
  %v6012 = vshrl.u32 %v6011, 7
  %v6013 = vsub.s32 %v53, %v6012
  %v6014 = vrot.slane %v5961, %v6013
  %v6015 = vlaneseq
  %v6016 = vshrl.u32 %v6015, 7
  %v6017 = vsub.s32 %v53, %v6016
  %v6018 = vrot.slane %v5964, %v6017
  %v6019 = vlaneseq
  %v6020 = vshrl.u32 %v6019, 7
  %v6021 = vsub.s32 %v53, %v6020
  %v6022 = vrot.slane %v5967, %v6021
  %v6023 = vlaneseq
  %v6024 = vshrl.u32 %v6023, 7
  %v6025 = vsub.s32 %v53, %v6024
  %v6026 = vrot.slane %v5970, %v6025
  %v6027 = vlaneseq
  %v6028 = vshrl.u32 %v6027, 7
  %v6029 = vsub.s32 %v53, %v6028
  %v6030 = vrot.slane %v5973, %v6029
  %v6031 = vlaneseq
  %v6032 = vshrl.u32 %v6031, 7
  %v6033 = vsub.s32 %v53, %v6032
  %v6034 = vrot.slane %v5976, %v6033
  %v6035 = vlaneseq
  %v6036 = vshrl.u32 %v6035, 7
  %v6037 = vsub.s32 %v53, %v6036
  %v6038 = vrot.slane %v5979, %v6037
  %v6039 = vlaneseq
  %v6040 = vshrl.u32 %v6039, 7
  %v6041 = vsub.s32 %v53, %v6040
  %v6042 = vrot.slane %v5982, %v6041
  %v6043 = vlaneseq
  %v6044 = vshrl.u32 %v6043, 7
  %v6045 = vsub.s32 %v53, %v6044
  %v6046 = vrot.slane %v5985, %v6045
  %v6047 = vlaneseq
  %v6048 = vshrl.u32 %v6047, 7
  %v6049 = vsub.s32 %v53, %v6048
  %v6050 = vrot.slane %v5988, %v6049
  %v6051 = vlaneseq
  %v6052 = vshrl.u32 %v6051, 7
  %v6053 = vsub.s32 %v53, %v6052
  %v6054 = vrot.slane %v5991, %v6053
  %v6055 = vlaneseq
  %v6056 = vshrl.u32 %v6055, 7
  %v6057 = vsub.s32 %v53, %v6056
  %v6058 = vrot.slane %v5994, %v6057
  %v6059 = vsel %vm2658, %v6002, %v5998
  %v6060 = vsel %vm2660, %v6006, %v6059
  %v6061 = vsel %vm2662, %v6010, %v6060
  %v6062 = vsel %vm2664, %v6014, %v6061
  %v6063 = vsel %vm2666, %v6018, %v6062
  %v6064 = vsel %vm2668, %v6022, %v6063
  %v6065 = vsel %vm2670, %v6026, %v6064
  %v6066 = vsel %vm2658, %v6034, %v6030
  %v6067 = vsel %vm2660, %v6038, %v6066
  %v6068 = vsel %vm2662, %v6042, %v6067
  %v6069 = vsel %vm2664, %v6046, %v6068
  %v6070 = vsel %vm2666, %v6050, %v6069
  %v6071 = vsel %vm2668, %v6054, %v6070
  %v6072 = vsel %vm2670, %v6058, %v6071
  %v6075 = vsel %vm348, %v6065, -inf
  %6076 = vmax.xlane.f32.xlu0 %v6075
  %v6077 = vpop.xlane.xlu0 %6076
  %v6078 = vsel %vm348, %v6072, -inf
  %6079 = vmax.xlane.f32.xlu0 %v6078
  %v6080 = vpop.xlane.xlu0 %6079
  %v6083 = vlaneseq
  %v6084 = vshrl.u32 %v6083, 7
  %v6085 = vsub.s32 0, %v6084
  %v6086 = vrot.slane %v6077, %v6085
  %v6087 = vlaneseq
  %v6088 = vshrl.u32 %v6087, 7
  %v6089 = vsub.s32 1, %v6088
  %v6090 = vrot.slane %v6077, %v6089
  %v6091 = vlaneseq
  %v6092 = vshrl.u32 %v6091, 7
  %v6093 = vsub.s32 2, %v6092
  %v6094 = vrot.slane %v6077, %v6093
  %v6095 = vlaneseq
  %v6096 = vshrl.u32 %v6095, 7
  %v6097 = vsub.s32 3, %v6096
  %v6098 = vrot.slane %v6077, %v6097
  %v6099 = vlaneseq
  %v6100 = vshrl.u32 %v6099, 7
  %v6101 = vsub.s32 4, %v6100
  %v6102 = vrot.slane %v6077, %v6101
  %v6103 = vlaneseq
  %v6104 = vshrl.u32 %v6103, 7
  %v6105 = vsub.s32 5, %v6104
  %v6106 = vrot.slane %v6077, %v6105
  %v6107 = vlaneseq
  %v6108 = vshrl.u32 %v6107, 7
  %v6109 = vsub.s32 6, %v6108
  %v6110 = vrot.slane %v6077, %v6109
  %v6111 = vlaneseq
  %v6112 = vshrl.u32 %v6111, 7
  %v6113 = vsub.s32 7, %v6112
  %v6114 = vrot.slane %v6077, %v6113
  %v6115 = vlaneseq
  %v6116 = vshrl.u32 %v6115, 7
  %v6117 = vsub.s32 0, %v6116
  %v6118 = vrot.slane %v6080, %v6117
  %v6119 = vlaneseq
  %v6120 = vshrl.u32 %v6119, 7
  %v6121 = vsub.s32 1, %v6120
  %v6122 = vrot.slane %v6080, %v6121
  %v6123 = vlaneseq
  %v6124 = vshrl.u32 %v6123, 7
  %v6125 = vsub.s32 2, %v6124
  %v6126 = vrot.slane %v6080, %v6125
  %v6127 = vlaneseq
  %v6128 = vshrl.u32 %v6127, 7
  %v6129 = vsub.s32 3, %v6128
  %v6130 = vrot.slane %v6080, %v6129
  %v6131 = vlaneseq
  %v6132 = vshrl.u32 %v6131, 7
  %v6133 = vsub.s32 4, %v6132
  %v6134 = vrot.slane %v6080, %v6133
  %v6135 = vlaneseq
  %v6136 = vshrl.u32 %v6135, 7
  %v6137 = vsub.s32 5, %v6136
  %v6138 = vrot.slane %v6080, %v6137
  %v6139 = vlaneseq
  %v6140 = vshrl.u32 %v6139, 7
  %v6141 = vsub.s32 6, %v6140
  %v6142 = vrot.slane %v6080, %v6141
  %v6143 = vlaneseq
  %v6144 = vshrl.u32 %v6143, 7
  %v6145 = vsub.s32 7, %v6144
  %v6146 = vrot.slane %v6080, %v6145
  %vm6163 = vcmp.eq.f32.partialorder %v5915, %v6086
  %vm6164 = vcmp.eq.f32.partialorder %v5916, %v6090
  %vm6165 = vcmp.eq.f32.partialorder %v5917, %v6094
  %vm6166 = vcmp.eq.f32.partialorder %v5918, %v6098
  %vm6167 = vcmp.eq.f32.partialorder %v5919, %v6102
  %vm6168 = vcmp.eq.f32.partialorder %v5920, %v6106
  %vm6169 = vcmp.eq.f32.partialorder %v5921, %v6110
  %vm6170 = vcmp.eq.f32.partialorder %v5922, %v6114
  %vm6171 = vcmp.eq.f32.partialorder %v5923, %v6118
  %vm6172 = vcmp.eq.f32.partialorder %v5924, %v6122
  %vm6173 = vcmp.eq.f32.partialorder %v5925, %v6126
  %vm6174 = vcmp.eq.f32.partialorder %v5926, %v6130
  %vm6175 = vcmp.eq.f32.partialorder %v5927, %v6134
  %vm6176 = vcmp.eq.f32.partialorder %v5928, %v6138
  %vm6177 = vcmp.eq.f32.partialorder %v5929, %v6142
  %vm6178 = vcmp.eq.f32.partialorder %v5930, %v6146
  %v6179 = vsel %vm6163, %v5736, 8
  %v6180 = vsel %vm6164, %v5736, 8
  %v6181 = vsel %vm6165, %v5736, 8
  %v6182 = vsel %vm6166, %v5736, 8
  %v6183 = vsel %vm6167, %v5736, 8
  %v6184 = vsel %vm6168, %v5736, 8
  %v6185 = vsel %vm6169, %v5736, 8
  %v6186 = vsel %vm6170, %v5736, 8
  %v6187 = vsel %vm6171, %v5736, 8
  %v6188 = vsel %vm6172, %v5736, 8
  %v6189 = vsel %vm6173, %v5736, 8
  %v6190 = vsel %vm6174, %v5736, 8
  %v6191 = vsel %vm6175, %v5736, 8
  %v6192 = vsel %vm6176, %v5736, 8
  %v6193 = vsel %vm6177, %v5736, 8
  %v6194 = vsel %vm6178, %v5736, 8
  %6195 = vset.pattern.permute.xlu0 0
  %6196 = vperm.xlu0 %6195, %v6179
  %v6197 = vpop.permute.xlu0 %6196
  %6198 = vset.pattern.permute.xlu0 0
  %6199 = vperm.xlu0 %6198, %v6180
  %v6200 = vpop.permute.xlu0 %6199
  %6201 = vset.pattern.permute.xlu0 0
  %6202 = vperm.xlu0 %6201, %v6181
  %v6203 = vpop.permute.xlu0 %6202
  %6204 = vset.pattern.permute.xlu0 0
  %6205 = vperm.xlu0 %6204, %v6182
  %v6206 = vpop.permute.xlu0 %6205
  %6207 = vset.pattern.permute.xlu0 0
  %6208 = vperm.xlu0 %6207, %v6183
  %v6209 = vpop.permute.xlu0 %6208
  %6210 = vset.pattern.permute.xlu0 0
  %6211 = vperm.xlu0 %6210, %v6184
  %v6212 = vpop.permute.xlu0 %6211
  %6213 = vset.pattern.permute.xlu0 0
  %6214 = vperm.xlu0 %6213, %v6185
  %v6215 = vpop.permute.xlu0 %6214
  %6216 = vset.pattern.permute.xlu0 0
  %6217 = vperm.xlu0 %6216, %v6186
  %v6218 = vpop.permute.xlu0 %6217
  %6219 = vset.pattern.permute.xlu0 0
  %6220 = vperm.xlu0 %6219, %v6187
  %v6221 = vpop.permute.xlu0 %6220
  %6222 = vset.pattern.permute.xlu0 0
  %6223 = vperm.xlu0 %6222, %v6188
  %v6224 = vpop.permute.xlu0 %6223
  %6225 = vset.pattern.permute.xlu0 0
  %6226 = vperm.xlu0 %6225, %v6189
  %v6227 = vpop.permute.xlu0 %6226
  %6228 = vset.pattern.permute.xlu0 0
  %6229 = vperm.xlu0 %6228, %v6190
  %v6230 = vpop.permute.xlu0 %6229
  %6231 = vset.pattern.permute.xlu0 0
  %6232 = vperm.xlu0 %6231, %v6191
  %v6233 = vpop.permute.xlu0 %6232
  %6234 = vset.pattern.permute.xlu0 0
  %6235 = vperm.xlu0 %6234, %v6192
  %v6236 = vpop.permute.xlu0 %6235
  %6237 = vset.pattern.permute.xlu0 0
  %6238 = vperm.xlu0 %6237, %v6193
  %v6239 = vpop.permute.xlu0 %6238
  %6240 = vset.pattern.permute.xlu0 0
  %6241 = vperm.xlu0 %6240, %v6194
  %v6242 = vpop.permute.xlu0 %6241
  %v6243 = vlaneseq
  %v6244 = vshrl.u32 %v6243, 7
  %v6245 = vsub.s32 %v53, %v6244
  %v6246 = vrot.slane %v6197, %v6245
  %v6247 = vlaneseq
  %v6248 = vshrl.u32 %v6247, 7
  %v6249 = vsub.s32 %v53, %v6248
  %v6250 = vrot.slane %v6200, %v6249
  %v6251 = vlaneseq
  %v6252 = vshrl.u32 %v6251, 7
  %v6253 = vsub.s32 %v53, %v6252
  %v6254 = vrot.slane %v6203, %v6253
  %v6255 = vlaneseq
  %v6256 = vshrl.u32 %v6255, 7
  %v6257 = vsub.s32 %v53, %v6256
  %v6258 = vrot.slane %v6206, %v6257
  %v6259 = vlaneseq
  %v6260 = vshrl.u32 %v6259, 7
  %v6261 = vsub.s32 %v53, %v6260
  %v6262 = vrot.slane %v6209, %v6261
  %v6263 = vlaneseq
  %v6264 = vshrl.u32 %v6263, 7
  %v6265 = vsub.s32 %v53, %v6264
  %v6266 = vrot.slane %v6212, %v6265
  %v6267 = vlaneseq
  %v6268 = vshrl.u32 %v6267, 7
  %v6269 = vsub.s32 %v53, %v6268
  %v6270 = vrot.slane %v6215, %v6269
  %v6271 = vlaneseq
  %v6272 = vshrl.u32 %v6271, 7
  %v6273 = vsub.s32 %v53, %v6272
  %v6274 = vrot.slane %v6218, %v6273
  %v6275 = vlaneseq
  %v6276 = vshrl.u32 %v6275, 7
  %v6277 = vsub.s32 %v53, %v6276
  %v6278 = vrot.slane %v6221, %v6277
  %v6279 = vlaneseq
  %v6280 = vshrl.u32 %v6279, 7
  %v6281 = vsub.s32 %v53, %v6280
  %v6282 = vrot.slane %v6224, %v6281
  %v6283 = vlaneseq
  %v6284 = vshrl.u32 %v6283, 7
  %v6285 = vsub.s32 %v53, %v6284
  %v6286 = vrot.slane %v6227, %v6285
  %v6287 = vlaneseq
  %v6288 = vshrl.u32 %v6287, 7
  %v6289 = vsub.s32 %v53, %v6288
  %v6290 = vrot.slane %v6230, %v6289
  %v6291 = vlaneseq
  %v6292 = vshrl.u32 %v6291, 7
  %v6293 = vsub.s32 %v53, %v6292
  %v6294 = vrot.slane %v6233, %v6293
  %v6295 = vlaneseq
  %v6296 = vshrl.u32 %v6295, 7
  %v6297 = vsub.s32 %v53, %v6296
  %v6298 = vrot.slane %v6236, %v6297
  %v6299 = vlaneseq
  %v6300 = vshrl.u32 %v6299, 7
  %v6301 = vsub.s32 %v53, %v6300
  %v6302 = vrot.slane %v6239, %v6301
  %v6303 = vlaneseq
  %v6304 = vshrl.u32 %v6303, 7
  %v6305 = vsub.s32 %v53, %v6304
  %v6306 = vrot.slane %v6242, %v6305
  %v6307 = vsel %vm2658, %v6250, %v6246
  %v6308 = vsel %vm2660, %v6254, %v6307
  %v6309 = vsel %vm2662, %v6258, %v6308
  %v6310 = vsel %vm2664, %v6262, %v6309
  %v6311 = vsel %vm2666, %v6266, %v6310
  %v6312 = vsel %vm2668, %v6270, %v6311
  %v6313 = vsel %vm2670, %v6274, %v6312
  %v6314 = vsel %vm2658, %v6282, %v6278
  %v6315 = vsel %vm2660, %v6286, %v6314
  %v6316 = vsel %vm2662, %v6290, %v6315
  %v6317 = vsel %vm2664, %v6294, %v6316
  %v6318 = vsel %vm2666, %v6298, %v6317
  %v6319 = vsel %vm2668, %v6302, %v6318
  %v6320 = vsel %vm2670, %v6306, %v6319
  %v6321 = vsel %vm348, %v6313, 2147483647
  %v6322 = vand.u32 %v6321, 65535
  %v6323 = vshra.s32 %v6321, 16
  %v6324 = vcvt.s32.f32 %v6322
  %v6325 = vcvt.s32.f32 %v6323
  %6326 = vmin.xlane.f32.xlu0 %v6325
  %v6327 = vpop.xlane.xlu0 %6326
  %vm6328 = vcmp.eq.f32.partialorder %v6325, %v6327
  %v6329 = vsel %vm6328, %v6324, inf
  %6330 = vmin.xlane.f32.xlu0 %v6329
  %v6331 = vpop.xlane.xlu0 %6330
  %v6332 = vcvt.f32.s32 %v6331
  %v6333 = vcvt.f32.s32 %v6327
  %v6334 = vshll.u32 %v6333, 16
  %v6335 = vadd.s32 %v6334, %v6332
  %v6336 = vsel %vm348, %v6320, 2147483647
  %v6337 = vand.u32 %v6336, 65535
  %v6338 = vshra.s32 %v6336, 16
  %v6339 = vcvt.s32.f32 %v6337
  %v6340 = vcvt.s32.f32 %v6338
  %6341 = vmin.xlane.f32.xlu0 %v6340
  %v6342 = vpop.xlane.xlu0 %6341
  %vm6343 = vcmp.eq.f32.partialorder %v6340, %v6342
  %v6344 = vsel %vm6343, %v6339, inf
  %6345 = vmin.xlane.f32.xlu0 %v6344
  %v6346 = vpop.xlane.xlu0 %6345
  %v6347 = vcvt.f32.s32 %v6346
  %v6348 = vcvt.f32.s32 %v6342
  %v6349 = vshll.u32 %v6348, 16
  %v6350 = vadd.s32 %v6349, %v6347
  %vm6351 = vcmp.lt.s32.totalorder %v6335, 7
  %v6352 = vsel %vm6351, %v6335, 7
  %vm6353 = vcmp.lt.s32.totalorder %v6350, 7
  %v6354 = vsel %vm6353, %v6350, 7
  %v6355 = vadd.f32 %v6077, %v3451
  %v6356 = vadd.f32 %v6080, %v3458
  %v6357 = vadd.f32 %v6355, %v2456
  %v6358 = vadd.f32 %v6355, %v2463
  %v6359 = vadd.f32 %v6355, %v2470
  %v6360 = vadd.f32 %v6355, %v2477
  %v6361 = vadd.f32 %v6355, %v2484
  %v6362 = vadd.f32 %v6355, %v2491
  %v6363 = vadd.f32 %v6355, %v2498
  %v6364 = vadd.f32 %v6355, %v2505
  %v6365 = vadd.f32 %v6356, %v2456
  %v6366 = vadd.f32 %v6356, %v2463
  %v6367 = vadd.f32 %v6356, %v2470
  %v6368 = vadd.f32 %v6356, %v2477
  %v6369 = vadd.f32 %v6356, %v2484
  %v6370 = vadd.f32 %v6356, %v2491
  %v6371 = vadd.f32 %v6356, %v2498
  %v6372 = vadd.f32 %v6356, %v2505
  %6389 = vset.pattern.permute.xlu0 0
  %6390 = vperm.xlu0 %6389, %v6357
  %v6391 = vpop.permute.xlu0 %6390
  %6392 = vset.pattern.permute.xlu0 0
  %6393 = vperm.xlu0 %6392, %v6358
  %v6394 = vpop.permute.xlu0 %6393
  %6395 = vset.pattern.permute.xlu0 0
  %6396 = vperm.xlu0 %6395, %v6359
  %v6397 = vpop.permute.xlu0 %6396
  %6398 = vset.pattern.permute.xlu0 0
  %6399 = vperm.xlu0 %6398, %v6360
  %v6400 = vpop.permute.xlu0 %6399
  %6401 = vset.pattern.permute.xlu0 0
  %6402 = vperm.xlu0 %6401, %v6361
  %v6403 = vpop.permute.xlu0 %6402
  %6404 = vset.pattern.permute.xlu0 0
  %6405 = vperm.xlu0 %6404, %v6362
  %v6406 = vpop.permute.xlu0 %6405
  %6407 = vset.pattern.permute.xlu0 0
  %6408 = vperm.xlu0 %6407, %v6363
  %v6409 = vpop.permute.xlu0 %6408
  %6410 = vset.pattern.permute.xlu0 0
  %6411 = vperm.xlu0 %6410, %v6364
  %v6412 = vpop.permute.xlu0 %6411
  %6413 = vset.pattern.permute.xlu0 0
  %6414 = vperm.xlu0 %6413, %v6365
  %v6415 = vpop.permute.xlu0 %6414
  %6416 = vset.pattern.permute.xlu0 0
  %6417 = vperm.xlu0 %6416, %v6366
  %v6418 = vpop.permute.xlu0 %6417
  %6419 = vset.pattern.permute.xlu0 0
  %6420 = vperm.xlu0 %6419, %v6367
  %v6421 = vpop.permute.xlu0 %6420
  %6422 = vset.pattern.permute.xlu0 0
  %6423 = vperm.xlu0 %6422, %v6368
  %v6424 = vpop.permute.xlu0 %6423
  %6425 = vset.pattern.permute.xlu0 0
  %6426 = vperm.xlu0 %6425, %v6369
  %v6427 = vpop.permute.xlu0 %6426
  %6428 = vset.pattern.permute.xlu0 0
  %6429 = vperm.xlu0 %6428, %v6370
  %v6430 = vpop.permute.xlu0 %6429
  %6431 = vset.pattern.permute.xlu0 0
  %6432 = vperm.xlu0 %6431, %v6371
  %v6433 = vpop.permute.xlu0 %6432
  %6434 = vset.pattern.permute.xlu0 0
  %6435 = vperm.xlu0 %6434, %v6372
  %v6436 = vpop.permute.xlu0 %6435
  %v6437 = vlaneseq
  %v6438 = vshrl.u32 %v6437, 7
  %v6439 = vsub.s32 %v53, %v6438
  %v6440 = vrot.slane %v6391, %v6439
  %v6441 = vlaneseq
  %v6442 = vshrl.u32 %v6441, 7
  %v6443 = vsub.s32 %v53, %v6442
  %v6444 = vrot.slane %v6394, %v6443
  %v6445 = vlaneseq
  %v6446 = vshrl.u32 %v6445, 7
  %v6447 = vsub.s32 %v53, %v6446
  %v6448 = vrot.slane %v6397, %v6447
  %v6449 = vlaneseq
  %v6450 = vshrl.u32 %v6449, 7
  %v6451 = vsub.s32 %v53, %v6450
  %v6452 = vrot.slane %v6400, %v6451
  %v6453 = vlaneseq
  %v6454 = vshrl.u32 %v6453, 7
  %v6455 = vsub.s32 %v53, %v6454
  %v6456 = vrot.slane %v6403, %v6455
  %v6457 = vlaneseq
  %v6458 = vshrl.u32 %v6457, 7
  %v6459 = vsub.s32 %v53, %v6458
  %v6460 = vrot.slane %v6406, %v6459
  %v6461 = vlaneseq
  %v6462 = vshrl.u32 %v6461, 7
  %v6463 = vsub.s32 %v53, %v6462
  %v6464 = vrot.slane %v6409, %v6463
  %v6465 = vlaneseq
  %v6466 = vshrl.u32 %v6465, 7
  %v6467 = vsub.s32 %v53, %v6466
  %v6468 = vrot.slane %v6412, %v6467
  %v6469 = vlaneseq
  %v6470 = vshrl.u32 %v6469, 7
  %v6471 = vsub.s32 %v53, %v6470
  %v6472 = vrot.slane %v6415, %v6471
  %v6473 = vlaneseq
  %v6474 = vshrl.u32 %v6473, 7
  %v6475 = vsub.s32 %v53, %v6474
  %v6476 = vrot.slane %v6418, %v6475
  %v6477 = vlaneseq
  %v6478 = vshrl.u32 %v6477, 7
  %v6479 = vsub.s32 %v53, %v6478
  %v6480 = vrot.slane %v6421, %v6479
  %v6481 = vlaneseq
  %v6482 = vshrl.u32 %v6481, 7
  %v6483 = vsub.s32 %v53, %v6482
  %v6484 = vrot.slane %v6424, %v6483
  %v6485 = vlaneseq
  %v6486 = vshrl.u32 %v6485, 7
  %v6487 = vsub.s32 %v53, %v6486
  %v6488 = vrot.slane %v6427, %v6487
  %v6489 = vlaneseq
  %v6490 = vshrl.u32 %v6489, 7
  %v6491 = vsub.s32 %v53, %v6490
  %v6492 = vrot.slane %v6430, %v6491
  %v6493 = vlaneseq
  %v6494 = vshrl.u32 %v6493, 7
  %v6495 = vsub.s32 %v53, %v6494
  %v6496 = vrot.slane %v6433, %v6495
  %v6497 = vlaneseq
  %v6498 = vshrl.u32 %v6497, 7
  %v6499 = vsub.s32 %v53, %v6498
  %v6500 = vrot.slane %v6436, %v6499
  %v6501 = vsel %vm2658, %v6444, %v6440
  %v6502 = vsel %vm2660, %v6448, %v6501
  %v6503 = vsel %vm2662, %v6452, %v6502
  %v6504 = vsel %vm2664, %v6456, %v6503
  %v6505 = vsel %vm2666, %v6460, %v6504
  %v6506 = vsel %vm2668, %v6464, %v6505
  %v6507 = vsel %vm2670, %v6468, %v6506
  %v6508 = vsel %vm2658, %v6476, %v6472
  %v6509 = vsel %vm2660, %v6480, %v6508
  %v6510 = vsel %vm2662, %v6484, %v6509
  %v6511 = vsel %vm2664, %v6488, %v6510
  %v6512 = vsel %vm2666, %v6492, %v6511
  %v6513 = vsel %vm2668, %v6496, %v6512
  %v6514 = vsel %vm2670, %v6500, %v6513
  %v6517 = vsel %vm348, %v6507, -inf
  %6518 = vmax.xlane.f32.xlu0 %v6517
  %v6519 = vpop.xlane.xlu0 %6518
  %v6520 = vsel %vm348, %v6514, -inf
  %6521 = vmax.xlane.f32.xlu0 %v6520
  %v6522 = vpop.xlane.xlu0 %6521
  %v6525 = vlaneseq
  %v6526 = vshrl.u32 %v6525, 7
  %v6527 = vsub.s32 0, %v6526
  %v6528 = vrot.slane %v6519, %v6527
  %v6529 = vlaneseq
  %v6530 = vshrl.u32 %v6529, 7
  %v6531 = vsub.s32 1, %v6530
  %v6532 = vrot.slane %v6519, %v6531
  %v6533 = vlaneseq
  %v6534 = vshrl.u32 %v6533, 7
  %v6535 = vsub.s32 2, %v6534
  %v6536 = vrot.slane %v6519, %v6535
  %v6537 = vlaneseq
  %v6538 = vshrl.u32 %v6537, 7
  %v6539 = vsub.s32 3, %v6538
  %v6540 = vrot.slane %v6519, %v6539
  %v6541 = vlaneseq
  %v6542 = vshrl.u32 %v6541, 7
  %v6543 = vsub.s32 4, %v6542
  %v6544 = vrot.slane %v6519, %v6543
  %v6545 = vlaneseq
  %v6546 = vshrl.u32 %v6545, 7
  %v6547 = vsub.s32 5, %v6546
  %v6548 = vrot.slane %v6519, %v6547
  %v6549 = vlaneseq
  %v6550 = vshrl.u32 %v6549, 7
  %v6551 = vsub.s32 6, %v6550
  %v6552 = vrot.slane %v6519, %v6551
  %v6553 = vlaneseq
  %v6554 = vshrl.u32 %v6553, 7
  %v6555 = vsub.s32 7, %v6554
  %v6556 = vrot.slane %v6519, %v6555
  %v6557 = vlaneseq
  %v6558 = vshrl.u32 %v6557, 7
  %v6559 = vsub.s32 0, %v6558
  %v6560 = vrot.slane %v6522, %v6559
  %v6561 = vlaneseq
  %v6562 = vshrl.u32 %v6561, 7
  %v6563 = vsub.s32 1, %v6562
  %v6564 = vrot.slane %v6522, %v6563
  %v6565 = vlaneseq
  %v6566 = vshrl.u32 %v6565, 7
  %v6567 = vsub.s32 2, %v6566
  %v6568 = vrot.slane %v6522, %v6567
  %v6569 = vlaneseq
  %v6570 = vshrl.u32 %v6569, 7
  %v6571 = vsub.s32 3, %v6570
  %v6572 = vrot.slane %v6522, %v6571
  %v6573 = vlaneseq
  %v6574 = vshrl.u32 %v6573, 7
  %v6575 = vsub.s32 4, %v6574
  %v6576 = vrot.slane %v6522, %v6575
  %v6577 = vlaneseq
  %v6578 = vshrl.u32 %v6577, 7
  %v6579 = vsub.s32 5, %v6578
  %v6580 = vrot.slane %v6522, %v6579
  %v6581 = vlaneseq
  %v6582 = vshrl.u32 %v6581, 7
  %v6583 = vsub.s32 6, %v6582
  %v6584 = vrot.slane %v6522, %v6583
  %v6585 = vlaneseq
  %v6586 = vshrl.u32 %v6585, 7
  %v6587 = vsub.s32 7, %v6586
  %v6588 = vrot.slane %v6522, %v6587
  %vm6605 = vcmp.eq.f32.partialorder %v6357, %v6528
  %vm6606 = vcmp.eq.f32.partialorder %v6358, %v6532
  %vm6607 = vcmp.eq.f32.partialorder %v6359, %v6536
  %vm6608 = vcmp.eq.f32.partialorder %v6360, %v6540
  %vm6609 = vcmp.eq.f32.partialorder %v6361, %v6544
  %vm6610 = vcmp.eq.f32.partialorder %v6362, %v6548
  %vm6611 = vcmp.eq.f32.partialorder %v6363, %v6552
  %vm6612 = vcmp.eq.f32.partialorder %v6364, %v6556
  %vm6613 = vcmp.eq.f32.partialorder %v6365, %v6560
  %vm6614 = vcmp.eq.f32.partialorder %v6366, %v6564
  %vm6615 = vcmp.eq.f32.partialorder %v6367, %v6568
  %vm6616 = vcmp.eq.f32.partialorder %v6368, %v6572
  %vm6617 = vcmp.eq.f32.partialorder %v6369, %v6576
  %vm6618 = vcmp.eq.f32.partialorder %v6370, %v6580
  %vm6619 = vcmp.eq.f32.partialorder %v6371, %v6584
  %vm6620 = vcmp.eq.f32.partialorder %v6372, %v6588
  %v6621 = vsel %vm6605, %v5736, 8
  %v6622 = vsel %vm6606, %v5736, 8
  %v6623 = vsel %vm6607, %v5736, 8
  %v6624 = vsel %vm6608, %v5736, 8
  %v6625 = vsel %vm6609, %v5736, 8
  %v6626 = vsel %vm6610, %v5736, 8
  %v6627 = vsel %vm6611, %v5736, 8
  %v6628 = vsel %vm6612, %v5736, 8
  %v6629 = vsel %vm6613, %v5736, 8
  %v6630 = vsel %vm6614, %v5736, 8
  %v6631 = vsel %vm6615, %v5736, 8
  %v6632 = vsel %vm6616, %v5736, 8
  %v6633 = vsel %vm6617, %v5736, 8
  %v6634 = vsel %vm6618, %v5736, 8
  %v6635 = vsel %vm6619, %v5736, 8
  %v6636 = vsel %vm6620, %v5736, 8
  %6637 = vset.pattern.permute.xlu0 0
  %6638 = vperm.xlu0 %6637, %v6621
  %v6639 = vpop.permute.xlu0 %6638
  %6640 = vset.pattern.permute.xlu0 0
  %6641 = vperm.xlu0 %6640, %v6622
  %v6642 = vpop.permute.xlu0 %6641
  %6643 = vset.pattern.permute.xlu0 0
  %6644 = vperm.xlu0 %6643, %v6623
  %v6645 = vpop.permute.xlu0 %6644
  %6646 = vset.pattern.permute.xlu0 0
  %6647 = vperm.xlu0 %6646, %v6624
  %v6648 = vpop.permute.xlu0 %6647
  %6649 = vset.pattern.permute.xlu0 0
  %6650 = vperm.xlu0 %6649, %v6625
  %v6651 = vpop.permute.xlu0 %6650
  %6652 = vset.pattern.permute.xlu0 0
  %6653 = vperm.xlu0 %6652, %v6626
  %v6654 = vpop.permute.xlu0 %6653
  %6655 = vset.pattern.permute.xlu0 0
  %6656 = vperm.xlu0 %6655, %v6627
  %v6657 = vpop.permute.xlu0 %6656
  %6658 = vset.pattern.permute.xlu0 0
  %6659 = vperm.xlu0 %6658, %v6628
  %v6660 = vpop.permute.xlu0 %6659
  %6661 = vset.pattern.permute.xlu0 0
  %6662 = vperm.xlu0 %6661, %v6629
  %v6663 = vpop.permute.xlu0 %6662
  %6664 = vset.pattern.permute.xlu0 0
  %6665 = vperm.xlu0 %6664, %v6630
  %v6666 = vpop.permute.xlu0 %6665
  %6667 = vset.pattern.permute.xlu0 0
  %6668 = vperm.xlu0 %6667, %v6631
  %v6669 = vpop.permute.xlu0 %6668
  %6670 = vset.pattern.permute.xlu0 0
  %6671 = vperm.xlu0 %6670, %v6632
  %v6672 = vpop.permute.xlu0 %6671
  %6673 = vset.pattern.permute.xlu0 0
  %6674 = vperm.xlu0 %6673, %v6633
  %v6675 = vpop.permute.xlu0 %6674
  %6676 = vset.pattern.permute.xlu0 0
  %6677 = vperm.xlu0 %6676, %v6634
  %v6678 = vpop.permute.xlu0 %6677
  %6679 = vset.pattern.permute.xlu0 0
  %6680 = vperm.xlu0 %6679, %v6635
  %v6681 = vpop.permute.xlu0 %6680
  %6682 = vset.pattern.permute.xlu0 0
  %6683 = vperm.xlu0 %6682, %v6636
  %v6684 = vpop.permute.xlu0 %6683
  %v6685 = vlaneseq
  %v6686 = vshrl.u32 %v6685, 7
  %v6687 = vsub.s32 %v53, %v6686
  %v6688 = vrot.slane %v6639, %v6687
  %v6689 = vlaneseq
  %v6690 = vshrl.u32 %v6689, 7
  %v6691 = vsub.s32 %v53, %v6690
  %v6692 = vrot.slane %v6642, %v6691
  %v6693 = vlaneseq
  %v6694 = vshrl.u32 %v6693, 7
  %v6695 = vsub.s32 %v53, %v6694
  %v6696 = vrot.slane %v6645, %v6695
  %v6697 = vlaneseq
  %v6698 = vshrl.u32 %v6697, 7
  %v6699 = vsub.s32 %v53, %v6698
  %v6700 = vrot.slane %v6648, %v6699
  %v6701 = vlaneseq
  %v6702 = vshrl.u32 %v6701, 7
  %v6703 = vsub.s32 %v53, %v6702
  %v6704 = vrot.slane %v6651, %v6703
  %v6705 = vlaneseq
  %v6706 = vshrl.u32 %v6705, 7
  %v6707 = vsub.s32 %v53, %v6706
  %v6708 = vrot.slane %v6654, %v6707
  %v6709 = vlaneseq
  %v6710 = vshrl.u32 %v6709, 7
  %v6711 = vsub.s32 %v53, %v6710
  %v6712 = vrot.slane %v6657, %v6711
  %v6713 = vlaneseq
  %v6714 = vshrl.u32 %v6713, 7
  %v6715 = vsub.s32 %v53, %v6714
  %v6716 = vrot.slane %v6660, %v6715
  %v6717 = vlaneseq
  %v6718 = vshrl.u32 %v6717, 7
  %v6719 = vsub.s32 %v53, %v6718
  %v6720 = vrot.slane %v6663, %v6719
  %v6721 = vlaneseq
  %v6722 = vshrl.u32 %v6721, 7
  %v6723 = vsub.s32 %v53, %v6722
  %v6724 = vrot.slane %v6666, %v6723
  %v6725 = vlaneseq
  %v6726 = vshrl.u32 %v6725, 7
  %v6727 = vsub.s32 %v53, %v6726
  %v6728 = vrot.slane %v6669, %v6727
  %v6729 = vlaneseq
  %v6730 = vshrl.u32 %v6729, 7
  %v6731 = vsub.s32 %v53, %v6730
  %v6732 = vrot.slane %v6672, %v6731
  %v6733 = vlaneseq
  %v6734 = vshrl.u32 %v6733, 7
  %v6735 = vsub.s32 %v53, %v6734
  %v6736 = vrot.slane %v6675, %v6735
  %v6737 = vlaneseq
  %v6738 = vshrl.u32 %v6737, 7
  %v6739 = vsub.s32 %v53, %v6738
  %v6740 = vrot.slane %v6678, %v6739
  %v6741 = vlaneseq
  %v6742 = vshrl.u32 %v6741, 7
  %v6743 = vsub.s32 %v53, %v6742
  %v6744 = vrot.slane %v6681, %v6743
  %v6745 = vlaneseq
  %v6746 = vshrl.u32 %v6745, 7
  %v6747 = vsub.s32 %v53, %v6746
  %v6748 = vrot.slane %v6684, %v6747
  %v6749 = vsel %vm2658, %v6692, %v6688
  %v6750 = vsel %vm2660, %v6696, %v6749
  %v6751 = vsel %vm2662, %v6700, %v6750
  %v6752 = vsel %vm2664, %v6704, %v6751
  %v6753 = vsel %vm2666, %v6708, %v6752
  %v6754 = vsel %vm2668, %v6712, %v6753
  %v6755 = vsel %vm2670, %v6716, %v6754
  %v6756 = vsel %vm2658, %v6724, %v6720
  %v6757 = vsel %vm2660, %v6728, %v6756
  %v6758 = vsel %vm2662, %v6732, %v6757
  %v6759 = vsel %vm2664, %v6736, %v6758
  %v6760 = vsel %vm2666, %v6740, %v6759
  %v6761 = vsel %vm2668, %v6744, %v6760
  %v6762 = vsel %vm2670, %v6748, %v6761
  %v6763 = vsel %vm348, %v6755, 2147483647
  %v6764 = vand.u32 %v6763, 65535
  %v6765 = vshra.s32 %v6763, 16
  %v6766 = vcvt.s32.f32 %v6764
  %v6767 = vcvt.s32.f32 %v6765
  %6768 = vmin.xlane.f32.xlu0 %v6767
  %v6769 = vpop.xlane.xlu0 %6768
  %vm6770 = vcmp.eq.f32.partialorder %v6767, %v6769
  %v6771 = vsel %vm6770, %v6766, inf
  %6772 = vmin.xlane.f32.xlu0 %v6771
  %v6773 = vpop.xlane.xlu0 %6772
  %v6774 = vcvt.f32.s32 %v6773
  %v6775 = vcvt.f32.s32 %v6769
  %v6776 = vshll.u32 %v6775, 16
  %v6777 = vadd.s32 %v6776, %v6774
  %v6778 = vsel %vm348, %v6762, 2147483647
  %v6779 = vand.u32 %v6778, 65535
  %v6780 = vshra.s32 %v6778, 16
  %v6781 = vcvt.s32.f32 %v6779
  %v6782 = vcvt.s32.f32 %v6780
  %6783 = vmin.xlane.f32.xlu0 %v6782
  %v6784 = vpop.xlane.xlu0 %6783
  %vm6785 = vcmp.eq.f32.partialorder %v6782, %v6784
  %v6786 = vsel %vm6785, %v6781, inf
  %6787 = vmin.xlane.f32.xlu0 %v6786
  %v6788 = vpop.xlane.xlu0 %6787
  %v6789 = vcvt.f32.s32 %v6788
  %v6790 = vcvt.f32.s32 %v6784
  %v6791 = vshll.u32 %v6790, 16
  %v6792 = vadd.s32 %v6791, %v6789
  %vm6793 = vcmp.lt.s32.totalorder %v6777, 7
  %v6794 = vsel %vm6793, %v6777, 7
  %vm6795 = vcmp.lt.s32.totalorder %v6792, 7
  %v6796 = vsel %vm6795, %v6792, 7
  %v6797 = vadd.f32 %v6519, %v3922
  %v6798 = vadd.f32 %v6522, %v3929
  %v6799 = vadd.f32 %v6797, %v2456
  %v6800 = vadd.f32 %v6797, %v2463
  %v6801 = vadd.f32 %v6797, %v2470
  %v6802 = vadd.f32 %v6797, %v2477
  %v6803 = vadd.f32 %v6797, %v2484
  %v6804 = vadd.f32 %v6797, %v2491
  %v6805 = vadd.f32 %v6797, %v2498
  %v6806 = vadd.f32 %v6797, %v2505
  %v6807 = vadd.f32 %v6798, %v2456
  %v6808 = vadd.f32 %v6798, %v2463
  %v6809 = vadd.f32 %v6798, %v2470
  %v6810 = vadd.f32 %v6798, %v2477
  %v6811 = vadd.f32 %v6798, %v2484
  %v6812 = vadd.f32 %v6798, %v2491
  %v6813 = vadd.f32 %v6798, %v2498
  %v6814 = vadd.f32 %v6798, %v2505
  %6831 = vset.pattern.permute.xlu0 0
  %6832 = vperm.xlu0 %6831, %v6799
  %v6833 = vpop.permute.xlu0 %6832
  %6834 = vset.pattern.permute.xlu0 0
  %6835 = vperm.xlu0 %6834, %v6800
  %v6836 = vpop.permute.xlu0 %6835
  %6837 = vset.pattern.permute.xlu0 0
  %6838 = vperm.xlu0 %6837, %v6801
  %v6839 = vpop.permute.xlu0 %6838
  %6840 = vset.pattern.permute.xlu0 0
  %6841 = vperm.xlu0 %6840, %v6802
  %v6842 = vpop.permute.xlu0 %6841
  %6843 = vset.pattern.permute.xlu0 0
  %6844 = vperm.xlu0 %6843, %v6803
  %v6845 = vpop.permute.xlu0 %6844
  %6846 = vset.pattern.permute.xlu0 0
  %6847 = vperm.xlu0 %6846, %v6804
  %v6848 = vpop.permute.xlu0 %6847
  %6849 = vset.pattern.permute.xlu0 0
  %6850 = vperm.xlu0 %6849, %v6805
  %v6851 = vpop.permute.xlu0 %6850
  %6852 = vset.pattern.permute.xlu0 0
  %6853 = vperm.xlu0 %6852, %v6806
  %v6854 = vpop.permute.xlu0 %6853
  %6855 = vset.pattern.permute.xlu0 0
  %6856 = vperm.xlu0 %6855, %v6807
  %v6857 = vpop.permute.xlu0 %6856
  %6858 = vset.pattern.permute.xlu0 0
  %6859 = vperm.xlu0 %6858, %v6808
  %v6860 = vpop.permute.xlu0 %6859
  %6861 = vset.pattern.permute.xlu0 0
  %6862 = vperm.xlu0 %6861, %v6809
  %v6863 = vpop.permute.xlu0 %6862
  %6864 = vset.pattern.permute.xlu0 0
  %6865 = vperm.xlu0 %6864, %v6810
  %v6866 = vpop.permute.xlu0 %6865
  %6867 = vset.pattern.permute.xlu0 0
  %6868 = vperm.xlu0 %6867, %v6811
  %v6869 = vpop.permute.xlu0 %6868
  %6870 = vset.pattern.permute.xlu0 0
  %6871 = vperm.xlu0 %6870, %v6812
  %v6872 = vpop.permute.xlu0 %6871
  %6873 = vset.pattern.permute.xlu0 0
  %6874 = vperm.xlu0 %6873, %v6813
  %v6875 = vpop.permute.xlu0 %6874
  %6876 = vset.pattern.permute.xlu0 0
  %6877 = vperm.xlu0 %6876, %v6814
  %v6878 = vpop.permute.xlu0 %6877
  %v6879 = vlaneseq
  %v6880 = vshrl.u32 %v6879, 7
  %v6881 = vsub.s32 %v53, %v6880
  %v6882 = vrot.slane %v6833, %v6881
  %v6883 = vlaneseq
  %v6884 = vshrl.u32 %v6883, 7
  %v6885 = vsub.s32 %v53, %v6884
  %v6886 = vrot.slane %v6836, %v6885
  %v6887 = vlaneseq
  %v6888 = vshrl.u32 %v6887, 7
  %v6889 = vsub.s32 %v53, %v6888
  %v6890 = vrot.slane %v6839, %v6889
  %v6891 = vlaneseq
  %v6892 = vshrl.u32 %v6891, 7
  %v6893 = vsub.s32 %v53, %v6892
  %v6894 = vrot.slane %v6842, %v6893
  %v6895 = vlaneseq
  %v6896 = vshrl.u32 %v6895, 7
  %v6897 = vsub.s32 %v53, %v6896
  %v6898 = vrot.slane %v6845, %v6897
  %v6899 = vlaneseq
  %v6900 = vshrl.u32 %v6899, 7
  %v6901 = vsub.s32 %v53, %v6900
  %v6902 = vrot.slane %v6848, %v6901
  %v6903 = vlaneseq
  %v6904 = vshrl.u32 %v6903, 7
  %v6905 = vsub.s32 %v53, %v6904
  %v6906 = vrot.slane %v6851, %v6905
  %v6907 = vlaneseq
  %v6908 = vshrl.u32 %v6907, 7
  %v6909 = vsub.s32 %v53, %v6908
  %v6910 = vrot.slane %v6854, %v6909
  %v6911 = vlaneseq
  %v6912 = vshrl.u32 %v6911, 7
  %v6913 = vsub.s32 %v53, %v6912
  %v6914 = vrot.slane %v6857, %v6913
  %v6915 = vlaneseq
  %v6916 = vshrl.u32 %v6915, 7
  %v6917 = vsub.s32 %v53, %v6916
  %v6918 = vrot.slane %v6860, %v6917
  %v6919 = vlaneseq
  %v6920 = vshrl.u32 %v6919, 7
  %v6921 = vsub.s32 %v53, %v6920
  %v6922 = vrot.slane %v6863, %v6921
  %v6923 = vlaneseq
  %v6924 = vshrl.u32 %v6923, 7
  %v6925 = vsub.s32 %v53, %v6924
  %v6926 = vrot.slane %v6866, %v6925
  %v6927 = vlaneseq
  %v6928 = vshrl.u32 %v6927, 7
  %v6929 = vsub.s32 %v53, %v6928
  %v6930 = vrot.slane %v6869, %v6929
  %v6931 = vlaneseq
  %v6932 = vshrl.u32 %v6931, 7
  %v6933 = vsub.s32 %v53, %v6932
  %v6934 = vrot.slane %v6872, %v6933
  %v6935 = vlaneseq
  %v6936 = vshrl.u32 %v6935, 7
  %v6937 = vsub.s32 %v53, %v6936
  %v6938 = vrot.slane %v6875, %v6937
  %v6939 = vlaneseq
  %v6940 = vshrl.u32 %v6939, 7
  %v6941 = vsub.s32 %v53, %v6940
  %v6942 = vrot.slane %v6878, %v6941
  %v6943 = vsel %vm2658, %v6886, %v6882
  %v6944 = vsel %vm2660, %v6890, %v6943
  %v6945 = vsel %vm2662, %v6894, %v6944
  %v6946 = vsel %vm2664, %v6898, %v6945
  %v6947 = vsel %vm2666, %v6902, %v6946
  %v6948 = vsel %vm2668, %v6906, %v6947
  %v6949 = vsel %vm2670, %v6910, %v6948
  %v6950 = vsel %vm2658, %v6918, %v6914
  %v6951 = vsel %vm2660, %v6922, %v6950
  %v6952 = vsel %vm2662, %v6926, %v6951
  %v6953 = vsel %vm2664, %v6930, %v6952
  %v6954 = vsel %vm2666, %v6934, %v6953
  %v6955 = vsel %vm2668, %v6938, %v6954
  %v6956 = vsel %vm2670, %v6942, %v6955
  %v6959 = vsel %vm348, %v6949, -inf
  %6960 = vmax.xlane.f32.xlu0 %v6959
  %v6961 = vpop.xlane.xlu0 %6960
  %v6962 = vsel %vm348, %v6956, -inf
  %6963 = vmax.xlane.f32.xlu0 %v6962
  %v6964 = vpop.xlane.xlu0 %6963
  %v6967 = vlaneseq
  %v6968 = vshrl.u32 %v6967, 7
  %v6969 = vsub.s32 0, %v6968
  %v6970 = vrot.slane %v6961, %v6969
  %v6971 = vlaneseq
  %v6972 = vshrl.u32 %v6971, 7
  %v6973 = vsub.s32 1, %v6972
  %v6974 = vrot.slane %v6961, %v6973
  %v6975 = vlaneseq
  %v6976 = vshrl.u32 %v6975, 7
  %v6977 = vsub.s32 2, %v6976
  %v6978 = vrot.slane %v6961, %v6977
  %v6979 = vlaneseq
  %v6980 = vshrl.u32 %v6979, 7
  %v6981 = vsub.s32 3, %v6980
  %v6982 = vrot.slane %v6961, %v6981
  %v6983 = vlaneseq
  %v6984 = vshrl.u32 %v6983, 7
  %v6985 = vsub.s32 4, %v6984
  %v6986 = vrot.slane %v6961, %v6985
  %v6987 = vlaneseq
  %v6988 = vshrl.u32 %v6987, 7
  %v6989 = vsub.s32 5, %v6988
  %v6990 = vrot.slane %v6961, %v6989
  %v6991 = vlaneseq
  %v6992 = vshrl.u32 %v6991, 7
  %v6993 = vsub.s32 6, %v6992
  %v6994 = vrot.slane %v6961, %v6993
  %v6995 = vlaneseq
  %v6996 = vshrl.u32 %v6995, 7
  %v6997 = vsub.s32 7, %v6996
  %v6998 = vrot.slane %v6961, %v6997
  %v6999 = vlaneseq
  %v7000 = vshrl.u32 %v6999, 7
  %v7001 = vsub.s32 0, %v7000
  %v7002 = vrot.slane %v6964, %v7001
  %v7003 = vlaneseq
  %v7004 = vshrl.u32 %v7003, 7
  %v7005 = vsub.s32 1, %v7004
  %v7006 = vrot.slane %v6964, %v7005
  %v7007 = vlaneseq
  %v7008 = vshrl.u32 %v7007, 7
  %v7009 = vsub.s32 2, %v7008
  %v7010 = vrot.slane %v6964, %v7009
  %v7011 = vlaneseq
  %v7012 = vshrl.u32 %v7011, 7
  %v7013 = vsub.s32 3, %v7012
  %v7014 = vrot.slane %v6964, %v7013
  %v7015 = vlaneseq
  %v7016 = vshrl.u32 %v7015, 7
  %v7017 = vsub.s32 4, %v7016
  %v7018 = vrot.slane %v6964, %v7017
  %v7019 = vlaneseq
  %v7020 = vshrl.u32 %v7019, 7
  %v7021 = vsub.s32 5, %v7020
  %v7022 = vrot.slane %v6964, %v7021
  %v7023 = vlaneseq
  %v7024 = vshrl.u32 %v7023, 7
  %v7025 = vsub.s32 6, %v7024
  %v7026 = vrot.slane %v6964, %v7025
  %v7027 = vlaneseq
  %v7028 = vshrl.u32 %v7027, 7
  %v7029 = vsub.s32 7, %v7028
  %v7030 = vrot.slane %v6964, %v7029
  %vm7047 = vcmp.eq.f32.partialorder %v6799, %v6970
  %vm7048 = vcmp.eq.f32.partialorder %v6800, %v6974
  %vm7049 = vcmp.eq.f32.partialorder %v6801, %v6978
  %vm7050 = vcmp.eq.f32.partialorder %v6802, %v6982
  %vm7051 = vcmp.eq.f32.partialorder %v6803, %v6986
  %vm7052 = vcmp.eq.f32.partialorder %v6804, %v6990
  %vm7053 = vcmp.eq.f32.partialorder %v6805, %v6994
  %vm7054 = vcmp.eq.f32.partialorder %v6806, %v6998
  %vm7055 = vcmp.eq.f32.partialorder %v6807, %v7002
  %vm7056 = vcmp.eq.f32.partialorder %v6808, %v7006
  %vm7057 = vcmp.eq.f32.partialorder %v6809, %v7010
  %vm7058 = vcmp.eq.f32.partialorder %v6810, %v7014
  %vm7059 = vcmp.eq.f32.partialorder %v6811, %v7018
  %vm7060 = vcmp.eq.f32.partialorder %v6812, %v7022
  %vm7061 = vcmp.eq.f32.partialorder %v6813, %v7026
  %vm7062 = vcmp.eq.f32.partialorder %v6814, %v7030
  %v7063 = vsel %vm7047, %v5736, 8
  %v7064 = vsel %vm7048, %v5736, 8
  %v7065 = vsel %vm7049, %v5736, 8
  %v7066 = vsel %vm7050, %v5736, 8
  %v7067 = vsel %vm7051, %v5736, 8
  %v7068 = vsel %vm7052, %v5736, 8
  %v7069 = vsel %vm7053, %v5736, 8
  %v7070 = vsel %vm7054, %v5736, 8
  %v7071 = vsel %vm7055, %v5736, 8
  %v7072 = vsel %vm7056, %v5736, 8
  %v7073 = vsel %vm7057, %v5736, 8
  %v7074 = vsel %vm7058, %v5736, 8
  %v7075 = vsel %vm7059, %v5736, 8
  %v7076 = vsel %vm7060, %v5736, 8
  %v7077 = vsel %vm7061, %v5736, 8
  %v7078 = vsel %vm7062, %v5736, 8
  %7079 = vset.pattern.permute.xlu0 0
  %7080 = vperm.xlu0 %7079, %v7063
  %v7081 = vpop.permute.xlu0 %7080
  %7082 = vset.pattern.permute.xlu0 0
  %7083 = vperm.xlu0 %7082, %v7064
  %v7084 = vpop.permute.xlu0 %7083
  %7085 = vset.pattern.permute.xlu0 0
  %7086 = vperm.xlu0 %7085, %v7065
  %v7087 = vpop.permute.xlu0 %7086
  %7088 = vset.pattern.permute.xlu0 0
  %7089 = vperm.xlu0 %7088, %v7066
  %v7090 = vpop.permute.xlu0 %7089
  %7091 = vset.pattern.permute.xlu0 0
  %7092 = vperm.xlu0 %7091, %v7067
  %v7093 = vpop.permute.xlu0 %7092
  %7094 = vset.pattern.permute.xlu0 0
  %7095 = vperm.xlu0 %7094, %v7068
  %v7096 = vpop.permute.xlu0 %7095
  %7097 = vset.pattern.permute.xlu0 0
  %7098 = vperm.xlu0 %7097, %v7069
  %v7099 = vpop.permute.xlu0 %7098
  %7100 = vset.pattern.permute.xlu0 0
  %7101 = vperm.xlu0 %7100, %v7070
  %v7102 = vpop.permute.xlu0 %7101
  %7103 = vset.pattern.permute.xlu0 0
  %7104 = vperm.xlu0 %7103, %v7071
  %v7105 = vpop.permute.xlu0 %7104
  %7106 = vset.pattern.permute.xlu0 0
  %7107 = vperm.xlu0 %7106, %v7072
  %v7108 = vpop.permute.xlu0 %7107
  %7109 = vset.pattern.permute.xlu0 0
  %7110 = vperm.xlu0 %7109, %v7073
  %v7111 = vpop.permute.xlu0 %7110
  %7112 = vset.pattern.permute.xlu0 0
  %7113 = vperm.xlu0 %7112, %v7074
  %v7114 = vpop.permute.xlu0 %7113
  %7115 = vset.pattern.permute.xlu0 0
  %7116 = vperm.xlu0 %7115, %v7075
  %v7117 = vpop.permute.xlu0 %7116
  %7118 = vset.pattern.permute.xlu0 0
  %7119 = vperm.xlu0 %7118, %v7076
  %v7120 = vpop.permute.xlu0 %7119
  %7121 = vset.pattern.permute.xlu0 0
  %7122 = vperm.xlu0 %7121, %v7077
  %v7123 = vpop.permute.xlu0 %7122
  %7124 = vset.pattern.permute.xlu0 0
  %7125 = vperm.xlu0 %7124, %v7078
  %v7126 = vpop.permute.xlu0 %7125
  %v7127 = vlaneseq
  %v7128 = vshrl.u32 %v7127, 7
  %v7129 = vsub.s32 %v53, %v7128
  %v7130 = vrot.slane %v7081, %v7129
  %v7131 = vlaneseq
  %v7132 = vshrl.u32 %v7131, 7
  %v7133 = vsub.s32 %v53, %v7132
  %v7134 = vrot.slane %v7084, %v7133
  %v7135 = vlaneseq
  %v7136 = vshrl.u32 %v7135, 7
  %v7137 = vsub.s32 %v53, %v7136
  %v7138 = vrot.slane %v7087, %v7137
  %v7139 = vlaneseq
  %v7140 = vshrl.u32 %v7139, 7
  %v7141 = vsub.s32 %v53, %v7140
  %v7142 = vrot.slane %v7090, %v7141
  %v7143 = vlaneseq
  %v7144 = vshrl.u32 %v7143, 7
  %v7145 = vsub.s32 %v53, %v7144
  %v7146 = vrot.slane %v7093, %v7145
  %v7147 = vlaneseq
  %v7148 = vshrl.u32 %v7147, 7
  %v7149 = vsub.s32 %v53, %v7148
  %v7150 = vrot.slane %v7096, %v7149
  %v7151 = vlaneseq
  %v7152 = vshrl.u32 %v7151, 7
  %v7153 = vsub.s32 %v53, %v7152
  %v7154 = vrot.slane %v7099, %v7153
  %v7155 = vlaneseq
  %v7156 = vshrl.u32 %v7155, 7
  %v7157 = vsub.s32 %v53, %v7156
  %v7158 = vrot.slane %v7102, %v7157
  %v7159 = vlaneseq
  %v7160 = vshrl.u32 %v7159, 7
  %v7161 = vsub.s32 %v53, %v7160
  %v7162 = vrot.slane %v7105, %v7161
  %v7163 = vlaneseq
  %v7164 = vshrl.u32 %v7163, 7
  %v7165 = vsub.s32 %v53, %v7164
  %v7166 = vrot.slane %v7108, %v7165
  %v7167 = vlaneseq
  %v7168 = vshrl.u32 %v7167, 7
  %v7169 = vsub.s32 %v53, %v7168
  %v7170 = vrot.slane %v7111, %v7169
  %v7171 = vlaneseq
  %v7172 = vshrl.u32 %v7171, 7
  %v7173 = vsub.s32 %v53, %v7172
  %v7174 = vrot.slane %v7114, %v7173
  %v7175 = vlaneseq
  %v7176 = vshrl.u32 %v7175, 7
  %v7177 = vsub.s32 %v53, %v7176
  %v7178 = vrot.slane %v7117, %v7177
  %v7179 = vlaneseq
  %v7180 = vshrl.u32 %v7179, 7
  %v7181 = vsub.s32 %v53, %v7180
  %v7182 = vrot.slane %v7120, %v7181
  %v7183 = vlaneseq
  %v7184 = vshrl.u32 %v7183, 7
  %v7185 = vsub.s32 %v53, %v7184
  %v7186 = vrot.slane %v7123, %v7185
  %v7187 = vlaneseq
  %v7188 = vshrl.u32 %v7187, 7
  %v7189 = vsub.s32 %v53, %v7188
  %v7190 = vrot.slane %v7126, %v7189
  %v7191 = vsel %vm2658, %v7134, %v7130
  %v7192 = vsel %vm2660, %v7138, %v7191
  %v7193 = vsel %vm2662, %v7142, %v7192
  %v7194 = vsel %vm2664, %v7146, %v7193
  %v7195 = vsel %vm2666, %v7150, %v7194
  %v7196 = vsel %vm2668, %v7154, %v7195
  %v7197 = vsel %vm2670, %v7158, %v7196
  %v7198 = vsel %vm2658, %v7166, %v7162
  %v7199 = vsel %vm2660, %v7170, %v7198
  %v7200 = vsel %vm2662, %v7174, %v7199
  %v7201 = vsel %vm2664, %v7178, %v7200
  %v7202 = vsel %vm2666, %v7182, %v7201
  %v7203 = vsel %vm2668, %v7186, %v7202
  %v7204 = vsel %vm2670, %v7190, %v7203
  %v7205 = vsel %vm348, %v7197, 2147483647
  %v7206 = vand.u32 %v7205, 65535
  %v7207 = vshra.s32 %v7205, 16
  %v7208 = vcvt.s32.f32 %v7206
  %v7209 = vcvt.s32.f32 %v7207
  %7210 = vmin.xlane.f32.xlu0 %v7209
  %v7211 = vpop.xlane.xlu0 %7210
  %vm7212 = vcmp.eq.f32.partialorder %v7209, %v7211
  %v7213 = vsel %vm7212, %v7208, inf
  %7214 = vmin.xlane.f32.xlu0 %v7213
  %v7215 = vpop.xlane.xlu0 %7214
  %v7216 = vcvt.f32.s32 %v7215
  %v7217 = vcvt.f32.s32 %v7211
  %v7218 = vshll.u32 %v7217, 16
  %v7219 = vadd.s32 %v7218, %v7216
  %v7220 = vsel %vm348, %v7204, 2147483647
  %v7221 = vand.u32 %v7220, 65535
  %v7222 = vshra.s32 %v7220, 16
  %v7223 = vcvt.s32.f32 %v7221
  %v7224 = vcvt.s32.f32 %v7222
  %7225 = vmin.xlane.f32.xlu0 %v7224
  %v7226 = vpop.xlane.xlu0 %7225
  %vm7227 = vcmp.eq.f32.partialorder %v7224, %v7226
  %v7228 = vsel %vm7227, %v7223, inf
  %7229 = vmin.xlane.f32.xlu0 %v7228
  %v7230 = vpop.xlane.xlu0 %7229
  %v7231 = vcvt.f32.s32 %v7230
  %v7232 = vcvt.f32.s32 %v7226
  %v7233 = vshll.u32 %v7232, 16
  %v7234 = vadd.s32 %v7233, %v7231
  %vm7235 = vcmp.lt.s32.totalorder %v7219, 7
  %v7236 = vsel %vm7235, %v7219, 7
  %vm7237 = vcmp.lt.s32.totalorder %v7234, 7
  %v7238 = vsel %vm7237, %v7234, 7
  %v7239 = vadd.f32 %v6961, %v4393
  %v7240 = vadd.f32 %v6964, %v4400
  %v7241 = vadd.f32 %v7239, %v2456
  %v7242 = vadd.f32 %v7239, %v2463
  %v7243 = vadd.f32 %v7239, %v2470
  %v7244 = vadd.f32 %v7239, %v2477
  %v7245 = vadd.f32 %v7239, %v2484
  %v7246 = vadd.f32 %v7239, %v2491
  %v7247 = vadd.f32 %v7239, %v2498
  %v7248 = vadd.f32 %v7239, %v2505
  %v7249 = vadd.f32 %v7240, %v2456
  %v7250 = vadd.f32 %v7240, %v2463
  %v7251 = vadd.f32 %v7240, %v2470
  %v7252 = vadd.f32 %v7240, %v2477
  %v7253 = vadd.f32 %v7240, %v2484
  %v7254 = vadd.f32 %v7240, %v2491
  %v7255 = vadd.f32 %v7240, %v2498
  %v7256 = vadd.f32 %v7240, %v2505
  %7273 = vset.pattern.permute.xlu0 0
  %7274 = vperm.xlu0 %7273, %v7241
  %v7275 = vpop.permute.xlu0 %7274
  %7276 = vset.pattern.permute.xlu0 0
  %7277 = vperm.xlu0 %7276, %v7242
  %v7278 = vpop.permute.xlu0 %7277
  %7279 = vset.pattern.permute.xlu0 0
  %7280 = vperm.xlu0 %7279, %v7243
  %v7281 = vpop.permute.xlu0 %7280
  %7282 = vset.pattern.permute.xlu0 0
  %7283 = vperm.xlu0 %7282, %v7244
  %v7284 = vpop.permute.xlu0 %7283
  %7285 = vset.pattern.permute.xlu0 0
  %7286 = vperm.xlu0 %7285, %v7245
  %v7287 = vpop.permute.xlu0 %7286
  %7288 = vset.pattern.permute.xlu0 0
  %7289 = vperm.xlu0 %7288, %v7246
  %v7290 = vpop.permute.xlu0 %7289
  %7291 = vset.pattern.permute.xlu0 0
  %7292 = vperm.xlu0 %7291, %v7247
  %v7293 = vpop.permute.xlu0 %7292
  %7294 = vset.pattern.permute.xlu0 0
  %7295 = vperm.xlu0 %7294, %v7248
  %v7296 = vpop.permute.xlu0 %7295
  %7297 = vset.pattern.permute.xlu0 0
  %7298 = vperm.xlu0 %7297, %v7249
  %v7299 = vpop.permute.xlu0 %7298
  %7300 = vset.pattern.permute.xlu0 0
  %7301 = vperm.xlu0 %7300, %v7250
  %v7302 = vpop.permute.xlu0 %7301
  %7303 = vset.pattern.permute.xlu0 0
  %7304 = vperm.xlu0 %7303, %v7251
  %v7305 = vpop.permute.xlu0 %7304
  %7306 = vset.pattern.permute.xlu0 0
  %7307 = vperm.xlu0 %7306, %v7252
  %v7308 = vpop.permute.xlu0 %7307
  %7309 = vset.pattern.permute.xlu0 0
  %7310 = vperm.xlu0 %7309, %v7253
  %v7311 = vpop.permute.xlu0 %7310
  %7312 = vset.pattern.permute.xlu0 0
  %7313 = vperm.xlu0 %7312, %v7254
  %v7314 = vpop.permute.xlu0 %7313
  %7315 = vset.pattern.permute.xlu0 0
  %7316 = vperm.xlu0 %7315, %v7255
  %v7317 = vpop.permute.xlu0 %7316
  %7318 = vset.pattern.permute.xlu0 0
  %7319 = vperm.xlu0 %7318, %v7256
  %v7320 = vpop.permute.xlu0 %7319
  %v7321 = vlaneseq
  %v7322 = vshrl.u32 %v7321, 7
  %v7323 = vsub.s32 %v53, %v7322
  %v7324 = vrot.slane %v7275, %v7323
  %v7325 = vlaneseq
  %v7326 = vshrl.u32 %v7325, 7
  %v7327 = vsub.s32 %v53, %v7326
  %v7328 = vrot.slane %v7278, %v7327
  %v7329 = vlaneseq
  %v7330 = vshrl.u32 %v7329, 7
  %v7331 = vsub.s32 %v53, %v7330
  %v7332 = vrot.slane %v7281, %v7331
  %v7333 = vlaneseq
  %v7334 = vshrl.u32 %v7333, 7
  %v7335 = vsub.s32 %v53, %v7334
  %v7336 = vrot.slane %v7284, %v7335
  %v7337 = vlaneseq
  %v7338 = vshrl.u32 %v7337, 7
  %v7339 = vsub.s32 %v53, %v7338
  %v7340 = vrot.slane %v7287, %v7339
  %v7341 = vlaneseq
  %v7342 = vshrl.u32 %v7341, 7
  %v7343 = vsub.s32 %v53, %v7342
  %v7344 = vrot.slane %v7290, %v7343
  %v7345 = vlaneseq
  %v7346 = vshrl.u32 %v7345, 7
  %v7347 = vsub.s32 %v53, %v7346
  %v7348 = vrot.slane %v7293, %v7347
  %v7349 = vlaneseq
  %v7350 = vshrl.u32 %v7349, 7
  %v7351 = vsub.s32 %v53, %v7350
  %v7352 = vrot.slane %v7296, %v7351
  %v7353 = vlaneseq
  %v7354 = vshrl.u32 %v7353, 7
  %v7355 = vsub.s32 %v53, %v7354
  %v7356 = vrot.slane %v7299, %v7355
  %v7357 = vlaneseq
  %v7358 = vshrl.u32 %v7357, 7
  %v7359 = vsub.s32 %v53, %v7358
  %v7360 = vrot.slane %v7302, %v7359
  %v7361 = vlaneseq
  %v7362 = vshrl.u32 %v7361, 7
  %v7363 = vsub.s32 %v53, %v7362
  %v7364 = vrot.slane %v7305, %v7363
  %v7365 = vlaneseq
  %v7366 = vshrl.u32 %v7365, 7
  %v7367 = vsub.s32 %v53, %v7366
  %v7368 = vrot.slane %v7308, %v7367
  %v7369 = vlaneseq
  %v7370 = vshrl.u32 %v7369, 7
  %v7371 = vsub.s32 %v53, %v7370
  %v7372 = vrot.slane %v7311, %v7371
  %v7373 = vlaneseq
  %v7374 = vshrl.u32 %v7373, 7
  %v7375 = vsub.s32 %v53, %v7374
  %v7376 = vrot.slane %v7314, %v7375
  %v7377 = vlaneseq
  %v7378 = vshrl.u32 %v7377, 7
  %v7379 = vsub.s32 %v53, %v7378
  %v7380 = vrot.slane %v7317, %v7379
  %v7381 = vlaneseq
  %v7382 = vshrl.u32 %v7381, 7
  %v7383 = vsub.s32 %v53, %v7382
  %v7384 = vrot.slane %v7320, %v7383
  %v7385 = vsel %vm2658, %v7328, %v7324
  %v7386 = vsel %vm2660, %v7332, %v7385
  %v7387 = vsel %vm2662, %v7336, %v7386
  %v7388 = vsel %vm2664, %v7340, %v7387
  %v7389 = vsel %vm2666, %v7344, %v7388
  %v7390 = vsel %vm2668, %v7348, %v7389
  %v7391 = vsel %vm2670, %v7352, %v7390
  %v7392 = vsel %vm2658, %v7360, %v7356
  %v7393 = vsel %vm2660, %v7364, %v7392
  %v7394 = vsel %vm2662, %v7368, %v7393
  %v7395 = vsel %vm2664, %v7372, %v7394
  %v7396 = vsel %vm2666, %v7376, %v7395
  %v7397 = vsel %vm2668, %v7380, %v7396
  %v7398 = vsel %vm2670, %v7384, %v7397
  %v7401 = vsel %vm348, %v7391, -inf
  %7402 = vmax.xlane.f32.xlu0 %v7401
  %v7403 = vpop.xlane.xlu0 %7402
  %v7404 = vsel %vm348, %v7398, -inf
  %7405 = vmax.xlane.f32.xlu0 %v7404
  %v7406 = vpop.xlane.xlu0 %7405
  %v7409 = vlaneseq
  %v7410 = vshrl.u32 %v7409, 7
  %v7411 = vsub.s32 0, %v7410
  %v7412 = vrot.slane %v7403, %v7411
  %v7413 = vlaneseq
  %v7414 = vshrl.u32 %v7413, 7
  %v7415 = vsub.s32 1, %v7414
  %v7416 = vrot.slane %v7403, %v7415
  %v7417 = vlaneseq
  %v7418 = vshrl.u32 %v7417, 7
  %v7419 = vsub.s32 2, %v7418
  %v7420 = vrot.slane %v7403, %v7419
  %v7421 = vlaneseq
  %v7422 = vshrl.u32 %v7421, 7
  %v7423 = vsub.s32 3, %v7422
  %v7424 = vrot.slane %v7403, %v7423
  %v7425 = vlaneseq
  %v7426 = vshrl.u32 %v7425, 7
  %v7427 = vsub.s32 4, %v7426
  %v7428 = vrot.slane %v7403, %v7427
  %v7429 = vlaneseq
  %v7430 = vshrl.u32 %v7429, 7
  %v7431 = vsub.s32 5, %v7430
  %v7432 = vrot.slane %v7403, %v7431
  %v7433 = vlaneseq
  %v7434 = vshrl.u32 %v7433, 7
  %v7435 = vsub.s32 6, %v7434
  %v7436 = vrot.slane %v7403, %v7435
  %v7437 = vlaneseq
  %v7438 = vshrl.u32 %v7437, 7
  %v7439 = vsub.s32 7, %v7438
  %v7440 = vrot.slane %v7403, %v7439
  %v7441 = vlaneseq
  %v7442 = vshrl.u32 %v7441, 7
  %v7443 = vsub.s32 0, %v7442
  %v7444 = vrot.slane %v7406, %v7443
  %v7445 = vlaneseq
  %v7446 = vshrl.u32 %v7445, 7
  %v7447 = vsub.s32 1, %v7446
  %v7448 = vrot.slane %v7406, %v7447
  %v7449 = vlaneseq
  %v7450 = vshrl.u32 %v7449, 7
  %v7451 = vsub.s32 2, %v7450
  %v7452 = vrot.slane %v7406, %v7451
  %v7453 = vlaneseq
  %v7454 = vshrl.u32 %v7453, 7
  %v7455 = vsub.s32 3, %v7454
  %v7456 = vrot.slane %v7406, %v7455
  %v7457 = vlaneseq
  %v7458 = vshrl.u32 %v7457, 7
  %v7459 = vsub.s32 4, %v7458
  %v7460 = vrot.slane %v7406, %v7459
  %v7461 = vlaneseq
  %v7462 = vshrl.u32 %v7461, 7
  %v7463 = vsub.s32 5, %v7462
  %v7464 = vrot.slane %v7406, %v7463
  %v7465 = vlaneseq
  %v7466 = vshrl.u32 %v7465, 7
  %v7467 = vsub.s32 6, %v7466
  %v7468 = vrot.slane %v7406, %v7467
  %v7469 = vlaneseq
  %v7470 = vshrl.u32 %v7469, 7
  %v7471 = vsub.s32 7, %v7470
  %v7472 = vrot.slane %v7406, %v7471
  %vm7489 = vcmp.eq.f32.partialorder %v7241, %v7412
  %vm7490 = vcmp.eq.f32.partialorder %v7242, %v7416
  %vm7491 = vcmp.eq.f32.partialorder %v7243, %v7420
  %vm7492 = vcmp.eq.f32.partialorder %v7244, %v7424
  %vm7493 = vcmp.eq.f32.partialorder %v7245, %v7428
  %vm7494 = vcmp.eq.f32.partialorder %v7246, %v7432
  %vm7495 = vcmp.eq.f32.partialorder %v7247, %v7436
  %vm7496 = vcmp.eq.f32.partialorder %v7248, %v7440
  %vm7497 = vcmp.eq.f32.partialorder %v7249, %v7444
  %vm7498 = vcmp.eq.f32.partialorder %v7250, %v7448
  %vm7499 = vcmp.eq.f32.partialorder %v7251, %v7452
  %vm7500 = vcmp.eq.f32.partialorder %v7252, %v7456
  %vm7501 = vcmp.eq.f32.partialorder %v7253, %v7460
  %vm7502 = vcmp.eq.f32.partialorder %v7254, %v7464
  %vm7503 = vcmp.eq.f32.partialorder %v7255, %v7468
  %vm7504 = vcmp.eq.f32.partialorder %v7256, %v7472
  %v7505 = vsel %vm7489, %v5736, 8
  %v7506 = vsel %vm7490, %v5736, 8
  %v7507 = vsel %vm7491, %v5736, 8
  %v7508 = vsel %vm7492, %v5736, 8
  %v7509 = vsel %vm7493, %v5736, 8
  %v7510 = vsel %vm7494, %v5736, 8
  %v7511 = vsel %vm7495, %v5736, 8
  %v7512 = vsel %vm7496, %v5736, 8
  %v7513 = vsel %vm7497, %v5736, 8
  %v7514 = vsel %vm7498, %v5736, 8
  %v7515 = vsel %vm7499, %v5736, 8
  %v7516 = vsel %vm7500, %v5736, 8
  %v7517 = vsel %vm7501, %v5736, 8
  %v7518 = vsel %vm7502, %v5736, 8
  %v7519 = vsel %vm7503, %v5736, 8
  %v7520 = vsel %vm7504, %v5736, 8
  %7521 = vset.pattern.permute.xlu0 0
  %7522 = vperm.xlu0 %7521, %v7505
  %v7523 = vpop.permute.xlu0 %7522
  %7524 = vset.pattern.permute.xlu0 0
  %7525 = vperm.xlu0 %7524, %v7506
  %v7526 = vpop.permute.xlu0 %7525
  %7527 = vset.pattern.permute.xlu0 0
  %7528 = vperm.xlu0 %7527, %v7507
  %v7529 = vpop.permute.xlu0 %7528
  %7530 = vset.pattern.permute.xlu0 0
  %7531 = vperm.xlu0 %7530, %v7508
  %v7532 = vpop.permute.xlu0 %7531
  %7533 = vset.pattern.permute.xlu0 0
  %7534 = vperm.xlu0 %7533, %v7509
  %v7535 = vpop.permute.xlu0 %7534
  %7536 = vset.pattern.permute.xlu0 0
  %7537 = vperm.xlu0 %7536, %v7510
  %v7538 = vpop.permute.xlu0 %7537
  %7539 = vset.pattern.permute.xlu0 0
  %7540 = vperm.xlu0 %7539, %v7511
  %v7541 = vpop.permute.xlu0 %7540
  %7542 = vset.pattern.permute.xlu0 0
  %7543 = vperm.xlu0 %7542, %v7512
  %v7544 = vpop.permute.xlu0 %7543
  %7545 = vset.pattern.permute.xlu0 0
  %7546 = vperm.xlu0 %7545, %v7513
  %v7547 = vpop.permute.xlu0 %7546
  %7548 = vset.pattern.permute.xlu0 0
  %7549 = vperm.xlu0 %7548, %v7514
  %v7550 = vpop.permute.xlu0 %7549
  %7551 = vset.pattern.permute.xlu0 0
  %7552 = vperm.xlu0 %7551, %v7515
  %v7553 = vpop.permute.xlu0 %7552
  %7554 = vset.pattern.permute.xlu0 0
  %7555 = vperm.xlu0 %7554, %v7516
  %v7556 = vpop.permute.xlu0 %7555
  %7557 = vset.pattern.permute.xlu0 0
  %7558 = vperm.xlu0 %7557, %v7517
  %v7559 = vpop.permute.xlu0 %7558
  %7560 = vset.pattern.permute.xlu0 0
  %7561 = vperm.xlu0 %7560, %v7518
  %v7562 = vpop.permute.xlu0 %7561
  %7563 = vset.pattern.permute.xlu0 0
  %7564 = vperm.xlu0 %7563, %v7519
  %v7565 = vpop.permute.xlu0 %7564
  %7566 = vset.pattern.permute.xlu0 0
  %7567 = vperm.xlu0 %7566, %v7520
  %v7568 = vpop.permute.xlu0 %7567
  %v7569 = vlaneseq
  %v7570 = vshrl.u32 %v7569, 7
  %v7571 = vsub.s32 %v53, %v7570
  %v7572 = vrot.slane %v7523, %v7571
  %v7573 = vlaneseq
  %v7574 = vshrl.u32 %v7573, 7
  %v7575 = vsub.s32 %v53, %v7574
  %v7576 = vrot.slane %v7526, %v7575
  %v7577 = vlaneseq
  %v7578 = vshrl.u32 %v7577, 7
  %v7579 = vsub.s32 %v53, %v7578
  %v7580 = vrot.slane %v7529, %v7579
  %v7581 = vlaneseq
  %v7582 = vshrl.u32 %v7581, 7
  %v7583 = vsub.s32 %v53, %v7582
  %v7584 = vrot.slane %v7532, %v7583
  %v7585 = vlaneseq
  %v7586 = vshrl.u32 %v7585, 7
  %v7587 = vsub.s32 %v53, %v7586
  %v7588 = vrot.slane %v7535, %v7587
  %v7589 = vlaneseq
  %v7590 = vshrl.u32 %v7589, 7
  %v7591 = vsub.s32 %v53, %v7590
  %v7592 = vrot.slane %v7538, %v7591
  %v7593 = vlaneseq
  %v7594 = vshrl.u32 %v7593, 7
  %v7595 = vsub.s32 %v53, %v7594
  %v7596 = vrot.slane %v7541, %v7595
  %v7597 = vlaneseq
  %v7598 = vshrl.u32 %v7597, 7
  %v7599 = vsub.s32 %v53, %v7598
  %v7600 = vrot.slane %v7544, %v7599
  %v7601 = vlaneseq
  %v7602 = vshrl.u32 %v7601, 7
  %v7603 = vsub.s32 %v53, %v7602
  %v7604 = vrot.slane %v7547, %v7603
  %v7605 = vlaneseq
  %v7606 = vshrl.u32 %v7605, 7
  %v7607 = vsub.s32 %v53, %v7606
  %v7608 = vrot.slane %v7550, %v7607
  %v7609 = vlaneseq
  %v7610 = vshrl.u32 %v7609, 7
  %v7611 = vsub.s32 %v53, %v7610
  %v7612 = vrot.slane %v7553, %v7611
  %v7613 = vlaneseq
  %v7614 = vshrl.u32 %v7613, 7
  %v7615 = vsub.s32 %v53, %v7614
  %v7616 = vrot.slane %v7556, %v7615
  %v7617 = vlaneseq
  %v7618 = vshrl.u32 %v7617, 7
  %v7619 = vsub.s32 %v53, %v7618
  %v7620 = vrot.slane %v7559, %v7619
  %v7621 = vlaneseq
  %v7622 = vshrl.u32 %v7621, 7
  %v7623 = vsub.s32 %v53, %v7622
  %v7624 = vrot.slane %v7562, %v7623
  %v7625 = vlaneseq
  %v7626 = vshrl.u32 %v7625, 7
  %v7627 = vsub.s32 %v53, %v7626
  %v7628 = vrot.slane %v7565, %v7627
  %v7629 = vlaneseq
  %v7630 = vshrl.u32 %v7629, 7
  %v7631 = vsub.s32 %v53, %v7630
  %v7632 = vrot.slane %v7568, %v7631
  %v7633 = vsel %vm2658, %v7576, %v7572
  %v7634 = vsel %vm2660, %v7580, %v7633
  %v7635 = vsel %vm2662, %v7584, %v7634
  %v7636 = vsel %vm2664, %v7588, %v7635
  %v7637 = vsel %vm2666, %v7592, %v7636
  %v7638 = vsel %vm2668, %v7596, %v7637
  %v7639 = vsel %vm2670, %v7600, %v7638
  %v7640 = vsel %vm2658, %v7608, %v7604
  %v7641 = vsel %vm2660, %v7612, %v7640
  %v7642 = vsel %vm2662, %v7616, %v7641
  %v7643 = vsel %vm2664, %v7620, %v7642
  %v7644 = vsel %vm2666, %v7624, %v7643
  %v7645 = vsel %vm2668, %v7628, %v7644
  %v7646 = vsel %vm2670, %v7632, %v7645
  %v7647 = vsel %vm348, %v7639, 2147483647
  %v7648 = vand.u32 %v7647, 65535
  %v7649 = vshra.s32 %v7647, 16
  %v7650 = vcvt.s32.f32 %v7648
  %v7651 = vcvt.s32.f32 %v7649
  %7652 = vmin.xlane.f32.xlu0 %v7651
  %v7653 = vpop.xlane.xlu0 %7652
  %vm7654 = vcmp.eq.f32.partialorder %v7651, %v7653
  %v7655 = vsel %vm7654, %v7650, inf
  %7656 = vmin.xlane.f32.xlu0 %v7655
  %v7657 = vpop.xlane.xlu0 %7656
  %v7658 = vcvt.f32.s32 %v7657
  %v7659 = vcvt.f32.s32 %v7653
  %v7660 = vshll.u32 %v7659, 16
  %v7661 = vadd.s32 %v7660, %v7658
  %v7662 = vsel %vm348, %v7646, 2147483647
  %v7663 = vand.u32 %v7662, 65535
  %v7664 = vshra.s32 %v7662, 16
  %v7665 = vcvt.s32.f32 %v7663
  %v7666 = vcvt.s32.f32 %v7664
  %7667 = vmin.xlane.f32.xlu0 %v7666
  %v7668 = vpop.xlane.xlu0 %7667
  %vm7669 = vcmp.eq.f32.partialorder %v7666, %v7668
  %v7670 = vsel %vm7669, %v7665, inf
  %7671 = vmin.xlane.f32.xlu0 %v7670
  %v7672 = vpop.xlane.xlu0 %7671
  %v7673 = vcvt.f32.s32 %v7672
  %v7674 = vcvt.f32.s32 %v7668
  %v7675 = vshll.u32 %v7674, 16
  %v7676 = vadd.s32 %v7675, %v7673
  %vm7677 = vcmp.lt.s32.totalorder %v7661, 7
  %v7678 = vsel %vm7677, %v7661, 7
  %vm7679 = vcmp.lt.s32.totalorder %v7676, 7
  %v7680 = vsel %vm7679, %v7676, 7
  %v7681 = vadd.f32 %v7403, %v4864
  %v7682 = vadd.f32 %v7406, %v4871
  %v7683 = vadd.f32 %v7681, %v2456
  %v7684 = vadd.f32 %v7681, %v2463
  %v7685 = vadd.f32 %v7681, %v2470
  %v7686 = vadd.f32 %v7681, %v2477
  %v7687 = vadd.f32 %v7681, %v2484
  %v7688 = vadd.f32 %v7681, %v2491
  %v7689 = vadd.f32 %v7681, %v2498
  %v7690 = vadd.f32 %v7681, %v2505
  %v7691 = vadd.f32 %v7682, %v2456
  %v7692 = vadd.f32 %v7682, %v2463
  %v7693 = vadd.f32 %v7682, %v2470
  %v7694 = vadd.f32 %v7682, %v2477
  %v7695 = vadd.f32 %v7682, %v2484
  %v7696 = vadd.f32 %v7682, %v2491
  %v7697 = vadd.f32 %v7682, %v2498
  %v7698 = vadd.f32 %v7682, %v2505
  %7715 = vset.pattern.permute.xlu0 0
  %7716 = vperm.xlu0 %7715, %v7683
  %v7717 = vpop.permute.xlu0 %7716
  %7718 = vset.pattern.permute.xlu0 0
  %7719 = vperm.xlu0 %7718, %v7684
  %v7720 = vpop.permute.xlu0 %7719
  %7721 = vset.pattern.permute.xlu0 0
  %7722 = vperm.xlu0 %7721, %v7685
  %v7723 = vpop.permute.xlu0 %7722
  %7724 = vset.pattern.permute.xlu0 0
  %7725 = vperm.xlu0 %7724, %v7686
  %v7726 = vpop.permute.xlu0 %7725
  %7727 = vset.pattern.permute.xlu0 0
  %7728 = vperm.xlu0 %7727, %v7687
  %v7729 = vpop.permute.xlu0 %7728
  %7730 = vset.pattern.permute.xlu0 0
  %7731 = vperm.xlu0 %7730, %v7688
  %v7732 = vpop.permute.xlu0 %7731
  %7733 = vset.pattern.permute.xlu0 0
  %7734 = vperm.xlu0 %7733, %v7689
  %v7735 = vpop.permute.xlu0 %7734
  %7736 = vset.pattern.permute.xlu0 0
  %7737 = vperm.xlu0 %7736, %v7690
  %v7738 = vpop.permute.xlu0 %7737
  %7739 = vset.pattern.permute.xlu0 0
  %7740 = vperm.xlu0 %7739, %v7691
  %v7741 = vpop.permute.xlu0 %7740
  %7742 = vset.pattern.permute.xlu0 0
  %7743 = vperm.xlu0 %7742, %v7692
  %v7744 = vpop.permute.xlu0 %7743
  %7745 = vset.pattern.permute.xlu0 0
  %7746 = vperm.xlu0 %7745, %v7693
  %v7747 = vpop.permute.xlu0 %7746
  %7748 = vset.pattern.permute.xlu0 0
  %7749 = vperm.xlu0 %7748, %v7694
  %v7750 = vpop.permute.xlu0 %7749
  %7751 = vset.pattern.permute.xlu0 0
  %7752 = vperm.xlu0 %7751, %v7695
  %v7753 = vpop.permute.xlu0 %7752
  %7754 = vset.pattern.permute.xlu0 0
  %7755 = vperm.xlu0 %7754, %v7696
  %v7756 = vpop.permute.xlu0 %7755
  %7757 = vset.pattern.permute.xlu0 0
  %7758 = vperm.xlu0 %7757, %v7697
  %v7759 = vpop.permute.xlu0 %7758
  %7760 = vset.pattern.permute.xlu0 0
  %7761 = vperm.xlu0 %7760, %v7698
  %v7762 = vpop.permute.xlu0 %7761
  %v7763 = vlaneseq
  %v7764 = vshrl.u32 %v7763, 7
  %v7765 = vsub.s32 %v53, %v7764
  %v7766 = vrot.slane %v7717, %v7765
  %v7767 = vlaneseq
  %v7768 = vshrl.u32 %v7767, 7
  %v7769 = vsub.s32 %v53, %v7768
  %v7770 = vrot.slane %v7720, %v7769
  %v7771 = vlaneseq
  %v7772 = vshrl.u32 %v7771, 7
  %v7773 = vsub.s32 %v53, %v7772
  %v7774 = vrot.slane %v7723, %v7773
  %v7775 = vlaneseq
  %v7776 = vshrl.u32 %v7775, 7
  %v7777 = vsub.s32 %v53, %v7776
  %v7778 = vrot.slane %v7726, %v7777
  %v7779 = vlaneseq
  %v7780 = vshrl.u32 %v7779, 7
  %v7781 = vsub.s32 %v53, %v7780
  %v7782 = vrot.slane %v7729, %v7781
  %v7783 = vlaneseq
  %v7784 = vshrl.u32 %v7783, 7
  %v7785 = vsub.s32 %v53, %v7784
  %v7786 = vrot.slane %v7732, %v7785
  %v7787 = vlaneseq
  %v7788 = vshrl.u32 %v7787, 7
  %v7789 = vsub.s32 %v53, %v7788
  %v7790 = vrot.slane %v7735, %v7789
  %v7791 = vlaneseq
  %v7792 = vshrl.u32 %v7791, 7
  %v7793 = vsub.s32 %v53, %v7792
  %v7794 = vrot.slane %v7738, %v7793
  %v7795 = vlaneseq
  %v7796 = vshrl.u32 %v7795, 7
  %v7797 = vsub.s32 %v53, %v7796
  %v7798 = vrot.slane %v7741, %v7797
  %v7799 = vlaneseq
  %v7800 = vshrl.u32 %v7799, 7
  %v7801 = vsub.s32 %v53, %v7800
  %v7802 = vrot.slane %v7744, %v7801
  %v7803 = vlaneseq
  %v7804 = vshrl.u32 %v7803, 7
  %v7805 = vsub.s32 %v53, %v7804
  %v7806 = vrot.slane %v7747, %v7805
  %v7807 = vlaneseq
  %v7808 = vshrl.u32 %v7807, 7
  %v7809 = vsub.s32 %v53, %v7808
  %v7810 = vrot.slane %v7750, %v7809
  %v7811 = vlaneseq
  %v7812 = vshrl.u32 %v7811, 7
  %v7813 = vsub.s32 %v53, %v7812
  %v7814 = vrot.slane %v7753, %v7813
  %v7815 = vlaneseq
  %v7816 = vshrl.u32 %v7815, 7
  %v7817 = vsub.s32 %v53, %v7816
  %v7818 = vrot.slane %v7756, %v7817
  %v7819 = vlaneseq
  %v7820 = vshrl.u32 %v7819, 7
  %v7821 = vsub.s32 %v53, %v7820
  %v7822 = vrot.slane %v7759, %v7821
  %v7823 = vlaneseq
  %v7824 = vshrl.u32 %v7823, 7
  %v7825 = vsub.s32 %v53, %v7824
  %v7826 = vrot.slane %v7762, %v7825
  %v7827 = vsel %vm2658, %v7770, %v7766
  %v7828 = vsel %vm2660, %v7774, %v7827
  %v7829 = vsel %vm2662, %v7778, %v7828
  %v7830 = vsel %vm2664, %v7782, %v7829
  %v7831 = vsel %vm2666, %v7786, %v7830
  %v7832 = vsel %vm2668, %v7790, %v7831
  %v7833 = vsel %vm2670, %v7794, %v7832
  %v7834 = vsel %vm2658, %v7802, %v7798
  %v7835 = vsel %vm2660, %v7806, %v7834
  %v7836 = vsel %vm2662, %v7810, %v7835
  %v7837 = vsel %vm2664, %v7814, %v7836
  %v7838 = vsel %vm2666, %v7818, %v7837
  %v7839 = vsel %vm2668, %v7822, %v7838
  %v7840 = vsel %vm2670, %v7826, %v7839
  %v7843 = vsel %vm348, %v7833, -inf
  %7844 = vmax.xlane.f32.xlu0 %v7843
  %v7845 = vpop.xlane.xlu0 %7844
  %v7846 = vsel %vm348, %v7840, -inf
  %7847 = vmax.xlane.f32.xlu0 %v7846
  %v7848 = vpop.xlane.xlu0 %7847
  %v7851 = vlaneseq
  %v7852 = vshrl.u32 %v7851, 7
  %v7853 = vsub.s32 0, %v7852
  %v7854 = vrot.slane %v7845, %v7853
  %v7855 = vlaneseq
  %v7856 = vshrl.u32 %v7855, 7
  %v7857 = vsub.s32 1, %v7856
  %v7858 = vrot.slane %v7845, %v7857
  %v7859 = vlaneseq
  %v7860 = vshrl.u32 %v7859, 7
  %v7861 = vsub.s32 2, %v7860
  %v7862 = vrot.slane %v7845, %v7861
  %v7863 = vlaneseq
  %v7864 = vshrl.u32 %v7863, 7
  %v7865 = vsub.s32 3, %v7864
  %v7866 = vrot.slane %v7845, %v7865
  %v7867 = vlaneseq
  %v7868 = vshrl.u32 %v7867, 7
  %v7869 = vsub.s32 4, %v7868
  %v7870 = vrot.slane %v7845, %v7869
  %v7871 = vlaneseq
  %v7872 = vshrl.u32 %v7871, 7
  %v7873 = vsub.s32 5, %v7872
  %v7874 = vrot.slane %v7845, %v7873
  %v7875 = vlaneseq
  %v7876 = vshrl.u32 %v7875, 7
  %v7877 = vsub.s32 6, %v7876
  %v7878 = vrot.slane %v7845, %v7877
  %v7879 = vlaneseq
  %v7880 = vshrl.u32 %v7879, 7
  %v7881 = vsub.s32 7, %v7880
  %v7882 = vrot.slane %v7845, %v7881
  %v7883 = vlaneseq
  %v7884 = vshrl.u32 %v7883, 7
  %v7885 = vsub.s32 0, %v7884
  %v7886 = vrot.slane %v7848, %v7885
  %v7887 = vlaneseq
  %v7888 = vshrl.u32 %v7887, 7
  %v7889 = vsub.s32 1, %v7888
  %v7890 = vrot.slane %v7848, %v7889
  %v7891 = vlaneseq
  %v7892 = vshrl.u32 %v7891, 7
  %v7893 = vsub.s32 2, %v7892
  %v7894 = vrot.slane %v7848, %v7893
  %v7895 = vlaneseq
  %v7896 = vshrl.u32 %v7895, 7
  %v7897 = vsub.s32 3, %v7896
  %v7898 = vrot.slane %v7848, %v7897
  %v7899 = vlaneseq
  %v7900 = vshrl.u32 %v7899, 7
  %v7901 = vsub.s32 4, %v7900
  %v7902 = vrot.slane %v7848, %v7901
  %v7903 = vlaneseq
  %v7904 = vshrl.u32 %v7903, 7
  %v7905 = vsub.s32 5, %v7904
  %v7906 = vrot.slane %v7848, %v7905
  %v7907 = vlaneseq
  %v7908 = vshrl.u32 %v7907, 7
  %v7909 = vsub.s32 6, %v7908
  %v7910 = vrot.slane %v7848, %v7909
  %v7911 = vlaneseq
  %v7912 = vshrl.u32 %v7911, 7
  %v7913 = vsub.s32 7, %v7912
  %v7914 = vrot.slane %v7848, %v7913
  %vm7931 = vcmp.eq.f32.partialorder %v7683, %v7854
  %vm7932 = vcmp.eq.f32.partialorder %v7684, %v7858
  %vm7933 = vcmp.eq.f32.partialorder %v7685, %v7862
  %vm7934 = vcmp.eq.f32.partialorder %v7686, %v7866
  %vm7935 = vcmp.eq.f32.partialorder %v7687, %v7870
  %vm7936 = vcmp.eq.f32.partialorder %v7688, %v7874
  %vm7937 = vcmp.eq.f32.partialorder %v7689, %v7878
  %vm7938 = vcmp.eq.f32.partialorder %v7690, %v7882
  %vm7939 = vcmp.eq.f32.partialorder %v7691, %v7886
  %vm7940 = vcmp.eq.f32.partialorder %v7692, %v7890
  %vm7941 = vcmp.eq.f32.partialorder %v7693, %v7894
  %vm7942 = vcmp.eq.f32.partialorder %v7694, %v7898
  %vm7943 = vcmp.eq.f32.partialorder %v7695, %v7902
  %vm7944 = vcmp.eq.f32.partialorder %v7696, %v7906
  %vm7945 = vcmp.eq.f32.partialorder %v7697, %v7910
  %vm7946 = vcmp.eq.f32.partialorder %v7698, %v7914
  %v7947 = vsel %vm7931, %v5736, 8
  %v7948 = vsel %vm7932, %v5736, 8
  %v7949 = vsel %vm7933, %v5736, 8
  %v7950 = vsel %vm7934, %v5736, 8
  %v7951 = vsel %vm7935, %v5736, 8
  %v7952 = vsel %vm7936, %v5736, 8
  %v7953 = vsel %vm7937, %v5736, 8
  %v7954 = vsel %vm7938, %v5736, 8
  %v7955 = vsel %vm7939, %v5736, 8
  %v7956 = vsel %vm7940, %v5736, 8
  %v7957 = vsel %vm7941, %v5736, 8
  %v7958 = vsel %vm7942, %v5736, 8
  %v7959 = vsel %vm7943, %v5736, 8
  %v7960 = vsel %vm7944, %v5736, 8
  %v7961 = vsel %vm7945, %v5736, 8
  %v7962 = vsel %vm7946, %v5736, 8
  %7963 = vset.pattern.permute.xlu0 0
  %7964 = vperm.xlu0 %7963, %v7947
  %v7965 = vpop.permute.xlu0 %7964
  %7966 = vset.pattern.permute.xlu0 0
  %7967 = vperm.xlu0 %7966, %v7948
  %v7968 = vpop.permute.xlu0 %7967
  %7969 = vset.pattern.permute.xlu0 0
  %7970 = vperm.xlu0 %7969, %v7949
  %v7971 = vpop.permute.xlu0 %7970
  %7972 = vset.pattern.permute.xlu0 0
  %7973 = vperm.xlu0 %7972, %v7950
  %v7974 = vpop.permute.xlu0 %7973
  %7975 = vset.pattern.permute.xlu0 0
  %7976 = vperm.xlu0 %7975, %v7951
  %v7977 = vpop.permute.xlu0 %7976
  %7978 = vset.pattern.permute.xlu0 0
  %7979 = vperm.xlu0 %7978, %v7952
  %v7980 = vpop.permute.xlu0 %7979
  %7981 = vset.pattern.permute.xlu0 0
  %7982 = vperm.xlu0 %7981, %v7953
  %v7983 = vpop.permute.xlu0 %7982
  %7984 = vset.pattern.permute.xlu0 0
  %7985 = vperm.xlu0 %7984, %v7954
  %v7986 = vpop.permute.xlu0 %7985
  %7987 = vset.pattern.permute.xlu0 0
  %7988 = vperm.xlu0 %7987, %v7955
  %v7989 = vpop.permute.xlu0 %7988
  %7990 = vset.pattern.permute.xlu0 0
  %7991 = vperm.xlu0 %7990, %v7956
  %v7992 = vpop.permute.xlu0 %7991
  %7993 = vset.pattern.permute.xlu0 0
  %7994 = vperm.xlu0 %7993, %v7957
  %v7995 = vpop.permute.xlu0 %7994
  %7996 = vset.pattern.permute.xlu0 0
  %7997 = vperm.xlu0 %7996, %v7958
  %v7998 = vpop.permute.xlu0 %7997
  %7999 = vset.pattern.permute.xlu0 0
  %8000 = vperm.xlu0 %7999, %v7959
  %v8001 = vpop.permute.xlu0 %8000
  %8002 = vset.pattern.permute.xlu0 0
  %8003 = vperm.xlu0 %8002, %v7960
  %v8004 = vpop.permute.xlu0 %8003
  %8005 = vset.pattern.permute.xlu0 0
  %8006 = vperm.xlu0 %8005, %v7961
  %v8007 = vpop.permute.xlu0 %8006
  %8008 = vset.pattern.permute.xlu0 0
  %8009 = vperm.xlu0 %8008, %v7962
  %v8010 = vpop.permute.xlu0 %8009
  %v8011 = vlaneseq
  %v8012 = vshrl.u32 %v8011, 7
  %v8013 = vsub.s32 %v53, %v8012
  %v8014 = vrot.slane %v7965, %v8013
  %v8015 = vlaneseq
  %v8016 = vshrl.u32 %v8015, 7
  %v8017 = vsub.s32 %v53, %v8016
  %v8018 = vrot.slane %v7968, %v8017
  %v8019 = vlaneseq
  %v8020 = vshrl.u32 %v8019, 7
  %v8021 = vsub.s32 %v53, %v8020
  %v8022 = vrot.slane %v7971, %v8021
  %v8023 = vlaneseq
  %v8024 = vshrl.u32 %v8023, 7
  %v8025 = vsub.s32 %v53, %v8024
  %v8026 = vrot.slane %v7974, %v8025
  %v8027 = vlaneseq
  %v8028 = vshrl.u32 %v8027, 7
  %v8029 = vsub.s32 %v53, %v8028
  %v8030 = vrot.slane %v7977, %v8029
  %v8031 = vlaneseq
  %v8032 = vshrl.u32 %v8031, 7
  %v8033 = vsub.s32 %v53, %v8032
  %v8034 = vrot.slane %v7980, %v8033
  %v8035 = vlaneseq
  %v8036 = vshrl.u32 %v8035, 7
  %v8037 = vsub.s32 %v53, %v8036
  %v8038 = vrot.slane %v7983, %v8037
  %v8039 = vlaneseq
  %v8040 = vshrl.u32 %v8039, 7
  %v8041 = vsub.s32 %v53, %v8040
  %v8042 = vrot.slane %v7986, %v8041
  %v8043 = vlaneseq
  %v8044 = vshrl.u32 %v8043, 7
  %v8045 = vsub.s32 %v53, %v8044
  %v8046 = vrot.slane %v7989, %v8045
  %v8047 = vlaneseq
  %v8048 = vshrl.u32 %v8047, 7
  %v8049 = vsub.s32 %v53, %v8048
  %v8050 = vrot.slane %v7992, %v8049
  %v8051 = vlaneseq
  %v8052 = vshrl.u32 %v8051, 7
  %v8053 = vsub.s32 %v53, %v8052
  %v8054 = vrot.slane %v7995, %v8053
  %v8055 = vlaneseq
  %v8056 = vshrl.u32 %v8055, 7
  %v8057 = vsub.s32 %v53, %v8056
  %v8058 = vrot.slane %v7998, %v8057
  %v8059 = vlaneseq
  %v8060 = vshrl.u32 %v8059, 7
  %v8061 = vsub.s32 %v53, %v8060
  %v8062 = vrot.slane %v8001, %v8061
  %v8063 = vlaneseq
  %v8064 = vshrl.u32 %v8063, 7
  %v8065 = vsub.s32 %v53, %v8064
  %v8066 = vrot.slane %v8004, %v8065
  %v8067 = vlaneseq
  %v8068 = vshrl.u32 %v8067, 7
  %v8069 = vsub.s32 %v53, %v8068
  %v8070 = vrot.slane %v8007, %v8069
  %v8071 = vlaneseq
  %v8072 = vshrl.u32 %v8071, 7
  %v8073 = vsub.s32 %v53, %v8072
  %v8074 = vrot.slane %v8010, %v8073
  %v8075 = vsel %vm2658, %v8018, %v8014
  %v8076 = vsel %vm2660, %v8022, %v8075
  %v8077 = vsel %vm2662, %v8026, %v8076
  %v8078 = vsel %vm2664, %v8030, %v8077
  %v8079 = vsel %vm2666, %v8034, %v8078
  %v8080 = vsel %vm2668, %v8038, %v8079
  %v8081 = vsel %vm2670, %v8042, %v8080
  %v8082 = vsel %vm2658, %v8050, %v8046
  %v8083 = vsel %vm2660, %v8054, %v8082
  %v8084 = vsel %vm2662, %v8058, %v8083
  %v8085 = vsel %vm2664, %v8062, %v8084
  %v8086 = vsel %vm2666, %v8066, %v8085
  %v8087 = vsel %vm2668, %v8070, %v8086
  %v8088 = vsel %vm2670, %v8074, %v8087
  %v8089 = vsel %vm348, %v8081, 2147483647
  %v8090 = vand.u32 %v8089, 65535
  %v8091 = vshra.s32 %v8089, 16
  %v8092 = vcvt.s32.f32 %v8090
  %v8093 = vcvt.s32.f32 %v8091
  %8094 = vmin.xlane.f32.xlu0 %v8093
  %v8095 = vpop.xlane.xlu0 %8094
  %vm8096 = vcmp.eq.f32.partialorder %v8093, %v8095
  %v8097 = vsel %vm8096, %v8092, inf
  %8098 = vmin.xlane.f32.xlu0 %v8097
  %v8099 = vpop.xlane.xlu0 %8098
  %v8100 = vcvt.f32.s32 %v8099
  %v8101 = vcvt.f32.s32 %v8095
  %v8102 = vshll.u32 %v8101, 16
  %v8103 = vadd.s32 %v8102, %v8100
  %v8104 = vsel %vm348, %v8088, 2147483647
  %v8105 = vand.u32 %v8104, 65535
  %v8106 = vshra.s32 %v8104, 16
  %v8107 = vcvt.s32.f32 %v8105
  %v8108 = vcvt.s32.f32 %v8106
  %8109 = vmin.xlane.f32.xlu0 %v8108
  %v8110 = vpop.xlane.xlu0 %8109
  %vm8111 = vcmp.eq.f32.partialorder %v8108, %v8110
  %v8112 = vsel %vm8111, %v8107, inf
  %8113 = vmin.xlane.f32.xlu0 %v8112
  %v8114 = vpop.xlane.xlu0 %8113
  %v8115 = vcvt.f32.s32 %v8114
  %v8116 = vcvt.f32.s32 %v8110
  %v8117 = vshll.u32 %v8116, 16
  %v8118 = vadd.s32 %v8117, %v8115
  %vm8119 = vcmp.lt.s32.totalorder %v8103, 7
  %v8120 = vsel %vm8119, %v8103, 7
  %vm8121 = vcmp.lt.s32.totalorder %v8118, 7
  %v8122 = vsel %vm8121, %v8118, 7
  %v8123 = vadd.f32 %v7845, %v5335
  %v8124 = vadd.f32 %v7848, %v5342
  %v8125 = vadd.f32 %v8123, %v5354
  %v8126 = vadd.f32 %v8124, %v5354
  %8129 = vset.pattern.permute.xlu0 0
  %8130 = vperm.xlu0 %8129, %v8125
  %v8131 = vpop.permute.xlu0 %8130
  %8132 = vset.pattern.permute.xlu0 0
  %8133 = vperm.xlu0 %8132, %v8126
  %v8134 = vpop.permute.xlu0 %8133
  %v8135 = vlaneseq
  %v8136 = vshrl.u32 %v8135, 7
  %v8137 = vsub.s32 %v53, %v8136
  %v8138 = vrot.slane %v8131, %v8137
  %v8139 = vlaneseq
  %v8140 = vshrl.u32 %v8139, 7
  %v8141 = vsub.s32 %v53, %v8140
  %v8142 = vrot.slane %v8134, %v8141
  %v8143 = vsel %vm2658, %v8142, %v8138
  %v8145 = vsel %vm5376, %v8143, -inf
  %8146 = vmax.xlane.f32.xlu0 %v8145
  %v8147 = vpop.xlane.xlu0 %8146
  %v8149 = vlaneseq
  %v8150 = vshrl.u32 %v8149, 7
  %v8151 = vsub.s32 0, %v8150
  %v8152 = vrot.slane %v8147, %v8151
  %v8153 = vlaneseq
  %v8154 = vshrl.u32 %v8153, 7
  %v8155 = vsub.s32 1, %v8154
  %v8156 = vrot.slane %v8147, %v8155
  %vm8159 = vcmp.eq.f32.partialorder %v8125, %v8152
  %vm8160 = vcmp.eq.f32.partialorder %v8126, %v8156
  %v8161 = vsel %vm8159, %v5736, 8
  %v8162 = vsel %vm8160, %v5736, 8
  %8163 = vset.pattern.permute.xlu0 0
  %8164 = vperm.xlu0 %8163, %v8161
  %v8165 = vpop.permute.xlu0 %8164
  %8166 = vset.pattern.permute.xlu0 0
  %8167 = vperm.xlu0 %8166, %v8162
  %v8168 = vpop.permute.xlu0 %8167
  %v8169 = vlaneseq
  %v8170 = vshrl.u32 %v8169, 7
  %v8171 = vsub.s32 %v53, %v8170
  %v8172 = vrot.slane %v8165, %v8171
  %v8173 = vlaneseq
  %v8174 = vshrl.u32 %v8173, 7
  %v8175 = vsub.s32 %v53, %v8174
  %v8176 = vrot.slane %v8168, %v8175
  %v8177 = vsel %vm2658, %v8176, %v8172
  %v8178 = vsel %vm5376, %v8177, 2147483647
  %v8179 = vand.u32 %v8178, 65535
  %v8180 = vshra.s32 %v8178, 16
  %v8181 = vcvt.s32.f32 %v8179
  %v8182 = vcvt.s32.f32 %v8180
  %8183 = vmin.xlane.f32.xlu0 %v8182
  %v8184 = vpop.xlane.xlu0 %8183
  %vm8185 = vcmp.eq.f32.partialorder %v8182, %v8184
  %v8186 = vsel %vm8185, %v8181, inf
  %8187 = vmin.xlane.f32.xlu0 %v8186
  %v8188 = vpop.xlane.xlu0 %8187
  %v8189 = vcvt.f32.s32 %v8188
  %v8190 = vcvt.f32.s32 %v8184
  %v8191 = vshll.u32 %v8190, 16
  %v8192 = vadd.s32 %v8191, %v8189
  %vm8193 = vcmp.lt.s32.totalorder %v8192, 7
  %v8194 = vsel %vm8193, %v8192, 7
  %vm8195 = vcmp.eq.s32.totalorder %v53, 7
  %v8196 = vcvt.s32.f32 %v8194
  %v8197 = vsel %vm8195, %v8196, 0.0
  %vm8198 = vcmp.eq.s32.totalorder %v53, %v8194
  %v8199 = vlaneseq
  %v8200 = vshrl.u32 %v8199, 7
  %v8201 = vsub.s32 %v53, %v8200
  %v8202 = vrot.slane %v8120, %v8201
  %v8203 = vlaneseq
  %v8204 = vshrl.u32 %v8203, 7
  %v8205 = vsub.s32 %v53, %v8204
  %v8206 = vrot.slane %v8122, %v8205
  %v8207 = vsel %vm2658, %v8206, %v8202
  %v8208 = vsel %vm8198, %v8207, 0
  %v8209 = vsel %vm5376, %v8208, 0
  %v8210 = vand.u32 %v8209, 65535
  %v8211 = vshrl.u32 %v8209, 16
  %v8212 = vcvt.s32.f32 %v8210
  %v8213 = vcvt.s32.f32 %v8211
  %8214 = vadd.xlane.f32.xlu0 %v8212
  %v8215 = vpop.xlane.xlu0 %8214
  %8216 = vadd.xlane.f32.xlu0 %v8213
  %v8217 = vpop.xlane.xlu0 %8216
  %v8218 = vcvt.f32.s32 %v8215
  %v8219 = vcvt.f32.s32 %v8217
  %v8220 = vshll.u32 %v8219, 16
  %v8221 = vadd.s32 %v8220, %v8218
  %vm8222 = vcmp.eq.s32.totalorder %v53, 6
  %v8223 = vcvt.s32.f32 %v8221
  %v8224 = vsel %vm8222, %v8223, %v8197
  %vm8225 = vcmp.eq.s32.totalorder %v53, %v8221
  %v8226 = vlaneseq
  %v8227 = vshrl.u32 %v8226, 7
  %v8228 = vsub.s32 %v53, %v8227
  %v8229 = vrot.slane %v7678, %v8228
  %v8230 = vlaneseq
  %v8231 = vshrl.u32 %v8230, 7
  %v8232 = vsub.s32 %v53, %v8231
  %v8233 = vrot.slane %v7680, %v8232
  %v8234 = vsel %vm2658, %v8233, %v8229
  %v8235 = vsel %vm8225, %v8234, 0
  %v8236 = vsel %vm5376, %v8235, 0
  %v8237 = vand.u32 %v8236, 65535
  %v8238 = vshrl.u32 %v8236, 16
  %v8239 = vcvt.s32.f32 %v8237
  %v8240 = vcvt.s32.f32 %v8238
  %8241 = vadd.xlane.f32.xlu0 %v8239
  %v8242 = vpop.xlane.xlu0 %8241
  %8243 = vadd.xlane.f32.xlu0 %v8240
  %v8244 = vpop.xlane.xlu0 %8243
  %v8245 = vcvt.f32.s32 %v8242
  %v8246 = vcvt.f32.s32 %v8244
  %v8247 = vshll.u32 %v8246, 16
  %v8248 = vadd.s32 %v8247, %v8245
  %vm8249 = vcmp.eq.s32.totalorder %v53, 5
  %v8250 = vcvt.s32.f32 %v8248
  %v8251 = vsel %vm8249, %v8250, %v8224
  %vm8252 = vcmp.eq.s32.totalorder %v53, %v8248
  %v8253 = vlaneseq
  %v8254 = vshrl.u32 %v8253, 7
  %v8255 = vsub.s32 %v53, %v8254
  %v8256 = vrot.slane %v7236, %v8255
  %v8257 = vlaneseq
  %v8258 = vshrl.u32 %v8257, 7
  %v8259 = vsub.s32 %v53, %v8258
  %v8260 = vrot.slane %v7238, %v8259
  %v8261 = vsel %vm2658, %v8260, %v8256
  %v8262 = vsel %vm8252, %v8261, 0
  %v8263 = vsel %vm5376, %v8262, 0
  %v8264 = vand.u32 %v8263, 65535
  %v8265 = vshrl.u32 %v8263, 16
  %v8266 = vcvt.s32.f32 %v8264
  %v8267 = vcvt.s32.f32 %v8265
  %8268 = vadd.xlane.f32.xlu0 %v8266
  %v8269 = vpop.xlane.xlu0 %8268
  %8270 = vadd.xlane.f32.xlu0 %v8267
  %v8271 = vpop.xlane.xlu0 %8270
  %v8272 = vcvt.f32.s32 %v8269
  %v8273 = vcvt.f32.s32 %v8271
  %v8274 = vshll.u32 %v8273, 16
  %v8275 = vadd.s32 %v8274, %v8272
  %vm8276 = vcmp.eq.s32.totalorder %v53, 4
  %v8277 = vcvt.s32.f32 %v8275
  %v8278 = vsel %vm8276, %v8277, %v8251
  %vm8279 = vcmp.eq.s32.totalorder %v53, %v8275
  %v8280 = vlaneseq
  %v8281 = vshrl.u32 %v8280, 7
  %v8282 = vsub.s32 %v53, %v8281
  %v8283 = vrot.slane %v6794, %v8282
  %v8284 = vlaneseq
  %v8285 = vshrl.u32 %v8284, 7
  %v8286 = vsub.s32 %v53, %v8285
  %v8287 = vrot.slane %v6796, %v8286
  %v8288 = vsel %vm2658, %v8287, %v8283
  %v8289 = vsel %vm8279, %v8288, 0
  %v8290 = vsel %vm5376, %v8289, 0
  %v8291 = vand.u32 %v8290, 65535
  %v8292 = vshrl.u32 %v8290, 16
  %v8293 = vcvt.s32.f32 %v8291
  %v8294 = vcvt.s32.f32 %v8292
  %8295 = vadd.xlane.f32.xlu0 %v8293
  %v8296 = vpop.xlane.xlu0 %8295
  %8297 = vadd.xlane.f32.xlu0 %v8294
  %v8298 = vpop.xlane.xlu0 %8297
  %v8299 = vcvt.f32.s32 %v8296
  %v8300 = vcvt.f32.s32 %v8298
  %v8301 = vshll.u32 %v8300, 16
  %v8302 = vadd.s32 %v8301, %v8299
  %vm8303 = vcmp.eq.s32.totalorder %v53, 3
  %v8304 = vcvt.s32.f32 %v8302
  %v8305 = vsel %vm8303, %v8304, %v8278
  %vm8306 = vcmp.eq.s32.totalorder %v53, %v8302
  %v8307 = vlaneseq
  %v8308 = vshrl.u32 %v8307, 7
  %v8309 = vsub.s32 %v53, %v8308
  %v8310 = vrot.slane %v6352, %v8309
  %v8311 = vlaneseq
  %v8312 = vshrl.u32 %v8311, 7
  %v8313 = vsub.s32 %v53, %v8312
  %v8314 = vrot.slane %v6354, %v8313
  %v8315 = vsel %vm2658, %v8314, %v8310
  %v8316 = vsel %vm8306, %v8315, 0
  %v8317 = vsel %vm5376, %v8316, 0
  %v8318 = vand.u32 %v8317, 65535
  %v8319 = vshrl.u32 %v8317, 16
  %v8320 = vcvt.s32.f32 %v8318
  %v8321 = vcvt.s32.f32 %v8319
  %8322 = vadd.xlane.f32.xlu0 %v8320
  %v8323 = vpop.xlane.xlu0 %8322
  %8324 = vadd.xlane.f32.xlu0 %v8321
  %v8325 = vpop.xlane.xlu0 %8324
  %v8326 = vcvt.f32.s32 %v8323
  %v8327 = vcvt.f32.s32 %v8325
  %v8328 = vshll.u32 %v8327, 16
  %v8329 = vadd.s32 %v8328, %v8326
  %vm8330 = vcmp.eq.s32.totalorder %v53, 2
  %v8331 = vcvt.s32.f32 %v8329
  %v8332 = vsel %vm8330, %v8331, %v8305
  %vm8333 = vcmp.eq.s32.totalorder %v53, %v8329
  %v8334 = vlaneseq
  %v8335 = vshrl.u32 %v8334, 7
  %v8336 = vsub.s32 %v53, %v8335
  %v8337 = vrot.slane %v5910, %v8336
  %v8338 = vlaneseq
  %v8339 = vshrl.u32 %v8338, 7
  %v8340 = vsub.s32 %v53, %v8339
  %v8341 = vrot.slane %v5912, %v8340
  %v8342 = vsel %vm2658, %v8341, %v8337
  %v8343 = vsel %vm8333, %v8342, 0
  %v8344 = vsel %vm5376, %v8343, 0
  %v8345 = vand.u32 %v8344, 65535
  %v8346 = vshrl.u32 %v8344, 16
  %v8347 = vcvt.s32.f32 %v8345
  %v8348 = vcvt.s32.f32 %v8346
  %8349 = vadd.xlane.f32.xlu0 %v8347
  %v8350 = vpop.xlane.xlu0 %8349
  %8351 = vadd.xlane.f32.xlu0 %v8348
  %v8352 = vpop.xlane.xlu0 %8351
  %v8353 = vcvt.f32.s32 %v8350
  %v8354 = vcvt.f32.s32 %v8352
  %v8355 = vshll.u32 %v8354, 16
  %v8356 = vadd.s32 %v8355, %v8353
  %vm8357 = vcmp.eq.s32.totalorder %v53, 1
  %v8358 = vcvt.s32.f32 %v8356
  %v8359 = vsel %vm8357, %v8358, %v8332
  %vm8360 = vcmp.eq.s32.totalorder %v53, %v8356
  %v8361 = vlaneseq
  %v8362 = vshrl.u32 %v8361, 7
  %v8363 = vsub.s32 %v53, %v8362
  %v8364 = vrot.slane %v5465, %v8363
  %v8365 = vlaneseq
  %v8366 = vshrl.u32 %v8365, 7
  %v8367 = vsub.s32 %v53, %v8366
  %v8368 = vrot.slane %v5467, %v8367
  %v8369 = vsel %vm2658, %v8368, %v8364
  %v8370 = vsel %vm8360, %v8369, 0
  %v8371 = vsel %vm5376, %v8370, 0
  %v8372 = vand.u32 %v8371, 65535
  %v8373 = vshrl.u32 %v8371, 16
  %v8374 = vcvt.s32.f32 %v8372
  %v8375 = vcvt.s32.f32 %v8373
  %8376 = vadd.xlane.f32.xlu0 %v8374
  %v8377 = vpop.xlane.xlu0 %8376
  %8378 = vadd.xlane.f32.xlu0 %v8375
  %v8379 = vpop.xlane.xlu0 %8378
  %v8380 = vcvt.f32.s32 %v8377
  %v8381 = vcvt.f32.s32 %v8379
  %v8382 = vshll.u32 %v8381, 16
  %v8383 = vadd.s32 %v8382, %v8380
  %vm8384 = vcmp.eq.s32.totalorder %v53, 0
  %v8385 = vcvt.s32.f32 %v8383
  %v8386 = vsel %vm8384, %v8385, %v8359
  %v8387 = vlaneseq
  %v8388 = vshrl.u32 %v8387, 7
  %vm8389 = vcmp.eq.s32.totalorder %v8388, 0
  %vm8390 = vmand %vm8389, %vm8384
  %8392 = vset.pattern.permute.xlu0 0
  %8393 = vperm.xlu0 %8392, %v5429
  %v8394 = vpop.permute.xlu0 %8393
  %v8396 = vsel %vm8390, %v8394, 0.0
  %vm8397 = vcmp.eq.s32.totalorder %v8388, 1
  %v8398 = vlaneseq
  %v8399 = vshrl.u32 %v8398, 7
  %v8400 = vsub.s32 0, %v8399
  %v8401 = vrot.slane %v8386, %v8400
  %v8402 = vsel %vm8397, %v8401, %v8396
  %vm8403 = vcmp.eq.s32.totalorder %v8388, 2
  %v8404 = vlaneseq
  %v8405 = vshrl.u32 %v8404, 7
  %v8406 = vsub.s32 1, %v8405
  %v8407 = vrot.slane %v8386, %v8406
  %v8408 = vsel %vm8403, %v8407, %v8402
  %8409 = vst [vmem:[%s5] sm:$0xff] %v8408
  // Predicated region
  $region22: #{kobert_crf_forward.1} parent=0 // pred_check
    _
  $region23: #{kobert_crf_forward.1} parent=0 // pred_check_branch
    %8411 = sbr.rel (0) target = $region25
  $region24: #{kobert_crf_forward.1} parent=0 // pred_region
    _
  $region25: #{kobert_crf_forward.1} parent=0 // pred_fallthru
    _
  // Predicated region
  $region26: #{kobert_crf_forward.1} parent=0 // pred_check
    _
  $region27: #{kobert_crf_forward.1} parent=0 // pred_check_branch
    %8413 = sbr.rel (0) target = $region29
  $region28: #{kobert_crf_forward.1} parent=0 // pred_region
    _
  $region29: #{kobert_crf_forward.1} parent=0 // pred_fallthru
    _

</llo_original>
